<compile_context>
chip_gen: v5e
topology: v5e:2x2
jax: 0.10.0
libtpu: 0.0.40
codegen_flags: <defaults>
</compile_context>

<pallas_src>
import jax
import jax.numpy as jnp
from jax import lax
from jax.experimental import pallas as pl
from jax.experimental.pallas import tpu as pltpu

K = 5                                  # kernel_size of every conv layer
PAD = 2                                # padding=2 -> "same" spatial size
CHANNELS = [1, 3, 5, 10, 1]            # conv1..conv4 in/out channels
CPAD = [8, 8, 8, 16, 8]                # channel counts rounded up to a multiple of 8
CMAX = max(CPAD)                       # 16
CK = [K * K * c for c in CPAD[:-1]]    # per-layer im2col contraction depth: 200,200,200,400
CK_MAX = max(CK)                       # 400


def _round_up(x, m):
    return ((x + m - 1) // m) * m


def make_cnn_kernel(H, W, NB):
    HP, WP = H + 2 * PAD, W + 2 * PAD
    L = HP * WP                               # flattened padded plane (20*20 = 400)
    OFF = PAD * WP + PAD                      # flat position of output pixel (0,0) after re-pad
    SW = _round_up((K - 1) * WP + (K - 1) + L, 128)   # per-image slot width (512 for 16x16)
    NL = NB * SW                              # lane width of one grid step
    taps = [kh * WP + kw for kh in range(K) for kw in range(K)]   # lane shift per tap

    def kernel(x_ref, mask_ref, w1, b1, w2, b2, w3, b3, w4, b4,
               out_ref, act_ref, col_ref):
        # Fresh activation scratch every step (halo correctness + padded-channel zeros) ->
        # each grid step is independent, so the batch grid axis can be "parallel".
        act_ref[...] = jnp.zeros(act_ref.shape, act_ref.dtype)
        # Drop the NB padded-flat input planes into channel row 0 (one lane-dense store).
        act_ref[0:1, 0:NL] = x_ref[0]

        mask = mask_ref[...]                  # (1, NL): 1.0 on valid output pixels, else 0.0

        def conv(w_ref, b_ref, li):
            cip, ck = CPAD[li], CK[li]
            # im2col: one lane-shifted copy per tap -> (ck, NL) RHS in the col scratch.
            for t, d in enumerate(taps):
                col_ref[t * cip:(t + 1) * cip, :] = act_ref[0:cip, d:d + NL]
            # Single fused MXU matmul per layer: (Cout_pad, ck) @ (ck, NL).
            acc = jnp.dot(w_ref[...], col_ref[0:ck, :],
                          preferred_element_type=jnp.float32)
            return jnp.maximum(acc + b_ref[...], 0.0)          # bias + ReLU

        for li, (w_ref, b_ref) in enumerate([(w1, b1), (w2, b2), (w3, b3)]):
            # Mask kills row-wrap garbage; the junk/masked columns are zeros and the shifted
            # full-width store drops them exactly onto the halo lanes (including the next
            # image slot's leading halo), so one store re-pads the plane for the next layer.
            y = conv(w_ref, b_ref, li) * mask
            cop = CPAD[li + 1]
            act_ref[0:cop, OFF:OFF + NL] = y

        # TODO(synk): nn.Dropout(p=0.2) after conv3 is identity at inference; training-mode
        # dropout (pltpu.prng_seed / prng_random_bits masking) is not implemented.

        # conv4: no writeback -> no mask needed; store all 8 padded channel rows lane-dense
        # (unmasked, multi-sublane vst); the wrapper slices real channel 0 / valid lanes.
        out_ref[0] = conv(w4, b4, 3)

    return kernel, SW


def cnn_forward(x_nchw, params, images_per_step=None):
    """Pallas forward. x_nchw: (N, 1, H, W) f32. params: list of 4 (w_oihw, b) tuples."""
    x = x_nchw.astype(jnp.float32)
    N, _, H, W = x.shape
    HP, WP = H + 2 * PAD, W + 2 * PAD
    L = HP * WP

    # Images per grid step: pack along lanes for big batches, but keep >=2 grid steps when
    # possible so both v7x TensorCores get work (N=2 -> NB=1, grid=(2,)).
    NB = images_per_step if images_per_step is not None else max(1, min(8, N // 2))
    G = -(-N // NB)                     # grid steps
    NPAD = G * NB

    kernel, SW = make_cnn_kernel(H, W, NB)
    NL = NB * SW

    # ---- layout glue (no FLOPs): padded-flat, lane-dense input, one 512-lane slot/image ----
    xp = jnp.pad(x[:, 0], ((0, NPAD - N), (PAD, PAD), (PAD, PAD))).reshape(NPAD, L)
    xp = jnp.pad(xp, ((0, 0), (0, SW - L)))                     # (NPAD, SW)
    x_in = xp.reshape(G, 1, NL)

    # valid-output mask in output-plane coordinates, replicated per image slot
    p = jnp.arange(SW)
    m = (((p // WP) < H) & ((p % WP) < W)).astype(jnp.float32)
    mask = jnp.tile(m, (NB,)).reshape(1, NL)

    # weights: (Cout, Cin, K, K) -> lane-dense im2col slabs (Cout_pad, K*K*Cin_pad);
    # bias -> (Cout_pad, 1).  Padded rows/cols are exact zeros.
    w_in, b_in = [], []
    for li, (w, b) in enumerate(params):
        cout, cin = CHANNELS[li + 1], CHANNELS[li]
        cop, cip = CPAD[li + 1], CPAD[li]
        wt = jnp.transpose(w, (0, 2, 3, 1))                     # (cout, K, K, cin)
        wt = jnp.pad(wt, ((0, cop - cout), (0, 0), (0, 0), (0, cip - cin)))
        w_in.append(wt.reshape(cop, K * K * cip).astype(jnp.float32))
        b_in.append(jnp.pad(b, (0, cop - cout)).reshape(cop, 1).astype(jnp.float32))

    in_specs = [pl.BlockSpec((1, 1, NL), lambda g: (g, 0, 0)),
                pl.BlockSpec(mask.shape, lambda g: (0, 0))]
    ins = [x_in, mask]
    for wt, bt in zip(w_in, b_in):
        in_specs += [pl.BlockSpec(wt.shape, lambda g: (0, 0)),
                     pl.BlockSpec(bt.shape, lambda g: (0, 0))]
        ins += [wt, bt]

    out = pl.pallas_call(
        kernel,
        out_shape=jax.ShapeDtypeStruct((G, CPAD[4], NL), jnp.float32),
        grid_spec=pltpu.PrefetchScalarGridSpec(
            num_scalar_prefetch=0,
            grid=(G,),
            in_specs=in_specs,
            out_specs=pl.BlockSpec((1, CPAD[4], NL), lambda g: (g, 0, 0)),
            scratch_shapes=[pltpu.VMEM((CMAX, NL + 128), jnp.float32),   # activation plane
                            pltpu.VMEM((CK_MAX, NL), jnp.float32)],      # im2col RHS
        ),
        compiler_params=pltpu.CompilerParams(dimension_semantics=("parallel",)),
    )(*ins)

    # ---- layout glue: lane-dense slabs -> NCHW valid region ----
    out = out.reshape(G, CPAD[4], NB, SW)
    out = jnp.transpose(out, (0, 2, 1, 3)).reshape(NPAD, CPAD[4], SW)
    out = out[:N, 0, :L].reshape(N, HP, WP)[:, :H, :W]
    return out[:, None, :, :]


def cnn_reference(x_nchw, params):
    """Pure-JAX reference of the PyTorch forward (dropout is identity in eval)."""
    y = x_nchw
    for (w, b) in params:
        y = lax.conv_general_dilated(
            y, w, window_strides=(1, 1), padding=((PAD, PAD), (PAD, PAD)),
            dimension_numbers=("NCHW", "OIHW", "NCHW"),
            precision=lax.Precision.HIGHEST)
        y = jnp.maximum(y + b[None, :, None, None], 0.0)
    return y


def init_params(key):
    """Deterministic PyTorch-style (uniform +/- 1/sqrt(fan_in)) init for conv1..conv4."""
    params = []
    for i in range(4):
        cin, cout = CHANNELS[i], CHANNELS[i + 1]
        key, kw, kb = jax.random.split(key, 3)
        bound = 1.0 / jnp.sqrt(cin * K * K)
        w = jax.random.uniform(kw, (cout, cin, K, K), jnp.float32, -bound, bound)
        b = jax.random.uniform(kb, (cout,), jnp.float32, -bound, bound)
        params.append((w, b))
    return params


if __name__ == "__main__":
    key = jax.random.PRNGKey(0)
    key, kx = jax.random.split(key)
    params = init_params(key)

    N, H, W = 2, 16, 16
    x = jax.random.normal(kx, (N, 1, H, W), jnp.float32)

    out = jax.block_until_ready(cnn_forward(x, params))
    ref = jax.block_until_ready(cnn_reference(x, params))

    assert out.shape == (N, 1, H, W), out.shape
    max_err = float(jnp.max(jnp.abs(out - ref)))
    assert jnp.allclose(out, ref, rtol=5e-3, atol=5e-3), f"max abs err = {max_err}"
    print("KERNEL_OK")
</pallas_src>

<mosaic_0001>
module attributes {stable_mosaic.version = 11 : i64} {
  func.func @kernel(%arg0: i32, %arg1: memref<1x1x512xf32, #tpu.memory_space<vmem>>, %arg2: memref<1x512xf32, #tpu.memory_space<vmem>>, %arg3: memref<8x200xf32, #tpu.memory_space<vmem>>, %arg4: memref<8x1xf32, #tpu.memory_space<vmem>>, %arg5: memref<8x200xf32, #tpu.memory_space<vmem>>, %arg6: memref<8x1xf32, #tpu.memory_space<vmem>>, %arg7: memref<16x200xf32, #tpu.memory_space<vmem>>, %arg8: memref<16x1xf32, #tpu.memory_space<vmem>>, %arg9: memref<8x400xf32, #tpu.memory_space<vmem>>, %arg10: memref<8x1xf32, #tpu.memory_space<vmem>>, %arg11: memref<1x8x512xf32, #tpu.memory_space<vmem>>, %arg12: memref<16x640xf32, #tpu.memory_space<vmem>>, %arg13: memref<400x512xf32, #tpu.memory_space<vmem>>) attributes {dimension_semantics = [#tpu.dimension_semantics<parallel>], iteration_bounds = array<i64: 2>, scalar_prefetch = 0 : i64, scratch_operands = 2 : i64, tpu.core_type = #tpu.core_type<tc>, window_params = [{transform_indices = @transform_0, window_bounds = array<i64: 1, 1, 512>}, {pipeline_mode = #tpu.pipeline_mode<synchronous>, transform_indices = @transform_1, window_bounds = array<i64: 1, 512>}, {pipeline_mode = #tpu.pipeline_mode<synchronous>, transform_indices = @transform_2, window_bounds = array<i64: 8, 200>}, {pipeline_mode = #tpu.pipeline_mode<synchronous>, transform_indices = @transform_3, window_bounds = array<i64: 8, 1>}, {pipeline_mode = #tpu.pipeline_mode<synchronous>, transform_indices = @transform_4, window_bounds = array<i64: 8, 200>}, {pipeline_mode = #tpu.pipeline_mode<synchronous>, transform_indices = @transform_5, window_bounds = array<i64: 8, 1>}, {pipeline_mode = #tpu.pipeline_mode<synchronous>, transform_indices = @transform_6, window_bounds = array<i64: 16, 200>}, {pipeline_mode = #tpu.pipeline_mode<synchronous>, transform_indices = @transform_7, window_bounds = array<i64: 16, 1>}, {pipeline_mode = #tpu.pipeline_mode<synchronous>, transform_indices = @transform_8, window_bounds = array<i64: 8, 400>}, {pipeline_mode = #tpu.pipeline_mode<synchronous>, transform_indices = @transform_9, window_bounds = array<i64: 8, 1>}, {transform_indices = @transform_10, window_bounds = array<i64: 1, 8, 512>}]} {
    %cst = arith.constant 0.000000e+00 : f32
    %0 = vector.broadcast %cst : f32 to vector<16x640xf32>
    %c0 = arith.constant 0 : index
    %c0_0 = arith.constant 0 : index
    %1 = vector.load %arg12[%c0, %c0_0] : memref<16x640xf32, #tpu.memory_space<vmem>>, vector<16x640xf32>
    tpu.vector_store %arg12[%c0, %c0_0], %0 {strides = array<i32>} : memref<16x640xf32, #tpu.memory_space<vmem>>, vector<16x640xf32>,
    %c0_1 = arith.constant 0 : index
    %c0_2 = arith.constant 0 : index
    %c0_3 = arith.constant 0 : index
    %2 = vector.load %arg1[%c0_1, %c0_2, %c0_3] : memref<1x1x512xf32, #tpu.memory_space<vmem>>, vector<1x1x512xf32>
    %3 = vector.shape_cast %2 : vector<1x1x512xf32> to vector<1x512xf32>
    %c0_4 = arith.constant 0 : index
    %c0_5 = arith.constant 0 : index
    %4 = vector.load %arg12[%c0_4, %c0_5] : memref<16x640xf32, #tpu.memory_space<vmem>>, vector<1x512xf32>
    tpu.vector_store %arg12[%c0_4, %c0_5], %3 {strides = array<i32>} : memref<16x640xf32, #tpu.memory_space<vmem>>, vector<1x512xf32>,
    %c0_6 = arith.constant 0 : index
    %c0_7 = arith.constant 0 : index
    %5 = vector.load %arg2[%c0_6, %c0_7] : memref<1x512xf32, #tpu.memory_space<vmem>>, vector<1x512xf32>
    %c0_8 = arith.constant 0 : index
    %c0_9 = arith.constant 0 : index
    %6 = vector.load %arg12[%c0_8, %c0_9] : memref<16x640xf32, #tpu.memory_space<vmem>>, vector<8x512xf32>
    %c0_10 = arith.constant 0 : index
    %c0_11 = arith.constant 0 : index
    %7 = vector.load %arg13[%c0_10, %c0_11] : memref<400x512xf32, #tpu.memory_space<vmem>>, vector<8x512xf32>
    tpu.vector_store %arg13[%c0_10, %c0_11], %6 {strides = array<i32>} : memref<400x512xf32, #tpu.memory_space<vmem>>, vector<8x512xf32>,
    %c0_12 = arith.constant 0 : index
    %c1 = arith.constant 1 : index
    %8 = vector.load %arg12[%c0_12, %c1] : memref<16x640xf32, #tpu.memory_space<vmem>>, vector<8x512xf32>
    %c8 = arith.constant 8 : index
    %c0_13 = arith.constant 0 : index
    %9 = vector.load %arg13[%c8, %c0_13] : memref<400x512xf32, #tpu.memory_space<vmem>>, vector<8x512xf32>
    tpu.vector_store %arg13[%c8, %c0_13], %8 {strides = array<i32>} : memref<400x512xf32, #tpu.memory_space<vmem>>, vector<8x512xf32>,
    %c0_14 = arith.constant 0 : index
    %c2 = arith.constant 2 : index
    %10 = vector.load %arg12[%c0_14, %c2] : memref<16x640xf32, #tpu.memory_space<vmem>>, vector<8x512xf32>
    %c16 = arith.constant 16 : index
    %c0_15 = arith.constant 0 : index
    %11 = vector.load %arg13[%c16, %c0_15] : memref<400x512xf32, #tpu.memory_space<vmem>>, vector<8x512xf32>
    tpu.vector_store %arg13[%c16, %c0_15], %10 {strides = array<i32>} : memref<400x512xf32, #tpu.memory_space<vmem>>, vector<8x512xf32>,
    %c0_16 = arith.constant 0 : index
    %c3 = arith.constant 3 : index
    %12 = vector.load %arg12[%c0_16, %c3] : memref<16x640xf32, #tpu.memory_space<vmem>>, vector<8x512xf32>
    %c24 = arith.constant 24 : index
    %c0_17 = arith.constant 0 : index
    %13 = vector.load %arg13[%c24, %c0_17] : memref<400x512xf32, #tpu.memory_space<vmem>>, vector<8x512xf32>
    tpu.vector_store %arg13[%c24, %c0_17], %12 {strides = array<i32>} : memref<400x512xf32, #tpu.memory_space<vmem>>, vector<8x512xf32>,
    %c0_18 = arith.constant 0 : index
    %c4 = arith.constant 4 : index
    %14 = vector.load %arg12[%c0_18, %c4] : memref<16x640xf32, #tpu.memory_space<vmem>>, vector<8x512xf32>
    %c32 = arith.constant 32 : index
    %c0_19 = arith.constant 0 : index
    %15 = vector.load %arg13[%c32, %c0_19] : memref<400x512xf32, #tpu.memory_space<vmem>>, vector<8x512xf32>
    tpu.vector_store %arg13[%c32, %c0_19], %14 {strides = array<i32>} : memref<400x512xf32, #tpu.memory_space<vmem>>, vector<8x512xf32>,
    %c0_20 = arith.constant 0 : index
    %c20 = arith.constant 20 : index
    %16 = vector.load %arg12[%c0_20, %c20] : memref<16x640xf32, #tpu.memory_space<vmem>>, vector<8x512xf32>
    %c40 = arith.constant 40 : index
    %c0_21 = arith.constant 0 : index
    %17 = vector.load %arg13[%c40, %c0_21] : memref<400x512xf32, #tpu.memory_space<vmem>>, vector<8x512xf32>
    tpu.vector_store %arg13[%c40, %c0_21], %16 {strides = array<i32>} : memref<400x512xf32, #tpu.memory_space<vmem>>, vector<8x512xf32>,
    %c0_22 = arith.constant 0 : index
    %c21 = arith.constant 21 : index
    %18 = vector.load %arg12[%c0_22, %c21] : memref<16x640xf32, #tpu.memory_space<vmem>>, vector<8x512xf32>
    %c48 = arith.constant 48 : index
    %c0_23 = arith.constant 0 : index
    %19 = vector.load %arg13[%c48, %c0_23] : memref<400x512xf32, #tpu.memory_space<vmem>>, vector<8x512xf32>
    tpu.vector_store %arg13[%c48, %c0_23], %18 {strides = array<i32>} : memref<400x512xf32, #tpu.memory_space<vmem>>, vector<8x512xf32>,
    %c0_24 = arith.constant 0 : index
    %c22 = arith.constant 22 : index
    %20 = vector.load %arg12[%c0_24, %c22] : memref<16x640xf32, #tpu.memory_space<vmem>>, vector<8x512xf32>
    %c56 = arith.constant 56 : index
    %c0_25 = arith.constant 0 : index
    %21 = vector.load %arg13[%c56, %c0_25] : memref<400x512xf32, #tpu.memory_space<vmem>>, vector<8x512xf32>
    tpu.vector_store %arg13[%c56, %c0_25], %20 {strides = array<i32>} : memref<400x512xf32, #tpu.memory_space<vmem>>, vector<8x512xf32>,
    %c0_26 = arith.constant 0 : index
    %c23 = arith.constant 23 : index
    %22 = vector.load %arg12[%c0_26, %c23] : memref<16x640xf32, #tpu.memory_space<vmem>>, vector<8x512xf32>
    %c64 = arith.constant 64 : index
    %c0_27 = arith.constant 0 : index
    %23 = vector.load %arg13[%c64, %c0_27] : memref<400x512xf32, #tpu.memory_space<vmem>>, vector<8x512xf32>
    tpu.vector_store %arg13[%c64, %c0_27], %22 {strides = array<i32>} : memref<400x512xf32, #tpu.memory_space<vmem>>, vector<8x512xf32>,
    %c0_28 = arith.constant 0 : index
    %c24_29 = arith.constant 24 : index
    %24 = vector.load %arg12[%c0_28, %c24_29] : memref<16x640xf32, #tpu.memory_space<vmem>>, vector<8x512xf32>
    %c72 = arith.constant 72 : index
    %c0_30 = arith.constant 0 : index
    %25 = vector.load %arg13[%c72, %c0_30] : memref<400x512xf32, #tpu.memory_space<vmem>>, vector<8x512xf32>
    tpu.vector_store %arg13[%c72, %c0_30], %24 {strides = array<i32>} : memref<400x512xf32, #tpu.memory_space<vmem>>, vector<8x512xf32>,
    %c0_31 = arith.constant 0 : index
    %c40_32 = arith.constant 40 : index
    %26 = vector.load %arg12[%c0_31, %c40_32] : memref<16x640xf32, #tpu.memory_space<vmem>>, vector<8x512xf32>
    %c80 = arith.constant 80 : index
    %c0_33 = arith.constant 0 : index
    %27 = vector.load %arg13[%c80, %c0_33] : memref<400x512xf32, #tpu.memory_space<vmem>>, vector<8x512xf32>
    tpu.vector_store %arg13[%c80, %c0_33], %26 {strides = array<i32>} : memref<400x512xf32, #tpu.memory_space<vmem>>, vector<8x512xf32>,
    %c0_34 = arith.constant 0 : index
    %c41 = arith.constant 41 : index
    %28 = vector.load %arg12[%c0_34, %c41] : memref<16x640xf32, #tpu.memory_space<vmem>>, vector<8x512xf32>
    %c88 = arith.constant 88 : index
    %c0_35 = arith.constant 0 : index
    %29 = vector.load %arg13[%c88, %c0_35] : memref<400x512xf32, #tpu.memory_space<vmem>>, vector<8x512xf32>
    tpu.vector_store %arg13[%c88, %c0_35], %28 {strides = array<i32>} : memref<400x512xf32, #tpu.memory_space<vmem>>, vector<8x512xf32>,
    %c0_36 = arith.constant 0 : index
    %c42 = arith.constant 42 : index
    %30 = vector.load %arg12[%c0_36, %c42] : memref<16x640xf32, #tpu.memory_space<vmem>>, vector<8x512xf32>
    %c96 = arith.constant 96 : index
    %c0_37 = arith.constant 0 : index
    %31 = vector.load %arg13[%c96, %c0_37] : memref<400x512xf32, #tpu.memory_space<vmem>>, vector<8x512xf32>
    tpu.vector_store %arg13[%c96, %c0_37], %30 {strides = array<i32>} : memref<400x512xf32, #tpu.memory_space<vmem>>, vector<8x512xf32>,
    %c0_38 = arith.constant 0 : index
    %c43 = arith.constant 43 : index
    %32 = vector.load %arg12[%c0_38, %c43] : memref<16x640xf32, #tpu.memory_space<vmem>>, vector<8x512xf32>
    %c104 = arith.constant 104 : index
    %c0_39 = arith.constant 0 : index
    %33 = vector.load %arg13[%c104, %c0_39] : memref<400x512xf32, #tpu.memory_space<vmem>>, vector<8x512xf32>
    tpu.vector_store %arg13[%c104, %c0_39], %32 {strides = array<i32>} : memref<400x512xf32, #tpu.memory_space<vmem>>, vector<8x512xf32>,
    %c0_40 = arith.constant 0 : index
    %c44 = arith.constant 44 : index
    %34 = vector.load %arg12[%c0_40, %c44] : memref<16x640xf32, #tpu.memory_space<vmem>>, vector<8x512xf32>
    %c112 = arith.constant 112 : index
    %c0_41 = arith.constant 0 : index
    %35 = vector.load %arg13[%c112, %c0_41] : memref<400x512xf32, #tpu.memory_space<vmem>>, vector<8x512xf32>
    tpu.vector_store %arg13[%c112, %c0_41], %34 {strides = array<i32>} : memref<400x512xf32, #tpu.memory_space<vmem>>, vector<8x512xf32>,
    %c0_42 = arith.constant 0 : index
    %c60 = arith.constant 60 : index
    %36 = vector.load %arg12[%c0_42, %c60] : memref<16x640xf32, #tpu.memory_space<vmem>>, vector<8x512xf32>
    %c120 = arith.constant 120 : index
    %c0_43 = arith.constant 0 : index
    %37 = vector.load %arg13[%c120, %c0_43] : memref<400x512xf32, #tpu.memory_space<vmem>>, vector<8x512xf32>
    tpu.vector_store %arg13[%c120, %c0_43], %36 {strides = array<i32>} : memref<400x512xf32, #tpu.memory_space<vmem>>, vector<8x512xf32>,
    %c0_44 = arith.constant 0 : index
    %c61 = arith.constant 61 : index
    %38 = vector.load %arg12[%c0_44, %c61] : memref<16x640xf32, #tpu.memory_space<vmem>>, vector<8x512xf32>
    %c128 = arith.constant 128 : index
    %c0_45 = arith.constant 0 : index
    %39 = vector.load %arg13[%c128, %c0_45] : memref<400x512xf32, #tpu.memory_space<vmem>>, vector<8x512xf32>
    tpu.vector_store %arg13[%c128, %c0_45], %38 {strides = array<i32>} : memref<400x512xf32, #tpu.memory_space<vmem>>, vector<8x512xf32>,
    %c0_46 = arith.constant 0 : index
    %c62 = arith.constant 62 : index
    %40 = vector.load %arg12[%c0_46, %c62] : memref<16x640xf32, #tpu.memory_space<vmem>>, vector<8x512xf32>
    %c136 = arith.constant 136 : index
    %c0_47 = arith.constant 0 : index
    %41 = vector.load %arg13[%c136, %c0_47] : memref<400x512xf32, #tpu.memory_space<vmem>>, vector<8x512xf32>
    tpu.vector_store %arg13[%c136, %c0_47], %40 {strides = array<i32>} : memref<400x512xf32, #tpu.memory_space<vmem>>, vector<8x512xf32>,
    %c0_48 = arith.constant 0 : index
    %c63 = arith.constant 63 : index
    %42 = vector.load %arg12[%c0_48, %c63] : memref<16x640xf32, #tpu.memory_space<vmem>>, vector<8x512xf32>
    %c144 = arith.constant 144 : index
    %c0_49 = arith.constant 0 : index
    %43 = vector.load %arg13[%c144, %c0_49] : memref<400x512xf32, #tpu.memory_space<vmem>>, vector<8x512xf32>
    tpu.vector_store %arg13[%c144, %c0_49], %42 {strides = array<i32>} : memref<400x512xf32, #tpu.memory_space<vmem>>, vector<8x512xf32>,
    %c0_50 = arith.constant 0 : index
    %c64_51 = arith.constant 64 : index
    %44 = vector.load %arg12[%c0_50, %c64_51] : memref<16x640xf32, #tpu.memory_space<vmem>>, vector<8x512xf32>
    %c152 = arith.constant 152 : index
    %c0_52 = arith.constant 0 : index
    %45 = vector.load %arg13[%c152, %c0_52] : memref<400x512xf32, #tpu.memory_space<vmem>>, vector<8x512xf32>
    tpu.vector_store %arg13[%c152, %c0_52], %44 {strides = array<i32>} : memref<400x512xf32, #tpu.memory_space<vmem>>, vector<8x512xf32>,
    %c0_53 = arith.constant 0 : index
    %c80_54 = arith.constant 80 : index
    %46 = vector.load %arg12[%c0_53, %c80_54] : memref<16x640xf32, #tpu.memory_space<vmem>>, vector<8x512xf32>
    %c160 = arith.constant 160 : index
    %c0_55 = arith.constant 0 : index
    %47 = vector.load %arg13[%c160, %c0_55] : memref<400x512xf32, #tpu.memory_space<vmem>>, vector<8x512xf32>
    tpu.vector_store %arg13[%c160, %c0_55], %46 {strides = array<i32>} : memref<400x512xf32, #tpu.memory_space<vmem>>, vector<8x512xf32>,
    %c0_56 = arith.constant 0 : index
    %c81 = arith.constant 81 : index
    %48 = vector.load %arg12[%c0_56, %c81] : memref<16x640xf32, #tpu.memory_space<vmem>>, vector<8x512xf32>
    %c168 = arith.constant 168 : index
    %c0_57 = arith.constant 0 : index
    %49 = vector.load %arg13[%c168, %c0_57] : memref<400x512xf32, #tpu.memory_space<vmem>>, vector<8x512xf32>
    tpu.vector_store %arg13[%c168, %c0_57], %48 {strides = array<i32>} : memref<400x512xf32, #tpu.memory_space<vmem>>, vector<8x512xf32>,
    %c0_58 = arith.constant 0 : index
    %c82 = arith.constant 82 : index
    %50 = vector.load %arg12[%c0_58, %c82] : memref<16x640xf32, #tpu.memory_space<vmem>>, vector<8x512xf32>
    %c176 = arith.constant 176 : index
    %c0_59 = arith.constant 0 : index
    %51 = vector.load %arg13[%c176, %c0_59] : memref<400x512xf32, #tpu.memory_space<vmem>>, vector<8x512xf32>
    tpu.vector_store %arg13[%c176, %c0_59], %50 {strides = array<i32>} : memref<400x512xf32, #tpu.memory_space<vmem>>, vector<8x512xf32>,
    %c0_60 = arith.constant 0 : index
    %c83 = arith.constant 83 : index
    %52 = vector.load %arg12[%c0_60, %c83] : memref<16x640xf32, #tpu.memory_space<vmem>>, vector<8x512xf32>
    %c184 = arith.constant 184 : index
    %c0_61 = arith.constant 0 : index
    %53 = vector.load %arg13[%c184, %c0_61] : memref<400x512xf32, #tpu.memory_space<vmem>>, vector<8x512xf32>
    tpu.vector_store %arg13[%c184, %c0_61], %52 {strides = array<i32>} : memref<400x512xf32, #tpu.memory_space<vmem>>, vector<8x512xf32>,
    %c0_62 = arith.constant 0 : index
    %c84 = arith.constant 84 : index
    %54 = vector.load %arg12[%c0_62, %c84] : memref<16x640xf32, #tpu.memory_space<vmem>>, vector<8x512xf32>
    %c192 = arith.constant 192 : index
    %c0_63 = arith.constant 0 : index
    %55 = vector.load %arg13[%c192, %c0_63] : memref<400x512xf32, #tpu.memory_space<vmem>>, vector<8x512xf32>
    tpu.vector_store %arg13[%c192, %c0_63], %54 {strides = array<i32>} : memref<400x512xf32, #tpu.memory_space<vmem>>, vector<8x512xf32>,
    %c0_64 = arith.constant 0 : index
    %c0_65 = arith.constant 0 : index
    %56 = vector.load %arg3[%c0_64, %c0_65] : memref<8x200xf32, #tpu.memory_space<vmem>>, vector<8x200xf32>
    %c0_66 = arith.constant 0 : index
    %c0_67 = arith.constant 0 : index
    %57 = vector.load %arg13[%c0_66, %c0_67] : memref<400x512xf32, #tpu.memory_space<vmem>>, vector<200x512xf32>
    %cst_68 = arith.constant dense<0.000000e+00> : vector<8x512xf32>
    %58 = tpu.matmul %56, %57, %cst_68 {dimension_numbers = #tpu.dot_dimension_numbers<[1], [0], [0], [1], [0, 0, 1, 1], [], []>} : vector<8x200xf32>, vector<200x512xf32>, vector<8x512xf32> -> vector<8x512xf32>
    %c0_69 = arith.constant 0 : index
    %c0_70 = arith.constant 0 : index
    %59 = vector.load %arg4[%c0_69, %c0_70] : memref<8x1xf32, #tpu.memory_space<vmem>>, vector<8x1xf32>
    %60 = vector.broadcast %59 : vector<8x1xf32> to vector<8x512xf32>
    %61 = arith.addf %58, %60 : vector<8x512xf32>
    %cst_71 = arith.constant 0.000000e+00 : f32
    %62 = vector.broadcast %cst_71 : f32 to vector<8x512xf32>
    %63 = arith.maximumf %61, %62 : vector<8x512xf32>
    %64 = vector.broadcast %5 : vector<1x512xf32> to vector<8x512xf32>
    %65 = arith.mulf %63, %64 : vector<8x512xf32>
    %c0_72 = arith.constant 0 : index
    %c42_73 = arith.constant 42 : index
    %66 = vector.load %arg12[%c0_72, %c42_73] : memref<16x640xf32, #tpu.memory_space<vmem>>, vector<8x512xf32>
    tpu.vector_store %arg12[%c0_72, %c42_73], %65 {strides = array<i32>} : memref<16x640xf32, #tpu.memory_space<vmem>>, vector<8x512xf32>,
    %c0_74 = arith.constant 0 : index
    %c0_75 = arith.constant 0 : index
    %67 = vector.load %arg12[%c0_74, %c0_75] : memref<16x640xf32, #tpu.memory_space<vmem>>, vector<8x512xf32>
    %c0_76 = arith.constant 0 : index
    %c0_77 = arith.constant 0 : index
    %68 = vector.load %arg13[%c0_76, %c0_77] : memref<400x512xf32, #tpu.memory_space<vmem>>, vector<8x512xf32>
    tpu.vector_store %arg13[%c0_76, %c0_77], %67 {strides = array<i32>} : memref<400x512xf32, #tpu.memory_space<vmem>>, vector<8x512xf32>,
    %c0_78 = arith.constant 0 : index
    %c1_79 = arith.constant 1 : index
    %69 = vector.load %arg12[%c0_78, %c1_79] : memref<16x640xf32, #tpu.memory_space<vmem>>, vector<8x512xf32>
    %c8_80 = arith.constant 8 : index
    %c0_81 = arith.constant 0 : index
    %70 = vector.load %arg13[%c8_80, %c0_81] : memref<400x512xf32, #tpu.memory_space<vmem>>, vector<8x512xf32>
    tpu.vector_store %arg13[%c8_80, %c0_81], %69 {strides = array<i32>} : memref<400x512xf32, #tpu.memory_space<vmem>>, vector<8x512xf32>,
    %c0_82 = arith.constant 0 : index
    %c2_83 = arith.constant 2 : index
    %71 = vector.load %arg12[%c0_82, %c2_83] : memref<16x640xf32, #tpu.memory_space<vmem>>, vector<8x512xf32>
    %c16_84 = arith.constant 16 : index
    %c0_85 = arith.constant 0 : index
    %72 = vector.load %arg13[%c16_84, %c0_85] : memref<400x512xf32, #tpu.memory_space<vmem>>, vector<8x512xf32>
    tpu.vector_store %arg13[%c16_84, %c0_85], %71 {strides = array<i32>} : memref<400x512xf32, #tpu.memory_space<vmem>>, vector<8x512xf32>,
    %c0_86 = arith.constant 0 : index
    %c3_87 = arith.constant 3 : index
    %73 = vector.load %arg12[%c0_86, %c3_87] : memref<16x640xf32, #tpu.memory_space<vmem>>, vector<8x512xf32>
    %c24_88 = arith.constant 24 : index
    %c0_89 = arith.constant 0 : index
    %74 = vector.load %arg13[%c24_88, %c0_89] : memref<400x512xf32, #tpu.memory_space<vmem>>, vector<8x512xf32>
    tpu.vector_store %arg13[%c24_88, %c0_89], %73 {strides = array<i32>} : memref<400x512xf32, #tpu.memory_space<vmem>>, vector<8x512xf32>,
    %c0_90 = arith.constant 0 : index
    %c4_91 = arith.constant 4 : index
    %75 = vector.load %arg12[%c0_90, %c4_91] : memref<16x640xf32, #tpu.memory_space<vmem>>, vector<8x512xf32>
    %c32_92 = arith.constant 32 : index
    %c0_93 = arith.constant 0 : index
    %76 = vector.load %arg13[%c32_92, %c0_93] : memref<400x512xf32, #tpu.memory_space<vmem>>, vector<8x512xf32>
    tpu.vector_store %arg13[%c32_92, %c0_93], %75 {strides = array<i32>} : memref<400x512xf32, #tpu.memory_space<vmem>>, vector<8x512xf32>,
    %c0_94 = arith.constant 0 : index
    %c20_95 = arith.constant 20 : index
    %77 = vector.load %arg12[%c0_94, %c20_95] : memref<16x640xf32, #tpu.memory_space<vmem>>, vector<8x512xf32>
    %c40_96 = arith.constant 40 : index
    %c0_97 = arith.constant 0 : index
    %78 = vector.load %arg13[%c40_96, %c0_97] : memref<400x512xf32, #tpu.memory_space<vmem>>, vector<8x512xf32>
    tpu.vector_store %arg13[%c40_96, %c0_97], %77 {strides = array<i32>} : memref<400x512xf32, #tpu.memory_space<vmem>>, vector<8x512xf32>,
    %c0_98 = arith.constant 0 : index
    %c21_99 = arith.constant 21 : index
    %79 = vector.load %arg12[%c0_98, %c21_99] : memref<16x640xf32, #tpu.memory_space<vmem>>, vector<8x512xf32>
    %c48_100 = arith.constant 48 : index
    %c0_101 = arith.constant 0 : index
    %80 = vector.load %arg13[%c48_100, %c0_101] : memref<400x512xf32, #tpu.memory_space<vmem>>, vector<8x512xf32>
    tpu.vector_store %arg13[%c48_100, %c0_101], %79 {strides = array<i32>} : memref<400x512xf32, #tpu.memory_space<vmem>>, vector<8x512xf32>,
    %c0_102 = arith.constant 0 : index
    %c22_103 = arith.constant 22 : index
    %81 = vector.load %arg12[%c0_102, %c22_103] : memref<16x640xf32, #tpu.memory_space<vmem>>, vector<8x512xf32>
    %c56_104 = arith.constant 56 : index
    %c0_105 = arith.constant 0 : index
    %82 = vector.load %arg13[%c56_104, %c0_105] : memref<400x512xf32, #tpu.memory_space<vmem>>, vector<8x512xf32>
    tpu.vector_store %arg13[%c56_104, %c0_105], %81 {strides = array<i32>} : memref<400x512xf32, #tpu.memory_space<vmem>>, vector<8x512xf32>,
    %c0_106 = arith.constant 0 : index
    %c23_107 = arith.constant 23 : index
    %83 = vector.load %arg12[%c0_106, %c23_107] : memref<16x640xf32, #tpu.memory_space<vmem>>, vector<8x512xf32>
    %c64_108 = arith.constant 64 : index
    %c0_109 = arith.constant 0 : index
    %84 = vector.load %arg13[%c64_108, %c0_109] : memref<400x512xf32, #tpu.memory_space<vmem>>, vector<8x512xf32>
    tpu.vector_store %arg13[%c64_108, %c0_109], %83 {strides = array<i32>} : memref<400x512xf32, #tpu.memory_space<vmem>>, vector<8x512xf32>,
    %c0_110 = arith.constant 0 : index
    %c24_111 = arith.constant 24 : index
    %85 = vector.load %arg12[%c0_110, %c24_111] : memref<16x640xf32, #tpu.memory_space<vmem>>, vector<8x512xf32>
    %c72_112 = arith.constant 72 : index
    %c0_113 = arith.constant 0 : index
    %86 = vector.load %arg13[%c72_112, %c0_113] : memref<400x512xf32, #tpu.memory_space<vmem>>, vector<8x512xf32>
    tpu.vector_store %arg13[%c72_112, %c0_113], %85 {strides = array<i32>} : memref<400x512xf32, #tpu.memory_space<vmem>>, vector<8x512xf32>,
    %c0_114 = arith.constant 0 : index
    %c40_115 = arith.constant 40 : index
    %87 = vector.load %arg12[%c0_114, %c40_115] : memref<16x640xf32, #tpu.memory_space<vmem>>, vector<8x512xf32>
    %c80_116 = arith.constant 80 : index
    %c0_117 = arith.constant 0 : index
    %88 = vector.load %arg13[%c80_116, %c0_117] : memref<400x512xf32, #tpu.memory_space<vmem>>, vector<8x512xf32>
    tpu.vector_store %arg13[%c80_116, %c0_117], %87 {strides = array<i32>} : memref<400x512xf32, #tpu.memory_space<vmem>>, vector<8x512xf32>,
    %c0_118 = arith.constant 0 : index
    %c41_119 = arith.constant 41 : index
    %89 = vector.load %arg12[%c0_118, %c41_119] : memref<16x640xf32, #tpu.memory_space<vmem>>, vector<8x512xf32>
    %c88_120 = arith.constant 88 : index
    %c0_121 = arith.constant 0 : index
    %90 = vector.load %arg13[%c88_120, %c0_121] : memref<400x512xf32, #tpu.memory_space<vmem>>, vector<8x512xf32>
    tpu.vector_store %arg13[%c88_120, %c0_121], %89 {strides = array<i32>} : memref<400x512xf32, #tpu.memory_space<vmem>>, vector<8x512xf32>,
    %c0_122 = arith.constant 0 : index
    %c42_123 = arith.constant 42 : index
    %91 = vector.load %arg12[%c0_122, %c42_123] : memref<16x640xf32, #tpu.memory_space<vmem>>, vector<8x512xf32>
    %c96_124 = arith.constant 96 : index
    %c0_125 = arith.constant 0 : index
    %92 = vector.load %arg13[%c96_124, %c0_125] : memref<400x512xf32, #tpu.memory_space<vmem>>, vector<8x512xf32>
    tpu.vector_store %arg13[%c96_124, %c0_125], %91 {strides = array<i32>} : memref<400x512xf32, #tpu.memory_space<vmem>>, vector<8x512xf32>,
    %c0_126 = arith.constant 0 : index
    %c43_127 = arith.constant 43 : index
    %93 = vector.load %arg12[%c0_126, %c43_127] : memref<16x640xf32, #tpu.memory_space<vmem>>, vector<8x512xf32>
    %c104_128 = arith.constant 104 : index
    %c0_129 = arith.constant 0 : index
    %94 = vector.load %arg13[%c104_128, %c0_129] : memref<400x512xf32, #tpu.memory_space<vmem>>, vector<8x512xf32>
    tpu.vector_store %arg13[%c104_128, %c0_129], %93 {strides = array<i32>} : memref<400x512xf32, #tpu.memory_space<vmem>>, vector<8x512xf32>,
    %c0_130 = arith.constant 0 : index
    %c44_131 = arith.constant 44 : index
    %95 = vector.load %arg12[%c0_130, %c44_131] : memref<16x640xf32, #tpu.memory_space<vmem>>, vector<8x512xf32>
    %c112_132 = arith.constant 112 : index
    %c0_133 = arith.constant 0 : index
    %96 = vector.load %arg13[%c112_132, %c0_133] : memref<400x512xf32, #tpu.memory_space<vmem>>, vector<8x512xf32>
    tpu.vector_store %arg13[%c112_132, %c0_133], %95 {strides = array<i32>} : memref<400x512xf32, #tpu.memory_space<vmem>>, vector<8x512xf32>,
    %c0_134 = arith.constant 0 : index
    %c60_135 = arith.constant 60 : index
    %97 = vector.load %arg12[%c0_134, %c60_135] : memref<16x640xf32, #tpu.memory_space<vmem>>, vector<8x512xf32>
    %c120_136 = arith.constant 120 : index
    %c0_137 = arith.constant 0 : index
    %98 = vector.load %arg13[%c120_136, %c0_137] : memref<400x512xf32, #tpu.memory_space<vmem>>, vector<8x512xf32>
    tpu.vector_store %arg13[%c120_136, %c0_137], %97 {strides = array<i32>} : memref<400x512xf32, #tpu.memory_space<vmem>>, vector<8x512xf32>,
    %c0_138 = arith.constant 0 : index
    %c61_139 = arith.constant 61 : index
    %99 = vector.load %arg12[%c0_138, %c61_139] : memref<16x640xf32, #tpu.memory_space<vmem>>, vector<8x512xf32>
    %c128_140 = arith.constant 128 : index
    %c0_141 = arith.constant 0 : index
    %100 = vector.load %arg13[%c128_140, %c0_141] : memref<400x512xf32, #tpu.memory_space<vmem>>, vector<8x512xf32>
    tpu.vector_store %arg13[%c128_140, %c0_141], %99 {strides = array<i32>} : memref<400x512xf32, #tpu.memory_space<vmem>>, vector<8x512xf32>,
    %c0_142 = arith.constant 0 : index
    %c62_143 = arith.constant 62 : index
    %101 = vector.load %arg12[%c0_142, %c62_143] : memref<16x640xf32, #tpu.memory_space<vmem>>, vector<8x512xf32>
    %c136_144 = arith.constant 136 : index
    %c0_145 = arith.constant 0 : index
    %102 = vector.load %arg13[%c136_144, %c0_145] : memref<400x512xf32, #tpu.memory_space<vmem>>, vector<8x512xf32>
    tpu.vector_store %arg13[%c136_144, %c0_145], %101 {strides = array<i32>} : memref<400x512xf32, #tpu.memory_space<vmem>>, vector<8x512xf32>,
    %c0_146 = arith.constant 0 : index
    %c63_147 = arith.constant 63 : index
    %103 = vector.load %arg12[%c0_146, %c63_147] : memref<16x640xf32, #tpu.memory_space<vmem>>, vector<8x512xf32>
    %c144_148 = arith.constant 144 : index
    %c0_149 = arith.constant 0 : index
    %104 = vector.load %arg13[%c144_148, %c0_149] : memref<400x512xf32, #tpu.memory_space<vmem>>, vector<8x512xf32>
    tpu.vector_store %arg13[%c144_148, %c0_149], %103 {strides = array<i32>} : memref<400x512xf32, #tpu.memory_space<vmem>>, vector<8x512xf32>,
    %c0_150 = arith.constant 0 : index
    %c64_151 = arith.constant 64 : index
    %105 = vector.load %arg12[%c0_150, %c64_151] : memref<16x640xf32, #tpu.memory_space<vmem>>, vector<8x512xf32>
    %c152_152 = arith.constant 152 : index
    %c0_153 = arith.constant 0 : index
    %106 = vector.load %arg13[%c152_152, %c0_153] : memref<400x512xf32, #tpu.memory_space<vmem>>, vector<8x512xf32>
    tpu.vector_store %arg13[%c152_152, %c0_153], %105 {strides = array<i32>} : memref<400x512xf32, #tpu.memory_space<vmem>>, vector<8x512xf32>,
    %c0_154 = arith.constant 0 : index
    %c80_155 = arith.constant 80 : index
    %107 = vector.load %arg12[%c0_154, %c80_155] : memref<16x640xf32, #tpu.memory_space<vmem>>, vector<8x512xf32>
    %c160_156 = arith.constant 160 : index
    %c0_157 = arith.constant 0 : index
    %108 = vector.load %arg13[%c160_156, %c0_157] : memref<400x512xf32, #tpu.memory_space<vmem>>, vector<8x512xf32>
    tpu.vector_store %arg13[%c160_156, %c0_157], %107 {strides = array<i32>} : memref<400x512xf32, #tpu.memory_space<vmem>>, vector<8x512xf32>,
    %c0_158 = arith.constant 0 : index
    %c81_159 = arith.constant 81 : index
    %109 = vector.load %arg12[%c0_158, %c81_159] : memref<16x640xf32, #tpu.memory_space<vmem>>, vector<8x512xf32>
    %c168_160 = arith.constant 168 : index
    %c0_161 = arith.constant 0 : index
    %110 = vector.load %arg13[%c168_160, %c0_161] : memref<400x512xf32, #tpu.memory_space<vmem>>, vector<8x512xf32>
    tpu.vector_store %arg13[%c168_160, %c0_161], %109 {strides = array<i32>} : memref<400x512xf32, #tpu.memory_space<vmem>>, vector<8x512xf32>,
    %c0_162 = arith.constant 0 : index
    %c82_163 = arith.constant 82 : index
    %111 = vector.load %arg12[%c0_162, %c82_163] : memref<16x640xf32, #tpu.memory_space<vmem>>, vector<8x512xf32>
    %c176_164 = arith.constant 176 : index
    %c0_165 = arith.constant 0 : index
    %112 = vector.load %arg13[%c176_164, %c0_165] : memref<400x512xf32, #tpu.memory_space<vmem>>, vector<8x512xf32>
    tpu.vector_store %arg13[%c176_164, %c0_165], %111 {strides = array<i32>} : memref<400x512xf32, #tpu.memory_space<vmem>>, vector<8x512xf32>,
    %c0_166 = arith.constant 0 : index
    %c83_167 = arith.constant 83 : index
    %113 = vector.load %arg12[%c0_166, %c83_167] : memref<16x640xf32, #tpu.memory_space<vmem>>, vector<8x512xf32>
    %c184_168 = arith.constant 184 : index
    %c0_169 = arith.constant 0 : index
    %114 = vector.load %arg13[%c184_168, %c0_169] : memref<400x512xf32, #tpu.memory_space<vmem>>, vector<8x512xf32>
    tpu.vector_store %arg13[%c184_168, %c0_169], %113 {strides = array<i32>} : memref<400x512xf32, #tpu.memory_space<vmem>>, vector<8x512xf32>,
    %c0_170 = arith.constant 0 : index
    %c84_171 = arith.constant 84 : index
    %115 = vector.load %arg12[%c0_170, %c84_171] : memref<16x640xf32, #tpu.memory_space<vmem>>, vector<8x512xf32>
    %c192_172 = arith.constant 192 : index
    %c0_173 = arith.constant 0 : index
    %116 = vector.load %arg13[%c192_172, %c0_173] : memref<400x512xf32, #tpu.memory_space<vmem>>, vector<8x512xf32>
    tpu.vector_store %arg13[%c192_172, %c0_173], %115 {strides = array<i32>} : memref<400x512xf32, #tpu.memory_space<vmem>>, vector<8x512xf32>,
    %c0_174 = arith.constant 0 : index
    %c0_175 = arith.constant 0 : index
    %117 = vector.load %arg5[%c0_174, %c0_175] : memref<8x200xf32, #tpu.memory_space<vmem>>, vector<8x200xf32>
    %c0_176 = arith.constant 0 : index
    %c0_177 = arith.constant 0 : index
    %118 = vector.load %arg13[%c0_176, %c0_177] : memref<400x512xf32, #tpu.memory_space<vmem>>, vector<200x512xf32>
    %cst_178 = arith.constant dense<0.000000e+00> : vector<8x512xf32>
    %119 = tpu.matmul %117, %118, %cst_178 {dimension_numbers = #tpu.dot_dimension_numbers<[1], [0], [0], [1], [0, 0, 1, 1], [], []>} : vector<8x200xf32>, vector<200x512xf32>, vector<8x512xf32> -> vector<8x512xf32>
    %c0_179 = arith.constant 0 : index
    %c0_180 = arith.constant 0 : index
    %120 = vector.load %arg6[%c0_179, %c0_180] : memref<8x1xf32, #tpu.memory_space<vmem>>, vector<8x1xf32>
    %121 = vector.broadcast %120 : vector<8x1xf32> to vector<8x512xf32>
    %122 = arith.addf %119, %121 : vector<8x512xf32>
    %cst_181 = arith.constant 0.000000e+00 : f32
    %123 = vector.broadcast %cst_181 : f32 to vector<8x512xf32>
    %124 = arith.maximumf %122, %123 : vector<8x512xf32>
    %125 = vector.broadcast %5 : vector<1x512xf32> to vector<8x512xf32>
    %126 = arith.mulf %124, %125 : vector<8x512xf32>
    %c0_182 = arith.constant 0 : index
    %c42_183 = arith.constant 42 : index
    %127 = vector.load %arg12[%c0_182, %c42_183] : memref<16x640xf32, #tpu.memory_space<vmem>>, vector<8x512xf32>
    tpu.vector_store %arg12[%c0_182, %c42_183], %126 {strides = array<i32>} : memref<16x640xf32, #tpu.memory_space<vmem>>, vector<8x512xf32>,
    %c0_184 = arith.constant 0 : index
    %c0_185 = arith.constant 0 : index
    %128 = vector.load %arg12[%c0_184, %c0_185] : memref<16x640xf32, #tpu.memory_space<vmem>>, vector<8x512xf32>
    %c0_186 = arith.constant 0 : index
    %c0_187 = arith.constant 0 : index
    %129 = vector.load %arg13[%c0_186, %c0_187] : memref<400x512xf32, #tpu.memory_space<vmem>>, vector<8x512xf32>
    tpu.vector_store %arg13[%c0_186, %c0_187], %128 {strides = array<i32>} : memref<400x512xf32, #tpu.memory_space<vmem>>, vector<8x512xf32>,
    %c0_188 = arith.constant 0 : index
    %c1_189 = arith.constant 1 : index
    %130 = vector.load %arg12[%c0_188, %c1_189] : memref<16x640xf32, #tpu.memory_space<vmem>>, vector<8x512xf32>
    %c8_190 = arith.constant 8 : index
    %c0_191 = arith.constant 0 : index
    %131 = vector.load %arg13[%c8_190, %c0_191] : memref<400x512xf32, #tpu.memory_space<vmem>>, vector<8x512xf32>
    tpu.vector_store %arg13[%c8_190, %c0_191], %130 {strides = array<i32>} : memref<400x512xf32, #tpu.memory_space<vmem>>, vector<8x512xf32>,
    %c0_192 = arith.constant 0 : index
    %c2_193 = arith.constant 2 : index
    %132 = vector.load %arg12[%c0_192, %c2_193] : memref<16x640xf32, #tpu.memory_space<vmem>>, vector<8x512xf32>
    %c16_194 = arith.constant 16 : index
    %c0_195 = arith.constant 0 : index
    %133 = vector.load %arg13[%c16_194, %c0_195] : memref<400x512xf32, #tpu.memory_space<vmem>>, vector<8x512xf32>
    tpu.vector_store %arg13[%c16_194, %c0_195], %132 {strides = array<i32>} : memref<400x512xf32, #tpu.memory_space<vmem>>, vector<8x512xf32>,
    %c0_196 = arith.constant 0 : index
    %c3_197 = arith.constant 3 : index
    %134 = vector.load %arg12[%c0_196, %c3_197] : memref<16x640xf32, #tpu.memory_space<vmem>>, vector<8x512xf32>
    %c24_198 = arith.constant 24 : index
    %c0_199 = arith.constant 0 : index
    %135 = vector.load %arg13[%c24_198, %c0_199] : memref<400x512xf32, #tpu.memory_space<vmem>>, vector<8x512xf32>
    tpu.vector_store %arg13[%c24_198, %c0_199], %134 {strides = array<i32>} : memref<400x512xf32, #tpu.memory_space<vmem>>, vector<8x512xf32>,
    %c0_200 = arith.constant 0 : index
    %c4_201 = arith.constant 4 : index
    %136 = vector.load %arg12[%c0_200, %c4_201] : memref<16x640xf32, #tpu.memory_space<vmem>>, vector<8x512xf32>
    %c32_202 = arith.constant 32 : index
    %c0_203 = arith.constant 0 : index
    %137 = vector.load %arg13[%c32_202, %c0_203] : memref<400x512xf32, #tpu.memory_space<vmem>>, vector<8x512xf32>
    tpu.vector_store %arg13[%c32_202, %c0_203], %136 {strides = array<i32>} : memref<400x512xf32, #tpu.memory_space<vmem>>, vector<8x512xf32>,
    %c0_204 = arith.constant 0 : index
    %c20_205 = arith.constant 20 : index
    %138 = vector.load %arg12[%c0_204, %c20_205] : memref<16x640xf32, #tpu.memory_space<vmem>>, vector<8x512xf32>
    %c40_206 = arith.constant 40 : index
    %c0_207 = arith.constant 0 : index
    %139 = vector.load %arg13[%c40_206, %c0_207] : memref<400x512xf32, #tpu.memory_space<vmem>>, vector<8x512xf32>
    tpu.vector_store %arg13[%c40_206, %c0_207], %138 {strides = array<i32>} : memref<400x512xf32, #tpu.memory_space<vmem>>, vector<8x512xf32>,
    %c0_208 = arith.constant 0 : index
    %c21_209 = arith.constant 21 : index
    %140 = vector.load %arg12[%c0_208, %c21_209] : memref<16x640xf32, #tpu.memory_space<vmem>>, vector<8x512xf32>
    %c48_210 = arith.constant 48 : index
    %c0_211 = arith.constant 0 : index
    %141 = vector.load %arg13[%c48_210, %c0_211] : memref<400x512xf32, #tpu.memory_space<vmem>>, vector<8x512xf32>
    tpu.vector_store %arg13[%c48_210, %c0_211], %140 {strides = array<i32>} : memref<400x512xf32, #tpu.memory_space<vmem>>, vector<8x512xf32>,
    %c0_212 = arith.constant 0 : index
    %c22_213 = arith.constant 22 : index
    %142 = vector.load %arg12[%c0_212, %c22_213] : memref<16x640xf32, #tpu.memory_space<vmem>>, vector<8x512xf32>
    %c56_214 = arith.constant 56 : index
    %c0_215 = arith.constant 0 : index
    %143 = vector.load %arg13[%c56_214, %c0_215] : memref<400x512xf32, #tpu.memory_space<vmem>>, vector<8x512xf32>
    tpu.vector_store %arg13[%c56_214, %c0_215], %142 {strides = array<i32>} : memref<400x512xf32, #tpu.memory_space<vmem>>, vector<8x512xf32>,
    %c0_216 = arith.constant 0 : index
    %c23_217 = arith.constant 23 : index
    %144 = vector.load %arg12[%c0_216, %c23_217] : memref<16x640xf32, #tpu.memory_space<vmem>>, vector<8x512xf32>
    %c64_218 = arith.constant 64 : index
    %c0_219 = arith.constant 0 : index
    %145 = vector.load %arg13[%c64_218, %c0_219] : memref<400x512xf32, #tpu.memory_space<vmem>>, vector<8x512xf32>
    tpu.vector_store %arg13[%c64_218, %c0_219], %144 {strides = array<i32>} : memref<400x512xf32, #tpu.memory_space<vmem>>, vector<8x512xf32>,
    %c0_220 = arith.constant 0 : index
    %c24_221 = arith.constant 24 : index
    %146 = vector.load %arg12[%c0_220, %c24_221] : memref<16x640xf32, #tpu.memory_space<vmem>>, vector<8x512xf32>
    %c72_222 = arith.constant 72 : index
    %c0_223 = arith.constant 0 : index
    %147 = vector.load %arg13[%c72_222, %c0_223] : memref<400x512xf32, #tpu.memory_space<vmem>>, vector<8x512xf32>
    tpu.vector_store %arg13[%c72_222, %c0_223], %146 {strides = array<i32>} : memref<400x512xf32, #tpu.memory_space<vmem>>, vector<8x512xf32>,
    %c0_224 = arith.constant 0 : index
    %c40_225 = arith.constant 40 : index
    %148 = vector.load %arg12[%c0_224, %c40_225] : memref<16x640xf32, #tpu.memory_space<vmem>>, vector<8x512xf32>
    %c80_226 = arith.constant 80 : index
    %c0_227 = arith.constant 0 : index
    %149 = vector.load %arg13[%c80_226, %c0_227] : memref<400x512xf32, #tpu.memory_space<vmem>>, vector<8x512xf32>
    tpu.vector_store %arg13[%c80_226, %c0_227], %148 {strides = array<i32>} : memref<400x512xf32, #tpu.memory_space<vmem>>, vector<8x512xf32>,
    %c0_228 = arith.constant 0 : index
    %c41_229 = arith.constant 41 : index
    %150 = vector.load %arg12[%c0_228, %c41_229] : memref<16x640xf32, #tpu.memory_space<vmem>>, vector<8x512xf32>
    %c88_230 = arith.constant 88 : index
    %c0_231 = arith.constant 0 : index
    %151 = vector.load %arg13[%c88_230, %c0_231] : memref<400x512xf32, #tpu.memory_space<vmem>>, vector<8x512xf32>
    tpu.vector_store %arg13[%c88_230, %c0_231], %150 {strides = array<i32>} : memref<400x512xf32, #tpu.memory_space<vmem>>, vector<8x512xf32>,
    %c0_232 = arith.constant 0 : index
    %c42_233 = arith.constant 42 : index
    %152 = vector.load %arg12[%c0_232, %c42_233] : memref<16x640xf32, #tpu.memory_space<vmem>>, vector<8x512xf32>
    %c96_234 = arith.constant 96 : index
    %c0_235 = arith.constant 0 : index
    %153 = vector.load %arg13[%c96_234, %c0_235] : memref<400x512xf32, #tpu.memory_space<vmem>>, vector<8x512xf32>
    tpu.vector_store %arg13[%c96_234, %c0_235], %152 {strides = array<i32>} : memref<400x512xf32, #tpu.memory_space<vmem>>, vector<8x512xf32>,
    %c0_236 = arith.constant 0 : index
    %c43_237 = arith.constant 43 : index
    %154 = vector.load %arg12[%c0_236, %c43_237] : memref<16x640xf32, #tpu.memory_space<vmem>>, vector<8x512xf32>
    %c104_238 = arith.constant 104 : index
    %c0_239 = arith.constant 0 : index
    %155 = vector.load %arg13[%c104_238, %c0_239] : memref<400x512xf32, #tpu.memory_space<vmem>>, vector<8x512xf32>
    tpu.vector_store %arg13[%c104_238, %c0_239], %154 {strides = array<i32>} : memref<400x512xf32, #tpu.memory_space<vmem>>, vector<8x512xf32>,
    %c0_240 = arith.constant 0 : index
    %c44_241 = arith.constant 44 : index
    %156 = vector.load %arg12[%c0_240, %c44_241] : memref<16x640xf32, #tpu.memory_space<vmem>>, vector<8x512xf32>
    %c112_242 = arith.constant 112 : index
    %c0_243 = arith.constant 0 : index
    %157 = vector.load %arg13[%c112_242, %c0_243] : memref<400x512xf32, #tpu.memory_space<vmem>>, vector<8x512xf32>
    tpu.vector_store %arg13[%c112_242, %c0_243], %156 {strides = array<i32>} : memref<400x512xf32, #tpu.memory_space<vmem>>, vector<8x512xf32>,
    %c0_244 = arith.constant 0 : index
    %c60_245 = arith.constant 60 : index
    %158 = vector.load %arg12[%c0_244, %c60_245] : memref<16x640xf32, #tpu.memory_space<vmem>>, vector<8x512xf32>
    %c120_246 = arith.constant 120 : index
    %c0_247 = arith.constant 0 : index
    %159 = vector.load %arg13[%c120_246, %c0_247] : memref<400x512xf32, #tpu.memory_space<vmem>>, vector<8x512xf32>
    tpu.vector_store %arg13[%c120_246, %c0_247], %158 {strides = array<i32>} : memref<400x512xf32, #tpu.memory_space<vmem>>, vector<8x512xf32>,
    %c0_248 = arith.constant 0 : index
    %c61_249 = arith.constant 61 : index
    %160 = vector.load %arg12[%c0_248, %c61_249] : memref<16x640xf32, #tpu.memory_space<vmem>>, vector<8x512xf32>
    %c128_250 = arith.constant 128 : index
    %c0_251 = arith.constant 0 : index
    %161 = vector.load %arg13[%c128_250, %c0_251] : memref<400x512xf32, #tpu.memory_space<vmem>>, vector<8x512xf32>
    tpu.vector_store %arg13[%c128_250, %c0_251], %160 {strides = array<i32>} : memref<400x512xf32, #tpu.memory_space<vmem>>, vector<8x512xf32>,
    %c0_252 = arith.constant 0 : index
    %c62_253 = arith.constant 62 : index
    %162 = vector.load %arg12[%c0_252, %c62_253] : memref<16x640xf32, #tpu.memory_space<vmem>>, vector<8x512xf32>
    %c136_254 = arith.constant 136 : index
    %c0_255 = arith.constant 0 : index
    %163 = vector.load %arg13[%c136_254, %c0_255] : memref<400x512xf32, #tpu.memory_space<vmem>>, vector<8x512xf32>
    tpu.vector_store %arg13[%c136_254, %c0_255], %162 {strides = array<i32>} : memref<400x512xf32, #tpu.memory_space<vmem>>, vector<8x512xf32>,
    %c0_256 = arith.constant 0 : index
    %c63_257 = arith.constant 63 : index
    %164 = vector.load %arg12[%c0_256, %c63_257] : memref<16x640xf32, #tpu.memory_space<vmem>>, vector<8x512xf32>
    %c144_258 = arith.constant 144 : index
    %c0_259 = arith.constant 0 : index
    %165 = vector.load %arg13[%c144_258, %c0_259] : memref<400x512xf32, #tpu.memory_space<vmem>>, vector<8x512xf32>
    tpu.vector_store %arg13[%c144_258, %c0_259], %164 {strides = array<i32>} : memref<400x512xf32, #tpu.memory_space<vmem>>, vector<8x512xf32>,
    %c0_260 = arith.constant 0 : index
    %c64_261 = arith.constant 64 : index
    %166 = vector.load %arg12[%c0_260, %c64_261] : memref<16x640xf32, #tpu.memory_space<vmem>>, vector<8x512xf32>
    %c152_262 = arith.constant 152 : index
    %c0_263 = arith.constant 0 : index
    %167 = vector.load %arg13[%c152_262, %c0_263] : memref<400x512xf32, #tpu.memory_space<vmem>>, vector<8x512xf32>
    tpu.vector_store %arg13[%c152_262, %c0_263], %166 {strides = array<i32>} : memref<400x512xf32, #tpu.memory_space<vmem>>, vector<8x512xf32>,
    %c0_264 = arith.constant 0 : index
    %c80_265 = arith.constant 80 : index
    %168 = vector.load %arg12[%c0_264, %c80_265] : memref<16x640xf32, #tpu.memory_space<vmem>>, vector<8x512xf32>
    %c160_266 = arith.constant 160 : index
    %c0_267 = arith.constant 0 : index
    %169 = vector.load %arg13[%c160_266, %c0_267] : memref<400x512xf32, #tpu.memory_space<vmem>>, vector<8x512xf32>
    tpu.vector_store %arg13[%c160_266, %c0_267], %168 {strides = array<i32>} : memref<400x512xf32, #tpu.memory_space<vmem>>, vector<8x512xf32>,
    %c0_268 = arith.constant 0 : index
    %c81_269 = arith.constant 81 : index
    %170 = vector.load %arg12[%c0_268, %c81_269] : memref<16x640xf32, #tpu.memory_space<vmem>>, vector<8x512xf32>
    %c168_270 = arith.constant 168 : index
    %c0_271 = arith.constant 0 : index
    %171 = vector.load %arg13[%c168_270, %c0_271] : memref<400x512xf32, #tpu.memory_space<vmem>>, vector<8x512xf32>
    tpu.vector_store %arg13[%c168_270, %c0_271], %170 {strides = array<i32>} : memref<400x512xf32, #tpu.memory_space<vmem>>, vector<8x512xf32>,
    %c0_272 = arith.constant 0 : index
    %c82_273 = arith.constant 82 : index
    %172 = vector.load %arg12[%c0_272, %c82_273] : memref<16x640xf32, #tpu.memory_space<vmem>>, vector<8x512xf32>
    %c176_274 = arith.constant 176 : index
    %c0_275 = arith.constant 0 : index
    %173 = vector.load %arg13[%c176_274, %c0_275] : memref<400x512xf32, #tpu.memory_space<vmem>>, vector<8x512xf32>
    tpu.vector_store %arg13[%c176_274, %c0_275], %172 {strides = array<i32>} : memref<400x512xf32, #tpu.memory_space<vmem>>, vector<8x512xf32>,
    %c0_276 = arith.constant 0 : index
    %c83_277 = arith.constant 83 : index
    %174 = vector.load %arg12[%c0_276, %c83_277] : memref<16x640xf32, #tpu.memory_space<vmem>>, vector<8x512xf32>
    %c184_278 = arith.constant 184 : index
    %c0_279 = arith.constant 0 : index
    %175 = vector.load %arg13[%c184_278, %c0_279] : memref<400x512xf32, #tpu.memory_space<vmem>>, vector<8x512xf32>
    tpu.vector_store %arg13[%c184_278, %c0_279], %174 {strides = array<i32>} : memref<400x512xf32, #tpu.memory_space<vmem>>, vector<8x512xf32>,
    %c0_280 = arith.constant 0 : index
    %c84_281 = arith.constant 84 : index
    %176 = vector.load %arg12[%c0_280, %c84_281] : memref<16x640xf32, #tpu.memory_space<vmem>>, vector<8x512xf32>
    %c192_282 = arith.constant 192 : index
    %c0_283 = arith.constant 0 : index
    %177 = vector.load %arg13[%c192_282, %c0_283] : memref<400x512xf32, #tpu.memory_space<vmem>>, vector<8x512xf32>
    tpu.vector_store %arg13[%c192_282, %c0_283], %176 {strides = array<i32>} : memref<400x512xf32, #tpu.memory_space<vmem>>, vector<8x512xf32>,
    %c0_284 = arith.constant 0 : index
    %c0_285 = arith.constant 0 : index
    %178 = vector.load %arg7[%c0_284, %c0_285] : memref<16x200xf32, #tpu.memory_space<vmem>>, vector<16x200xf32>
    %c0_286 = arith.constant 0 : index
    %c0_287 = arith.constant 0 : index
    %179 = vector.load %arg13[%c0_286, %c0_287] : memref<400x512xf32, #tpu.memory_space<vmem>>, vector<200x512xf32>
    %cst_288 = arith.constant dense<0.000000e+00> : vector<16x512xf32>
    %180 = tpu.matmul %178, %179, %cst_288 {dimension_numbers = #tpu.dot_dimension_numbers<[1], [0], [0], [1], [0, 0, 1, 1], [], []>} : vector<16x200xf32>, vector<200x512xf32>, vector<16x512xf32> -> vector<16x512xf32>
    %c0_289 = arith.constant 0 : index
    %c0_290 = arith.constant 0 : index
    %181 = vector.load %arg8[%c0_289, %c0_290] : memref<16x1xf32, #tpu.memory_space<vmem>>, vector<16x1xf32>
    %182 = vector.broadcast %181 : vector<16x1xf32> to vector<16x512xf32>
    %183 = arith.addf %180, %182 : vector<16x512xf32>
    %cst_291 = arith.constant 0.000000e+00 : f32
    %184 = vector.broadcast %cst_291 : f32 to vector<16x512xf32>
    %185 = arith.maximumf %183, %184 : vector<16x512xf32>
    %186 = vector.broadcast %5 : vector<1x512xf32> to vector<16x512xf32>
    %187 = arith.mulf %185, %186 : vector<16x512xf32>
    %c0_292 = arith.constant 0 : index
    %c42_293 = arith.constant 42 : index
    %188 = vector.load %arg12[%c0_292, %c42_293] : memref<16x640xf32, #tpu.memory_space<vmem>>, vector<16x512xf32>
    tpu.vector_store %arg12[%c0_292, %c42_293], %187 {strides = array<i32>} : memref<16x640xf32, #tpu.memory_space<vmem>>, vector<16x512xf32>,
    %c0_294 = arith.constant 0 : index
    %c0_295 = arith.constant 0 : index
    %189 = vector.load %arg12[%c0_294, %c0_295] : memref<16x640xf32, #tpu.memory_space<vmem>>, vector<16x512xf32>
    %c0_296 = arith.constant 0 : index
    %c0_297 = arith.constant 0 : index
    %190 = vector.load %arg13[%c0_296, %c0_297] : memref<400x512xf32, #tpu.memory_space<vmem>>, vector<16x512xf32>
    tpu.vector_store %arg13[%c0_296, %c0_297], %189 {strides = array<i32>} : memref<400x512xf32, #tpu.memory_space<vmem>>, vector<16x512xf32>,
    %c0_298 = arith.constant 0 : index
    %c1_299 = arith.constant 1 : index
    %191 = vector.load %arg12[%c0_298, %c1_299] : memref<16x640xf32, #tpu.memory_space<vmem>>, vector<16x512xf32>
    %c16_300 = arith.constant 16 : index
    %c0_301 = arith.constant 0 : index
    %192 = vector.load %arg13[%c16_300, %c0_301] : memref<400x512xf32, #tpu.memory_space<vmem>>, vector<16x512xf32>
    tpu.vector_store %arg13[%c16_300, %c0_301], %191 {strides = array<i32>} : memref<400x512xf32, #tpu.memory_space<vmem>>, vector<16x512xf32>,
    %c0_302 = arith.constant 0 : index
    %c2_303 = arith.constant 2 : index
    %193 = vector.load %arg12[%c0_302, %c2_303] : memref<16x640xf32, #tpu.memory_space<vmem>>, vector<16x512xf32>
    %c32_304 = arith.constant 32 : index
    %c0_305 = arith.constant 0 : index
    %194 = vector.load %arg13[%c32_304, %c0_305] : memref<400x512xf32, #tpu.memory_space<vmem>>, vector<16x512xf32>
    tpu.vector_store %arg13[%c32_304, %c0_305], %193 {strides = array<i32>} : memref<400x512xf32, #tpu.memory_space<vmem>>, vector<16x512xf32>,
    %c0_306 = arith.constant 0 : index
    %c3_307 = arith.constant 3 : index
    %195 = vector.load %arg12[%c0_306, %c3_307] : memref<16x640xf32, #tpu.memory_space<vmem>>, vector<16x512xf32>
    %c48_308 = arith.constant 48 : index
    %c0_309 = arith.constant 0 : index
    %196 = vector.load %arg13[%c48_308, %c0_309] : memref<400x512xf32, #tpu.memory_space<vmem>>, vector<16x512xf32>
    tpu.vector_store %arg13[%c48_308, %c0_309], %195 {strides = array<i32>} : memref<400x512xf32, #tpu.memory_space<vmem>>, vector<16x512xf32>,
    %c0_310 = arith.constant 0 : index
    %c4_311 = arith.constant 4 : index
    %197 = vector.load %arg12[%c0_310, %c4_311] : memref<16x640xf32, #tpu.memory_space<vmem>>, vector<16x512xf32>
    %c64_312 = arith.constant 64 : index
    %c0_313 = arith.constant 0 : index
    %198 = vector.load %arg13[%c64_312, %c0_313] : memref<400x512xf32, #tpu.memory_space<vmem>>, vector<16x512xf32>
    tpu.vector_store %arg13[%c64_312, %c0_313], %197 {strides = array<i32>} : memref<400x512xf32, #tpu.memory_space<vmem>>, vector<16x512xf32>,
    %c0_314 = arith.constant 0 : index
    %c20_315 = arith.constant 20 : index
    %199 = vector.load %arg12[%c0_314, %c20_315] : memref<16x640xf32, #tpu.memory_space<vmem>>, vector<16x512xf32>
    %c80_316 = arith.constant 80 : index
    %c0_317 = arith.constant 0 : index
    %200 = vector.load %arg13[%c80_316, %c0_317] : memref<400x512xf32, #tpu.memory_space<vmem>>, vector<16x512xf32>
    tpu.vector_store %arg13[%c80_316, %c0_317], %199 {strides = array<i32>} : memref<400x512xf32, #tpu.memory_space<vmem>>, vector<16x512xf32>,
    %c0_318 = arith.constant 0 : index
    %c21_319 = arith.constant 21 : index
    %201 = vector.load %arg12[%c0_318, %c21_319] : memref<16x640xf32, #tpu.memory_space<vmem>>, vector<16x512xf32>
    %c96_320 = arith.constant 96 : index
    %c0_321 = arith.constant 0 : index
    %202 = vector.load %arg13[%c96_320, %c0_321] : memref<400x512xf32, #tpu.memory_space<vmem>>, vector<16x512xf32>
    tpu.vector_store %arg13[%c96_320, %c0_321], %201 {strides = array<i32>} : memref<400x512xf32, #tpu.memory_space<vmem>>, vector<16x512xf32>,
    %c0_322 = arith.constant 0 : index
    %c22_323 = arith.constant 22 : index
    %203 = vector.load %arg12[%c0_322, %c22_323] : memref<16x640xf32, #tpu.memory_space<vmem>>, vector<16x512xf32>
    %c112_324 = arith.constant 112 : index
    %c0_325 = arith.constant 0 : index
    %204 = vector.load %arg13[%c112_324, %c0_325] : memref<400x512xf32, #tpu.memory_space<vmem>>, vector<16x512xf32>
    tpu.vector_store %arg13[%c112_324, %c0_325], %203 {strides = array<i32>} : memref<400x512xf32, #tpu.memory_space<vmem>>, vector<16x512xf32>,
    %c0_326 = arith.constant 0 : index
    %c23_327 = arith.constant 23 : index
    %205 = vector.load %arg12[%c0_326, %c23_327] : memref<16x640xf32, #tpu.memory_space<vmem>>, vector<16x512xf32>
    %c128_328 = arith.constant 128 : index
    %c0_329 = arith.constant 0 : index
    %206 = vector.load %arg13[%c128_328, %c0_329] : memref<400x512xf32, #tpu.memory_space<vmem>>, vector<16x512xf32>
    tpu.vector_store %arg13[%c128_328, %c0_329], %205 {strides = array<i32>} : memref<400x512xf32, #tpu.memory_space<vmem>>, vector<16x512xf32>,
    %c0_330 = arith.constant 0 : index
    %c24_331 = arith.constant 24 : index
    %207 = vector.load %arg12[%c0_330, %c24_331] : memref<16x640xf32, #tpu.memory_space<vmem>>, vector<16x512xf32>
    %c144_332 = arith.constant 144 : index
    %c0_333 = arith.constant 0 : index
    %208 = vector.load %arg13[%c144_332, %c0_333] : memref<400x512xf32, #tpu.memory_space<vmem>>, vector<16x512xf32>
    tpu.vector_store %arg13[%c144_332, %c0_333], %207 {strides = array<i32>} : memref<400x512xf32, #tpu.memory_space<vmem>>, vector<16x512xf32>,
    %c0_334 = arith.constant 0 : index
    %c40_335 = arith.constant 40 : index
    %209 = vector.load %arg12[%c0_334, %c40_335] : memref<16x640xf32, #tpu.memory_space<vmem>>, vector<16x512xf32>
    %c160_336 = arith.constant 160 : index
    %c0_337 = arith.constant 0 : index
    %210 = vector.load %arg13[%c160_336, %c0_337] : memref<400x512xf32, #tpu.memory_space<vmem>>, vector<16x512xf32>
    tpu.vector_store %arg13[%c160_336, %c0_337], %209 {strides = array<i32>} : memref<400x512xf32, #tpu.memory_space<vmem>>, vector<16x512xf32>,
    %c0_338 = arith.constant 0 : index
    %c41_339 = arith.constant 41 : index
    %211 = vector.load %arg12[%c0_338, %c41_339] : memref<16x640xf32, #tpu.memory_space<vmem>>, vector<16x512xf32>
    %c176_340 = arith.constant 176 : index
    %c0_341 = arith.constant 0 : index
    %212 = vector.load %arg13[%c176_340, %c0_341] : memref<400x512xf32, #tpu.memory_space<vmem>>, vector<16x512xf32>
    tpu.vector_store %arg13[%c176_340, %c0_341], %211 {strides = array<i32>} : memref<400x512xf32, #tpu.memory_space<vmem>>, vector<16x512xf32>,
    %c0_342 = arith.constant 0 : index
    %c42_343 = arith.constant 42 : index
    %213 = vector.load %arg12[%c0_342, %c42_343] : memref<16x640xf32, #tpu.memory_space<vmem>>, vector<16x512xf32>
    %c192_344 = arith.constant 192 : index
    %c0_345 = arith.constant 0 : index
    %214 = vector.load %arg13[%c192_344, %c0_345] : memref<400x512xf32, #tpu.memory_space<vmem>>, vector<16x512xf32>
    tpu.vector_store %arg13[%c192_344, %c0_345], %213 {strides = array<i32>} : memref<400x512xf32, #tpu.memory_space<vmem>>, vector<16x512xf32>,
    %c0_346 = arith.constant 0 : index
    %c43_347 = arith.constant 43 : index
    %215 = vector.load %arg12[%c0_346, %c43_347] : memref<16x640xf32, #tpu.memory_space<vmem>>, vector<16x512xf32>
    %c208 = arith.constant 208 : index
    %c0_348 = arith.constant 0 : index
    %216 = vector.load %arg13[%c208, %c0_348] : memref<400x512xf32, #tpu.memory_space<vmem>>, vector<16x512xf32>
    tpu.vector_store %arg13[%c208, %c0_348], %215 {strides = array<i32>} : memref<400x512xf32, #tpu.memory_space<vmem>>, vector<16x512xf32>,
    %c0_349 = arith.constant 0 : index
    %c44_350 = arith.constant 44 : index
    %217 = vector.load %arg12[%c0_349, %c44_350] : memref<16x640xf32, #tpu.memory_space<vmem>>, vector<16x512xf32>
    %c224 = arith.constant 224 : index
    %c0_351 = arith.constant 0 : index
    %218 = vector.load %arg13[%c224, %c0_351] : memref<400x512xf32, #tpu.memory_space<vmem>>, vector<16x512xf32>
    tpu.vector_store %arg13[%c224, %c0_351], %217 {strides = array<i32>} : memref<400x512xf32, #tpu.memory_space<vmem>>, vector<16x512xf32>,
    %c0_352 = arith.constant 0 : index
    %c60_353 = arith.constant 60 : index
    %219 = vector.load %arg12[%c0_352, %c60_353] : memref<16x640xf32, #tpu.memory_space<vmem>>, vector<16x512xf32>
    %c240 = arith.constant 240 : index
    %c0_354 = arith.constant 0 : index
    %220 = vector.load %arg13[%c240, %c0_354] : memref<400x512xf32, #tpu.memory_space<vmem>>, vector<16x512xf32>
    tpu.vector_store %arg13[%c240, %c0_354], %219 {strides = array<i32>} : memref<400x512xf32, #tpu.memory_space<vmem>>, vector<16x512xf32>,
    %c0_355 = arith.constant 0 : index
    %c61_356 = arith.constant 61 : index
    %221 = vector.load %arg12[%c0_355, %c61_356] : memref<16x640xf32, #tpu.memory_space<vmem>>, vector<16x512xf32>
    %c256 = arith.constant 256 : index
    %c0_357 = arith.constant 0 : index
    %222 = vector.load %arg13[%c256, %c0_357] : memref<400x512xf32, #tpu.memory_space<vmem>>, vector<16x512xf32>
    tpu.vector_store %arg13[%c256, %c0_357], %221 {strides = array<i32>} : memref<400x512xf32, #tpu.memory_space<vmem>>, vector<16x512xf32>,
    %c0_358 = arith.constant 0 : index
    %c62_359 = arith.constant 62 : index
    %223 = vector.load %arg12[%c0_358, %c62_359] : memref<16x640xf32, #tpu.memory_space<vmem>>, vector<16x512xf32>
    %c272 = arith.constant 272 : index
    %c0_360 = arith.constant 0 : index
    %224 = vector.load %arg13[%c272, %c0_360] : memref<400x512xf32, #tpu.memory_space<vmem>>, vector<16x512xf32>
    tpu.vector_store %arg13[%c272, %c0_360], %223 {strides = array<i32>} : memref<400x512xf32, #tpu.memory_space<vmem>>, vector<16x512xf32>,
    %c0_361 = arith.constant 0 : index
    %c63_362 = arith.constant 63 : index
    %225 = vector.load %arg12[%c0_361, %c63_362] : memref<16x640xf32, #tpu.memory_space<vmem>>, vector<16x512xf32>
    %c288 = arith.constant 288 : index
    %c0_363 = arith.constant 0 : index
    %226 = vector.load %arg13[%c288, %c0_363] : memref<400x512xf32, #tpu.memory_space<vmem>>, vector<16x512xf32>
    tpu.vector_store %arg13[%c288, %c0_363], %225 {strides = array<i32>} : memref<400x512xf32, #tpu.memory_space<vmem>>, vector<16x512xf32>,
    %c0_364 = arith.constant 0 : index
    %c64_365 = arith.constant 64 : index
    %227 = vector.load %arg12[%c0_364, %c64_365] : memref<16x640xf32, #tpu.memory_space<vmem>>, vector<16x512xf32>
    %c304 = arith.constant 304 : index
    %c0_366 = arith.constant 0 : index
    %228 = vector.load %arg13[%c304, %c0_366] : memref<400x512xf32, #tpu.memory_space<vmem>>, vector<16x512xf32>
    tpu.vector_store %arg13[%c304, %c0_366], %227 {strides = array<i32>} : memref<400x512xf32, #tpu.memory_space<vmem>>, vector<16x512xf32>,
    %c0_367 = arith.constant 0 : index
    %c80_368 = arith.constant 80 : index
    %229 = vector.load %arg12[%c0_367, %c80_368] : memref<16x640xf32, #tpu.memory_space<vmem>>, vector<16x512xf32>
    %c320 = arith.constant 320 : index
    %c0_369 = arith.constant 0 : index
    %230 = vector.load %arg13[%c320, %c0_369] : memref<400x512xf32, #tpu.memory_space<vmem>>, vector<16x512xf32>
    tpu.vector_store %arg13[%c320, %c0_369], %229 {strides = array<i32>} : memref<400x512xf32, #tpu.memory_space<vmem>>, vector<16x512xf32>,
    %c0_370 = arith.constant 0 : index
    %c81_371 = arith.constant 81 : index
    %231 = vector.load %arg12[%c0_370, %c81_371] : memref<16x640xf32, #tpu.memory_space<vmem>>, vector<16x512xf32>
    %c336 = arith.constant 336 : index
    %c0_372 = arith.constant 0 : index
    %232 = vector.load %arg13[%c336, %c0_372] : memref<400x512xf32, #tpu.memory_space<vmem>>, vector<16x512xf32>
    tpu.vector_store %arg13[%c336, %c0_372], %231 {strides = array<i32>} : memref<400x512xf32, #tpu.memory_space<vmem>>, vector<16x512xf32>,
    %c0_373 = arith.constant 0 : index
    %c82_374 = arith.constant 82 : index
    %233 = vector.load %arg12[%c0_373, %c82_374] : memref<16x640xf32, #tpu.memory_space<vmem>>, vector<16x512xf32>
    %c352 = arith.constant 352 : index
    %c0_375 = arith.constant 0 : index
    %234 = vector.load %arg13[%c352, %c0_375] : memref<400x512xf32, #tpu.memory_space<vmem>>, vector<16x512xf32>
    tpu.vector_store %arg13[%c352, %c0_375], %233 {strides = array<i32>} : memref<400x512xf32, #tpu.memory_space<vmem>>, vector<16x512xf32>,
    %c0_376 = arith.constant 0 : index
    %c83_377 = arith.constant 83 : index
    %235 = vector.load %arg12[%c0_376, %c83_377] : memref<16x640xf32, #tpu.memory_space<vmem>>, vector<16x512xf32>
    %c368 = arith.constant 368 : index
    %c0_378 = arith.constant 0 : index
    %236 = vector.load %arg13[%c368, %c0_378] : memref<400x512xf32, #tpu.memory_space<vmem>>, vector<16x512xf32>
    tpu.vector_store %arg13[%c368, %c0_378], %235 {strides = array<i32>} : memref<400x512xf32, #tpu.memory_space<vmem>>, vector<16x512xf32>,
    %c0_379 = arith.constant 0 : index
    %c84_380 = arith.constant 84 : index
    %237 = vector.load %arg12[%c0_379, %c84_380] : memref<16x640xf32, #tpu.memory_space<vmem>>, vector<16x512xf32>
    %c384 = arith.constant 384 : index
    %c0_381 = arith.constant 0 : index
    %238 = vector.load %arg13[%c384, %c0_381] : memref<400x512xf32, #tpu.memory_space<vmem>>, vector<16x512xf32>
    tpu.vector_store %arg13[%c384, %c0_381], %237 {strides = array<i32>} : memref<400x512xf32, #tpu.memory_space<vmem>>, vector<16x512xf32>,
    %c0_382 = arith.constant 0 : index
    %c0_383 = arith.constant 0 : index
    %239 = vector.load %arg9[%c0_382, %c0_383] : memref<8x400xf32, #tpu.memory_space<vmem>>, vector<8x400xf32>
    %c0_384 = arith.constant 0 : index
    %c0_385 = arith.constant 0 : index
    %240 = vector.load %arg13[%c0_384, %c0_385] : memref<400x512xf32, #tpu.memory_space<vmem>>, vector<400x512xf32>
    %cst_386 = arith.constant dense<0.000000e+00> : vector<8x512xf32>
    %241 = tpu.matmul %239, %240, %cst_386 {dimension_numbers = #tpu.dot_dimension_numbers<[1], [0], [0], [1], [0, 0, 1, 1], [], []>} : vector<8x400xf32>, vector<400x512xf32>, vector<8x512xf32> -> vector<8x512xf32>
    %c0_387 = arith.constant 0 : index
    %c0_388 = arith.constant 0 : index
    %242 = vector.load %arg10[%c0_387, %c0_388] : memref<8x1xf32, #tpu.memory_space<vmem>>, vector<8x1xf32>
    %243 = vector.broadcast %242 : vector<8x1xf32> to vector<8x512xf32>
    %244 = arith.addf %241, %243 : vector<8x512xf32>
    %cst_389 = arith.constant 0.000000e+00 : f32
    %245 = vector.broadcast %cst_389 : f32 to vector<8x512xf32>
    %246 = arith.maximumf %244, %245 : vector<8x512xf32>
    %c0_390 = arith.constant 0 : index
    %c0_391 = arith.constant 0 : index
    %c0_392 = arith.constant 0 : index
    %247 = vector.load %arg11[%c0_390, %c0_391, %c0_392] : memref<1x8x512xf32, #tpu.memory_space<vmem>>, vector<1x8x512xf32>
    %248 = vector.shape_cast %247 : vector<1x8x512xf32> to vector<8x512xf32>
    %249 = vector.shape_cast %246 : vector<8x512xf32> to vector<1x8x512xf32>
    tpu.vector_store %arg11[%c0_390, %c0_391, %c0_392], %249 {strides = array<i32>} : memref<1x8x512xf32, #tpu.memory_space<vmem>>, vector<1x8x512xf32>,
    return
  }
  func.func @transform_0(%arg0: i32) -> (i32, i32, i32) {
    %c0_i32 = arith.constant 0 : i32
    %c0_i32_0 = arith.constant 0 : i32
    %c0_i32_1 = arith.constant 0 : i32
    return %arg0, %c0_i32, %c0_i32_0 : i32, i32, i32
  }
  func.func @transform_1(%arg0: i32) -> (i32, i32) {
    %c0_i32 = arith.constant 0 : i32
    %c0_i32_0 = arith.constant 0 : i32
    %c0_i32_1 = arith.constant 0 : i32
    return %c0_i32, %c0_i32_0 : i32, i32
  }
  func.func @transform_2(%arg0: i32) -> (i32, i32) {
    %c0_i32 = arith.constant 0 : i32
    %c0_i32_0 = arith.constant 0 : i32
    %c0_i32_1 = arith.constant 0 : i32
    return %c0_i32, %c0_i32_0 : i32, i32
  }
  func.func @transform_3(%arg0: i32) -> (i32, i32) {
    %c0_i32 = arith.constant 0 : i32
    %c0_i32_0 = arith.constant 0 : i32
    %c0_i32_1 = arith.constant 0 : i32
    return %c0_i32, %c0_i32_0 : i32, i32
  }
  func.func @transform_4(%arg0: i32) -> (i32, i32) {
    %c0_i32 = arith.constant 0 : i32
    %c0_i32_0 = arith.constant 0 : i32
    %c0_i32_1 = arith.constant 0 : i32
    return %c0_i32, %c0_i32_0 : i32, i32
  }
  func.func @transform_5(%arg0: i32) -> (i32, i32) {
    %c0_i32 = arith.constant 0 : i32
    %c0_i32_0 = arith.constant 0 : i32
    %c0_i32_1 = arith.constant 0 : i32
    return %c0_i32, %c0_i32_0 : i32, i32
  }
  func.func @transform_6(%arg0: i32) -> (i32, i32) {
    %c0_i32 = arith.constant 0 : i32
    %c0_i32_0 = arith.constant 0 : i32
    %c0_i32_1 = arith.constant 0 : i32
    return %c0_i32, %c0_i32_0 : i32, i32
  }
  func.func @transform_7(%arg0: i32) -> (i32, i32) {
    %c0_i32 = arith.constant 0 : i32
    %c0_i32_0 = arith.constant 0 : i32
    %c0_i32_1 = arith.constant 0 : i32
    return %c0_i32, %c0_i32_0 : i32, i32
  }
  func.func @transform_8(%arg0: i32) -> (i32, i32) {
    %c0_i32 = arith.constant 0 : i32
    %c0_i32_0 = arith.constant 0 : i32
    %c0_i32_1 = arith.constant 0 : i32
    return %c0_i32, %c0_i32_0 : i32, i32
  }
  func.func @transform_9(%arg0: i32) -> (i32, i32) {
    %c0_i32 = arith.constant 0 : i32
    %c0_i32_0 = arith.constant 0 : i32
    %c0_i32_1 = arith.constant 0 : i32
    return %c0_i32, %c0_i32_0 : i32, i32
  }
  func.func @transform_10(%arg0: i32) -> (i32, i32, i32) {
    %c0_i32 = arith.constant 0 : i32
    %c0_i32_0 = arith.constant 0 : i32
    %c0_i32_1 = arith.constant 0 : i32
    return %arg0, %c0_i32, %c0_i32_0 : i32, i32, i32
  }
}

</mosaic_0001>

<llo_original>
// kernel: tpu_custom_call.1
$region0: #{tpu_custom_call.1}
  #allocation0 [shape = 'u32[]', space=smem, size = 0x4, offset = 0x4, fixed_abs, tag = 'smem constant byte address 0x4 - core index']
  #allocation1 [shape = 'u32[72,128]{1,0:T(1,128)}', space=vmem, size = 0x9000, scoped, tag = 'internal scratch']
  #allocation2 [shape = 'f32[16,640]{1,0:T(8,128)}', space=vmem, size = 0xa000, scoped, tag = 'scratch operand']
  #allocation3 [shape = 'f32[400,512]{1,0:T(8,128)}', space=vmem, size = 0xc8000, scoped, tag = 'scratch operand']
  %s0 = inlined_call_operand.vmem [shape: f32[2,1,512], index: 0, kind: input, shape index: {}]
  %s1 = inlined_call_operand.hbm [shape: f32[1,512], index: 1, kind: input, shape index: {}]
  %s2 = inlined_call_operand.vmem [shape: f32[8,200], index: 2, kind: input, shape index: {}]
  %s3 = inlined_call_operand.vmem [shape: f32[8,1], index: 3, kind: input, shape index: {}]
  %s4 = inlined_call_operand.vmem [shape: f32[8,200], index: 4, kind: input, shape index: {}]
  %s5 = inlined_call_operand.vmem [shape: f32[8,1], index: 5, kind: input, shape index: {}]
  %s6 = inlined_call_operand.hbm [shape: f32[16,200], index: 6, kind: input, shape index: {}]
  %s7 = inlined_call_operand.vmem [shape: f32[16,1], index: 7, kind: input, shape index: {}]
  %s8 = inlined_call_operand.hbm [shape: f32[8,400], index: 8, kind: input, shape index: {}]
  %s9 = inlined_call_operand.vmem [shape: f32[8,1], index: 9, kind: input, shape index: {}]
  %s10 = inlined_call_operand.hbm [shape: f32[2,8,512], index: 10, kind: output, shape index: {}]
  %s11 = sld [smem:[#allocation0]]
  $region85: #{tpu_custom_call.1} parent=0
    _
  %s13 = ssub.s32 1, %s11
  %s14 = scalar_select 0, %s13, %s11
  $region1: #{tpu_custom_call.1} parent=0
    #allocation4 [shape = 'u8[2048]{0}', space=vmem, size = 0x800, scoped, tag = 'input window, operand 1, single buffered']
    #allocation5 [shape = 's32[2]{0}', space=sflag, size = 0x8, scoped, tag = 'scoped memory for tpu_custom_call.1']
    #allocation6 [shape = 's32[2]{0}', space=sflag, size = 0x8, scoped, tag = 'scoped memory for tpu_custom_call.1']
    #allocation7 [shape = 'u8[16384]{0}', space=vmem, size = 0x4000, scoped, tag = 'input window, operand 6, single buffered']
    #allocation8 [shape = 's32[1]{0}', space=sflag, size = 0x4, scoped, tag = 'scoped memory for tpu_custom_call.1']
    #allocation9 [shape = 'u8[16384]{0}', space=vmem, size = 0x4000, scoped, tag = 'input window, operand 8, single buffered']
    #allocation10 [shape = 'u8[32768]{0}', space=vmem, size = 0x8000, scoped, tag = 'output window, operand 0']
    %15 = vsyncpa [#allocation5], 0
    %16 = vsyncpa [#allocation8], 0
    %17 = vsyncpa [#allocation6], 0
    %s18 = scalar_lea.sflag [#allocation6], 1
    %19 = vsyncpa %s18, 0
    loop: start=0, step=1, limit=4
    $region2: #{tpu_custom_call.1} parent=1 // loop_pre_header
      _
    $region3: #{tpu_custom_call.1} parent=1 // loop_header
      %s21 = sphi 0, %s25
      %p22 = scmp.ge.s32.totalorder %s21, 4
      %s31 = sphi 0, %s33
      %s34 = sphi 0, %s31
      %s35 = sphi 0, %s34
      %s51 = sphi 0, %s35
      %s55 = sphi 0, %s55
      %s57 = sphi 0, %s55
      %s58 = sphi 0, %s57
      %s72 = sphi 0, %s58
      %s76 = sphi 0, %s76
      %s78 = sphi 0, %s76
      %s79 = sphi 0, %s78
      %s93 = sphi 0, %s79
      %s97 = sphi 0, %s97
      %s99 = sphi 0, %s97
      %s100 = sphi 0, %s99
      %s114 = sphi 0, %s100
      %s118 = sphi 0, %s118
      %s120 = sphi 0, %s118
      %s121 = sphi 0, %s120
      %s135 = sphi 0, %s121
      %s139 = sphi 0, %s139
      %s141 = sphi 0, %s139
      %s142 = sphi 0, %s141
      %s156 = sphi 0, %s142
      %s160 = sphi 0, %s160
      %s162 = sphi 0, %s160
      %s163 = sphi 0, %s162
      %s177 = sphi 0, %s163
      %s181 = sphi 0, %s181
      %s183 = sphi 0, %s181
      %s184 = sphi 0, %s183
      %s198 = sphi 0, %s184
      %s202 = sphi 0, %s202
      %s204 = sphi 0, %s202
      %s205 = sphi 0, %s204
      %s219 = sphi 0, %s205
      %s223 = sphi 0, %s223
      %s225 = sphi 0, %s223
      %s226 = sphi 0, %s225
      %s240 = sphi 0, %s226
      %s246 = sphi 0, %s248
      %s249 = sphi 0, %s246
      %s250 = sphi 0, %s249
      %s266 = sphi 0, %s250
    $region4: #{tpu_custom_call.1} parent=1 // loop_header_branch
      %24 = sbr.rel (%p22) target = $region8
    $region5: #{tpu_custom_call.1} parent=1 // loop_body
      %s26 = ssub.s32 %s21, 1
      %s27 = ssub.s32 %s21, 2
      %s28 = sadd.s32 %s21, 1
      %s29 = ssub.s32 %s21, %s28
      %p30 = scmp.eq.s32.totalorder %s29, 0
      %s32 = sadd.s32 %s31, 1
      %s33 = scalar_select %p30, %s31, %s32
      %p36 = pneg %p30
      %p37 = scmp.eq.s32.totalorder %s21, 1
      %p38 = por %p36, %p37
      %p39 = scmp.ne.s32.totalorder %s31, %s34
      %p40 = scmp.eq.s32.totalorder %s21, 0
      %p41 = por %p39, %p40
      %p42 = scmp.ne.s32.totalorder %s31, %s34
      %p43 = scmp.eq.s32.totalorder %s26, 1
      %p44 = por %p42, %p43
      %p45 = scmp.ne.s32.totalorder %s34, %s35
      %p46 = scmp.eq.s32.totalorder %s26, 0
      %p47 = por %p45, %p46
      %p48 = scmp.ne.s32.totalorder %s34, %s35
      %p49 = scmp.eq.s32.totalorder %s27, 1
      %p50 = por %p48, %p49
      %p52 = scmp.ne.s32.totalorder %s35, %s51
      %p53 = scmp.eq.s32.totalorder %s27, 0
      %p54 = por %p52, %p53
      %s56 = sadd.s32 %s55, 1
      %p59 = scmp.eq.s32.totalorder %s21, 1
      %p60 = scmp.ne.s32.totalorder %s55, %s57
      %p61 = scmp.eq.s32.totalorder %s21, 0
      %p62 = por %p60, %p61
      %p63 = scmp.ne.s32.totalorder %s55, %s57
      %p64 = scmp.eq.s32.totalorder %s26, 1
      %p65 = por %p63, %p64
      %p66 = scmp.ne.s32.totalorder %s57, %s58
      %p67 = scmp.eq.s32.totalorder %s26, 0
      %p68 = por %p66, %p67
      %p69 = scmp.ne.s32.totalorder %s57, %s58
      %p70 = scmp.eq.s32.totalorder %s27, 1
      %p71 = por %p69, %p70
      %p73 = scmp.ne.s32.totalorder %s58, %s72
      %p74 = scmp.eq.s32.totalorder %s27, 0
      %p75 = por %p73, %p74
      %s77 = sadd.s32 %s76, 1
      %p80 = scmp.eq.s32.totalorder %s21, 1
      %p81 = scmp.ne.s32.totalorder %s76, %s78
      %p82 = scmp.eq.s32.totalorder %s21, 0
      %p83 = por %p81, %p82
      %p84 = scmp.ne.s32.totalorder %s76, %s78
      %p85 = scmp.eq.s32.totalorder %s26, 1
      %p86 = por %p84, %p85
      %p87 = scmp.ne.s32.totalorder %s78, %s79
      %p88 = scmp.eq.s32.totalorder %s26, 0
      %p89 = por %p87, %p88
      %p90 = scmp.ne.s32.totalorder %s78, %s79
      %p91 = scmp.eq.s32.totalorder %s27, 1
      %p92 = por %p90, %p91
      %p94 = scmp.ne.s32.totalorder %s79, %s93
      %p95 = scmp.eq.s32.totalorder %s27, 0
      %p96 = por %p94, %p95
      %s98 = sadd.s32 %s97, 1
      %p101 = scmp.eq.s32.totalorder %s21, 1
      %p102 = scmp.ne.s32.totalorder %s97, %s99
      %p103 = scmp.eq.s32.totalorder %s21, 0
      %p104 = por %p102, %p103
      %p105 = scmp.ne.s32.totalorder %s97, %s99
      %p106 = scmp.eq.s32.totalorder %s26, 1
      %p107 = por %p105, %p106
      %p108 = scmp.ne.s32.totalorder %s99, %s100
      %p109 = scmp.eq.s32.totalorder %s26, 0
      %p110 = por %p108, %p109
      %p111 = scmp.ne.s32.totalorder %s99, %s100
      %p112 = scmp.eq.s32.totalorder %s27, 1
      %p113 = por %p111, %p112
      %p115 = scmp.ne.s32.totalorder %s100, %s114
      %p116 = scmp.eq.s32.totalorder %s27, 0
      %p117 = por %p115, %p116
      %s119 = sadd.s32 %s118, 1
      %p122 = scmp.eq.s32.totalorder %s21, 1
      %p123 = scmp.ne.s32.totalorder %s118, %s120
      %p124 = scmp.eq.s32.totalorder %s21, 0
      %p125 = por %p123, %p124
      %p126 = scmp.ne.s32.totalorder %s118, %s120
      %p127 = scmp.eq.s32.totalorder %s26, 1
      %p128 = por %p126, %p127
      %p129 = scmp.ne.s32.totalorder %s120, %s121
      %p130 = scmp.eq.s32.totalorder %s26, 0
      %p131 = por %p129, %p130
      %p132 = scmp.ne.s32.totalorder %s120, %s121
      %p133 = scmp.eq.s32.totalorder %s27, 1
      %p134 = por %p132, %p133
      %p136 = scmp.ne.s32.totalorder %s121, %s135
      %p137 = scmp.eq.s32.totalorder %s27, 0
      %p138 = por %p136, %p137
      %s140 = sadd.s32 %s139, 1
      %p143 = scmp.eq.s32.totalorder %s21, 1
      %p144 = scmp.ne.s32.totalorder %s139, %s141
      %p145 = scmp.eq.s32.totalorder %s21, 0
      %p146 = por %p144, %p145
      %p147 = scmp.ne.s32.totalorder %s139, %s141
      %p148 = scmp.eq.s32.totalorder %s26, 1
      %p149 = por %p147, %p148
      %p150 = scmp.ne.s32.totalorder %s141, %s142
      %p151 = scmp.eq.s32.totalorder %s26, 0
      %p152 = por %p150, %p151
      %p153 = scmp.ne.s32.totalorder %s141, %s142
      %p154 = scmp.eq.s32.totalorder %s27, 1
      %p155 = por %p153, %p154
      %p157 = scmp.ne.s32.totalorder %s142, %s156
      %p158 = scmp.eq.s32.totalorder %s27, 0
      %p159 = por %p157, %p158
      %s161 = sadd.s32 %s160, 1
      %p164 = scmp.eq.s32.totalorder %s21, 1
      %p165 = scmp.ne.s32.totalorder %s160, %s162
      %p166 = scmp.eq.s32.totalorder %s21, 0
      %p167 = por %p165, %p166
      %p168 = scmp.ne.s32.totalorder %s160, %s162
      %p169 = scmp.eq.s32.totalorder %s26, 1
      %p170 = por %p168, %p169
      %p171 = scmp.ne.s32.totalorder %s162, %s163
      %p172 = scmp.eq.s32.totalorder %s26, 0
      %p173 = por %p171, %p172
      %p174 = scmp.ne.s32.totalorder %s162, %s163
      %p175 = scmp.eq.s32.totalorder %s27, 1
      %p176 = por %p174, %p175
      %p178 = scmp.ne.s32.totalorder %s163, %s177
      %p179 = scmp.eq.s32.totalorder %s27, 0
      %p180 = por %p178, %p179
      %s182 = sadd.s32 %s181, 1
      %p185 = scmp.eq.s32.totalorder %s21, 1
      %p186 = scmp.ne.s32.totalorder %s181, %s183
      %p187 = scmp.eq.s32.totalorder %s21, 0
      %p188 = por %p186, %p187
      %p189 = scmp.ne.s32.totalorder %s181, %s183
      %p190 = scmp.eq.s32.totalorder %s26, 1
      %p191 = por %p189, %p190
      %p192 = scmp.ne.s32.totalorder %s183, %s184
      %p193 = scmp.eq.s32.totalorder %s26, 0
      %p194 = por %p192, %p193
      %p195 = scmp.ne.s32.totalorder %s183, %s184
      %p196 = scmp.eq.s32.totalorder %s27, 1
      %p197 = por %p195, %p196
      %p199 = scmp.ne.s32.totalorder %s184, %s198
      %p200 = scmp.eq.s32.totalorder %s27, 0
      %p201 = por %p199, %p200
      %s203 = sadd.s32 %s202, 1
      %p206 = scmp.eq.s32.totalorder %s21, 1
      %p207 = scmp.ne.s32.totalorder %s202, %s204
      %p208 = scmp.eq.s32.totalorder %s21, 0
      %p209 = por %p207, %p208
      %p210 = scmp.ne.s32.totalorder %s202, %s204
      %p211 = scmp.eq.s32.totalorder %s26, 1
      %p212 = por %p210, %p211
      %p213 = scmp.ne.s32.totalorder %s204, %s205
      %p214 = scmp.eq.s32.totalorder %s26, 0
      %p215 = por %p213, %p214
      %p216 = scmp.ne.s32.totalorder %s204, %s205
      %p217 = scmp.eq.s32.totalorder %s27, 1
      %p218 = por %p216, %p217
      %p220 = scmp.ne.s32.totalorder %s205, %s219
      %p221 = scmp.eq.s32.totalorder %s27, 0
      %p222 = por %p220, %p221
      %s224 = sadd.s32 %s223, 1
      %p227 = scmp.eq.s32.totalorder %s21, 1
      %p228 = scmp.ne.s32.totalorder %s223, %s225
      %p229 = scmp.eq.s32.totalorder %s21, 0
      %p230 = por %p228, %p229
      %p231 = scmp.ne.s32.totalorder %s223, %s225
      %p232 = scmp.eq.s32.totalorder %s26, 1
      %p233 = por %p231, %p232
      %p234 = scmp.ne.s32.totalorder %s225, %s226
      %p235 = scmp.eq.s32.totalorder %s26, 0
      %p236 = por %p234, %p235
      %p237 = scmp.ne.s32.totalorder %s225, %s226
      %p238 = scmp.eq.s32.totalorder %s27, 1
      %p239 = por %p237, %p238
      %p241 = scmp.ne.s32.totalorder %s226, %s240
      %p242 = scmp.eq.s32.totalorder %s27, 0
      %p243 = por %p241, %p242
      %s244 = ssub.s32 %s21, %s28
      %p245 = scmp.eq.s32.totalorder %s244, 0
      %s247 = sadd.s32 %s246, 1
      %s248 = scalar_select %p245, %s246, %s247
      %p251 = pneg %p245
      %p252 = scmp.eq.s32.totalorder %s21, 1
      %p253 = por %p251, %p252
      %p254 = scmp.ne.s32.totalorder %s246, %s249
      %p255 = scmp.eq.s32.totalorder %s21, 0
      %p256 = por %p254, %p255
      %p257 = scmp.ne.s32.totalorder %s246, %s249
      %p258 = scmp.eq.s32.totalorder %s26, 1
      %p259 = por %p257, %p258
      %p260 = scmp.ne.s32.totalorder %s249, %s250
      %p261 = scmp.eq.s32.totalorder %s26, 0
      %p262 = por %p260, %p261
      %p263 = scmp.ne.s32.totalorder %s249, %s250
      %p264 = scmp.eq.s32.totalorder %s27, 1
      %p265 = por %p263, %p264
      %p267 = scmp.ne.s32.totalorder %s250, %s266
      %p268 = scmp.eq.s32.totalorder %s27, 0
      %p269 = por %p267, %p268
      %p270 = scmp.le.s32.totalorder 1, %s21
      %p271 = scmp.lt.s32.totalorder %s21, 3
      %p272 = pnand %p270, %p271
      %p273 = pneg %p272
      // Predicated region
      $region9: #{tpu_custom_call.1} parent=5 // pred_check
        _
      $region10: #{tpu_custom_call.1} parent=5 // pred_check_branch
        %275 = sbr.rel (%p272) target = $region12
      $region11: #{tpu_custom_call.1} parent=5 // pred_region
        %s276 = ssub.s32 %s21, 1
        // Predicated region
        $region13: #{tpu_custom_call.1} parent=11 // pred_check
          %p277 = pneg %p68
        $region14: #{tpu_custom_call.1} parent=11 // pred_check_branch
          %279 = sbr.rel (%p277) target = $region16
        $region15: #{tpu_custom_call.1} parent=11 // pred_region
          %281 = vsyncadd [#allocation5], 0
          %s283 = sshll.u32 %s1, 4
          %s284 = int_to_ptr.hbm [resolvable:$true] %s283
          %s285 = sshll.u32 [#allocation4], 4
          %s286 = int_to_ptr.vmem [resolvable:$true] %s285
          %288 = dma.hbm_to_vmem [thread:$0]  %s284, 64, %s286, [#allocation5]
        $region16: #{tpu_custom_call.1} parent=11 // pred_fallthru
          _
        // Predicated region
        $region17: #{tpu_custom_call.1} parent=11 // pred_check
          %p289 = pneg %p89
        $region18: #{tpu_custom_call.1} parent=11 // pred_check_branch
          %291 = sbr.rel (%p289) target = $region20
        $region19: #{tpu_custom_call.1} parent=11 // pred_region
          _
        $region20: #{tpu_custom_call.1} parent=11 // pred_fallthru
          _
        // Predicated region
        $region21: #{tpu_custom_call.1} parent=11 // pred_check
          %p292 = pneg %p110
        $region22: #{tpu_custom_call.1} parent=11 // pred_check_branch
          %294 = sbr.rel (%p292) target = $region24
        $region23: #{tpu_custom_call.1} parent=11 // pred_region
          _
        $region24: #{tpu_custom_call.1} parent=11 // pred_fallthru
          _
        // Predicated region
        $region25: #{tpu_custom_call.1} parent=11 // pred_check
          %p295 = pneg %p131
        $region26: #{tpu_custom_call.1} parent=11 // pred_check_branch
          %297 = sbr.rel (%p295) target = $region28
        $region27: #{tpu_custom_call.1} parent=11 // pred_region
          _
        $region28: #{tpu_custom_call.1} parent=11 // pred_fallthru
          _
        // Predicated region
        $region29: #{tpu_custom_call.1} parent=11 // pred_check
          %p298 = pneg %p152
        $region30: #{tpu_custom_call.1} parent=11 // pred_check_branch
          %300 = sbr.rel (%p298) target = $region32
        $region31: #{tpu_custom_call.1} parent=11 // pred_region
          _
        $region32: #{tpu_custom_call.1} parent=11 // pred_fallthru
          _
        // Predicated region
        $region33: #{tpu_custom_call.1} parent=11 // pred_check
          %p301 = pneg %p173
        $region34: #{tpu_custom_call.1} parent=11 // pred_check_branch
          %303 = sbr.rel (%p301) target = $region36
        $region35: #{tpu_custom_call.1} parent=11 // pred_region
          %305 = vsyncadd [#allocation8], 0
          %s306 = sshll.u32 %s6, 4
          %s307 = int_to_ptr.hbm [resolvable:$true] %s306
          %s308 = sshll.u32 [#allocation7], 4
          %s309 = int_to_ptr.vmem [resolvable:$true] %s308
          %314 = dma.hbm_to_vmem [thread:$0]  %s307, 512, %s309, [#allocation8], 256, 256, 16
        $region36: #{tpu_custom_call.1} parent=11 // pred_fallthru
          _
        // Predicated region
        $region37: #{tpu_custom_call.1} parent=11 // pred_check
          %p315 = pneg %p194
        $region38: #{tpu_custom_call.1} parent=11 // pred_check_branch
          %317 = sbr.rel (%p315) target = $region40
        $region39: #{tpu_custom_call.1} parent=11 // pred_region
          _
        $region40: #{tpu_custom_call.1} parent=11 // pred_fallthru
          _
        // Predicated region
        $region41: #{tpu_custom_call.1} parent=11 // pred_check
          %p318 = pneg %p215
        $region42: #{tpu_custom_call.1} parent=11 // pred_check_branch
          %320 = sbr.rel (%p318) target = $region44
        $region43: #{tpu_custom_call.1} parent=11 // pred_region
          %322 = vsyncadd [#allocation8], 0
          %s324 = sshll.u32 %s8, 4
          %s325 = int_to_ptr.hbm [resolvable:$true] %s324
          %s326 = sshll.u32 [#allocation9], 4
          %s327 = int_to_ptr.vmem [resolvable:$true] %s326
          %329 = dma.hbm_to_vmem [thread:$0]  %s325, 512, %s327, [#allocation8]
        $region44: #{tpu_custom_call.1} parent=11 // pred_fallthru
          _
        // Predicated region
        $region45: #{tpu_custom_call.1} parent=11 // pred_check
          %p330 = pneg %p236
        $region46: #{tpu_custom_call.1} parent=11 // pred_check_branch
          %332 = sbr.rel (%p330) target = $region48
        $region47: #{tpu_custom_call.1} parent=11 // pred_region
          _
        $region48: #{tpu_custom_call.1} parent=11 // pred_fallthru
          _
      $region12: #{tpu_custom_call.1} parent=5 // pred_fallthru
        _
      %p333 = scmp.lt.s32.totalorder %s21, 2
      // Predicated region
      $region49: #{tpu_custom_call.1} parent=5 // pred_check
        %p334 = pneg %p333
      $region50: #{tpu_custom_call.1} parent=5 // pred_check_branch
        %336 = sbr.rel (%p334) target = $region52
      $region51: #{tpu_custom_call.1} parent=5 // pred_region
        // Predicated region
        $region53: #{tpu_custom_call.1} parent=51 // pred_check
          %p337 = pneg %p41
        $region54: #{tpu_custom_call.1} parent=51 // pred_check_branch
          %339 = sbr.rel (%p337) target = $region56
        $region55: #{tpu_custom_call.1} parent=51 // pred_region
          %p340 = scmp.lt.s32.totalorder %s21, 1
          %s341 = scalar_select %p340, %s21, 1
          %s342 = smul.addr %s341, 4
          %s343 = scalar_lea.vmem %s0, %s342
        $region56: #{tpu_custom_call.1} parent=51 // pred_fallthru
          _
      $region52: #{tpu_custom_call.1} parent=5 // pred_fallthru
        _
      %p344 = scmp.le.s32.totalorder 1, %s21
      %p345 = scmp.lt.s32.totalorder %s21, 3
      %p346 = pnand %p344, %p345
      %p347 = pneg %p346
      // Predicated region
      $region57: #{tpu_custom_call.1} parent=5 // pred_check
        _
      $region58: #{tpu_custom_call.1} parent=5 // pred_check_branch
        %349 = sbr.rel (%p346) target = $region60
      $region59: #{tpu_custom_call.1} parent=5 // pred_region
        %s350 = ssub.s32 %s21, 1
        // Predicated region
        $region61: #{tpu_custom_call.1} parent=59 // pred_check
          %p351 = pneg %p68
        $region62: #{tpu_custom_call.1} parent=59 // pred_check_branch
          %353 = sbr.rel (%p351) target = $region64
        $region63: #{tpu_custom_call.1} parent=59 // pred_region
          %355 = dma.done [#allocation5], 64
        $region64: #{tpu_custom_call.1} parent=59 // pred_fallthru
          _
        // Predicated region
        $region65: #{tpu_custom_call.1} parent=59 // pred_check
          %p356 = pneg %p173
        $region66: #{tpu_custom_call.1} parent=59 // pred_check_branch
          %358 = sbr.rel (%p356) target = $region68
        $region67: #{tpu_custom_call.1} parent=59 // pred_region
          %360 = dma.done [#allocation8], 512
        $region68: #{tpu_custom_call.1} parent=59 // pred_fallthru
          _
        // Predicated region
        $region69: #{tpu_custom_call.1} parent=59 // pred_check
          %p361 = pneg %p215
        $region70: #{tpu_custom_call.1} parent=59 // pred_check_branch
          %363 = sbr.rel (%p361) target = $region72
        $region71: #{tpu_custom_call.1} parent=59 // pred_region
          %365 = dma.done [#allocation8], 512
        $region72: #{tpu_custom_call.1} parent=59 // pred_fallthru
          _
        %p366 = scmp.lt.s32.totalorder %s26, 1
        %s367 = scalar_select %p366, %s26, 1
        %s368 = smul.addr %s367, 4
        %s369 = scalar_lea.vmem %s0, %s368
        %p370 = pneg %p47
        %p371 = pneg %p44
        %p372 = pneg %p68
        %p373 = pneg %p65
        %p374 = pneg %p89
        %p375 = pneg %p86
        %p376 = pneg %p110
        %p377 = pneg %p107
        %p378 = pneg %p131
        %p379 = pneg %p128
        %p380 = pneg %p152
        %p381 = pneg %p149
        %p382 = pneg %p173
        %p383 = pneg %p170
        %p384 = pneg %p194
        %p385 = pneg %p191
        %p386 = pneg %p215
        %p387 = pneg %p212
        %p388 = pneg %p236
        %p389 = pneg %p233
        %p390 = pneg %p262
        %p391 = pneg %p259
        %s392 = sand.u32 %s249, 1
        %s393 = scalar_lea.sflag [#allocation6], %s392
        %s394 = sand.u32 %s249, 1
        %s395 = smul.addr %s394, 32
        %s396 = scalar_lea.vmem [#allocation10], %s395
        %p397 = scmp.lt.s32.totalorder %s26, 1
        %s398 = scalar_select %p397, %s26, 1
        %s399 = smul.addr %s398, 4
        %s400 = scalar_lea.vmem %s0, %s399
        %401 = vst [vmem:[#allocation2] sm:$0xff] 0.0
        %402 = vst [vmem:[#allocation2 + $0x8] sm:$0xff] 0.0
        %403 = vst [vmem:[#allocation2 + $0x10] sm:$0xff] 0.0
        %404 = vst [vmem:[#allocation2 + $0x18] sm:$0xff] 0.0
        %405 = vst [vmem:[#allocation2 + $0x20] sm:$0xff] 0.0
        %406 = vst [vmem:[#allocation2 + $0x28] sm:$0xff] 0.0
        %407 = vst [vmem:[#allocation2 + $0x30] sm:$0xff] 0.0
        %408 = vst [vmem:[#allocation2 + $0x38] sm:$0xff] 0.0
        %409 = vst [vmem:[#allocation2 + $0x40] sm:$0xff] 0.0
        %410 = vst [vmem:[#allocation2 + $0x48] sm:$0xff] 0.0
        %v411 = vld [vmem:[%s400] sm:$0xf]
        %v412 = vlaneseq
        %vm413 = vcmp.ge.s32.totalorder %v412, 0
        %vm414 = vcmp.lt.s32.totalorder %v412, 512
        %vm415 = vmand %vm413, %vm414
        %416 = vst.msk [vmem:[#allocation2] ss:$8 sm:$0xf] %vm415, %v411
        %417 = vst.msk [vmem:[#allocation2] ss:$8 sm:$0x0] %vm415, %v411
        %v418 = vld [vmem:[#allocation4] sm:$0xf]
        %v419 = vld [vmem:[#allocation2] sm:$0xff]
        %v420 = vld [vmem:[#allocation2 + $0x8] sm:$0xff]
        %v421 = vld [vmem:[#allocation2 + $0x10] sm:$0xff]
        %v422 = vld [vmem:[#allocation2 + $0x18] sm:$0xff]
        %423 = vst [vmem:[#allocation3] sm:$0xff] %v419
        %424 = vst [vmem:[#allocation3 + $0x8] sm:$0xff] %v420
        %425 = vst [vmem:[#allocation3 + $0x10] sm:$0xff] %v421
        %426 = vst [vmem:[#allocation3 + $0x18] sm:$0xff] %v422
        %v427 = vld [vmem:[#allocation2] sm:$0xff]
        %v428 = vld [vmem:[#allocation2 + $0x8] sm:$0xff]
        %v429 = vld [vmem:[#allocation2 + $0x10] sm:$0xff]
        %v430 = vld [vmem:[#allocation2 + $0x18] sm:$0xff]
        %v431 = vld [vmem:[#allocation2 + $0x20] sm:$0xff]
        %437 = vrot.lane.b32.xlu0 %v427, 127
        %v438 = vpop.permute.xlu0 %437
        %439 = vrot.lane.b32.xlu0 %v428, 127
        %v440 = vpop.permute.xlu0 %439
        %441 = vrot.lane.b32.xlu0 %v429, 127
        %v442 = vpop.permute.xlu0 %441
        %443 = vrot.lane.b32.xlu0 %v430, 127
        %v444 = vpop.permute.xlu0 %443
        %445 = vrot.lane.b32.xlu0 %v431, 127
        %v446 = vpop.permute.xlu0 %445
        %vm447 = vcmask 1039360
        %v448 = vsel %vm447, %v438, %v440
        %v449 = vsel %vm447, %v440, %v442
        %v450 = vsel %vm447, %v442, %v444
        %v451 = vsel %vm447, %v444, %v446
        %456 = vst [vmem:[#allocation3 + $0x20] sm:$0xff] %v448
        %457 = vst [vmem:[#allocation3 + $0x28] sm:$0xff] %v449
        %458 = vst [vmem:[#allocation3 + $0x30] sm:$0xff] %v450
        %459 = vst [vmem:[#allocation3 + $0x38] sm:$0xff] %v451
        %v460 = vld [vmem:[#allocation2] sm:$0xff]
        %v461 = vld [vmem:[#allocation2 + $0x8] sm:$0xff]
        %v462 = vld [vmem:[#allocation2 + $0x10] sm:$0xff]
        %v463 = vld [vmem:[#allocation2 + $0x18] sm:$0xff]
        %v464 = vld [vmem:[#allocation2 + $0x20] sm:$0xff]
        %470 = vrot.lane.b32.xlu0 %v460, 126
        %v471 = vpop.permute.xlu0 %470
        %472 = vrot.lane.b32.xlu0 %v461, 126
        %v473 = vpop.permute.xlu0 %472
        %474 = vrot.lane.b32.xlu0 %v462, 126
        %v475 = vpop.permute.xlu0 %474
        %476 = vrot.lane.b32.xlu0 %v463, 126
        %v477 = vpop.permute.xlu0 %476
        %478 = vrot.lane.b32.xlu0 %v464, 126
        %v479 = vpop.permute.xlu0 %478
        %vm480 = vcmask 1031168
        %v481 = vsel %vm480, %v471, %v473
        %v482 = vsel %vm480, %v473, %v475
        %v483 = vsel %vm480, %v475, %v477
        %v484 = vsel %vm480, %v477, %v479
        %489 = vst [vmem:[#allocation3 + $0x40] sm:$0xff] %v481
        %490 = vst [vmem:[#allocation3 + $0x48] sm:$0xff] %v482
        %491 = vst [vmem:[#allocation3 + $0x50] sm:$0xff] %v483
        %492 = vst [vmem:[#allocation3 + $0x58] sm:$0xff] %v484
        %v493 = vld [vmem:[#allocation2] sm:$0xff]
        %v494 = vld [vmem:[#allocation2 + $0x8] sm:$0xff]
        %v495 = vld [vmem:[#allocation2 + $0x10] sm:$0xff]
        %v496 = vld [vmem:[#allocation2 + $0x18] sm:$0xff]
        %v497 = vld [vmem:[#allocation2 + $0x20] sm:$0xff]
        %503 = vrot.lane.b32.xlu0 %v493, 125
        %v504 = vpop.permute.xlu0 %503
        %505 = vrot.lane.b32.xlu0 %v494, 125
        %v506 = vpop.permute.xlu0 %505
        %507 = vrot.lane.b32.xlu0 %v495, 125
        %v508 = vpop.permute.xlu0 %507
        %509 = vrot.lane.b32.xlu0 %v496, 125
        %v510 = vpop.permute.xlu0 %509
        %511 = vrot.lane.b32.xlu0 %v497, 125
        %v512 = vpop.permute.xlu0 %511
        %vm513 = vcmask 1022976
        %v514 = vsel %vm513, %v504, %v506
        %v515 = vsel %vm513, %v506, %v508
        %v516 = vsel %vm513, %v508, %v510
        %v517 = vsel %vm513, %v510, %v512
        %522 = vst [vmem:[#allocation3 + $0x60] sm:$0xff] %v514
        %523 = vst [vmem:[#allocation3 + $0x68] sm:$0xff] %v515
        %524 = vst [vmem:[#allocation3 + $0x70] sm:$0xff] %v516
        %525 = vst [vmem:[#allocation3 + $0x78] sm:$0xff] %v517
        %v526 = vld [vmem:[#allocation2] sm:$0xff]
        %v527 = vld [vmem:[#allocation2 + $0x8] sm:$0xff]
        %v528 = vld [vmem:[#allocation2 + $0x10] sm:$0xff]
        %v529 = vld [vmem:[#allocation2 + $0x18] sm:$0xff]
        %v530 = vld [vmem:[#allocation2 + $0x20] sm:$0xff]
        %536 = vrot.lane.b32.xlu0 %v526, 124
        %v537 = vpop.permute.xlu0 %536
        %538 = vrot.lane.b32.xlu0 %v527, 124
        %v539 = vpop.permute.xlu0 %538
        %540 = vrot.lane.b32.xlu0 %v528, 124
        %v541 = vpop.permute.xlu0 %540
        %542 = vrot.lane.b32.xlu0 %v529, 124
        %v543 = vpop.permute.xlu0 %542
        %544 = vrot.lane.b32.xlu0 %v530, 124
        %v545 = vpop.permute.xlu0 %544
        %vm546 = vcmask 1014784
        %v547 = vsel %vm546, %v537, %v539
        %v548 = vsel %vm546, %v539, %v541
        %v549 = vsel %vm546, %v541, %v543
        %v550 = vsel %vm546, %v543, %v545
        %555 = vst [vmem:[#allocation3 + $0x80] sm:$0xff] %v547
        %556 = vst [vmem:[#allocation3 + $0x88] sm:$0xff] %v548
        %557 = vst [vmem:[#allocation3 + $0x90] sm:$0xff] %v549
        %558 = vst [vmem:[#allocation3 + $0x98] sm:$0xff] %v550
        %v559 = vld [vmem:[#allocation2] sm:$0xff]
        %v560 = vld [vmem:[#allocation2 + $0x8] sm:$0xff]
        %v561 = vld [vmem:[#allocation2 + $0x10] sm:$0xff]
        %v562 = vld [vmem:[#allocation2 + $0x18] sm:$0xff]
        %v563 = vld [vmem:[#allocation2 + $0x20] sm:$0xff]
        %569 = vrot.lane.b32.xlu0 %v559, 108
        %v570 = vpop.permute.xlu0 %569
        %571 = vrot.lane.b32.xlu0 %v560, 108
        %v572 = vpop.permute.xlu0 %571
        %573 = vrot.lane.b32.xlu0 %v561, 108
        %v574 = vpop.permute.xlu0 %573
        %575 = vrot.lane.b32.xlu0 %v562, 108
        %v576 = vpop.permute.xlu0 %575
        %577 = vrot.lane.b32.xlu0 %v563, 108
        %v578 = vpop.permute.xlu0 %577
        %vm579 = vcmask 883712
        %v580 = vsel %vm579, %v570, %v572
        %v581 = vsel %vm579, %v572, %v574
        %v582 = vsel %vm579, %v574, %v576
        %v583 = vsel %vm579, %v576, %v578
        %588 = vst [vmem:[#allocation3 + $0xa0] sm:$0xff] %v580
        %589 = vst [vmem:[#allocation3 + $0xa8] sm:$0xff] %v581
        %590 = vst [vmem:[#allocation3 + $0xb0] sm:$0xff] %v582
        %591 = vst [vmem:[#allocation3 + $0xb8] sm:$0xff] %v583
        %v592 = vld [vmem:[#allocation2] sm:$0xff]
        %v593 = vld [vmem:[#allocation2 + $0x8] sm:$0xff]
        %v594 = vld [vmem:[#allocation2 + $0x10] sm:$0xff]
        %v595 = vld [vmem:[#allocation2 + $0x18] sm:$0xff]
        %v596 = vld [vmem:[#allocation2 + $0x20] sm:$0xff]
        %602 = vrot.lane.b32.xlu0 %v592, 107
        %v603 = vpop.permute.xlu0 %602
        %604 = vrot.lane.b32.xlu0 %v593, 107
        %v605 = vpop.permute.xlu0 %604
        %606 = vrot.lane.b32.xlu0 %v594, 107
        %v607 = vpop.permute.xlu0 %606
        %608 = vrot.lane.b32.xlu0 %v595, 107
        %v609 = vpop.permute.xlu0 %608
        %610 = vrot.lane.b32.xlu0 %v596, 107
        %v611 = vpop.permute.xlu0 %610
        %vm612 = vcmask 875520
        %v613 = vsel %vm612, %v603, %v605
        %v614 = vsel %vm612, %v605, %v607
        %v615 = vsel %vm612, %v607, %v609
        %v616 = vsel %vm612, %v609, %v611
        %621 = vst [vmem:[#allocation3 + $0xc0] sm:$0xff] %v613
        %622 = vst [vmem:[#allocation3 + $0xc8] sm:$0xff] %v614
        %623 = vst [vmem:[#allocation3 + $0xd0] sm:$0xff] %v615
        %624 = vst [vmem:[#allocation3 + $0xd8] sm:$0xff] %v616
        %v625 = vld [vmem:[#allocation2] sm:$0xff]
        %v626 = vld [vmem:[#allocation2 + $0x8] sm:$0xff]
        %v627 = vld [vmem:[#allocation2 + $0x10] sm:$0xff]
        %v628 = vld [vmem:[#allocation2 + $0x18] sm:$0xff]
        %v629 = vld [vmem:[#allocation2 + $0x20] sm:$0xff]
        %635 = vrot.lane.b32.xlu0 %v625, 106
        %v636 = vpop.permute.xlu0 %635
        %637 = vrot.lane.b32.xlu0 %v626, 106
        %v638 = vpop.permute.xlu0 %637
        %639 = vrot.lane.b32.xlu0 %v627, 106
        %v640 = vpop.permute.xlu0 %639
        %641 = vrot.lane.b32.xlu0 %v628, 106
        %v642 = vpop.permute.xlu0 %641
        %643 = vrot.lane.b32.xlu0 %v629, 106
        %v644 = vpop.permute.xlu0 %643
        %vm645 = vcmask 867328
        %v646 = vsel %vm645, %v636, %v638
        %v647 = vsel %vm645, %v638, %v640
        %v648 = vsel %vm645, %v640, %v642
        %v649 = vsel %vm645, %v642, %v644
        %654 = vst [vmem:[#allocation3 + $0xe0] sm:$0xff] %v646
        %655 = vst [vmem:[#allocation3 + $0xe8] sm:$0xff] %v647
        %656 = vst [vmem:[#allocation3 + $0xf0] sm:$0xff] %v648
        %657 = vst [vmem:[#allocation3 + $0xf8] sm:$0xff] %v649
        %v658 = vld [vmem:[#allocation2] sm:$0xff]
        %v659 = vld [vmem:[#allocation2 + $0x8] sm:$0xff]
        %v660 = vld [vmem:[#allocation2 + $0x10] sm:$0xff]
        %v661 = vld [vmem:[#allocation2 + $0x18] sm:$0xff]
        %v662 = vld [vmem:[#allocation2 + $0x20] sm:$0xff]
        %668 = vrot.lane.b32.xlu0 %v658, 105
        %v669 = vpop.permute.xlu0 %668
        %670 = vrot.lane.b32.xlu0 %v659, 105
        %v671 = vpop.permute.xlu0 %670
        %672 = vrot.lane.b32.xlu0 %v660, 105
        %v673 = vpop.permute.xlu0 %672
        %674 = vrot.lane.b32.xlu0 %v661, 105
        %v675 = vpop.permute.xlu0 %674
        %676 = vrot.lane.b32.xlu0 %v662, 105
        %v677 = vpop.permute.xlu0 %676
        %vm678 = vcmask 859136
        %v679 = vsel %vm678, %v669, %v671
        %v680 = vsel %vm678, %v671, %v673
        %v681 = vsel %vm678, %v673, %v675
        %v682 = vsel %vm678, %v675, %v677
        %687 = vst [vmem:[#allocation3 + $0x100] sm:$0xff] %v679
        %688 = vst [vmem:[#allocation3 + $0x108] sm:$0xff] %v680
        %689 = vst [vmem:[#allocation3 + $0x110] sm:$0xff] %v681
        %690 = vst [vmem:[#allocation3 + $0x118] sm:$0xff] %v682
        %v691 = vld [vmem:[#allocation2] sm:$0xff]
        %v692 = vld [vmem:[#allocation2 + $0x8] sm:$0xff]
        %v693 = vld [vmem:[#allocation2 + $0x10] sm:$0xff]
        %v694 = vld [vmem:[#allocation2 + $0x18] sm:$0xff]
        %v695 = vld [vmem:[#allocation2 + $0x20] sm:$0xff]
        %701 = vrot.lane.b32.xlu0 %v691, 104
        %v702 = vpop.permute.xlu0 %701
        %703 = vrot.lane.b32.xlu0 %v692, 104
        %v704 = vpop.permute.xlu0 %703
        %705 = vrot.lane.b32.xlu0 %v693, 104
        %v706 = vpop.permute.xlu0 %705
        %707 = vrot.lane.b32.xlu0 %v694, 104
        %v708 = vpop.permute.xlu0 %707
        %709 = vrot.lane.b32.xlu0 %v695, 104
        %v710 = vpop.permute.xlu0 %709
        %vm711 = vcmask 850944
        %v712 = vsel %vm711, %v702, %v704
        %v713 = vsel %vm711, %v704, %v706
        %v714 = vsel %vm711, %v706, %v708
        %v715 = vsel %vm711, %v708, %v710
        %720 = vst [vmem:[#allocation3 + $0x120] sm:$0xff] %v712
        %721 = vst [vmem:[#allocation3 + $0x128] sm:$0xff] %v713
        %722 = vst [vmem:[#allocation3 + $0x130] sm:$0xff] %v714
        %723 = vst [vmem:[#allocation3 + $0x138] sm:$0xff] %v715
        %v724 = vld [vmem:[#allocation2] sm:$0xff]
        %v725 = vld [vmem:[#allocation2 + $0x8] sm:$0xff]
        %v726 = vld [vmem:[#allocation2 + $0x10] sm:$0xff]
        %v727 = vld [vmem:[#allocation2 + $0x18] sm:$0xff]
        %v728 = vld [vmem:[#allocation2 + $0x20] sm:$0xff]
        %734 = vrot.lane.b32.xlu0 %v724, 88
        %v735 = vpop.permute.xlu0 %734
        %736 = vrot.lane.b32.xlu0 %v725, 88
        %v737 = vpop.permute.xlu0 %736
        %738 = vrot.lane.b32.xlu0 %v726, 88
        %v739 = vpop.permute.xlu0 %738
        %740 = vrot.lane.b32.xlu0 %v727, 88
        %v741 = vpop.permute.xlu0 %740
        %742 = vrot.lane.b32.xlu0 %v728, 88
        %v743 = vpop.permute.xlu0 %742
        %vm744 = vcmask 719872
        %v745 = vsel %vm744, %v735, %v737
        %v746 = vsel %vm744, %v737, %v739
        %v747 = vsel %vm744, %v739, %v741
        %v748 = vsel %vm744, %v741, %v743
        %753 = vst [vmem:[#allocation3 + $0x140] sm:$0xff] %v745
        %754 = vst [vmem:[#allocation3 + $0x148] sm:$0xff] %v746
        %755 = vst [vmem:[#allocation3 + $0x150] sm:$0xff] %v747
        %756 = vst [vmem:[#allocation3 + $0x158] sm:$0xff] %v748
        %v757 = vld [vmem:[#allocation2] sm:$0xff]
        %v758 = vld [vmem:[#allocation2 + $0x8] sm:$0xff]
        %v759 = vld [vmem:[#allocation2 + $0x10] sm:$0xff]
        %v760 = vld [vmem:[#allocation2 + $0x18] sm:$0xff]
        %v761 = vld [vmem:[#allocation2 + $0x20] sm:$0xff]
        %767 = vrot.lane.b32.xlu0 %v757, 87
        %v768 = vpop.permute.xlu0 %767
        %769 = vrot.lane.b32.xlu0 %v758, 87
        %v770 = vpop.permute.xlu0 %769
        %771 = vrot.lane.b32.xlu0 %v759, 87
        %v772 = vpop.permute.xlu0 %771
        %773 = vrot.lane.b32.xlu0 %v760, 87
        %v774 = vpop.permute.xlu0 %773
        %775 = vrot.lane.b32.xlu0 %v761, 87
        %v776 = vpop.permute.xlu0 %775
        %vm777 = vcmask 711680
        %v778 = vsel %vm777, %v768, %v770
        %v779 = vsel %vm777, %v770, %v772
        %v780 = vsel %vm777, %v772, %v774
        %v781 = vsel %vm777, %v774, %v776
        %786 = vst [vmem:[#allocation3 + $0x160] sm:$0xff] %v778
        %787 = vst [vmem:[#allocation3 + $0x168] sm:$0xff] %v779
        %788 = vst [vmem:[#allocation3 + $0x170] sm:$0xff] %v780
        %789 = vst [vmem:[#allocation3 + $0x178] sm:$0xff] %v781
        %v790 = vld [vmem:[#allocation2] sm:$0xff]
        %v791 = vld [vmem:[#allocation2 + $0x8] sm:$0xff]
        %v792 = vld [vmem:[#allocation2 + $0x10] sm:$0xff]
        %v793 = vld [vmem:[#allocation2 + $0x18] sm:$0xff]
        %v794 = vld [vmem:[#allocation2 + $0x20] sm:$0xff]
        %800 = vrot.lane.b32.xlu0 %v790, 86
        %v801 = vpop.permute.xlu0 %800
        %802 = vrot.lane.b32.xlu0 %v791, 86
        %v803 = vpop.permute.xlu0 %802
        %804 = vrot.lane.b32.xlu0 %v792, 86
        %v805 = vpop.permute.xlu0 %804
        %806 = vrot.lane.b32.xlu0 %v793, 86
        %v807 = vpop.permute.xlu0 %806
        %808 = vrot.lane.b32.xlu0 %v794, 86
        %v809 = vpop.permute.xlu0 %808
        %vm810 = vcmask 703488
        %v811 = vsel %vm810, %v801, %v803
        %v812 = vsel %vm810, %v803, %v805
        %v813 = vsel %vm810, %v805, %v807
        %v814 = vsel %vm810, %v807, %v809
        %819 = vst [vmem:[#allocation3 + $0x180] sm:$0xff] %v811
        %820 = vst [vmem:[#allocation3 + $0x188] sm:$0xff] %v812
        %821 = vst [vmem:[#allocation3 + $0x190] sm:$0xff] %v813
        %822 = vst [vmem:[#allocation3 + $0x198] sm:$0xff] %v814
        %v823 = vld [vmem:[#allocation2] sm:$0xff]
        %v824 = vld [vmem:[#allocation2 + $0x8] sm:$0xff]
        %v825 = vld [vmem:[#allocation2 + $0x10] sm:$0xff]
        %v826 = vld [vmem:[#allocation2 + $0x18] sm:$0xff]
        %v827 = vld [vmem:[#allocation2 + $0x20] sm:$0xff]
        %833 = vrot.lane.b32.xlu0 %v823, 85
        %v834 = vpop.permute.xlu0 %833
        %835 = vrot.lane.b32.xlu0 %v824, 85
        %v836 = vpop.permute.xlu0 %835
        %837 = vrot.lane.b32.xlu0 %v825, 85
        %v838 = vpop.permute.xlu0 %837
        %839 = vrot.lane.b32.xlu0 %v826, 85
        %v840 = vpop.permute.xlu0 %839
        %841 = vrot.lane.b32.xlu0 %v827, 85
        %v842 = vpop.permute.xlu0 %841
        %vm843 = vcmask 695296
        %v844 = vsel %vm843, %v834, %v836
        %v845 = vsel %vm843, %v836, %v838
        %v846 = vsel %vm843, %v838, %v840
        %v847 = vsel %vm843, %v840, %v842
        %852 = vst [vmem:[#allocation3 + $0x1a0] sm:$0xff] %v844
        %853 = vst [vmem:[#allocation3 + $0x1a8] sm:$0xff] %v845
        %854 = vst [vmem:[#allocation3 + $0x1b0] sm:$0xff] %v846
        %855 = vst [vmem:[#allocation3 + $0x1b8] sm:$0xff] %v847
        %v856 = vld [vmem:[#allocation2] sm:$0xff]
        %v857 = vld [vmem:[#allocation2 + $0x8] sm:$0xff]
        %v858 = vld [vmem:[#allocation2 + $0x10] sm:$0xff]
        %v859 = vld [vmem:[#allocation2 + $0x18] sm:$0xff]
        %v860 = vld [vmem:[#allocation2 + $0x20] sm:$0xff]
        %866 = vrot.lane.b32.xlu0 %v856, 84
        %v867 = vpop.permute.xlu0 %866
        %868 = vrot.lane.b32.xlu0 %v857, 84
        %v869 = vpop.permute.xlu0 %868
        %870 = vrot.lane.b32.xlu0 %v858, 84
        %v871 = vpop.permute.xlu0 %870
        %872 = vrot.lane.b32.xlu0 %v859, 84
        %v873 = vpop.permute.xlu0 %872
        %874 = vrot.lane.b32.xlu0 %v860, 84
        %v875 = vpop.permute.xlu0 %874
        %vm876 = vcmask 687104
        %v877 = vsel %vm876, %v867, %v869
        %v878 = vsel %vm876, %v869, %v871
        %v879 = vsel %vm876, %v871, %v873
        %v880 = vsel %vm876, %v873, %v875
        %885 = vst [vmem:[#allocation3 + $0x1c0] sm:$0xff] %v877
        %886 = vst [vmem:[#allocation3 + $0x1c8] sm:$0xff] %v878
        %887 = vst [vmem:[#allocation3 + $0x1d0] sm:$0xff] %v879
        %888 = vst [vmem:[#allocation3 + $0x1d8] sm:$0xff] %v880
        %v889 = vld [vmem:[#allocation2] sm:$0xff]
        %v890 = vld [vmem:[#allocation2 + $0x8] sm:$0xff]
        %v891 = vld [vmem:[#allocation2 + $0x10] sm:$0xff]
        %v892 = vld [vmem:[#allocation2 + $0x18] sm:$0xff]
        %v893 = vld [vmem:[#allocation2 + $0x20] sm:$0xff]
        %899 = vrot.lane.b32.xlu0 %v889, 68
        %v900 = vpop.permute.xlu0 %899
        %901 = vrot.lane.b32.xlu0 %v890, 68
        %v902 = vpop.permute.xlu0 %901
        %903 = vrot.lane.b32.xlu0 %v891, 68
        %v904 = vpop.permute.xlu0 %903
        %905 = vrot.lane.b32.xlu0 %v892, 68
        %v906 = vpop.permute.xlu0 %905
        %907 = vrot.lane.b32.xlu0 %v893, 68
        %v908 = vpop.permute.xlu0 %907
        %vm909 = vcmask 556032
        %v910 = vsel %vm909, %v900, %v902
        %v911 = vsel %vm909, %v902, %v904
        %v912 = vsel %vm909, %v904, %v906
        %v913 = vsel %vm909, %v906, %v908
        %918 = vst [vmem:[#allocation3 + $0x1e0] sm:$0xff] %v910
        %919 = vst [vmem:[#allocation3 + $0x1e8] sm:$0xff] %v911
        %920 = vst [vmem:[#allocation3 + $0x1f0] sm:$0xff] %v912
        %921 = vst [vmem:[#allocation3 + $0x1f8] sm:$0xff] %v913
        %v922 = vld [vmem:[#allocation2] sm:$0xff]
        %v923 = vld [vmem:[#allocation2 + $0x8] sm:$0xff]
        %v924 = vld [vmem:[#allocation2 + $0x10] sm:$0xff]
        %v925 = vld [vmem:[#allocation2 + $0x18] sm:$0xff]
        %v926 = vld [vmem:[#allocation2 + $0x20] sm:$0xff]
        %932 = vrot.lane.b32.xlu0 %v922, 67
        %v933 = vpop.permute.xlu0 %932
        %934 = vrot.lane.b32.xlu0 %v923, 67
        %v935 = vpop.permute.xlu0 %934
        %936 = vrot.lane.b32.xlu0 %v924, 67
        %v937 = vpop.permute.xlu0 %936
        %938 = vrot.lane.b32.xlu0 %v925, 67
        %v939 = vpop.permute.xlu0 %938
        %940 = vrot.lane.b32.xlu0 %v926, 67
        %v941 = vpop.permute.xlu0 %940
        %vm942 = vcmask 547840
        %v943 = vsel %vm942, %v933, %v935
        %v944 = vsel %vm942, %v935, %v937
        %v945 = vsel %vm942, %v937, %v939
        %v946 = vsel %vm942, %v939, %v941
        %951 = vst [vmem:[#allocation3 + $0x200] sm:$0xff] %v943
        %952 = vst [vmem:[#allocation3 + $0x208] sm:$0xff] %v944
        %953 = vst [vmem:[#allocation3 + $0x210] sm:$0xff] %v945
        %954 = vst [vmem:[#allocation3 + $0x218] sm:$0xff] %v946
        %v955 = vld [vmem:[#allocation2] sm:$0xff]
        %v956 = vld [vmem:[#allocation2 + $0x8] sm:$0xff]
        %v957 = vld [vmem:[#allocation2 + $0x10] sm:$0xff]
        %v958 = vld [vmem:[#allocation2 + $0x18] sm:$0xff]
        %v959 = vld [vmem:[#allocation2 + $0x20] sm:$0xff]
        %965 = vrot.lane.b32.xlu0 %v955, 66
        %v966 = vpop.permute.xlu0 %965
        %967 = vrot.lane.b32.xlu0 %v956, 66
        %v968 = vpop.permute.xlu0 %967
        %969 = vrot.lane.b32.xlu0 %v957, 66
        %v970 = vpop.permute.xlu0 %969
        %971 = vrot.lane.b32.xlu0 %v958, 66
        %v972 = vpop.permute.xlu0 %971
        %973 = vrot.lane.b32.xlu0 %v959, 66
        %v974 = vpop.permute.xlu0 %973
        %vm975 = vcmask 539648
        %v976 = vsel %vm975, %v966, %v968
        %v977 = vsel %vm975, %v968, %v970
        %v978 = vsel %vm975, %v970, %v972
        %v979 = vsel %vm975, %v972, %v974
        %984 = vst [vmem:[#allocation3 + $0x220] sm:$0xff] %v976
        %985 = vst [vmem:[#allocation3 + $0x228] sm:$0xff] %v977
        %986 = vst [vmem:[#allocation3 + $0x230] sm:$0xff] %v978
        %987 = vst [vmem:[#allocation3 + $0x238] sm:$0xff] %v979
        %v988 = vld [vmem:[#allocation2] sm:$0xff]
        %v989 = vld [vmem:[#allocation2 + $0x8] sm:$0xff]
        %v990 = vld [vmem:[#allocation2 + $0x10] sm:$0xff]
        %v991 = vld [vmem:[#allocation2 + $0x18] sm:$0xff]
        %v992 = vld [vmem:[#allocation2 + $0x20] sm:$0xff]
        %998 = vrot.lane.b32.xlu0 %v988, 65
        %v999 = vpop.permute.xlu0 %998
        %1000 = vrot.lane.b32.xlu0 %v989, 65
        %v1001 = vpop.permute.xlu0 %1000
        %1002 = vrot.lane.b32.xlu0 %v990, 65
        %v1003 = vpop.permute.xlu0 %1002
        %1004 = vrot.lane.b32.xlu0 %v991, 65
        %v1005 = vpop.permute.xlu0 %1004
        %1006 = vrot.lane.b32.xlu0 %v992, 65
        %v1007 = vpop.permute.xlu0 %1006
        %vm1008 = vcmask 531456
        %v1009 = vsel %vm1008, %v999, %v1001
        %v1010 = vsel %vm1008, %v1001, %v1003
        %v1011 = vsel %vm1008, %v1003, %v1005
        %v1012 = vsel %vm1008, %v1005, %v1007
        %1017 = vst [vmem:[#allocation3 + $0x240] sm:$0xff] %v1009
        %1018 = vst [vmem:[#allocation3 + $0x248] sm:$0xff] %v1010
        %1019 = vst [vmem:[#allocation3 + $0x250] sm:$0xff] %v1011
        %1020 = vst [vmem:[#allocation3 + $0x258] sm:$0xff] %v1012
        %v1021 = vld [vmem:[#allocation2] sm:$0xff]
        %v1022 = vld [vmem:[#allocation2 + $0x8] sm:$0xff]
        %v1023 = vld [vmem:[#allocation2 + $0x10] sm:$0xff]
        %v1024 = vld [vmem:[#allocation2 + $0x18] sm:$0xff]
        %v1025 = vld [vmem:[#allocation2 + $0x20] sm:$0xff]
        %1031 = vrot.lane.b32.xlu0 %v1021, 64
        %v1032 = vpop.permute.xlu0 %1031
        %1033 = vrot.lane.b32.xlu0 %v1022, 64
        %v1034 = vpop.permute.xlu0 %1033
        %1035 = vrot.lane.b32.xlu0 %v1023, 64
        %v1036 = vpop.permute.xlu0 %1035
        %1037 = vrot.lane.b32.xlu0 %v1024, 64
        %v1038 = vpop.permute.xlu0 %1037
        %1039 = vrot.lane.b32.xlu0 %v1025, 64
        %v1040 = vpop.permute.xlu0 %1039
        %vm1041 = vcmask 523264
        %v1042 = vsel %vm1041, %v1032, %v1034
        %v1043 = vsel %vm1041, %v1034, %v1036
        %v1044 = vsel %vm1041, %v1036, %v1038
        %v1045 = vsel %vm1041, %v1038, %v1040
        %1050 = vst [vmem:[#allocation3 + $0x260] sm:$0xff] %v1042
        %1051 = vst [vmem:[#allocation3 + $0x268] sm:$0xff] %v1043
        %1052 = vst [vmem:[#allocation3 + $0x270] sm:$0xff] %v1044
        %1053 = vst [vmem:[#allocation3 + $0x278] sm:$0xff] %v1045
        %v1054 = vld [vmem:[#allocation2] sm:$0xff]
        %v1055 = vld [vmem:[#allocation2 + $0x8] sm:$0xff]
        %v1056 = vld [vmem:[#allocation2 + $0x10] sm:$0xff]
        %v1057 = vld [vmem:[#allocation2 + $0x18] sm:$0xff]
        %v1058 = vld [vmem:[#allocation2 + $0x20] sm:$0xff]
        %1064 = vrot.lane.b32.xlu0 %v1054, 48
        %v1065 = vpop.permute.xlu0 %1064
        %1066 = vrot.lane.b32.xlu0 %v1055, 48
        %v1067 = vpop.permute.xlu0 %1066
        %1068 = vrot.lane.b32.xlu0 %v1056, 48
        %v1069 = vpop.permute.xlu0 %1068
        %1070 = vrot.lane.b32.xlu0 %v1057, 48
        %v1071 = vpop.permute.xlu0 %1070
        %1072 = vrot.lane.b32.xlu0 %v1058, 48
        %v1073 = vpop.permute.xlu0 %1072
        %vm1074 = vcmask 392192
        %v1075 = vsel %vm1074, %v1065, %v1067
        %v1076 = vsel %vm1074, %v1067, %v1069
        %v1077 = vsel %vm1074, %v1069, %v1071
        %v1078 = vsel %vm1074, %v1071, %v1073
        %1083 = vst [vmem:[#allocation3 + $0x280] sm:$0xff] %v1075
        %1084 = vst [vmem:[#allocation3 + $0x288] sm:$0xff] %v1076
        %1085 = vst [vmem:[#allocation3 + $0x290] sm:$0xff] %v1077
        %1086 = vst [vmem:[#allocation3 + $0x298] sm:$0xff] %v1078
        %v1087 = vld [vmem:[#allocation2] sm:$0xff]
        %v1088 = vld [vmem:[#allocation2 + $0x8] sm:$0xff]
        %v1089 = vld [vmem:[#allocation2 + $0x10] sm:$0xff]
        %v1090 = vld [vmem:[#allocation2 + $0x18] sm:$0xff]
        %v1091 = vld [vmem:[#allocation2 + $0x20] sm:$0xff]
        %1097 = vrot.lane.b32.xlu0 %v1087, 47
        %v1098 = vpop.permute.xlu0 %1097
        %1099 = vrot.lane.b32.xlu0 %v1088, 47
        %v1100 = vpop.permute.xlu0 %1099
        %1101 = vrot.lane.b32.xlu0 %v1089, 47
        %v1102 = vpop.permute.xlu0 %1101
        %1103 = vrot.lane.b32.xlu0 %v1090, 47
        %v1104 = vpop.permute.xlu0 %1103
        %1105 = vrot.lane.b32.xlu0 %v1091, 47
        %v1106 = vpop.permute.xlu0 %1105
        %vm1107 = vcmask 384000
        %v1108 = vsel %vm1107, %v1098, %v1100
        %v1109 = vsel %vm1107, %v1100, %v1102
        %v1110 = vsel %vm1107, %v1102, %v1104
        %v1111 = vsel %vm1107, %v1104, %v1106
        %1116 = vst [vmem:[#allocation3 + $0x2a0] sm:$0xff] %v1108
        %1117 = vst [vmem:[#allocation3 + $0x2a8] sm:$0xff] %v1109
        %1118 = vst [vmem:[#allocation3 + $0x2b0] sm:$0xff] %v1110
        %1119 = vst [vmem:[#allocation3 + $0x2b8] sm:$0xff] %v1111
        %v1120 = vld [vmem:[#allocation2] sm:$0xff]
        %v1121 = vld [vmem:[#allocation2 + $0x8] sm:$0xff]
        %v1122 = vld [vmem:[#allocation2 + $0x10] sm:$0xff]
        %v1123 = vld [vmem:[#allocation2 + $0x18] sm:$0xff]
        %v1124 = vld [vmem:[#allocation2 + $0x20] sm:$0xff]
        %1130 = vrot.lane.b32.xlu0 %v1120, 46
        %v1131 = vpop.permute.xlu0 %1130
        %1132 = vrot.lane.b32.xlu0 %v1121, 46
        %v1133 = vpop.permute.xlu0 %1132
        %1134 = vrot.lane.b32.xlu0 %v1122, 46
        %v1135 = vpop.permute.xlu0 %1134
        %1136 = vrot.lane.b32.xlu0 %v1123, 46
        %v1137 = vpop.permute.xlu0 %1136
        %1138 = vrot.lane.b32.xlu0 %v1124, 46
        %v1139 = vpop.permute.xlu0 %1138
        %vm1140 = vcmask 375808
        %v1141 = vsel %vm1140, %v1131, %v1133
        %v1142 = vsel %vm1140, %v1133, %v1135
        %v1143 = vsel %vm1140, %v1135, %v1137
        %v1144 = vsel %vm1140, %v1137, %v1139
        %1149 = vst [vmem:[#allocation3 + $0x2c0] sm:$0xff] %v1141
        %1150 = vst [vmem:[#allocation3 + $0x2c8] sm:$0xff] %v1142
        %1151 = vst [vmem:[#allocation3 + $0x2d0] sm:$0xff] %v1143
        %1152 = vst [vmem:[#allocation3 + $0x2d8] sm:$0xff] %v1144
        %v1153 = vld [vmem:[#allocation2] sm:$0xff]
        %v1154 = vld [vmem:[#allocation2 + $0x8] sm:$0xff]
        %v1155 = vld [vmem:[#allocation2 + $0x10] sm:$0xff]
        %v1156 = vld [vmem:[#allocation2 + $0x18] sm:$0xff]
        %v1157 = vld [vmem:[#allocation2 + $0x20] sm:$0xff]
        %1163 = vrot.lane.b32.xlu0 %v1153, 45
        %v1164 = vpop.permute.xlu0 %1163
        %1165 = vrot.lane.b32.xlu0 %v1154, 45
        %v1166 = vpop.permute.xlu0 %1165
        %1167 = vrot.lane.b32.xlu0 %v1155, 45
        %v1168 = vpop.permute.xlu0 %1167
        %1169 = vrot.lane.b32.xlu0 %v1156, 45
        %v1170 = vpop.permute.xlu0 %1169
        %1171 = vrot.lane.b32.xlu0 %v1157, 45
        %v1172 = vpop.permute.xlu0 %1171
        %vm1173 = vcmask 367616
        %v1174 = vsel %vm1173, %v1164, %v1166
        %v1175 = vsel %vm1173, %v1166, %v1168
        %v1176 = vsel %vm1173, %v1168, %v1170
        %v1177 = vsel %vm1173, %v1170, %v1172
        %1182 = vst [vmem:[#allocation3 + $0x2e0] sm:$0xff] %v1174
        %1183 = vst [vmem:[#allocation3 + $0x2e8] sm:$0xff] %v1175
        %1184 = vst [vmem:[#allocation3 + $0x2f0] sm:$0xff] %v1176
        %1185 = vst [vmem:[#allocation3 + $0x2f8] sm:$0xff] %v1177
        %v1186 = vld [vmem:[#allocation2] sm:$0xff]
        %v1187 = vld [vmem:[#allocation2 + $0x8] sm:$0xff]
        %v1188 = vld [vmem:[#allocation2 + $0x10] sm:$0xff]
        %v1189 = vld [vmem:[#allocation2 + $0x18] sm:$0xff]
        %v1190 = vld [vmem:[#allocation2 + $0x20] sm:$0xff]
        %1196 = vrot.lane.b32.xlu0 %v1186, 44
        %v1197 = vpop.permute.xlu0 %1196
        %1198 = vrot.lane.b32.xlu0 %v1187, 44
        %v1199 = vpop.permute.xlu0 %1198
        %1200 = vrot.lane.b32.xlu0 %v1188, 44
        %v1201 = vpop.permute.xlu0 %1200
        %1202 = vrot.lane.b32.xlu0 %v1189, 44
        %v1203 = vpop.permute.xlu0 %1202
        %1204 = vrot.lane.b32.xlu0 %v1190, 44
        %v1205 = vpop.permute.xlu0 %1204
        %vm1206 = vcmask 359424
        %v1207 = vsel %vm1206, %v1197, %v1199
        %v1208 = vsel %vm1206, %v1199, %v1201
        %v1209 = vsel %vm1206, %v1201, %v1203
        %v1210 = vsel %vm1206, %v1203, %v1205
        %1215 = vst [vmem:[#allocation3 + $0x300] sm:$0xff] %v1207
        %1216 = vst [vmem:[#allocation3 + $0x308] sm:$0xff] %v1208
        %1217 = vst [vmem:[#allocation3 + $0x310] sm:$0xff] %v1209
        %1218 = vst [vmem:[#allocation3 + $0x318] sm:$0xff] %v1210
        %v1219 = vld [vmem:[%s2] sm:$0xff]
        %v1220 = vld [vmem:[%s2 + $0x8] sm:$0xff]
        %v1221 = vld [vmem:[#allocation3] sm:$0xff]
        %v1222 = vld [vmem:[#allocation3 + $0x8] sm:$0xff]
        %v1223 = vld [vmem:[#allocation3 + $0x10] sm:$0xff]
        %v1224 = vld [vmem:[#allocation3 + $0x18] sm:$0xff]
        %v1225 = vld [vmem:[#allocation3 + $0x20] sm:$0xff]
        %v1226 = vld [vmem:[#allocation3 + $0x28] sm:$0xff]
        %v1227 = vld [vmem:[#allocation3 + $0x30] sm:$0xff]
        %v1228 = vld [vmem:[#allocation3 + $0x38] sm:$0xff]
        %v1229 = vld [vmem:[#allocation3 + $0x40] sm:$0xff]
        %v1230 = vld [vmem:[#allocation3 + $0x48] sm:$0xff]
        %v1231 = vld [vmem:[#allocation3 + $0x50] sm:$0xff]
        %v1232 = vld [vmem:[#allocation3 + $0x58] sm:$0xff]
        %v1233 = vld [vmem:[#allocation3 + $0x60] sm:$0xff]
        %v1234 = vld [vmem:[#allocation3 + $0x68] sm:$0xff]
        %v1235 = vld [vmem:[#allocation3 + $0x70] sm:$0xff]
        %v1236 = vld [vmem:[#allocation3 + $0x78] sm:$0xff]
        %v1237 = vld [vmem:[#allocation3 + $0x80] sm:$0xff]
        %v1238 = vld [vmem:[#allocation3 + $0x88] sm:$0xff]
        %v1239 = vld [vmem:[#allocation3 + $0x90] sm:$0xff]
        %v1240 = vld [vmem:[#allocation3 + $0x98] sm:$0xff]
        %v1241 = vld [vmem:[#allocation3 + $0xa0] sm:$0xff]
        %v1242 = vld [vmem:[#allocation3 + $0xa8] sm:$0xff]
        %v1243 = vld [vmem:[#allocation3 + $0xb0] sm:$0xff]
        %v1244 = vld [vmem:[#allocation3 + $0xb8] sm:$0xff]
        %v1245 = vld [vmem:[#allocation3 + $0xc0] sm:$0xff]
        %v1246 = vld [vmem:[#allocation3 + $0xc8] sm:$0xff]
        %v1247 = vld [vmem:[#allocation3 + $0xd0] sm:$0xff]
        %v1248 = vld [vmem:[#allocation3 + $0xd8] sm:$0xff]
        %v1249 = vld [vmem:[#allocation3 + $0xe0] sm:$0xff]
        %v1250 = vld [vmem:[#allocation3 + $0xe8] sm:$0xff]
        %v1251 = vld [vmem:[#allocation3 + $0xf0] sm:$0xff]
        %v1252 = vld [vmem:[#allocation3 + $0xf8] sm:$0xff]
        %v1253 = vld [vmem:[#allocation3 + $0x100] sm:$0xff]
        %v1254 = vld [vmem:[#allocation3 + $0x108] sm:$0xff]
        %v1255 = vld [vmem:[#allocation3 + $0x110] sm:$0xff]
        %v1256 = vld [vmem:[#allocation3 + $0x118] sm:$0xff]
        %v1257 = vld [vmem:[#allocation3 + $0x120] sm:$0xff]
        %v1258 = vld [vmem:[#allocation3 + $0x128] sm:$0xff]
        %v1259 = vld [vmem:[#allocation3 + $0x130] sm:$0xff]
        %v1260 = vld [vmem:[#allocation3 + $0x138] sm:$0xff]
        %v1261 = vld [vmem:[#allocation3 + $0x140] sm:$0xff]
        %v1262 = vld [vmem:[#allocation3 + $0x148] sm:$0xff]
        %v1263 = vld [vmem:[#allocation3 + $0x150] sm:$0xff]
        %v1264 = vld [vmem:[#allocation3 + $0x158] sm:$0xff]
        %v1265 = vld [vmem:[#allocation3 + $0x160] sm:$0xff]
        %v1266 = vld [vmem:[#allocation3 + $0x168] sm:$0xff]
        %v1267 = vld [vmem:[#allocation3 + $0x170] sm:$0xff]
        %v1268 = vld [vmem:[#allocation3 + $0x178] sm:$0xff]
        %v1269 = vld [vmem:[#allocation3 + $0x180] sm:$0xff]
        %v1270 = vld [vmem:[#allocation3 + $0x188] sm:$0xff]
        %v1271 = vld [vmem:[#allocation3 + $0x190] sm:$0xff]
        %v1272 = vld [vmem:[#allocation3 + $0x198] sm:$0xff]
        %v1273 = vld [vmem:[#allocation3 + $0x1a0] sm:$0xff]
        %v1274 = vld [vmem:[#allocation3 + $0x1a8] sm:$0xff]
        %v1275 = vld [vmem:[#allocation3 + $0x1b0] sm:$0xff]
        %v1276 = vld [vmem:[#allocation3 + $0x1b8] sm:$0xff]
        %v1277 = vld [vmem:[#allocation3 + $0x1c0] sm:$0xff]
        %v1278 = vld [vmem:[#allocation3 + $0x1c8] sm:$0xff]
        %v1279 = vld [vmem:[#allocation3 + $0x1d0] sm:$0xff]
        %v1280 = vld [vmem:[#allocation3 + $0x1d8] sm:$0xff]
        %v1281 = vld [vmem:[#allocation3 + $0x1e0] sm:$0xff]
        %v1282 = vld [vmem:[#allocation3 + $0x1e8] sm:$0xff]
        %v1283 = vld [vmem:[#allocation3 + $0x1f0] sm:$0xff]
        %v1284 = vld [vmem:[#allocation3 + $0x1f8] sm:$0xff]
        %v1285 = vld [vmem:[#allocation3 + $0x200] sm:$0xff]
        %v1286 = vld [vmem:[#allocation3 + $0x208] sm:$0xff]
        %v1287 = vld [vmem:[#allocation3 + $0x210] sm:$0xff]
        %v1288 = vld [vmem:[#allocation3 + $0x218] sm:$0xff]
        %v1289 = vld [vmem:[#allocation3 + $0x220] sm:$0xff]
        %v1290 = vld [vmem:[#allocation3 + $0x228] sm:$0xff]
        %v1291 = vld [vmem:[#allocation3 + $0x230] sm:$0xff]
        %v1292 = vld [vmem:[#allocation3 + $0x238] sm:$0xff]
        %v1293 = vld [vmem:[#allocation3 + $0x240] sm:$0xff]
        %v1294 = vld [vmem:[#allocation3 + $0x248] sm:$0xff]
        %v1295 = vld [vmem:[#allocation3 + $0x250] sm:$0xff]
        %v1296 = vld [vmem:[#allocation3 + $0x258] sm:$0xff]
        %v1297 = vld [vmem:[#allocation3 + $0x260] sm:$0xff]
        %v1298 = vld [vmem:[#allocation3 + $0x268] sm:$0xff]
        %v1299 = vld [vmem:[#allocation3 + $0x270] sm:$0xff]
        %v1300 = vld [vmem:[#allocation3 + $0x278] sm:$0xff]
        %v1301 = vld [vmem:[#allocation3 + $0x280] sm:$0xff]
        %v1302 = vld [vmem:[#allocation3 + $0x288] sm:$0xff]
        %v1303 = vld [vmem:[#allocation3 + $0x290] sm:$0xff]
        %v1304 = vld [vmem:[#allocation3 + $0x298] sm:$0xff]
        %v1305 = vld [vmem:[#allocation3 + $0x2a0] sm:$0xff]
        %v1306 = vld [vmem:[#allocation3 + $0x2a8] sm:$0xff]
        %v1307 = vld [vmem:[#allocation3 + $0x2b0] sm:$0xff]
        %v1308 = vld [vmem:[#allocation3 + $0x2b8] sm:$0xff]
        %v1309 = vld [vmem:[#allocation3 + $0x2c0] sm:$0xff]
        %v1310 = vld [vmem:[#allocation3 + $0x2c8] sm:$0xff]
        %v1311 = vld [vmem:[#allocation3 + $0x2d0] sm:$0xff]
        %v1312 = vld [vmem:[#allocation3 + $0x2d8] sm:$0xff]
        %v1313 = vld [vmem:[#allocation3 + $0x2e0] sm:$0xff]
        %v1314 = vld [vmem:[#allocation3 + $0x2e8] sm:$0xff]
        %v1315 = vld [vmem:[#allocation3 + $0x2f0] sm:$0xff]
        %v1316 = vld [vmem:[#allocation3 + $0x2f8] sm:$0xff]
        %v1317 = vld [vmem:[#allocation3 + $0x300] sm:$0xff]
        %v1318 = vld [vmem:[#allocation3 + $0x308] sm:$0xff]
        %v1319 = vld [vmem:[#allocation3 + $0x310] sm:$0xff]
        %v1320 = vld [vmem:[#allocation3 + $0x318] sm:$0xff]
        %v1321 = vld [vmem:[%s3] sm:$0xff]
        %1323 = vset.pattern.permute.xlu0 0
        %1324 = vperm.xlu0 %1323, %v1321
        %v1325 = vpop.permute.xlu0 %1324
        %vm1327 = vcmask 588800
        %v1329 = vsel %vm1327, %v1220, 0
        %1331 = vmatpush.msra.mxu0 %v1281
        %1332 = vmatpush.msra.mxu0 %v1277
        %1333 = vmatpush.msra.mxu0 %v1273
        %1334 = vmatpush.msra.mxu0 %v1269
        %1335 = vmatpush.msra.mxu0 %v1265
        %1336 = vmatpush.msra.mxu0 %v1261
        %1337 = vmatpush.msra.mxu0 %v1257
        %1338 = vmatpush.msra.mxu0 %v1253
        %1339 = vmatpush.msra.mxu0 %v1249
        %1340 = vmatpush.msra.mxu0 %v1245
        %1341 = vmatpush.msra.mxu0 %v1241
        %1342 = vmatpush.msra.mxu0 %v1237
        %1343 = vmatpush.msra.mxu0 %v1233
        %1344 = vmatpush.msra.mxu0 %v1229
        %1345 = vmatpush.msra.mxu0 %v1225
        %1346 = vmatpush.msra.mxu0 %v1221
        %1347 = vmatmul.f32.gmra.mxu0 %v1219
        %v1348 = vpop.f32.mrf.mxu0
        %v1349 = vadd.f32 %v1325, %v1348
        %1350 = vdwg.mxu0
        %1351 = vmatpush.msra.mxu0 0.0
        %1352 = vmatpush.msra.mxu0 0.0
        %1353 = vmatpush.msra.mxu0 0.0
        %1354 = vmatpush.msra.mxu0 0.0
        %1355 = vmatpush.msra.mxu0 0.0
        %1356 = vmatpush.msra.mxu0 0.0
        %1357 = vmatpush.msra.mxu0 0.0
        %1358 = vmatpush.msra.mxu0 %v1317
        %1359 = vmatpush.msra.mxu0 %v1313
        %1360 = vmatpush.msra.mxu0 %v1309
        %1361 = vmatpush.msra.mxu0 %v1305
        %1362 = vmatpush.msra.mxu0 %v1301
        %1363 = vmatpush.msra.mxu0 %v1297
        %1364 = vmatpush.msra.mxu0 %v1293
        %1365 = vmatpush.msra.mxu0 %v1289
        %1366 = vmatpush.msra.mxu0 %v1285
        %1367 = vmatmul.f32.gmra.mxu0 %v1329
        %v1368 = vpop.f32.mrf.mxu0
        %v1369 = vadd.f32 %v1349, %v1368
        %1370 = vdwg.mxu0
        %1371 = vmatpush.msra.mxu0 %v1282
        %1372 = vmatpush.msra.mxu0 %v1278
        %1373 = vmatpush.msra.mxu0 %v1274
        %1374 = vmatpush.msra.mxu0 %v1270
        %1375 = vmatpush.msra.mxu0 %v1266
        %1376 = vmatpush.msra.mxu0 %v1262
        %1377 = vmatpush.msra.mxu0 %v1258
        %1378 = vmatpush.msra.mxu0 %v1254
        %1379 = vmatpush.msra.mxu0 %v1250
        %1380 = vmatpush.msra.mxu0 %v1246
        %1381 = vmatpush.msra.mxu0 %v1242
        %1382 = vmatpush.msra.mxu0 %v1238
        %1383 = vmatpush.msra.mxu0 %v1234
        %1384 = vmatpush.msra.mxu0 %v1230
        %1385 = vmatpush.msra.mxu0 %v1226
        %1386 = vmatpush.msra.mxu0 %v1222
        %1387 = vmatmul.f32.gmra.mxu0 %v1219
        %v1388 = vpop.f32.mrf.mxu0
        %v1389 = vadd.f32 %v1325, %v1388
        %1390 = vdwg.mxu0
        %1391 = vmatpush.msra.mxu0 0.0
        %1392 = vmatpush.msra.mxu0 0.0
        %1393 = vmatpush.msra.mxu0 0.0
        %1394 = vmatpush.msra.mxu0 0.0
        %1395 = vmatpush.msra.mxu0 0.0
        %1396 = vmatpush.msra.mxu0 0.0
        %1397 = vmatpush.msra.mxu0 0.0
        %1398 = vmatpush.msra.mxu0 %v1318
        %1399 = vmatpush.msra.mxu0 %v1314
        %1400 = vmatpush.msra.mxu0 %v1310
        %1401 = vmatpush.msra.mxu0 %v1306
        %1402 = vmatpush.msra.mxu0 %v1302
        %1403 = vmatpush.msra.mxu0 %v1298
        %1404 = vmatpush.msra.mxu0 %v1294
        %1405 = vmatpush.msra.mxu0 %v1290
        %1406 = vmatpush.msra.mxu0 %v1286
        %1407 = vmatmul.f32.gmra.mxu0 %v1329
        %v1408 = vpop.f32.mrf.mxu0
        %v1409 = vadd.f32 %v1389, %v1408
        %1410 = vdwg.mxu0
        %1411 = vmatpush.msra.mxu0 %v1283
        %1412 = vmatpush.msra.mxu0 %v1279
        %1413 = vmatpush.msra.mxu0 %v1275
        %1414 = vmatpush.msra.mxu0 %v1271
        %1415 = vmatpush.msra.mxu0 %v1267
        %1416 = vmatpush.msra.mxu0 %v1263
        %1417 = vmatpush.msra.mxu0 %v1259
        %1418 = vmatpush.msra.mxu0 %v1255
        %1419 = vmatpush.msra.mxu0 %v1251
        %1420 = vmatpush.msra.mxu0 %v1247
        %1421 = vmatpush.msra.mxu0 %v1243
        %1422 = vmatpush.msra.mxu0 %v1239
        %1423 = vmatpush.msra.mxu0 %v1235
        %1424 = vmatpush.msra.mxu0 %v1231
        %1425 = vmatpush.msra.mxu0 %v1227
        %1426 = vmatpush.msra.mxu0 %v1223
        %1427 = vmatmul.f32.gmra.mxu0 %v1219
        %v1428 = vpop.f32.mrf.mxu0
        %v1429 = vadd.f32 %v1325, %v1428
        %1430 = vdwg.mxu0
        %1431 = vmatpush.msra.mxu0 0.0
        %1432 = vmatpush.msra.mxu0 0.0
        %1433 = vmatpush.msra.mxu0 0.0
        %1434 = vmatpush.msra.mxu0 0.0
        %1435 = vmatpush.msra.mxu0 0.0
        %1436 = vmatpush.msra.mxu0 0.0
        %1437 = vmatpush.msra.mxu0 0.0
        %1438 = vmatpush.msra.mxu0 %v1319
        %1439 = vmatpush.msra.mxu0 %v1315
        %1440 = vmatpush.msra.mxu0 %v1311
        %1441 = vmatpush.msra.mxu0 %v1307
        %1442 = vmatpush.msra.mxu0 %v1303
        %1443 = vmatpush.msra.mxu0 %v1299
        %1444 = vmatpush.msra.mxu0 %v1295
        %1445 = vmatpush.msra.mxu0 %v1291
        %1446 = vmatpush.msra.mxu0 %v1287
        %1447 = vmatmul.f32.gmra.mxu0 %v1329
        %v1448 = vpop.f32.mrf.mxu0
        %v1449 = vadd.f32 %v1429, %v1448
        %1450 = vdwg.mxu0
        %1451 = vmatpush.msra.mxu0 %v1284
        %1452 = vmatpush.msra.mxu0 %v1280
        %1453 = vmatpush.msra.mxu0 %v1276
        %1454 = vmatpush.msra.mxu0 %v1272
        %1455 = vmatpush.msra.mxu0 %v1268
        %1456 = vmatpush.msra.mxu0 %v1264
        %1457 = vmatpush.msra.mxu0 %v1260
        %1458 = vmatpush.msra.mxu0 %v1256
        %1459 = vmatpush.msra.mxu0 %v1252
        %1460 = vmatpush.msra.mxu0 %v1248
        %1461 = vmatpush.msra.mxu0 %v1244
        %1462 = vmatpush.msra.mxu0 %v1240
        %1463 = vmatpush.msra.mxu0 %v1236
        %1464 = vmatpush.msra.mxu0 %v1232
        %1465 = vmatpush.msra.mxu0 %v1228
        %1466 = vmatpush.msra.mxu0 %v1224
        %1467 = vmatmul.f32.gmra.mxu0 %v1219
        %v1468 = vpop.f32.mrf.mxu0
        %v1469 = vadd.f32 %v1325, %v1468
        %1470 = vdwg.mxu0
        %1471 = vmatpush.msra.mxu0 0.0
        %1472 = vmatpush.msra.mxu0 0.0
        %1473 = vmatpush.msra.mxu0 0.0
        %1474 = vmatpush.msra.mxu0 0.0
        %1475 = vmatpush.msra.mxu0 0.0
        %1476 = vmatpush.msra.mxu0 0.0
        %1477 = vmatpush.msra.mxu0 0.0
        %1478 = vmatpush.msra.mxu0 %v1320
        %1479 = vmatpush.msra.mxu0 %v1316
        %1480 = vmatpush.msra.mxu0 %v1312
        %1481 = vmatpush.msra.mxu0 %v1308
        %1482 = vmatpush.msra.mxu0 %v1304
        %1483 = vmatpush.msra.mxu0 %v1300
        %1484 = vmatpush.msra.mxu0 %v1296
        %1485 = vmatpush.msra.mxu0 %v1292
        %1486 = vmatpush.msra.mxu0 %v1288
        %1487 = vmatmul.f32.gmra.mxu0 %v1329
        %v1488 = vpop.f32.mrf.mxu0
        %v1489 = vadd.f32 %v1469, %v1488
        %1490 = vdwg.mxu0
        %v1491 = vmax.f32 %v1369, 0.0
        %v1492 = vmax.f32 %v1409, 0.0
        %v1493 = vmax.f32 %v1449, 0.0
        %v1494 = vmax.f32 %v1489, 0.0
        %v1496 = vperm.slane %v418, 0
        %v1497 = vperm.slane %v418, 1
        %v1498 = vperm.slane %v418, 2
        %v1499 = vperm.slane %v418, 3
        %v1504 = vmul.f32 %v1491, %v1496
        %v1505 = vmul.f32 %v1492, %v1497
        %v1506 = vmul.f32 %v1493, %v1498
        %v1507 = vmul.f32 %v1494, %v1499
        %1512 = vrot.lane.b32.xlu0 %v1504, 42
        %v1513 = vpop.permute.xlu0 %1512
        %1514 = vrot.lane.b32.xlu0 %v1505, 42
        %v1515 = vpop.permute.xlu0 %1514
        %1516 = vrot.lane.b32.xlu0 %v1506, 42
        %v1517 = vpop.permute.xlu0 %1516
        %1518 = vrot.lane.b32.xlu0 %v1507, 42
        %v1519 = vpop.permute.xlu0 %1518
        %vm1520 = vcmask 343040
        %v1521 = vsel %vm1520, %v1513, %v1515
        %v1522 = vsel %vm1520, %v1515, %v1517
        %v1523 = vsel %vm1520, %v1517, %v1519
        %vm1529 = vcmask 1047888
        %1530 = vst.msk [vmem:[#allocation2] sm:$0xff] %vm1529, %v1513
        %1531 = vst [vmem:[#allocation2 + $0x8] sm:$0xff] %v1521
        %1532 = vst [vmem:[#allocation2 + $0x10] sm:$0xff] %v1522
        %1533 = vst [vmem:[#allocation2 + $0x18] sm:$0xff] %v1523
        %1534 = vst.msk [vmem:[#allocation2 + $0x20] sm:$0xff] %vm1520, %v1519
        %v1535 = vld [vmem:[#allocation2] sm:$0xff]
        %v1536 = vld [vmem:[#allocation2 + $0x8] sm:$0xff]
        %v1537 = vld [vmem:[#allocation2 + $0x10] sm:$0xff]
        %v1538 = vld [vmem:[#allocation2 + $0x18] sm:$0xff]
        %1539 = vst [vmem:[#allocation3] sm:$0xff] %v1535
        %1540 = vst [vmem:[#allocation3 + $0x8] sm:$0xff] %v1536
        %1541 = vst [vmem:[#allocation3 + $0x10] sm:$0xff] %v1537
        %1542 = vst [vmem:[#allocation3 + $0x18] sm:$0xff] %v1538
        %v1543 = vld [vmem:[#allocation2] sm:$0xff]
        %v1544 = vld [vmem:[#allocation2 + $0x8] sm:$0xff]
        %v1545 = vld [vmem:[#allocation2 + $0x10] sm:$0xff]
        %v1546 = vld [vmem:[#allocation2 + $0x18] sm:$0xff]
        %v1547 = vld [vmem:[#allocation2 + $0x20] sm:$0xff]
        %1553 = vrot.lane.b32.xlu0 %v1543, 127
        %v1554 = vpop.permute.xlu0 %1553
        %1555 = vrot.lane.b32.xlu0 %v1544, 127
        %v1556 = vpop.permute.xlu0 %1555
        %1557 = vrot.lane.b32.xlu0 %v1545, 127
        %v1558 = vpop.permute.xlu0 %1557
        %1559 = vrot.lane.b32.xlu0 %v1546, 127
        %v1560 = vpop.permute.xlu0 %1559
        %1561 = vrot.lane.b32.xlu0 %v1547, 127
        %v1562 = vpop.permute.xlu0 %1561
        %v1563 = vsel %vm447, %v1554, %v1556
        %v1564 = vsel %vm447, %v1556, %v1558
        %v1565 = vsel %vm447, %v1558, %v1560
        %v1566 = vsel %vm447, %v1560, %v1562
        %1571 = vst [vmem:[#allocation3 + $0x20] sm:$0xff] %v1563
        %1572 = vst [vmem:[#allocation3 + $0x28] sm:$0xff] %v1564
        %1573 = vst [vmem:[#allocation3 + $0x30] sm:$0xff] %v1565
        %1574 = vst [vmem:[#allocation3 + $0x38] sm:$0xff] %v1566
        %v1575 = vld [vmem:[#allocation2] sm:$0xff]
        %v1576 = vld [vmem:[#allocation2 + $0x8] sm:$0xff]
        %v1577 = vld [vmem:[#allocation2 + $0x10] sm:$0xff]
        %v1578 = vld [vmem:[#allocation2 + $0x18] sm:$0xff]
        %v1579 = vld [vmem:[#allocation2 + $0x20] sm:$0xff]
        %1585 = vrot.lane.b32.xlu0 %v1575, 126
        %v1586 = vpop.permute.xlu0 %1585
        %1587 = vrot.lane.b32.xlu0 %v1576, 126
        %v1588 = vpop.permute.xlu0 %1587
        %1589 = vrot.lane.b32.xlu0 %v1577, 126
        %v1590 = vpop.permute.xlu0 %1589
        %1591 = vrot.lane.b32.xlu0 %v1578, 126
        %v1592 = vpop.permute.xlu0 %1591
        %1593 = vrot.lane.b32.xlu0 %v1579, 126
        %v1594 = vpop.permute.xlu0 %1593
        %v1595 = vsel %vm480, %v1586, %v1588
        %v1596 = vsel %vm480, %v1588, %v1590
        %v1597 = vsel %vm480, %v1590, %v1592
        %v1598 = vsel %vm480, %v1592, %v1594
        %1603 = vst [vmem:[#allocation3 + $0x40] sm:$0xff] %v1595
        %1604 = vst [vmem:[#allocation3 + $0x48] sm:$0xff] %v1596
        %1605 = vst [vmem:[#allocation3 + $0x50] sm:$0xff] %v1597
        %1606 = vst [vmem:[#allocation3 + $0x58] sm:$0xff] %v1598
        %v1607 = vld [vmem:[#allocation2] sm:$0xff]
        %v1608 = vld [vmem:[#allocation2 + $0x8] sm:$0xff]
        %v1609 = vld [vmem:[#allocation2 + $0x10] sm:$0xff]
        %v1610 = vld [vmem:[#allocation2 + $0x18] sm:$0xff]
        %v1611 = vld [vmem:[#allocation2 + $0x20] sm:$0xff]
        %1617 = vrot.lane.b32.xlu0 %v1607, 125
        %v1618 = vpop.permute.xlu0 %1617
        %1619 = vrot.lane.b32.xlu0 %v1608, 125
        %v1620 = vpop.permute.xlu0 %1619
        %1621 = vrot.lane.b32.xlu0 %v1609, 125
        %v1622 = vpop.permute.xlu0 %1621
        %1623 = vrot.lane.b32.xlu0 %v1610, 125
        %v1624 = vpop.permute.xlu0 %1623
        %1625 = vrot.lane.b32.xlu0 %v1611, 125
        %v1626 = vpop.permute.xlu0 %1625
        %v1627 = vsel %vm513, %v1618, %v1620
        %v1628 = vsel %vm513, %v1620, %v1622
        %v1629 = vsel %vm513, %v1622, %v1624
        %v1630 = vsel %vm513, %v1624, %v1626
        %1635 = vst [vmem:[#allocation3 + $0x60] sm:$0xff] %v1627
        %1636 = vst [vmem:[#allocation3 + $0x68] sm:$0xff] %v1628
        %1637 = vst [vmem:[#allocation3 + $0x70] sm:$0xff] %v1629
        %1638 = vst [vmem:[#allocation3 + $0x78] sm:$0xff] %v1630
        %v1639 = vld [vmem:[#allocation2] sm:$0xff]
        %v1640 = vld [vmem:[#allocation2 + $0x8] sm:$0xff]
        %v1641 = vld [vmem:[#allocation2 + $0x10] sm:$0xff]
        %v1642 = vld [vmem:[#allocation2 + $0x18] sm:$0xff]
        %v1643 = vld [vmem:[#allocation2 + $0x20] sm:$0xff]
        %1649 = vrot.lane.b32.xlu0 %v1639, 124
        %v1650 = vpop.permute.xlu0 %1649
        %1651 = vrot.lane.b32.xlu0 %v1640, 124
        %v1652 = vpop.permute.xlu0 %1651
        %1653 = vrot.lane.b32.xlu0 %v1641, 124
        %v1654 = vpop.permute.xlu0 %1653
        %1655 = vrot.lane.b32.xlu0 %v1642, 124
        %v1656 = vpop.permute.xlu0 %1655
        %1657 = vrot.lane.b32.xlu0 %v1643, 124
        %v1658 = vpop.permute.xlu0 %1657
        %v1659 = vsel %vm546, %v1650, %v1652
        %v1660 = vsel %vm546, %v1652, %v1654
        %v1661 = vsel %vm546, %v1654, %v1656
        %v1662 = vsel %vm546, %v1656, %v1658
        %1667 = vst [vmem:[#allocation3 + $0x80] sm:$0xff] %v1659
        %1668 = vst [vmem:[#allocation3 + $0x88] sm:$0xff] %v1660
        %1669 = vst [vmem:[#allocation3 + $0x90] sm:$0xff] %v1661
        %1670 = vst [vmem:[#allocation3 + $0x98] sm:$0xff] %v1662
        %v1671 = vld [vmem:[#allocation2] sm:$0xff]
        %v1672 = vld [vmem:[#allocation2 + $0x8] sm:$0xff]
        %v1673 = vld [vmem:[#allocation2 + $0x10] sm:$0xff]
        %v1674 = vld [vmem:[#allocation2 + $0x18] sm:$0xff]
        %v1675 = vld [vmem:[#allocation2 + $0x20] sm:$0xff]
        %1681 = vrot.lane.b32.xlu0 %v1671, 108
        %v1682 = vpop.permute.xlu0 %1681
        %1683 = vrot.lane.b32.xlu0 %v1672, 108
        %v1684 = vpop.permute.xlu0 %1683
        %1685 = vrot.lane.b32.xlu0 %v1673, 108
        %v1686 = vpop.permute.xlu0 %1685
        %1687 = vrot.lane.b32.xlu0 %v1674, 108
        %v1688 = vpop.permute.xlu0 %1687
        %1689 = vrot.lane.b32.xlu0 %v1675, 108
        %v1690 = vpop.permute.xlu0 %1689
        %v1691 = vsel %vm579, %v1682, %v1684
        %v1692 = vsel %vm579, %v1684, %v1686
        %v1693 = vsel %vm579, %v1686, %v1688
        %v1694 = vsel %vm579, %v1688, %v1690
        %1699 = vst [vmem:[#allocation3 + $0xa0] sm:$0xff] %v1691
        %1700 = vst [vmem:[#allocation3 + $0xa8] sm:$0xff] %v1692
        %1701 = vst [vmem:[#allocation3 + $0xb0] sm:$0xff] %v1693
        %1702 = vst [vmem:[#allocation3 + $0xb8] sm:$0xff] %v1694
        %v1703 = vld [vmem:[#allocation2] sm:$0xff]
        %v1704 = vld [vmem:[#allocation2 + $0x8] sm:$0xff]
        %v1705 = vld [vmem:[#allocation2 + $0x10] sm:$0xff]
        %v1706 = vld [vmem:[#allocation2 + $0x18] sm:$0xff]
        %v1707 = vld [vmem:[#allocation2 + $0x20] sm:$0xff]
        %1713 = vrot.lane.b32.xlu0 %v1703, 107
        %v1714 = vpop.permute.xlu0 %1713
        %1715 = vrot.lane.b32.xlu0 %v1704, 107
        %v1716 = vpop.permute.xlu0 %1715
        %1717 = vrot.lane.b32.xlu0 %v1705, 107
        %v1718 = vpop.permute.xlu0 %1717
        %1719 = vrot.lane.b32.xlu0 %v1706, 107
        %v1720 = vpop.permute.xlu0 %1719
        %1721 = vrot.lane.b32.xlu0 %v1707, 107
        %v1722 = vpop.permute.xlu0 %1721
        %v1723 = vsel %vm612, %v1714, %v1716
        %v1724 = vsel %vm612, %v1716, %v1718
        %v1725 = vsel %vm612, %v1718, %v1720
        %v1726 = vsel %vm612, %v1720, %v1722
        %1731 = vst [vmem:[#allocation3 + $0xc0] sm:$0xff] %v1723
        %1732 = vst [vmem:[#allocation3 + $0xc8] sm:$0xff] %v1724
        %1733 = vst [vmem:[#allocation3 + $0xd0] sm:$0xff] %v1725
        %1734 = vst [vmem:[#allocation3 + $0xd8] sm:$0xff] %v1726
        %v1735 = vld [vmem:[#allocation2] sm:$0xff]
        %v1736 = vld [vmem:[#allocation2 + $0x8] sm:$0xff]
        %v1737 = vld [vmem:[#allocation2 + $0x10] sm:$0xff]
        %v1738 = vld [vmem:[#allocation2 + $0x18] sm:$0xff]
        %v1739 = vld [vmem:[#allocation2 + $0x20] sm:$0xff]
        %1745 = vrot.lane.b32.xlu0 %v1735, 106
        %v1746 = vpop.permute.xlu0 %1745
        %1747 = vrot.lane.b32.xlu0 %v1736, 106
        %v1748 = vpop.permute.xlu0 %1747
        %1749 = vrot.lane.b32.xlu0 %v1737, 106
        %v1750 = vpop.permute.xlu0 %1749
        %1751 = vrot.lane.b32.xlu0 %v1738, 106
        %v1752 = vpop.permute.xlu0 %1751
        %1753 = vrot.lane.b32.xlu0 %v1739, 106
        %v1754 = vpop.permute.xlu0 %1753
        %v1755 = vsel %vm645, %v1746, %v1748
        %v1756 = vsel %vm645, %v1748, %v1750
        %v1757 = vsel %vm645, %v1750, %v1752
        %v1758 = vsel %vm645, %v1752, %v1754
        %1763 = vst [vmem:[#allocation3 + $0xe0] sm:$0xff] %v1755
        %1764 = vst [vmem:[#allocation3 + $0xe8] sm:$0xff] %v1756
        %1765 = vst [vmem:[#allocation3 + $0xf0] sm:$0xff] %v1757
        %1766 = vst [vmem:[#allocation3 + $0xf8] sm:$0xff] %v1758
        %v1767 = vld [vmem:[#allocation2] sm:$0xff]
        %v1768 = vld [vmem:[#allocation2 + $0x8] sm:$0xff]
        %v1769 = vld [vmem:[#allocation2 + $0x10] sm:$0xff]
        %v1770 = vld [vmem:[#allocation2 + $0x18] sm:$0xff]
        %v1771 = vld [vmem:[#allocation2 + $0x20] sm:$0xff]
        %1777 = vrot.lane.b32.xlu0 %v1767, 105
        %v1778 = vpop.permute.xlu0 %1777
        %1779 = vrot.lane.b32.xlu0 %v1768, 105
        %v1780 = vpop.permute.xlu0 %1779
        %1781 = vrot.lane.b32.xlu0 %v1769, 105
        %v1782 = vpop.permute.xlu0 %1781
        %1783 = vrot.lane.b32.xlu0 %v1770, 105
        %v1784 = vpop.permute.xlu0 %1783
        %1785 = vrot.lane.b32.xlu0 %v1771, 105
        %v1786 = vpop.permute.xlu0 %1785
        %v1787 = vsel %vm678, %v1778, %v1780
        %v1788 = vsel %vm678, %v1780, %v1782
        %v1789 = vsel %vm678, %v1782, %v1784
        %v1790 = vsel %vm678, %v1784, %v1786
        %1795 = vst [vmem:[#allocation3 + $0x100] sm:$0xff] %v1787
        %1796 = vst [vmem:[#allocation3 + $0x108] sm:$0xff] %v1788
        %1797 = vst [vmem:[#allocation3 + $0x110] sm:$0xff] %v1789
        %1798 = vst [vmem:[#allocation3 + $0x118] sm:$0xff] %v1790
        %v1799 = vld [vmem:[#allocation2] sm:$0xff]
        %v1800 = vld [vmem:[#allocation2 + $0x8] sm:$0xff]
        %v1801 = vld [vmem:[#allocation2 + $0x10] sm:$0xff]
        %v1802 = vld [vmem:[#allocation2 + $0x18] sm:$0xff]
        %v1803 = vld [vmem:[#allocation2 + $0x20] sm:$0xff]
        %1809 = vrot.lane.b32.xlu0 %v1799, 104
        %v1810 = vpop.permute.xlu0 %1809
        %1811 = vrot.lane.b32.xlu0 %v1800, 104
        %v1812 = vpop.permute.xlu0 %1811
        %1813 = vrot.lane.b32.xlu0 %v1801, 104
        %v1814 = vpop.permute.xlu0 %1813
        %1815 = vrot.lane.b32.xlu0 %v1802, 104
        %v1816 = vpop.permute.xlu0 %1815
        %1817 = vrot.lane.b32.xlu0 %v1803, 104
        %v1818 = vpop.permute.xlu0 %1817
        %v1819 = vsel %vm711, %v1810, %v1812
        %v1820 = vsel %vm711, %v1812, %v1814
        %v1821 = vsel %vm711, %v1814, %v1816
        %v1822 = vsel %vm711, %v1816, %v1818
        %1827 = vst [vmem:[#allocation3 + $0x120] sm:$0xff] %v1819
        %1828 = vst [vmem:[#allocation3 + $0x128] sm:$0xff] %v1820
        %1829 = vst [vmem:[#allocation3 + $0x130] sm:$0xff] %v1821
        %1830 = vst [vmem:[#allocation3 + $0x138] sm:$0xff] %v1822
        %v1831 = vld [vmem:[#allocation2] sm:$0xff]
        %v1832 = vld [vmem:[#allocation2 + $0x8] sm:$0xff]
        %v1833 = vld [vmem:[#allocation2 + $0x10] sm:$0xff]
        %v1834 = vld [vmem:[#allocation2 + $0x18] sm:$0xff]
        %v1835 = vld [vmem:[#allocation2 + $0x20] sm:$0xff]
        %1841 = vrot.lane.b32.xlu0 %v1831, 88
        %v1842 = vpop.permute.xlu0 %1841
        %1843 = vrot.lane.b32.xlu0 %v1832, 88
        %v1844 = vpop.permute.xlu0 %1843
        %1845 = vrot.lane.b32.xlu0 %v1833, 88
        %v1846 = vpop.permute.xlu0 %1845
        %1847 = vrot.lane.b32.xlu0 %v1834, 88
        %v1848 = vpop.permute.xlu0 %1847
        %1849 = vrot.lane.b32.xlu0 %v1835, 88
        %v1850 = vpop.permute.xlu0 %1849
        %v1851 = vsel %vm744, %v1842, %v1844
        %v1852 = vsel %vm744, %v1844, %v1846
        %v1853 = vsel %vm744, %v1846, %v1848
        %v1854 = vsel %vm744, %v1848, %v1850
        %1859 = vst [vmem:[#allocation3 + $0x140] sm:$0xff] %v1851
        %1860 = vst [vmem:[#allocation3 + $0x148] sm:$0xff] %v1852
        %1861 = vst [vmem:[#allocation3 + $0x150] sm:$0xff] %v1853
        %1862 = vst [vmem:[#allocation3 + $0x158] sm:$0xff] %v1854
        %v1863 = vld [vmem:[#allocation2] sm:$0xff]
        %v1864 = vld [vmem:[#allocation2 + $0x8] sm:$0xff]
        %v1865 = vld [vmem:[#allocation2 + $0x10] sm:$0xff]
        %v1866 = vld [vmem:[#allocation2 + $0x18] sm:$0xff]
        %v1867 = vld [vmem:[#allocation2 + $0x20] sm:$0xff]
        %1873 = vrot.lane.b32.xlu0 %v1863, 87
        %v1874 = vpop.permute.xlu0 %1873
        %1875 = vrot.lane.b32.xlu0 %v1864, 87
        %v1876 = vpop.permute.xlu0 %1875
        %1877 = vrot.lane.b32.xlu0 %v1865, 87
        %v1878 = vpop.permute.xlu0 %1877
        %1879 = vrot.lane.b32.xlu0 %v1866, 87
        %v1880 = vpop.permute.xlu0 %1879
        %1881 = vrot.lane.b32.xlu0 %v1867, 87
        %v1882 = vpop.permute.xlu0 %1881
        %v1883 = vsel %vm777, %v1874, %v1876
        %v1884 = vsel %vm777, %v1876, %v1878
        %v1885 = vsel %vm777, %v1878, %v1880
        %v1886 = vsel %vm777, %v1880, %v1882
        %1891 = vst [vmem:[#allocation3 + $0x160] sm:$0xff] %v1883
        %1892 = vst [vmem:[#allocation3 + $0x168] sm:$0xff] %v1884
        %1893 = vst [vmem:[#allocation3 + $0x170] sm:$0xff] %v1885
        %1894 = vst [vmem:[#allocation3 + $0x178] sm:$0xff] %v1886
        %v1895 = vld [vmem:[#allocation2] sm:$0xff]
        %v1896 = vld [vmem:[#allocation2 + $0x8] sm:$0xff]
        %v1897 = vld [vmem:[#allocation2 + $0x10] sm:$0xff]
        %v1898 = vld [vmem:[#allocation2 + $0x18] sm:$0xff]
        %v1899 = vld [vmem:[#allocation2 + $0x20] sm:$0xff]
        %1905 = vrot.lane.b32.xlu0 %v1895, 86
        %v1906 = vpop.permute.xlu0 %1905
        %1907 = vrot.lane.b32.xlu0 %v1896, 86
        %v1908 = vpop.permute.xlu0 %1907
        %1909 = vrot.lane.b32.xlu0 %v1897, 86
        %v1910 = vpop.permute.xlu0 %1909
        %1911 = vrot.lane.b32.xlu0 %v1898, 86
        %v1912 = vpop.permute.xlu0 %1911
        %1913 = vrot.lane.b32.xlu0 %v1899, 86
        %v1914 = vpop.permute.xlu0 %1913
        %v1915 = vsel %vm810, %v1906, %v1908
        %v1916 = vsel %vm810, %v1908, %v1910
        %v1917 = vsel %vm810, %v1910, %v1912
        %v1918 = vsel %vm810, %v1912, %v1914
        %1923 = vst [vmem:[#allocation3 + $0x180] sm:$0xff] %v1915
        %1924 = vst [vmem:[#allocation3 + $0x188] sm:$0xff] %v1916
        %1925 = vst [vmem:[#allocation3 + $0x190] sm:$0xff] %v1917
        %1926 = vst [vmem:[#allocation3 + $0x198] sm:$0xff] %v1918
        %v1927 = vld [vmem:[#allocation2] sm:$0xff]
        %v1928 = vld [vmem:[#allocation2 + $0x8] sm:$0xff]
        %v1929 = vld [vmem:[#allocation2 + $0x10] sm:$0xff]
        %v1930 = vld [vmem:[#allocation2 + $0x18] sm:$0xff]
        %v1931 = vld [vmem:[#allocation2 + $0x20] sm:$0xff]
        %1937 = vrot.lane.b32.xlu0 %v1927, 85
        %v1938 = vpop.permute.xlu0 %1937
        %1939 = vrot.lane.b32.xlu0 %v1928, 85
        %v1940 = vpop.permute.xlu0 %1939
        %1941 = vrot.lane.b32.xlu0 %v1929, 85
        %v1942 = vpop.permute.xlu0 %1941
        %1943 = vrot.lane.b32.xlu0 %v1930, 85
        %v1944 = vpop.permute.xlu0 %1943
        %1945 = vrot.lane.b32.xlu0 %v1931, 85
        %v1946 = vpop.permute.xlu0 %1945
        %v1947 = vsel %vm843, %v1938, %v1940
        %v1948 = vsel %vm843, %v1940, %v1942
        %v1949 = vsel %vm843, %v1942, %v1944
        %v1950 = vsel %vm843, %v1944, %v1946
        %1955 = vst [vmem:[#allocation3 + $0x1a0] sm:$0xff] %v1947
        %1956 = vst [vmem:[#allocation3 + $0x1a8] sm:$0xff] %v1948
        %1957 = vst [vmem:[#allocation3 + $0x1b0] sm:$0xff] %v1949
        %1958 = vst [vmem:[#allocation3 + $0x1b8] sm:$0xff] %v1950
        %v1959 = vld [vmem:[#allocation2] sm:$0xff]
        %v1960 = vld [vmem:[#allocation2 + $0x8] sm:$0xff]
        %v1961 = vld [vmem:[#allocation2 + $0x10] sm:$0xff]
        %v1962 = vld [vmem:[#allocation2 + $0x18] sm:$0xff]
        %v1963 = vld [vmem:[#allocation2 + $0x20] sm:$0xff]
        %1969 = vrot.lane.b32.xlu0 %v1959, 84
        %v1970 = vpop.permute.xlu0 %1969
        %1971 = vrot.lane.b32.xlu0 %v1960, 84
        %v1972 = vpop.permute.xlu0 %1971
        %1973 = vrot.lane.b32.xlu0 %v1961, 84
        %v1974 = vpop.permute.xlu0 %1973
        %1975 = vrot.lane.b32.xlu0 %v1962, 84
        %v1976 = vpop.permute.xlu0 %1975
        %1977 = vrot.lane.b32.xlu0 %v1963, 84
        %v1978 = vpop.permute.xlu0 %1977
        %v1979 = vsel %vm876, %v1970, %v1972
        %v1980 = vsel %vm876, %v1972, %v1974
        %v1981 = vsel %vm876, %v1974, %v1976
        %v1982 = vsel %vm876, %v1976, %v1978
        %1987 = vst [vmem:[#allocation3 + $0x1c0] sm:$0xff] %v1979
        %1988 = vst [vmem:[#allocation3 + $0x1c8] sm:$0xff] %v1980
        %1989 = vst [vmem:[#allocation3 + $0x1d0] sm:$0xff] %v1981
        %1990 = vst [vmem:[#allocation3 + $0x1d8] sm:$0xff] %v1982
        %v1991 = vld [vmem:[#allocation2] sm:$0xff]
        %v1992 = vld [vmem:[#allocation2 + $0x8] sm:$0xff]
        %v1993 = vld [vmem:[#allocation2 + $0x10] sm:$0xff]
        %v1994 = vld [vmem:[#allocation2 + $0x18] sm:$0xff]
        %v1995 = vld [vmem:[#allocation2 + $0x20] sm:$0xff]
        %2001 = vrot.lane.b32.xlu0 %v1991, 68
        %v2002 = vpop.permute.xlu0 %2001
        %2003 = vrot.lane.b32.xlu0 %v1992, 68
        %v2004 = vpop.permute.xlu0 %2003
        %2005 = vrot.lane.b32.xlu0 %v1993, 68
        %v2006 = vpop.permute.xlu0 %2005
        %2007 = vrot.lane.b32.xlu0 %v1994, 68
        %v2008 = vpop.permute.xlu0 %2007
        %2009 = vrot.lane.b32.xlu0 %v1995, 68
        %v2010 = vpop.permute.xlu0 %2009
        %v2011 = vsel %vm909, %v2002, %v2004
        %v2012 = vsel %vm909, %v2004, %v2006
        %v2013 = vsel %vm909, %v2006, %v2008
        %v2014 = vsel %vm909, %v2008, %v2010
        %2019 = vst [vmem:[#allocation3 + $0x1e0] sm:$0xff] %v2011
        %2020 = vst [vmem:[#allocation3 + $0x1e8] sm:$0xff] %v2012
        %2021 = vst [vmem:[#allocation3 + $0x1f0] sm:$0xff] %v2013
        %2022 = vst [vmem:[#allocation3 + $0x1f8] sm:$0xff] %v2014
        %v2023 = vld [vmem:[#allocation2] sm:$0xff]
        %v2024 = vld [vmem:[#allocation2 + $0x8] sm:$0xff]
        %v2025 = vld [vmem:[#allocation2 + $0x10] sm:$0xff]
        %v2026 = vld [vmem:[#allocation2 + $0x18] sm:$0xff]
        %v2027 = vld [vmem:[#allocation2 + $0x20] sm:$0xff]
        %2033 = vrot.lane.b32.xlu0 %v2023, 67
        %v2034 = vpop.permute.xlu0 %2033
        %2035 = vrot.lane.b32.xlu0 %v2024, 67
        %v2036 = vpop.permute.xlu0 %2035
        %2037 = vrot.lane.b32.xlu0 %v2025, 67
        %v2038 = vpop.permute.xlu0 %2037
        %2039 = vrot.lane.b32.xlu0 %v2026, 67
        %v2040 = vpop.permute.xlu0 %2039
        %2041 = vrot.lane.b32.xlu0 %v2027, 67
        %v2042 = vpop.permute.xlu0 %2041
        %v2043 = vsel %vm942, %v2034, %v2036
        %v2044 = vsel %vm942, %v2036, %v2038
        %v2045 = vsel %vm942, %v2038, %v2040
        %v2046 = vsel %vm942, %v2040, %v2042
        %2051 = vst [vmem:[#allocation3 + $0x200] sm:$0xff] %v2043
        %2052 = vst [vmem:[#allocation3 + $0x208] sm:$0xff] %v2044
        %2053 = vst [vmem:[#allocation3 + $0x210] sm:$0xff] %v2045
        %2054 = vst [vmem:[#allocation3 + $0x218] sm:$0xff] %v2046
        %v2055 = vld [vmem:[#allocation2] sm:$0xff]
        %v2056 = vld [vmem:[#allocation2 + $0x8] sm:$0xff]
        %v2057 = vld [vmem:[#allocation2 + $0x10] sm:$0xff]
        %v2058 = vld [vmem:[#allocation2 + $0x18] sm:$0xff]
        %v2059 = vld [vmem:[#allocation2 + $0x20] sm:$0xff]
        %2065 = vrot.lane.b32.xlu0 %v2055, 66
        %v2066 = vpop.permute.xlu0 %2065
        %2067 = vrot.lane.b32.xlu0 %v2056, 66
        %v2068 = vpop.permute.xlu0 %2067
        %2069 = vrot.lane.b32.xlu0 %v2057, 66
        %v2070 = vpop.permute.xlu0 %2069
        %2071 = vrot.lane.b32.xlu0 %v2058, 66
        %v2072 = vpop.permute.xlu0 %2071
        %2073 = vrot.lane.b32.xlu0 %v2059, 66
        %v2074 = vpop.permute.xlu0 %2073
        %v2075 = vsel %vm975, %v2066, %v2068
        %v2076 = vsel %vm975, %v2068, %v2070
        %v2077 = vsel %vm975, %v2070, %v2072
        %v2078 = vsel %vm975, %v2072, %v2074
        %2083 = vst [vmem:[#allocation3 + $0x220] sm:$0xff] %v2075
        %2084 = vst [vmem:[#allocation3 + $0x228] sm:$0xff] %v2076
        %2085 = vst [vmem:[#allocation3 + $0x230] sm:$0xff] %v2077
        %2086 = vst [vmem:[#allocation3 + $0x238] sm:$0xff] %v2078
        %v2087 = vld [vmem:[#allocation2] sm:$0xff]
        %v2088 = vld [vmem:[#allocation2 + $0x8] sm:$0xff]
        %v2089 = vld [vmem:[#allocation2 + $0x10] sm:$0xff]
        %v2090 = vld [vmem:[#allocation2 + $0x18] sm:$0xff]
        %v2091 = vld [vmem:[#allocation2 + $0x20] sm:$0xff]
        %2097 = vrot.lane.b32.xlu0 %v2087, 65
        %v2098 = vpop.permute.xlu0 %2097
        %2099 = vrot.lane.b32.xlu0 %v2088, 65
        %v2100 = vpop.permute.xlu0 %2099
        %2101 = vrot.lane.b32.xlu0 %v2089, 65
        %v2102 = vpop.permute.xlu0 %2101
        %2103 = vrot.lane.b32.xlu0 %v2090, 65
        %v2104 = vpop.permute.xlu0 %2103
        %2105 = vrot.lane.b32.xlu0 %v2091, 65
        %v2106 = vpop.permute.xlu0 %2105
        %v2107 = vsel %vm1008, %v2098, %v2100
        %v2108 = vsel %vm1008, %v2100, %v2102
        %v2109 = vsel %vm1008, %v2102, %v2104
        %v2110 = vsel %vm1008, %v2104, %v2106
        %2115 = vst [vmem:[#allocation3 + $0x240] sm:$0xff] %v2107
        %2116 = vst [vmem:[#allocation3 + $0x248] sm:$0xff] %v2108
        %2117 = vst [vmem:[#allocation3 + $0x250] sm:$0xff] %v2109
        %2118 = vst [vmem:[#allocation3 + $0x258] sm:$0xff] %v2110
        %v2119 = vld [vmem:[#allocation2] sm:$0xff]
        %v2120 = vld [vmem:[#allocation2 + $0x8] sm:$0xff]
        %v2121 = vld [vmem:[#allocation2 + $0x10] sm:$0xff]
        %v2122 = vld [vmem:[#allocation2 + $0x18] sm:$0xff]
        %v2123 = vld [vmem:[#allocation2 + $0x20] sm:$0xff]
        %2129 = vrot.lane.b32.xlu0 %v2119, 64
        %v2130 = vpop.permute.xlu0 %2129
        %2131 = vrot.lane.b32.xlu0 %v2120, 64
        %v2132 = vpop.permute.xlu0 %2131
        %2133 = vrot.lane.b32.xlu0 %v2121, 64
        %v2134 = vpop.permute.xlu0 %2133
        %2135 = vrot.lane.b32.xlu0 %v2122, 64
        %v2136 = vpop.permute.xlu0 %2135
        %2137 = vrot.lane.b32.xlu0 %v2123, 64
        %v2138 = vpop.permute.xlu0 %2137
        %v2139 = vsel %vm1041, %v2130, %v2132
        %v2140 = vsel %vm1041, %v2132, %v2134
        %v2141 = vsel %vm1041, %v2134, %v2136
        %v2142 = vsel %vm1041, %v2136, %v2138
        %2147 = vst [vmem:[#allocation3 + $0x260] sm:$0xff] %v2139
        %2148 = vst [vmem:[#allocation3 + $0x268] sm:$0xff] %v2140
        %2149 = vst [vmem:[#allocation3 + $0x270] sm:$0xff] %v2141
        %2150 = vst [vmem:[#allocation3 + $0x278] sm:$0xff] %v2142
        %v2151 = vld [vmem:[#allocation2] sm:$0xff]
        %v2152 = vld [vmem:[#allocation2 + $0x8] sm:$0xff]
        %v2153 = vld [vmem:[#allocation2 + $0x10] sm:$0xff]
        %v2154 = vld [vmem:[#allocation2 + $0x18] sm:$0xff]
        %v2155 = vld [vmem:[#allocation2 + $0x20] sm:$0xff]
        %2161 = vrot.lane.b32.xlu0 %v2151, 48
        %v2162 = vpop.permute.xlu0 %2161
        %2163 = vrot.lane.b32.xlu0 %v2152, 48
        %v2164 = vpop.permute.xlu0 %2163
        %2165 = vrot.lane.b32.xlu0 %v2153, 48
        %v2166 = vpop.permute.xlu0 %2165
        %2167 = vrot.lane.b32.xlu0 %v2154, 48
        %v2168 = vpop.permute.xlu0 %2167
        %2169 = vrot.lane.b32.xlu0 %v2155, 48
        %v2170 = vpop.permute.xlu0 %2169
        %v2171 = vsel %vm1074, %v2162, %v2164
        %v2172 = vsel %vm1074, %v2164, %v2166
        %v2173 = vsel %vm1074, %v2166, %v2168
        %v2174 = vsel %vm1074, %v2168, %v2170
        %2179 = vst [vmem:[#allocation3 + $0x280] sm:$0xff] %v2171
        %2180 = vst [vmem:[#allocation3 + $0x288] sm:$0xff] %v2172
        %2181 = vst [vmem:[#allocation3 + $0x290] sm:$0xff] %v2173
        %2182 = vst [vmem:[#allocation3 + $0x298] sm:$0xff] %v2174
        %v2183 = vld [vmem:[#allocation2] sm:$0xff]
        %v2184 = vld [vmem:[#allocation2 + $0x8] sm:$0xff]
        %v2185 = vld [vmem:[#allocation2 + $0x10] sm:$0xff]
        %v2186 = vld [vmem:[#allocation2 + $0x18] sm:$0xff]
        %v2187 = vld [vmem:[#allocation2 + $0x20] sm:$0xff]
        %2193 = vrot.lane.b32.xlu0 %v2183, 47
        %v2194 = vpop.permute.xlu0 %2193
        %2195 = vrot.lane.b32.xlu0 %v2184, 47
        %v2196 = vpop.permute.xlu0 %2195
        %2197 = vrot.lane.b32.xlu0 %v2185, 47
        %v2198 = vpop.permute.xlu0 %2197
        %2199 = vrot.lane.b32.xlu0 %v2186, 47
        %v2200 = vpop.permute.xlu0 %2199
        %2201 = vrot.lane.b32.xlu0 %v2187, 47
        %v2202 = vpop.permute.xlu0 %2201
        %v2203 = vsel %vm1107, %v2194, %v2196
        %v2204 = vsel %vm1107, %v2196, %v2198
        %v2205 = vsel %vm1107, %v2198, %v2200
        %v2206 = vsel %vm1107, %v2200, %v2202
        %2211 = vst [vmem:[#allocation3 + $0x2a0] sm:$0xff] %v2203
        %2212 = vst [vmem:[#allocation3 + $0x2a8] sm:$0xff] %v2204
        %2213 = vst [vmem:[#allocation3 + $0x2b0] sm:$0xff] %v2205
        %2214 = vst [vmem:[#allocation3 + $0x2b8] sm:$0xff] %v2206
        %v2215 = vld [vmem:[#allocation2] sm:$0xff]
        %v2216 = vld [vmem:[#allocation2 + $0x8] sm:$0xff]
        %v2217 = vld [vmem:[#allocation2 + $0x10] sm:$0xff]
        %v2218 = vld [vmem:[#allocation2 + $0x18] sm:$0xff]
        %v2219 = vld [vmem:[#allocation2 + $0x20] sm:$0xff]
        %2225 = vrot.lane.b32.xlu0 %v2215, 46
        %v2226 = vpop.permute.xlu0 %2225
        %2227 = vrot.lane.b32.xlu0 %v2216, 46
        %v2228 = vpop.permute.xlu0 %2227
        %2229 = vrot.lane.b32.xlu0 %v2217, 46
        %v2230 = vpop.permute.xlu0 %2229
        %2231 = vrot.lane.b32.xlu0 %v2218, 46
        %v2232 = vpop.permute.xlu0 %2231
        %2233 = vrot.lane.b32.xlu0 %v2219, 46
        %v2234 = vpop.permute.xlu0 %2233
        %v2235 = vsel %vm1140, %v2226, %v2228
        %v2236 = vsel %vm1140, %v2228, %v2230
        %v2237 = vsel %vm1140, %v2230, %v2232
        %v2238 = vsel %vm1140, %v2232, %v2234
        %2243 = vst [vmem:[#allocation3 + $0x2c0] sm:$0xff] %v2235
        %2244 = vst [vmem:[#allocation3 + $0x2c8] sm:$0xff] %v2236
        %2245 = vst [vmem:[#allocation3 + $0x2d0] sm:$0xff] %v2237
        %2246 = vst [vmem:[#allocation3 + $0x2d8] sm:$0xff] %v2238
        %v2247 = vld [vmem:[#allocation2] sm:$0xff]
        %v2248 = vld [vmem:[#allocation2 + $0x8] sm:$0xff]
        %v2249 = vld [vmem:[#allocation2 + $0x10] sm:$0xff]
        %v2250 = vld [vmem:[#allocation2 + $0x18] sm:$0xff]
        %v2251 = vld [vmem:[#allocation2 + $0x20] sm:$0xff]
        %2257 = vrot.lane.b32.xlu0 %v2247, 45
        %v2258 = vpop.permute.xlu0 %2257
        %2259 = vrot.lane.b32.xlu0 %v2248, 45
        %v2260 = vpop.permute.xlu0 %2259
        %2261 = vrot.lane.b32.xlu0 %v2249, 45
        %v2262 = vpop.permute.xlu0 %2261
        %2263 = vrot.lane.b32.xlu0 %v2250, 45
        %v2264 = vpop.permute.xlu0 %2263
        %2265 = vrot.lane.b32.xlu0 %v2251, 45
        %v2266 = vpop.permute.xlu0 %2265
        %v2267 = vsel %vm1173, %v2258, %v2260
        %v2268 = vsel %vm1173, %v2260, %v2262
        %v2269 = vsel %vm1173, %v2262, %v2264
        %v2270 = vsel %vm1173, %v2264, %v2266
        %2275 = vst [vmem:[#allocation3 + $0x2e0] sm:$0xff] %v2267
        %2276 = vst [vmem:[#allocation3 + $0x2e8] sm:$0xff] %v2268
        %2277 = vst [vmem:[#allocation3 + $0x2f0] sm:$0xff] %v2269
        %2278 = vst [vmem:[#allocation3 + $0x2f8] sm:$0xff] %v2270
        %v2279 = vld [vmem:[#allocation2] sm:$0xff]
        %v2280 = vld [vmem:[#allocation2 + $0x8] sm:$0xff]
        %v2281 = vld [vmem:[#allocation2 + $0x10] sm:$0xff]
        %v2282 = vld [vmem:[#allocation2 + $0x18] sm:$0xff]
        %v2283 = vld [vmem:[#allocation2 + $0x20] sm:$0xff]
        %2289 = vrot.lane.b32.xlu0 %v2279, 44
        %v2290 = vpop.permute.xlu0 %2289
        %2291 = vrot.lane.b32.xlu0 %v2280, 44
        %v2292 = vpop.permute.xlu0 %2291
        %2293 = vrot.lane.b32.xlu0 %v2281, 44
        %v2294 = vpop.permute.xlu0 %2293
        %2295 = vrot.lane.b32.xlu0 %v2282, 44
        %v2296 = vpop.permute.xlu0 %2295
        %2297 = vrot.lane.b32.xlu0 %v2283, 44
        %v2298 = vpop.permute.xlu0 %2297
        %v2299 = vsel %vm1206, %v2290, %v2292
        %v2300 = vsel %vm1206, %v2292, %v2294
        %v2301 = vsel %vm1206, %v2294, %v2296
        %v2302 = vsel %vm1206, %v2296, %v2298
        %2307 = vst [vmem:[#allocation3 + $0x300] sm:$0xff] %v2299
        %2308 = vst [vmem:[#allocation3 + $0x308] sm:$0xff] %v2300
        %2309 = vst [vmem:[#allocation3 + $0x310] sm:$0xff] %v2301
        %2310 = vst [vmem:[#allocation3 + $0x318] sm:$0xff] %v2302
        %v2311 = vld [vmem:[%s4] sm:$0xff]
        %v2312 = vld [vmem:[%s4 + $0x8] sm:$0xff]
        %v2313 = vld [vmem:[#allocation3] sm:$0xff]
        %v2314 = vld [vmem:[#allocation3 + $0x8] sm:$0xff]
        %v2315 = vld [vmem:[#allocation3 + $0x10] sm:$0xff]
        %v2316 = vld [vmem:[#allocation3 + $0x18] sm:$0xff]
        %v2317 = vld [vmem:[#allocation3 + $0x20] sm:$0xff]
        %v2318 = vld [vmem:[#allocation3 + $0x28] sm:$0xff]
        %v2319 = vld [vmem:[#allocation3 + $0x30] sm:$0xff]
        %v2320 = vld [vmem:[#allocation3 + $0x38] sm:$0xff]
        %v2321 = vld [vmem:[#allocation3 + $0x40] sm:$0xff]
        %v2322 = vld [vmem:[#allocation3 + $0x48] sm:$0xff]
        %v2323 = vld [vmem:[#allocation3 + $0x50] sm:$0xff]
        %v2324 = vld [vmem:[#allocation3 + $0x58] sm:$0xff]
        %v2325 = vld [vmem:[#allocation3 + $0x60] sm:$0xff]
        %v2326 = vld [vmem:[#allocation3 + $0x68] sm:$0xff]
        %v2327 = vld [vmem:[#allocation3 + $0x70] sm:$0xff]
        %v2328 = vld [vmem:[#allocation3 + $0x78] sm:$0xff]
        %v2329 = vld [vmem:[#allocation3 + $0x80] sm:$0xff]
        %v2330 = vld [vmem:[#allocation3 + $0x88] sm:$0xff]
        %v2331 = vld [vmem:[#allocation3 + $0x90] sm:$0xff]
        %v2332 = vld [vmem:[#allocation3 + $0x98] sm:$0xff]
        %v2333 = vld [vmem:[#allocation3 + $0xa0] sm:$0xff]
        %v2334 = vld [vmem:[#allocation3 + $0xa8] sm:$0xff]
        %v2335 = vld [vmem:[#allocation3 + $0xb0] sm:$0xff]
        %v2336 = vld [vmem:[#allocation3 + $0xb8] sm:$0xff]
        %v2337 = vld [vmem:[#allocation3 + $0xc0] sm:$0xff]
        %v2338 = vld [vmem:[#allocation3 + $0xc8] sm:$0xff]
        %v2339 = vld [vmem:[#allocation3 + $0xd0] sm:$0xff]
        %v2340 = vld [vmem:[#allocation3 + $0xd8] sm:$0xff]
        %v2341 = vld [vmem:[#allocation3 + $0xe0] sm:$0xff]
        %v2342 = vld [vmem:[#allocation3 + $0xe8] sm:$0xff]
        %v2343 = vld [vmem:[#allocation3 + $0xf0] sm:$0xff]
        %v2344 = vld [vmem:[#allocation3 + $0xf8] sm:$0xff]
        %v2345 = vld [vmem:[#allocation3 + $0x100] sm:$0xff]
        %v2346 = vld [vmem:[#allocation3 + $0x108] sm:$0xff]
        %v2347 = vld [vmem:[#allocation3 + $0x110] sm:$0xff]
        %v2348 = vld [vmem:[#allocation3 + $0x118] sm:$0xff]
        %v2349 = vld [vmem:[#allocation3 + $0x120] sm:$0xff]
        %v2350 = vld [vmem:[#allocation3 + $0x128] sm:$0xff]
        %v2351 = vld [vmem:[#allocation3 + $0x130] sm:$0xff]
        %v2352 = vld [vmem:[#allocation3 + $0x138] sm:$0xff]
        %v2353 = vld [vmem:[#allocation3 + $0x140] sm:$0xff]
        %v2354 = vld [vmem:[#allocation3 + $0x148] sm:$0xff]
        %v2355 = vld [vmem:[#allocation3 + $0x150] sm:$0xff]
        %v2356 = vld [vmem:[#allocation3 + $0x158] sm:$0xff]
        %v2357 = vld [vmem:[#allocation3 + $0x160] sm:$0xff]
        %v2358 = vld [vmem:[#allocation3 + $0x168] sm:$0xff]
        %v2359 = vld [vmem:[#allocation3 + $0x170] sm:$0xff]
        %v2360 = vld [vmem:[#allocation3 + $0x178] sm:$0xff]
        %v2361 = vld [vmem:[#allocation3 + $0x180] sm:$0xff]
        %v2362 = vld [vmem:[#allocation3 + $0x188] sm:$0xff]
        %v2363 = vld [vmem:[#allocation3 + $0x190] sm:$0xff]
        %v2364 = vld [vmem:[#allocation3 + $0x198] sm:$0xff]
        %v2365 = vld [vmem:[#allocation3 + $0x1a0] sm:$0xff]
        %v2366 = vld [vmem:[#allocation3 + $0x1a8] sm:$0xff]
        %v2367 = vld [vmem:[#allocation3 + $0x1b0] sm:$0xff]
        %v2368 = vld [vmem:[#allocation3 + $0x1b8] sm:$0xff]
        %v2369 = vld [vmem:[#allocation3 + $0x1c0] sm:$0xff]
        %v2370 = vld [vmem:[#allocation3 + $0x1c8] sm:$0xff]
        %v2371 = vld [vmem:[#allocation3 + $0x1d0] sm:$0xff]
        %v2372 = vld [vmem:[#allocation3 + $0x1d8] sm:$0xff]
        %v2373 = vld [vmem:[#allocation3 + $0x1e0] sm:$0xff]
        %v2374 = vld [vmem:[#allocation3 + $0x1e8] sm:$0xff]
        %v2375 = vld [vmem:[#allocation3 + $0x1f0] sm:$0xff]
        %v2376 = vld [vmem:[#allocation3 + $0x1f8] sm:$0xff]
        %v2377 = vld [vmem:[#allocation3 + $0x200] sm:$0xff]
        %v2378 = vld [vmem:[#allocation3 + $0x208] sm:$0xff]
        %v2379 = vld [vmem:[#allocation3 + $0x210] sm:$0xff]
        %v2380 = vld [vmem:[#allocation3 + $0x218] sm:$0xff]
        %v2381 = vld [vmem:[#allocation3 + $0x220] sm:$0xff]
        %v2382 = vld [vmem:[#allocation3 + $0x228] sm:$0xff]
        %v2383 = vld [vmem:[#allocation3 + $0x230] sm:$0xff]
        %v2384 = vld [vmem:[#allocation3 + $0x238] sm:$0xff]
        %v2385 = vld [vmem:[#allocation3 + $0x240] sm:$0xff]
        %v2386 = vld [vmem:[#allocation3 + $0x248] sm:$0xff]
        %v2387 = vld [vmem:[#allocation3 + $0x250] sm:$0xff]
        %v2388 = vld [vmem:[#allocation3 + $0x258] sm:$0xff]
        %v2389 = vld [vmem:[#allocation3 + $0x260] sm:$0xff]
        %v2390 = vld [vmem:[#allocation3 + $0x268] sm:$0xff]
        %v2391 = vld [vmem:[#allocation3 + $0x270] sm:$0xff]
        %v2392 = vld [vmem:[#allocation3 + $0x278] sm:$0xff]
        %v2393 = vld [vmem:[#allocation3 + $0x280] sm:$0xff]
        %v2394 = vld [vmem:[#allocation3 + $0x288] sm:$0xff]
        %v2395 = vld [vmem:[#allocation3 + $0x290] sm:$0xff]
        %v2396 = vld [vmem:[#allocation3 + $0x298] sm:$0xff]
        %v2397 = vld [vmem:[#allocation3 + $0x2a0] sm:$0xff]
        %v2398 = vld [vmem:[#allocation3 + $0x2a8] sm:$0xff]
        %v2399 = vld [vmem:[#allocation3 + $0x2b0] sm:$0xff]
        %v2400 = vld [vmem:[#allocation3 + $0x2b8] sm:$0xff]
        %v2401 = vld [vmem:[#allocation3 + $0x2c0] sm:$0xff]
        %v2402 = vld [vmem:[#allocation3 + $0x2c8] sm:$0xff]
        %v2403 = vld [vmem:[#allocation3 + $0x2d0] sm:$0xff]
        %v2404 = vld [vmem:[#allocation3 + $0x2d8] sm:$0xff]
        %v2405 = vld [vmem:[#allocation3 + $0x2e0] sm:$0xff]
        %v2406 = vld [vmem:[#allocation3 + $0x2e8] sm:$0xff]
        %v2407 = vld [vmem:[#allocation3 + $0x2f0] sm:$0xff]
        %v2408 = vld [vmem:[#allocation3 + $0x2f8] sm:$0xff]
        %v2409 = vld [vmem:[#allocation3 + $0x300] sm:$0xff]
        %v2410 = vld [vmem:[#allocation3 + $0x308] sm:$0xff]
        %v2411 = vld [vmem:[#allocation3 + $0x310] sm:$0xff]
        %v2412 = vld [vmem:[#allocation3 + $0x318] sm:$0xff]
        %v2413 = vld [vmem:[%s5] sm:$0xff]
        %2415 = vset.pattern.permute.xlu0 0
        %2416 = vperm.xlu0 %2415, %v2413
        %v2417 = vpop.permute.xlu0 %2416
        %v2420 = vsel %vm1327, %v2312, 0
        %2422 = vmatpush.msra.mxu0 %v2373
        %2423 = vmatpush.msra.mxu0 %v2369
        %2424 = vmatpush.msra.mxu0 %v2365
        %2425 = vmatpush.msra.mxu0 %v2361
        %2426 = vmatpush.msra.mxu0 %v2357
        %2427 = vmatpush.msra.mxu0 %v2353
        %2428 = vmatpush.msra.mxu0 %v2349
        %2429 = vmatpush.msra.mxu0 %v2345
        %2430 = vmatpush.msra.mxu0 %v2341
        %2431 = vmatpush.msra.mxu0 %v2337
        %2432 = vmatpush.msra.mxu0 %v2333
        %2433 = vmatpush.msra.mxu0 %v2329
        %2434 = vmatpush.msra.mxu0 %v2325
        %2435 = vmatpush.msra.mxu0 %v2321
        %2436 = vmatpush.msra.mxu0 %v2317
        %2437 = vmatpush.msra.mxu0 %v2313
        %2438 = vmatmul.f32.gmra.mxu0 %v2311
        %v2439 = vpop.f32.mrf.mxu0
        %v2440 = vadd.f32 %v2417, %v2439
        %2441 = vdwg.mxu0
        %2442 = vmatpush.msra.mxu0 0.0
        %2443 = vmatpush.msra.mxu0 0.0
        %2444 = vmatpush.msra.mxu0 0.0
        %2445 = vmatpush.msra.mxu0 0.0
        %2446 = vmatpush.msra.mxu0 0.0
        %2447 = vmatpush.msra.mxu0 0.0
        %2448 = vmatpush.msra.mxu0 0.0
        %2449 = vmatpush.msra.mxu0 %v2409
        %2450 = vmatpush.msra.mxu0 %v2405
        %2451 = vmatpush.msra.mxu0 %v2401
        %2452 = vmatpush.msra.mxu0 %v2397
        %2453 = vmatpush.msra.mxu0 %v2393
        %2454 = vmatpush.msra.mxu0 %v2389
        %2455 = vmatpush.msra.mxu0 %v2385
        %2456 = vmatpush.msra.mxu0 %v2381
        %2457 = vmatpush.msra.mxu0 %v2377
        %2458 = vmatmul.f32.gmra.mxu0 %v2420
        %v2459 = vpop.f32.mrf.mxu0
        %v2460 = vadd.f32 %v2440, %v2459
        %2461 = vdwg.mxu0
        %2462 = vmatpush.msra.mxu0 %v2374
        %2463 = vmatpush.msra.mxu0 %v2370
        %2464 = vmatpush.msra.mxu0 %v2366
        %2465 = vmatpush.msra.mxu0 %v2362
        %2466 = vmatpush.msra.mxu0 %v2358
        %2467 = vmatpush.msra.mxu0 %v2354
        %2468 = vmatpush.msra.mxu0 %v2350
        %2469 = vmatpush.msra.mxu0 %v2346
        %2470 = vmatpush.msra.mxu0 %v2342
        %2471 = vmatpush.msra.mxu0 %v2338
        %2472 = vmatpush.msra.mxu0 %v2334
        %2473 = vmatpush.msra.mxu0 %v2330
        %2474 = vmatpush.msra.mxu0 %v2326
        %2475 = vmatpush.msra.mxu0 %v2322
        %2476 = vmatpush.msra.mxu0 %v2318
        %2477 = vmatpush.msra.mxu0 %v2314
        %2478 = vmatmul.f32.gmra.mxu0 %v2311
        %v2479 = vpop.f32.mrf.mxu0
        %v2480 = vadd.f32 %v2417, %v2479
        %2481 = vdwg.mxu0
        %2482 = vmatpush.msra.mxu0 0.0
        %2483 = vmatpush.msra.mxu0 0.0
        %2484 = vmatpush.msra.mxu0 0.0
        %2485 = vmatpush.msra.mxu0 0.0
        %2486 = vmatpush.msra.mxu0 0.0
        %2487 = vmatpush.msra.mxu0 0.0
        %2488 = vmatpush.msra.mxu0 0.0
        %2489 = vmatpush.msra.mxu0 %v2410
        %2490 = vmatpush.msra.mxu0 %v2406
        %2491 = vmatpush.msra.mxu0 %v2402
        %2492 = vmatpush.msra.mxu0 %v2398
        %2493 = vmatpush.msra.mxu0 %v2394
        %2494 = vmatpush.msra.mxu0 %v2390
        %2495 = vmatpush.msra.mxu0 %v2386
        %2496 = vmatpush.msra.mxu0 %v2382
        %2497 = vmatpush.msra.mxu0 %v2378
        %2498 = vmatmul.f32.gmra.mxu0 %v2420
        %v2499 = vpop.f32.mrf.mxu0
        %v2500 = vadd.f32 %v2480, %v2499
        %2501 = vdwg.mxu0
        %2502 = vmatpush.msra.mxu0 %v2375
        %2503 = vmatpush.msra.mxu0 %v2371
        %2504 = vmatpush.msra.mxu0 %v2367
        %2505 = vmatpush.msra.mxu0 %v2363
        %2506 = vmatpush.msra.mxu0 %v2359
        %2507 = vmatpush.msra.mxu0 %v2355
        %2508 = vmatpush.msra.mxu0 %v2351
        %2509 = vmatpush.msra.mxu0 %v2347
        %2510 = vmatpush.msra.mxu0 %v2343
        %2511 = vmatpush.msra.mxu0 %v2339
        %2512 = vmatpush.msra.mxu0 %v2335
        %2513 = vmatpush.msra.mxu0 %v2331
        %2514 = vmatpush.msra.mxu0 %v2327
        %2515 = vmatpush.msra.mxu0 %v2323
        %2516 = vmatpush.msra.mxu0 %v2319
        %2517 = vmatpush.msra.mxu0 %v2315
        %2518 = vmatmul.f32.gmra.mxu0 %v2311
        %v2519 = vpop.f32.mrf.mxu0
        %v2520 = vadd.f32 %v2417, %v2519
        %2521 = vdwg.mxu0
        %2522 = vmatpush.msra.mxu0 0.0
        %2523 = vmatpush.msra.mxu0 0.0
        %2524 = vmatpush.msra.mxu0 0.0
        %2525 = vmatpush.msra.mxu0 0.0
        %2526 = vmatpush.msra.mxu0 0.0
        %2527 = vmatpush.msra.mxu0 0.0
        %2528 = vmatpush.msra.mxu0 0.0
        %2529 = vmatpush.msra.mxu0 %v2411
        %2530 = vmatpush.msra.mxu0 %v2407
        %2531 = vmatpush.msra.mxu0 %v2403
        %2532 = vmatpush.msra.mxu0 %v2399
        %2533 = vmatpush.msra.mxu0 %v2395
        %2534 = vmatpush.msra.mxu0 %v2391
        %2535 = vmatpush.msra.mxu0 %v2387
        %2536 = vmatpush.msra.mxu0 %v2383
        %2537 = vmatpush.msra.mxu0 %v2379
        %2538 = vmatmul.f32.gmra.mxu0 %v2420
        %v2539 = vpop.f32.mrf.mxu0
        %v2540 = vadd.f32 %v2520, %v2539
        %2541 = vdwg.mxu0
        %2542 = vmatpush.msra.mxu0 %v2376
        %2543 = vmatpush.msra.mxu0 %v2372
        %2544 = vmatpush.msra.mxu0 %v2368
        %2545 = vmatpush.msra.mxu0 %v2364
        %2546 = vmatpush.msra.mxu0 %v2360
        %2547 = vmatpush.msra.mxu0 %v2356
        %2548 = vmatpush.msra.mxu0 %v2352
        %2549 = vmatpush.msra.mxu0 %v2348
        %2550 = vmatpush.msra.mxu0 %v2344
        %2551 = vmatpush.msra.mxu0 %v2340
        %2552 = vmatpush.msra.mxu0 %v2336
        %2553 = vmatpush.msra.mxu0 %v2332
        %2554 = vmatpush.msra.mxu0 %v2328
        %2555 = vmatpush.msra.mxu0 %v2324
        %2556 = vmatpush.msra.mxu0 %v2320
        %2557 = vmatpush.msra.mxu0 %v2316
        %2558 = vmatmul.f32.gmra.mxu0 %v2311
        %v2559 = vpop.f32.mrf.mxu0
        %v2560 = vadd.f32 %v2417, %v2559
        %2561 = vdwg.mxu0
        %2562 = vmatpush.msra.mxu0 0.0
        %2563 = vmatpush.msra.mxu0 0.0
        %2564 = vmatpush.msra.mxu0 0.0
        %2565 = vmatpush.msra.mxu0 0.0
        %2566 = vmatpush.msra.mxu0 0.0
        %2567 = vmatpush.msra.mxu0 0.0
        %2568 = vmatpush.msra.mxu0 0.0
        %2569 = vmatpush.msra.mxu0 %v2412
        %2570 = vmatpush.msra.mxu0 %v2408
        %2571 = vmatpush.msra.mxu0 %v2404
        %2572 = vmatpush.msra.mxu0 %v2400
        %2573 = vmatpush.msra.mxu0 %v2396
        %2574 = vmatpush.msra.mxu0 %v2392
        %2575 = vmatpush.msra.mxu0 %v2388
        %2576 = vmatpush.msra.mxu0 %v2384
        %2577 = vmatpush.msra.mxu0 %v2380
        %2578 = vmatmul.f32.gmra.mxu0 %v2420
        %v2579 = vpop.f32.mrf.mxu0
        %v2580 = vadd.f32 %v2560, %v2579
        %2581 = vdwg.mxu0
        %v2582 = vmax.f32 %v2460, 0.0
        %v2583 = vmax.f32 %v2500, 0.0
        %v2584 = vmax.f32 %v2540, 0.0
        %v2585 = vmax.f32 %v2580, 0.0
        %v2586 = vmul.f32 %v2582, %v1496
        %v2587 = vmul.f32 %v2583, %v1497
        %v2588 = vmul.f32 %v2584, %v1498
        %v2589 = vmul.f32 %v2585, %v1499
        %2594 = vrot.lane.b32.xlu0 %v2586, 42
        %v2595 = vpop.permute.xlu0 %2594
        %2596 = vrot.lane.b32.xlu0 %v2587, 42
        %v2597 = vpop.permute.xlu0 %2596
        %2598 = vrot.lane.b32.xlu0 %v2588, 42
        %v2599 = vpop.permute.xlu0 %2598
        %2600 = vrot.lane.b32.xlu0 %v2589, 42
        %v2601 = vpop.permute.xlu0 %2600
        %v2602 = vsel %vm1520, %v2595, %v2597
        %v2603 = vsel %vm1520, %v2597, %v2599
        %v2604 = vsel %vm1520, %v2599, %v2601
        %2610 = vst.msk [vmem:[#allocation2] sm:$0xff] %vm1529, %v2595
        %2611 = vst [vmem:[#allocation2 + $0x8] sm:$0xff] %v2602
        %2612 = vst [vmem:[#allocation2 + $0x10] sm:$0xff] %v2603
        %2613 = vst [vmem:[#allocation2 + $0x18] sm:$0xff] %v2604
        %2614 = vst.msk [vmem:[#allocation2 + $0x20] sm:$0xff] %vm1520, %v2601
        %v2615 = vld [vmem:[#allocation2] sm:$0xff]
        %v2616 = vld [vmem:[#allocation2 + $0x8] sm:$0xff]
        %v2617 = vld [vmem:[#allocation2 + $0x10] sm:$0xff]
        %v2618 = vld [vmem:[#allocation2 + $0x18] sm:$0xff]
        %2619 = vst [vmem:[#allocation3] sm:$0xff] %v2615
        %2620 = vst [vmem:[#allocation3 + $0x8] sm:$0xff] %v2616
        %2621 = vst [vmem:[#allocation3 + $0x10] sm:$0xff] %v2617
        %2622 = vst [vmem:[#allocation3 + $0x18] sm:$0xff] %v2618
        %v2623 = vld [vmem:[#allocation2] sm:$0xff]
        %v2624 = vld [vmem:[#allocation2 + $0x8] sm:$0xff]
        %v2625 = vld [vmem:[#allocation2 + $0x10] sm:$0xff]
        %v2626 = vld [vmem:[#allocation2 + $0x18] sm:$0xff]
        %v2627 = vld [vmem:[#allocation2 + $0x20] sm:$0xff]
        %2633 = vrot.lane.b32.xlu0 %v2623, 127
        %v2634 = vpop.permute.xlu0 %2633
        %2635 = vrot.lane.b32.xlu0 %v2624, 127
        %v2636 = vpop.permute.xlu0 %2635
        %2637 = vrot.lane.b32.xlu0 %v2625, 127
        %v2638 = vpop.permute.xlu0 %2637
        %2639 = vrot.lane.b32.xlu0 %v2626, 127
        %v2640 = vpop.permute.xlu0 %2639
        %2641 = vrot.lane.b32.xlu0 %v2627, 127
        %v2642 = vpop.permute.xlu0 %2641
        %v2643 = vsel %vm447, %v2634, %v2636
        %v2644 = vsel %vm447, %v2636, %v2638
        %v2645 = vsel %vm447, %v2638, %v2640
        %v2646 = vsel %vm447, %v2640, %v2642
        %2651 = vst [vmem:[#allocation3 + $0x20] sm:$0xff] %v2643
        %2652 = vst [vmem:[#allocation3 + $0x28] sm:$0xff] %v2644
        %2653 = vst [vmem:[#allocation3 + $0x30] sm:$0xff] %v2645
        %2654 = vst [vmem:[#allocation3 + $0x38] sm:$0xff] %v2646
        %v2655 = vld [vmem:[#allocation2] sm:$0xff]
        %v2656 = vld [vmem:[#allocation2 + $0x8] sm:$0xff]
        %v2657 = vld [vmem:[#allocation2 + $0x10] sm:$0xff]
        %v2658 = vld [vmem:[#allocation2 + $0x18] sm:$0xff]
        %v2659 = vld [vmem:[#allocation2 + $0x20] sm:$0xff]
        %2665 = vrot.lane.b32.xlu0 %v2655, 126
        %v2666 = vpop.permute.xlu0 %2665
        %2667 = vrot.lane.b32.xlu0 %v2656, 126
        %v2668 = vpop.permute.xlu0 %2667
        %2669 = vrot.lane.b32.xlu0 %v2657, 126
        %v2670 = vpop.permute.xlu0 %2669
        %2671 = vrot.lane.b32.xlu0 %v2658, 126
        %v2672 = vpop.permute.xlu0 %2671
        %2673 = vrot.lane.b32.xlu0 %v2659, 126
        %v2674 = vpop.permute.xlu0 %2673
        %v2675 = vsel %vm480, %v2666, %v2668
        %v2676 = vsel %vm480, %v2668, %v2670
        %v2677 = vsel %vm480, %v2670, %v2672
        %v2678 = vsel %vm480, %v2672, %v2674
        %2683 = vst [vmem:[#allocation3 + $0x40] sm:$0xff] %v2675
        %2684 = vst [vmem:[#allocation3 + $0x48] sm:$0xff] %v2676
        %2685 = vst [vmem:[#allocation3 + $0x50] sm:$0xff] %v2677
        %2686 = vst [vmem:[#allocation3 + $0x58] sm:$0xff] %v2678
        %v2687 = vld [vmem:[#allocation2] sm:$0xff]
        %v2688 = vld [vmem:[#allocation2 + $0x8] sm:$0xff]
        %v2689 = vld [vmem:[#allocation2 + $0x10] sm:$0xff]
        %v2690 = vld [vmem:[#allocation2 + $0x18] sm:$0xff]
        %v2691 = vld [vmem:[#allocation2 + $0x20] sm:$0xff]
        %2697 = vrot.lane.b32.xlu0 %v2687, 125
        %v2698 = vpop.permute.xlu0 %2697
        %2699 = vrot.lane.b32.xlu0 %v2688, 125
        %v2700 = vpop.permute.xlu0 %2699
        %2701 = vrot.lane.b32.xlu0 %v2689, 125
        %v2702 = vpop.permute.xlu0 %2701
        %2703 = vrot.lane.b32.xlu0 %v2690, 125
        %v2704 = vpop.permute.xlu0 %2703
        %2705 = vrot.lane.b32.xlu0 %v2691, 125
        %v2706 = vpop.permute.xlu0 %2705
        %v2707 = vsel %vm513, %v2698, %v2700
        %v2708 = vsel %vm513, %v2700, %v2702
        %v2709 = vsel %vm513, %v2702, %v2704
        %v2710 = vsel %vm513, %v2704, %v2706
        %2715 = vst [vmem:[#allocation3 + $0x60] sm:$0xff] %v2707
        %2716 = vst [vmem:[#allocation3 + $0x68] sm:$0xff] %v2708
        %2717 = vst [vmem:[#allocation3 + $0x70] sm:$0xff] %v2709
        %2718 = vst [vmem:[#allocation3 + $0x78] sm:$0xff] %v2710
        %v2719 = vld [vmem:[#allocation2] sm:$0xff]
        %v2720 = vld [vmem:[#allocation2 + $0x8] sm:$0xff]
        %v2721 = vld [vmem:[#allocation2 + $0x10] sm:$0xff]
        %v2722 = vld [vmem:[#allocation2 + $0x18] sm:$0xff]
        %v2723 = vld [vmem:[#allocation2 + $0x20] sm:$0xff]
        %2729 = vrot.lane.b32.xlu0 %v2719, 124
        %v2730 = vpop.permute.xlu0 %2729
        %2731 = vrot.lane.b32.xlu0 %v2720, 124
        %v2732 = vpop.permute.xlu0 %2731
        %2733 = vrot.lane.b32.xlu0 %v2721, 124
        %v2734 = vpop.permute.xlu0 %2733
        %2735 = vrot.lane.b32.xlu0 %v2722, 124
        %v2736 = vpop.permute.xlu0 %2735
        %2737 = vrot.lane.b32.xlu0 %v2723, 124
        %v2738 = vpop.permute.xlu0 %2737
        %v2739 = vsel %vm546, %v2730, %v2732
        %v2740 = vsel %vm546, %v2732, %v2734
        %v2741 = vsel %vm546, %v2734, %v2736
        %v2742 = vsel %vm546, %v2736, %v2738
        %2747 = vst [vmem:[#allocation3 + $0x80] sm:$0xff] %v2739
        %2748 = vst [vmem:[#allocation3 + $0x88] sm:$0xff] %v2740
        %2749 = vst [vmem:[#allocation3 + $0x90] sm:$0xff] %v2741
        %2750 = vst [vmem:[#allocation3 + $0x98] sm:$0xff] %v2742
        %v2751 = vld [vmem:[#allocation2] sm:$0xff]
        %v2752 = vld [vmem:[#allocation2 + $0x8] sm:$0xff]
        %v2753 = vld [vmem:[#allocation2 + $0x10] sm:$0xff]
        %v2754 = vld [vmem:[#allocation2 + $0x18] sm:$0xff]
        %v2755 = vld [vmem:[#allocation2 + $0x20] sm:$0xff]
        %2761 = vrot.lane.b32.xlu0 %v2751, 108
        %v2762 = vpop.permute.xlu0 %2761
        %2763 = vrot.lane.b32.xlu0 %v2752, 108
        %v2764 = vpop.permute.xlu0 %2763
        %2765 = vrot.lane.b32.xlu0 %v2753, 108
        %v2766 = vpop.permute.xlu0 %2765
        %2767 = vrot.lane.b32.xlu0 %v2754, 108
        %v2768 = vpop.permute.xlu0 %2767
        %2769 = vrot.lane.b32.xlu0 %v2755, 108
        %v2770 = vpop.permute.xlu0 %2769
        %v2771 = vsel %vm579, %v2762, %v2764
        %v2772 = vsel %vm579, %v2764, %v2766
        %v2773 = vsel %vm579, %v2766, %v2768
        %v2774 = vsel %vm579, %v2768, %v2770
        %2779 = vst [vmem:[#allocation3 + $0xa0] sm:$0xff] %v2771
        %2780 = vst [vmem:[#allocation3 + $0xa8] sm:$0xff] %v2772
        %2781 = vst [vmem:[#allocation3 + $0xb0] sm:$0xff] %v2773
        %2782 = vst [vmem:[#allocation3 + $0xb8] sm:$0xff] %v2774
        %v2783 = vld [vmem:[#allocation2] sm:$0xff]
        %v2784 = vld [vmem:[#allocation2 + $0x8] sm:$0xff]
        %v2785 = vld [vmem:[#allocation2 + $0x10] sm:$0xff]
        %v2786 = vld [vmem:[#allocation2 + $0x18] sm:$0xff]
        %v2787 = vld [vmem:[#allocation2 + $0x20] sm:$0xff]
        %2793 = vrot.lane.b32.xlu0 %v2783, 107
        %v2794 = vpop.permute.xlu0 %2793
        %2795 = vrot.lane.b32.xlu0 %v2784, 107
        %v2796 = vpop.permute.xlu0 %2795
        %2797 = vrot.lane.b32.xlu0 %v2785, 107
        %v2798 = vpop.permute.xlu0 %2797
        %2799 = vrot.lane.b32.xlu0 %v2786, 107
        %v2800 = vpop.permute.xlu0 %2799
        %2801 = vrot.lane.b32.xlu0 %v2787, 107
        %v2802 = vpop.permute.xlu0 %2801
        %v2803 = vsel %vm612, %v2794, %v2796
        %v2804 = vsel %vm612, %v2796, %v2798
        %v2805 = vsel %vm612, %v2798, %v2800
        %v2806 = vsel %vm612, %v2800, %v2802
        %2811 = vst [vmem:[#allocation3 + $0xc0] sm:$0xff] %v2803
        %2812 = vst [vmem:[#allocation3 + $0xc8] sm:$0xff] %v2804
        %2813 = vst [vmem:[#allocation3 + $0xd0] sm:$0xff] %v2805
        %2814 = vst [vmem:[#allocation3 + $0xd8] sm:$0xff] %v2806
        %v2815 = vld [vmem:[#allocation2] sm:$0xff]
        %v2816 = vld [vmem:[#allocation2 + $0x8] sm:$0xff]
        %v2817 = vld [vmem:[#allocation2 + $0x10] sm:$0xff]
        %v2818 = vld [vmem:[#allocation2 + $0x18] sm:$0xff]
        %v2819 = vld [vmem:[#allocation2 + $0x20] sm:$0xff]
        %2825 = vrot.lane.b32.xlu0 %v2815, 106
        %v2826 = vpop.permute.xlu0 %2825
        %2827 = vrot.lane.b32.xlu0 %v2816, 106
        %v2828 = vpop.permute.xlu0 %2827
        %2829 = vrot.lane.b32.xlu0 %v2817, 106
        %v2830 = vpop.permute.xlu0 %2829
        %2831 = vrot.lane.b32.xlu0 %v2818, 106
        %v2832 = vpop.permute.xlu0 %2831
        %2833 = vrot.lane.b32.xlu0 %v2819, 106
        %v2834 = vpop.permute.xlu0 %2833
        %v2835 = vsel %vm645, %v2826, %v2828
        %v2836 = vsel %vm645, %v2828, %v2830
        %v2837 = vsel %vm645, %v2830, %v2832
        %v2838 = vsel %vm645, %v2832, %v2834
        %2843 = vst [vmem:[#allocation3 + $0xe0] sm:$0xff] %v2835
        %2844 = vst [vmem:[#allocation3 + $0xe8] sm:$0xff] %v2836
        %2845 = vst [vmem:[#allocation3 + $0xf0] sm:$0xff] %v2837
        %2846 = vst [vmem:[#allocation3 + $0xf8] sm:$0xff] %v2838
        %v2847 = vld [vmem:[#allocation2] sm:$0xff]
        %v2848 = vld [vmem:[#allocation2 + $0x8] sm:$0xff]
        %v2849 = vld [vmem:[#allocation2 + $0x10] sm:$0xff]
        %v2850 = vld [vmem:[#allocation2 + $0x18] sm:$0xff]
        %v2851 = vld [vmem:[#allocation2 + $0x20] sm:$0xff]
        %2857 = vrot.lane.b32.xlu0 %v2847, 105
        %v2858 = vpop.permute.xlu0 %2857
        %2859 = vrot.lane.b32.xlu0 %v2848, 105
        %v2860 = vpop.permute.xlu0 %2859
        %2861 = vrot.lane.b32.xlu0 %v2849, 105
        %v2862 = vpop.permute.xlu0 %2861
        %2863 = vrot.lane.b32.xlu0 %v2850, 105
        %v2864 = vpop.permute.xlu0 %2863
        %2865 = vrot.lane.b32.xlu0 %v2851, 105
        %v2866 = vpop.permute.xlu0 %2865
        %v2867 = vsel %vm678, %v2858, %v2860
        %v2868 = vsel %vm678, %v2860, %v2862
        %v2869 = vsel %vm678, %v2862, %v2864
        %v2870 = vsel %vm678, %v2864, %v2866
        %2875 = vst [vmem:[#allocation3 + $0x100] sm:$0xff] %v2867
        %2876 = vst [vmem:[#allocation3 + $0x108] sm:$0xff] %v2868
        %2877 = vst [vmem:[#allocation3 + $0x110] sm:$0xff] %v2869
        %2878 = vst [vmem:[#allocation3 + $0x118] sm:$0xff] %v2870
        %v2879 = vld [vmem:[#allocation2] sm:$0xff]
        %v2880 = vld [vmem:[#allocation2 + $0x8] sm:$0xff]
        %v2881 = vld [vmem:[#allocation2 + $0x10] sm:$0xff]
        %v2882 = vld [vmem:[#allocation2 + $0x18] sm:$0xff]
        %v2883 = vld [vmem:[#allocation2 + $0x20] sm:$0xff]
        %2889 = vrot.lane.b32.xlu0 %v2879, 104
        %v2890 = vpop.permute.xlu0 %2889
        %2891 = vrot.lane.b32.xlu0 %v2880, 104
        %v2892 = vpop.permute.xlu0 %2891
        %2893 = vrot.lane.b32.xlu0 %v2881, 104
        %v2894 = vpop.permute.xlu0 %2893
        %2895 = vrot.lane.b32.xlu0 %v2882, 104
        %v2896 = vpop.permute.xlu0 %2895
        %2897 = vrot.lane.b32.xlu0 %v2883, 104
        %v2898 = vpop.permute.xlu0 %2897
        %v2899 = vsel %vm711, %v2890, %v2892
        %v2900 = vsel %vm711, %v2892, %v2894
        %v2901 = vsel %vm711, %v2894, %v2896
        %v2902 = vsel %vm711, %v2896, %v2898
        %2907 = vst [vmem:[#allocation3 + $0x120] sm:$0xff] %v2899
        %2908 = vst [vmem:[#allocation3 + $0x128] sm:$0xff] %v2900
        %2909 = vst [vmem:[#allocation3 + $0x130] sm:$0xff] %v2901
        %2910 = vst [vmem:[#allocation3 + $0x138] sm:$0xff] %v2902
        %v2911 = vld [vmem:[#allocation2] sm:$0xff]
        %v2912 = vld [vmem:[#allocation2 + $0x8] sm:$0xff]
        %v2913 = vld [vmem:[#allocation2 + $0x10] sm:$0xff]
        %v2914 = vld [vmem:[#allocation2 + $0x18] sm:$0xff]
        %v2915 = vld [vmem:[#allocation2 + $0x20] sm:$0xff]
        %2921 = vrot.lane.b32.xlu0 %v2911, 88
        %v2922 = vpop.permute.xlu0 %2921
        %2923 = vrot.lane.b32.xlu0 %v2912, 88
        %v2924 = vpop.permute.xlu0 %2923
        %2925 = vrot.lane.b32.xlu0 %v2913, 88
        %v2926 = vpop.permute.xlu0 %2925
        %2927 = vrot.lane.b32.xlu0 %v2914, 88
        %v2928 = vpop.permute.xlu0 %2927
        %2929 = vrot.lane.b32.xlu0 %v2915, 88
        %v2930 = vpop.permute.xlu0 %2929
        %v2931 = vsel %vm744, %v2922, %v2924
        %v2932 = vsel %vm744, %v2924, %v2926
        %v2933 = vsel %vm744, %v2926, %v2928
        %v2934 = vsel %vm744, %v2928, %v2930
        %2939 = vst [vmem:[#allocation3 + $0x140] sm:$0xff] %v2931
        %2940 = vst [vmem:[#allocation3 + $0x148] sm:$0xff] %v2932
        %2941 = vst [vmem:[#allocation3 + $0x150] sm:$0xff] %v2933
        %2942 = vst [vmem:[#allocation3 + $0x158] sm:$0xff] %v2934
        %v2943 = vld [vmem:[#allocation2] sm:$0xff]
        %v2944 = vld [vmem:[#allocation2 + $0x8] sm:$0xff]
        %v2945 = vld [vmem:[#allocation2 + $0x10] sm:$0xff]
        %v2946 = vld [vmem:[#allocation2 + $0x18] sm:$0xff]
        %v2947 = vld [vmem:[#allocation2 + $0x20] sm:$0xff]
        %2953 = vrot.lane.b32.xlu0 %v2943, 87
        %v2954 = vpop.permute.xlu0 %2953
        %2955 = vrot.lane.b32.xlu0 %v2944, 87
        %v2956 = vpop.permute.xlu0 %2955
        %2957 = vrot.lane.b32.xlu0 %v2945, 87
        %v2958 = vpop.permute.xlu0 %2957
        %2959 = vrot.lane.b32.xlu0 %v2946, 87
        %v2960 = vpop.permute.xlu0 %2959
        %2961 = vrot.lane.b32.xlu0 %v2947, 87
        %v2962 = vpop.permute.xlu0 %2961
        %v2963 = vsel %vm777, %v2954, %v2956
        %v2964 = vsel %vm777, %v2956, %v2958
        %v2965 = vsel %vm777, %v2958, %v2960
        %v2966 = vsel %vm777, %v2960, %v2962
        %2971 = vst [vmem:[#allocation3 + $0x160] sm:$0xff] %v2963
        %2972 = vst [vmem:[#allocation3 + $0x168] sm:$0xff] %v2964
        %2973 = vst [vmem:[#allocation3 + $0x170] sm:$0xff] %v2965
        %2974 = vst [vmem:[#allocation3 + $0x178] sm:$0xff] %v2966
        %v2975 = vld [vmem:[#allocation2] sm:$0xff]
        %v2976 = vld [vmem:[#allocation2 + $0x8] sm:$0xff]
        %v2977 = vld [vmem:[#allocation2 + $0x10] sm:$0xff]
        %v2978 = vld [vmem:[#allocation2 + $0x18] sm:$0xff]
        %v2979 = vld [vmem:[#allocation2 + $0x20] sm:$0xff]
        %2985 = vrot.lane.b32.xlu0 %v2975, 86
        %v2986 = vpop.permute.xlu0 %2985
        %2987 = vrot.lane.b32.xlu0 %v2976, 86
        %v2988 = vpop.permute.xlu0 %2987
        %2989 = vrot.lane.b32.xlu0 %v2977, 86
        %v2990 = vpop.permute.xlu0 %2989
        %2991 = vrot.lane.b32.xlu0 %v2978, 86
        %v2992 = vpop.permute.xlu0 %2991
        %2993 = vrot.lane.b32.xlu0 %v2979, 86
        %v2994 = vpop.permute.xlu0 %2993
        %v2995 = vsel %vm810, %v2986, %v2988
        %v2996 = vsel %vm810, %v2988, %v2990
        %v2997 = vsel %vm810, %v2990, %v2992
        %v2998 = vsel %vm810, %v2992, %v2994
        %3003 = vst [vmem:[#allocation3 + $0x180] sm:$0xff] %v2995
        %3004 = vst [vmem:[#allocation3 + $0x188] sm:$0xff] %v2996
        %3005 = vst [vmem:[#allocation3 + $0x190] sm:$0xff] %v2997
        %3006 = vst [vmem:[#allocation3 + $0x198] sm:$0xff] %v2998
        %v3007 = vld [vmem:[#allocation2] sm:$0xff]
        %v3008 = vld [vmem:[#allocation2 + $0x8] sm:$0xff]
        %v3009 = vld [vmem:[#allocation2 + $0x10] sm:$0xff]
        %v3010 = vld [vmem:[#allocation2 + $0x18] sm:$0xff]
        %v3011 = vld [vmem:[#allocation2 + $0x20] sm:$0xff]
        %3017 = vrot.lane.b32.xlu0 %v3007, 85
        %v3018 = vpop.permute.xlu0 %3017
        %3019 = vrot.lane.b32.xlu0 %v3008, 85
        %v3020 = vpop.permute.xlu0 %3019
        %3021 = vrot.lane.b32.xlu0 %v3009, 85
        %v3022 = vpop.permute.xlu0 %3021
        %3023 = vrot.lane.b32.xlu0 %v3010, 85
        %v3024 = vpop.permute.xlu0 %3023
        %3025 = vrot.lane.b32.xlu0 %v3011, 85
        %v3026 = vpop.permute.xlu0 %3025
        %v3027 = vsel %vm843, %v3018, %v3020
        %v3028 = vsel %vm843, %v3020, %v3022
        %v3029 = vsel %vm843, %v3022, %v3024
        %v3030 = vsel %vm843, %v3024, %v3026
        %3035 = vst [vmem:[#allocation3 + $0x1a0] sm:$0xff] %v3027
        %3036 = vst [vmem:[#allocation3 + $0x1a8] sm:$0xff] %v3028
        %3037 = vst [vmem:[#allocation3 + $0x1b0] sm:$0xff] %v3029
        %3038 = vst [vmem:[#allocation3 + $0x1b8] sm:$0xff] %v3030
        %v3039 = vld [vmem:[#allocation2] sm:$0xff]
        %v3040 = vld [vmem:[#allocation2 + $0x8] sm:$0xff]
        %v3041 = vld [vmem:[#allocation2 + $0x10] sm:$0xff]
        %v3042 = vld [vmem:[#allocation2 + $0x18] sm:$0xff]
        %v3043 = vld [vmem:[#allocation2 + $0x20] sm:$0xff]
        %3049 = vrot.lane.b32.xlu0 %v3039, 84
        %v3050 = vpop.permute.xlu0 %3049
        %3051 = vrot.lane.b32.xlu0 %v3040, 84
        %v3052 = vpop.permute.xlu0 %3051
        %3053 = vrot.lane.b32.xlu0 %v3041, 84
        %v3054 = vpop.permute.xlu0 %3053
        %3055 = vrot.lane.b32.xlu0 %v3042, 84
        %v3056 = vpop.permute.xlu0 %3055
        %3057 = vrot.lane.b32.xlu0 %v3043, 84
        %v3058 = vpop.permute.xlu0 %3057
        %v3059 = vsel %vm876, %v3050, %v3052
        %v3060 = vsel %vm876, %v3052, %v3054
        %v3061 = vsel %vm876, %v3054, %v3056
        %v3062 = vsel %vm876, %v3056, %v3058
        %3067 = vst [vmem:[#allocation3 + $0x1c0] sm:$0xff] %v3059
        %3068 = vst [vmem:[#allocation3 + $0x1c8] sm:$0xff] %v3060
        %3069 = vst [vmem:[#allocation3 + $0x1d0] sm:$0xff] %v3061
        %3070 = vst [vmem:[#allocation3 + $0x1d8] sm:$0xff] %v3062
        %v3071 = vld [vmem:[#allocation2] sm:$0xff]
        %v3072 = vld [vmem:[#allocation2 + $0x8] sm:$0xff]
        %v3073 = vld [vmem:[#allocation2 + $0x10] sm:$0xff]
        %v3074 = vld [vmem:[#allocation2 + $0x18] sm:$0xff]
        %v3075 = vld [vmem:[#allocation2 + $0x20] sm:$0xff]
        %3081 = vrot.lane.b32.xlu0 %v3071, 68
        %v3082 = vpop.permute.xlu0 %3081
        %3083 = vrot.lane.b32.xlu0 %v3072, 68
        %v3084 = vpop.permute.xlu0 %3083
        %3085 = vrot.lane.b32.xlu0 %v3073, 68
        %v3086 = vpop.permute.xlu0 %3085
        %3087 = vrot.lane.b32.xlu0 %v3074, 68
        %v3088 = vpop.permute.xlu0 %3087
        %3089 = vrot.lane.b32.xlu0 %v3075, 68
        %v3090 = vpop.permute.xlu0 %3089
        %v3091 = vsel %vm909, %v3082, %v3084
        %v3092 = vsel %vm909, %v3084, %v3086
        %v3093 = vsel %vm909, %v3086, %v3088
        %v3094 = vsel %vm909, %v3088, %v3090
        %3099 = vst [vmem:[#allocation3 + $0x1e0] sm:$0xff] %v3091
        %3100 = vst [vmem:[#allocation3 + $0x1e8] sm:$0xff] %v3092
        %3101 = vst [vmem:[#allocation3 + $0x1f0] sm:$0xff] %v3093
        %3102 = vst [vmem:[#allocation3 + $0x1f8] sm:$0xff] %v3094
        %v3103 = vld [vmem:[#allocation2] sm:$0xff]
        %v3104 = vld [vmem:[#allocation2 + $0x8] sm:$0xff]
        %v3105 = vld [vmem:[#allocation2 + $0x10] sm:$0xff]
        %v3106 = vld [vmem:[#allocation2 + $0x18] sm:$0xff]
        %v3107 = vld [vmem:[#allocation2 + $0x20] sm:$0xff]
        %3113 = vrot.lane.b32.xlu0 %v3103, 67
        %v3114 = vpop.permute.xlu0 %3113
        %3115 = vrot.lane.b32.xlu0 %v3104, 67
        %v3116 = vpop.permute.xlu0 %3115
        %3117 = vrot.lane.b32.xlu0 %v3105, 67
        %v3118 = vpop.permute.xlu0 %3117
        %3119 = vrot.lane.b32.xlu0 %v3106, 67
        %v3120 = vpop.permute.xlu0 %3119
        %3121 = vrot.lane.b32.xlu0 %v3107, 67
        %v3122 = vpop.permute.xlu0 %3121
        %v3123 = vsel %vm942, %v3114, %v3116
        %v3124 = vsel %vm942, %v3116, %v3118
        %v3125 = vsel %vm942, %v3118, %v3120
        %v3126 = vsel %vm942, %v3120, %v3122
        %3131 = vst [vmem:[#allocation3 + $0x200] sm:$0xff] %v3123
        %3132 = vst [vmem:[#allocation3 + $0x208] sm:$0xff] %v3124
        %3133 = vst [vmem:[#allocation3 + $0x210] sm:$0xff] %v3125
        %3134 = vst [vmem:[#allocation3 + $0x218] sm:$0xff] %v3126
        %v3135 = vld [vmem:[#allocation2] sm:$0xff]
        %v3136 = vld [vmem:[#allocation2 + $0x8] sm:$0xff]
        %v3137 = vld [vmem:[#allocation2 + $0x10] sm:$0xff]
        %v3138 = vld [vmem:[#allocation2 + $0x18] sm:$0xff]
        %v3139 = vld [vmem:[#allocation2 + $0x20] sm:$0xff]
        %3145 = vrot.lane.b32.xlu0 %v3135, 66
        %v3146 = vpop.permute.xlu0 %3145
        %3147 = vrot.lane.b32.xlu0 %v3136, 66
        %v3148 = vpop.permute.xlu0 %3147
        %3149 = vrot.lane.b32.xlu0 %v3137, 66
        %v3150 = vpop.permute.xlu0 %3149
        %3151 = vrot.lane.b32.xlu0 %v3138, 66
        %v3152 = vpop.permute.xlu0 %3151
        %3153 = vrot.lane.b32.xlu0 %v3139, 66
        %v3154 = vpop.permute.xlu0 %3153
        %v3155 = vsel %vm975, %v3146, %v3148
        %v3156 = vsel %vm975, %v3148, %v3150
        %v3157 = vsel %vm975, %v3150, %v3152
        %v3158 = vsel %vm975, %v3152, %v3154
        %3163 = vst [vmem:[#allocation3 + $0x220] sm:$0xff] %v3155
        %3164 = vst [vmem:[#allocation3 + $0x228] sm:$0xff] %v3156
        %3165 = vst [vmem:[#allocation3 + $0x230] sm:$0xff] %v3157
        %3166 = vst [vmem:[#allocation3 + $0x238] sm:$0xff] %v3158
        %v3167 = vld [vmem:[#allocation2] sm:$0xff]
        %v3168 = vld [vmem:[#allocation2 + $0x8] sm:$0xff]
        %v3169 = vld [vmem:[#allocation2 + $0x10] sm:$0xff]
        %v3170 = vld [vmem:[#allocation2 + $0x18] sm:$0xff]
        %v3171 = vld [vmem:[#allocation2 + $0x20] sm:$0xff]
        %3177 = vrot.lane.b32.xlu0 %v3167, 65
        %v3178 = vpop.permute.xlu0 %3177
        %3179 = vrot.lane.b32.xlu0 %v3168, 65
        %v3180 = vpop.permute.xlu0 %3179
        %3181 = vrot.lane.b32.xlu0 %v3169, 65
        %v3182 = vpop.permute.xlu0 %3181
        %3183 = vrot.lane.b32.xlu0 %v3170, 65
        %v3184 = vpop.permute.xlu0 %3183
        %3185 = vrot.lane.b32.xlu0 %v3171, 65
        %v3186 = vpop.permute.xlu0 %3185
        %v3187 = vsel %vm1008, %v3178, %v3180
        %v3188 = vsel %vm1008, %v3180, %v3182
        %v3189 = vsel %vm1008, %v3182, %v3184
        %v3190 = vsel %vm1008, %v3184, %v3186
        %3195 = vst [vmem:[#allocation3 + $0x240] sm:$0xff] %v3187
        %3196 = vst [vmem:[#allocation3 + $0x248] sm:$0xff] %v3188
        %3197 = vst [vmem:[#allocation3 + $0x250] sm:$0xff] %v3189
        %3198 = vst [vmem:[#allocation3 + $0x258] sm:$0xff] %v3190
        %v3199 = vld [vmem:[#allocation2] sm:$0xff]
        %v3200 = vld [vmem:[#allocation2 + $0x8] sm:$0xff]
        %v3201 = vld [vmem:[#allocation2 + $0x10] sm:$0xff]
        %v3202 = vld [vmem:[#allocation2 + $0x18] sm:$0xff]
        %v3203 = vld [vmem:[#allocation2 + $0x20] sm:$0xff]
        %3209 = vrot.lane.b32.xlu0 %v3199, 64
        %v3210 = vpop.permute.xlu0 %3209
        %3211 = vrot.lane.b32.xlu0 %v3200, 64
        %v3212 = vpop.permute.xlu0 %3211
        %3213 = vrot.lane.b32.xlu0 %v3201, 64
        %v3214 = vpop.permute.xlu0 %3213
        %3215 = vrot.lane.b32.xlu0 %v3202, 64
        %v3216 = vpop.permute.xlu0 %3215
        %3217 = vrot.lane.b32.xlu0 %v3203, 64
        %v3218 = vpop.permute.xlu0 %3217
        %v3219 = vsel %vm1041, %v3210, %v3212
        %v3220 = vsel %vm1041, %v3212, %v3214
        %v3221 = vsel %vm1041, %v3214, %v3216
        %v3222 = vsel %vm1041, %v3216, %v3218
        %3227 = vst [vmem:[#allocation3 + $0x260] sm:$0xff] %v3219
        %3228 = vst [vmem:[#allocation3 + $0x268] sm:$0xff] %v3220
        %3229 = vst [vmem:[#allocation3 + $0x270] sm:$0xff] %v3221
        %3230 = vst [vmem:[#allocation3 + $0x278] sm:$0xff] %v3222
        %v3231 = vld [vmem:[#allocation2] sm:$0xff]
        %v3232 = vld [vmem:[#allocation2 + $0x8] sm:$0xff]
        %v3233 = vld [vmem:[#allocation2 + $0x10] sm:$0xff]
        %v3234 = vld [vmem:[#allocation2 + $0x18] sm:$0xff]
        %v3235 = vld [vmem:[#allocation2 + $0x20] sm:$0xff]
        %3241 = vrot.lane.b32.xlu0 %v3231, 48
        %v3242 = vpop.permute.xlu0 %3241
        %3243 = vrot.lane.b32.xlu0 %v3232, 48
        %v3244 = vpop.permute.xlu0 %3243
        %3245 = vrot.lane.b32.xlu0 %v3233, 48
        %v3246 = vpop.permute.xlu0 %3245
        %3247 = vrot.lane.b32.xlu0 %v3234, 48
        %v3248 = vpop.permute.xlu0 %3247
        %3249 = vrot.lane.b32.xlu0 %v3235, 48
        %v3250 = vpop.permute.xlu0 %3249
        %v3251 = vsel %vm1074, %v3242, %v3244
        %v3252 = vsel %vm1074, %v3244, %v3246
        %v3253 = vsel %vm1074, %v3246, %v3248
        %v3254 = vsel %vm1074, %v3248, %v3250
        %3259 = vst [vmem:[#allocation3 + $0x280] sm:$0xff] %v3251
        %3260 = vst [vmem:[#allocation3 + $0x288] sm:$0xff] %v3252
        %3261 = vst [vmem:[#allocation3 + $0x290] sm:$0xff] %v3253
        %3262 = vst [vmem:[#allocation3 + $0x298] sm:$0xff] %v3254
        %v3263 = vld [vmem:[#allocation2] sm:$0xff]
        %v3264 = vld [vmem:[#allocation2 + $0x8] sm:$0xff]
        %v3265 = vld [vmem:[#allocation2 + $0x10] sm:$0xff]
        %v3266 = vld [vmem:[#allocation2 + $0x18] sm:$0xff]
        %v3267 = vld [vmem:[#allocation2 + $0x20] sm:$0xff]
        %3273 = vrot.lane.b32.xlu0 %v3263, 47
        %v3274 = vpop.permute.xlu0 %3273
        %3275 = vrot.lane.b32.xlu0 %v3264, 47
        %v3276 = vpop.permute.xlu0 %3275
        %3277 = vrot.lane.b32.xlu0 %v3265, 47
        %v3278 = vpop.permute.xlu0 %3277
        %3279 = vrot.lane.b32.xlu0 %v3266, 47
        %v3280 = vpop.permute.xlu0 %3279
        %3281 = vrot.lane.b32.xlu0 %v3267, 47
        %v3282 = vpop.permute.xlu0 %3281
        %v3283 = vsel %vm1107, %v3274, %v3276
        %v3284 = vsel %vm1107, %v3276, %v3278
        %v3285 = vsel %vm1107, %v3278, %v3280
        %v3286 = vsel %vm1107, %v3280, %v3282
        %3291 = vst [vmem:[#allocation3 + $0x2a0] sm:$0xff] %v3283
        %3292 = vst [vmem:[#allocation3 + $0x2a8] sm:$0xff] %v3284
        %3293 = vst [vmem:[#allocation3 + $0x2b0] sm:$0xff] %v3285
        %3294 = vst [vmem:[#allocation3 + $0x2b8] sm:$0xff] %v3286
        %v3295 = vld [vmem:[#allocation2] sm:$0xff]
        %v3296 = vld [vmem:[#allocation2 + $0x8] sm:$0xff]
        %v3297 = vld [vmem:[#allocation2 + $0x10] sm:$0xff]
        %v3298 = vld [vmem:[#allocation2 + $0x18] sm:$0xff]
        %v3299 = vld [vmem:[#allocation2 + $0x20] sm:$0xff]
        %3305 = vrot.lane.b32.xlu0 %v3295, 46
        %v3306 = vpop.permute.xlu0 %3305
        %3307 = vrot.lane.b32.xlu0 %v3296, 46
        %v3308 = vpop.permute.xlu0 %3307
        %3309 = vrot.lane.b32.xlu0 %v3297, 46
        %v3310 = vpop.permute.xlu0 %3309
        %3311 = vrot.lane.b32.xlu0 %v3298, 46
        %v3312 = vpop.permute.xlu0 %3311
        %3313 = vrot.lane.b32.xlu0 %v3299, 46
        %v3314 = vpop.permute.xlu0 %3313
        %v3315 = vsel %vm1140, %v3306, %v3308
        %v3316 = vsel %vm1140, %v3308, %v3310
        %v3317 = vsel %vm1140, %v3310, %v3312
        %v3318 = vsel %vm1140, %v3312, %v3314
        %3323 = vst [vmem:[#allocation3 + $0x2c0] sm:$0xff] %v3315
        %3324 = vst [vmem:[#allocation3 + $0x2c8] sm:$0xff] %v3316
        %3325 = vst [vmem:[#allocation3 + $0x2d0] sm:$0xff] %v3317
        %3326 = vst [vmem:[#allocation3 + $0x2d8] sm:$0xff] %v3318
        %v3327 = vld [vmem:[#allocation2] sm:$0xff]
        %v3328 = vld [vmem:[#allocation2 + $0x8] sm:$0xff]
        %v3329 = vld [vmem:[#allocation2 + $0x10] sm:$0xff]
        %v3330 = vld [vmem:[#allocation2 + $0x18] sm:$0xff]
        %v3331 = vld [vmem:[#allocation2 + $0x20] sm:$0xff]
        %3337 = vrot.lane.b32.xlu0 %v3327, 45
        %v3338 = vpop.permute.xlu0 %3337
        %3339 = vrot.lane.b32.xlu0 %v3328, 45
        %v3340 = vpop.permute.xlu0 %3339
        %3341 = vrot.lane.b32.xlu0 %v3329, 45
        %v3342 = vpop.permute.xlu0 %3341
        %3343 = vrot.lane.b32.xlu0 %v3330, 45
        %v3344 = vpop.permute.xlu0 %3343
        %3345 = vrot.lane.b32.xlu0 %v3331, 45
        %v3346 = vpop.permute.xlu0 %3345
        %v3347 = vsel %vm1173, %v3338, %v3340
        %v3348 = vsel %vm1173, %v3340, %v3342
        %v3349 = vsel %vm1173, %v3342, %v3344
        %v3350 = vsel %vm1173, %v3344, %v3346
        %3355 = vst [vmem:[#allocation3 + $0x2e0] sm:$0xff] %v3347
        %3356 = vst [vmem:[#allocation3 + $0x2e8] sm:$0xff] %v3348
        %3357 = vst [vmem:[#allocation3 + $0x2f0] sm:$0xff] %v3349
        %3358 = vst [vmem:[#allocation3 + $0x2f8] sm:$0xff] %v3350
        %v3359 = vld [vmem:[#allocation2] sm:$0xff]
        %v3360 = vld [vmem:[#allocation2 + $0x8] sm:$0xff]
        %v3361 = vld [vmem:[#allocation2 + $0x10] sm:$0xff]
        %v3362 = vld [vmem:[#allocation2 + $0x18] sm:$0xff]
        %v3363 = vld [vmem:[#allocation2 + $0x20] sm:$0xff]
        %3369 = vrot.lane.b32.xlu0 %v3359, 44
        %v3370 = vpop.permute.xlu0 %3369
        %3371 = vrot.lane.b32.xlu0 %v3360, 44
        %v3372 = vpop.permute.xlu0 %3371
        %3373 = vrot.lane.b32.xlu0 %v3361, 44
        %v3374 = vpop.permute.xlu0 %3373
        %3375 = vrot.lane.b32.xlu0 %v3362, 44
        %v3376 = vpop.permute.xlu0 %3375
        %3377 = vrot.lane.b32.xlu0 %v3363, 44
        %v3378 = vpop.permute.xlu0 %3377
        %v3379 = vsel %vm1206, %v3370, %v3372
        %v3380 = vsel %vm1206, %v3372, %v3374
        %v3381 = vsel %vm1206, %v3374, %v3376
        %v3382 = vsel %vm1206, %v3376, %v3378
        %3387 = vst [vmem:[#allocation3 + $0x300] sm:$0xff] %v3379
        %3388 = vst [vmem:[#allocation3 + $0x308] sm:$0xff] %v3380
        %3389 = vst [vmem:[#allocation3 + $0x310] sm:$0xff] %v3381
        %3390 = vst [vmem:[#allocation3 + $0x318] sm:$0xff] %v3382
        %v3391 = vld [vmem:[#allocation7] sm:$0xff]
        %v3392 = vld [vmem:[#allocation7 + $0x8] sm:$0xff]
        %v3393 = vld [vmem:[#allocation7 + $0x10] sm:$0xff]
        %v3394 = vld [vmem:[#allocation7 + $0x18] sm:$0xff]
        %v3395 = vld [vmem:[#allocation3] sm:$0xff]
        %v3396 = vld [vmem:[#allocation3 + $0x8] sm:$0xff]
        %v3397 = vld [vmem:[#allocation3 + $0x10] sm:$0xff]
        %v3398 = vld [vmem:[#allocation3 + $0x18] sm:$0xff]
        %v3399 = vld [vmem:[#allocation3 + $0x20] sm:$0xff]
        %v3400 = vld [vmem:[#allocation3 + $0x28] sm:$0xff]
        %v3401 = vld [vmem:[#allocation3 + $0x30] sm:$0xff]
        %v3402 = vld [vmem:[#allocation3 + $0x38] sm:$0xff]
        %v3403 = vld [vmem:[#allocation3 + $0x40] sm:$0xff]
        %v3404 = vld [vmem:[#allocation3 + $0x48] sm:$0xff]
        %v3405 = vld [vmem:[#allocation3 + $0x50] sm:$0xff]
        %v3406 = vld [vmem:[#allocation3 + $0x58] sm:$0xff]
        %v3407 = vld [vmem:[#allocation3 + $0x60] sm:$0xff]
        %v3408 = vld [vmem:[#allocation3 + $0x68] sm:$0xff]
        %v3409 = vld [vmem:[#allocation3 + $0x70] sm:$0xff]
        %v3410 = vld [vmem:[#allocation3 + $0x78] sm:$0xff]
        %v3411 = vld [vmem:[#allocation3 + $0x80] sm:$0xff]
        %v3412 = vld [vmem:[#allocation3 + $0x88] sm:$0xff]
        %v3413 = vld [vmem:[#allocation3 + $0x90] sm:$0xff]
        %v3414 = vld [vmem:[#allocation3 + $0x98] sm:$0xff]
        %v3415 = vld [vmem:[#allocation3 + $0xa0] sm:$0xff]
        %v3416 = vld [vmem:[#allocation3 + $0xa8] sm:$0xff]
        %v3417 = vld [vmem:[#allocation3 + $0xb0] sm:$0xff]
        %v3418 = vld [vmem:[#allocation3 + $0xb8] sm:$0xff]
        %v3419 = vld [vmem:[#allocation3 + $0xc0] sm:$0xff]
        %v3420 = vld [vmem:[#allocation3 + $0xc8] sm:$0xff]
        %v3421 = vld [vmem:[#allocation3 + $0xd0] sm:$0xff]
        %v3422 = vld [vmem:[#allocation3 + $0xd8] sm:$0xff]
        %v3423 = vld [vmem:[#allocation3 + $0xe0] sm:$0xff]
        %v3424 = vld [vmem:[#allocation3 + $0xe8] sm:$0xff]
        %v3425 = vld [vmem:[#allocation3 + $0xf0] sm:$0xff]
        %v3426 = vld [vmem:[#allocation3 + $0xf8] sm:$0xff]
        %v3427 = vld [vmem:[#allocation3 + $0x100] sm:$0xff]
        %v3428 = vld [vmem:[#allocation3 + $0x108] sm:$0xff]
        %v3429 = vld [vmem:[#allocation3 + $0x110] sm:$0xff]
        %v3430 = vld [vmem:[#allocation3 + $0x118] sm:$0xff]
        %v3431 = vld [vmem:[#allocation3 + $0x120] sm:$0xff]
        %v3432 = vld [vmem:[#allocation3 + $0x128] sm:$0xff]
        %v3433 = vld [vmem:[#allocation3 + $0x130] sm:$0xff]
        %v3434 = vld [vmem:[#allocation3 + $0x138] sm:$0xff]
        %v3435 = vld [vmem:[#allocation3 + $0x140] sm:$0xff]
        %v3436 = vld [vmem:[#allocation3 + $0x148] sm:$0xff]
        %v3437 = vld [vmem:[#allocation3 + $0x150] sm:$0xff]
        %v3438 = vld [vmem:[#allocation3 + $0x158] sm:$0xff]
        %v3439 = vld [vmem:[#allocation3 + $0x160] sm:$0xff]
        %v3440 = vld [vmem:[#allocation3 + $0x168] sm:$0xff]
        %v3441 = vld [vmem:[#allocation3 + $0x170] sm:$0xff]
        %v3442 = vld [vmem:[#allocation3 + $0x178] sm:$0xff]
        %v3443 = vld [vmem:[#allocation3 + $0x180] sm:$0xff]
        %v3444 = vld [vmem:[#allocation3 + $0x188] sm:$0xff]
        %v3445 = vld [vmem:[#allocation3 + $0x190] sm:$0xff]
        %v3446 = vld [vmem:[#allocation3 + $0x198] sm:$0xff]
        %v3447 = vld [vmem:[#allocation3 + $0x1a0] sm:$0xff]
        %v3448 = vld [vmem:[#allocation3 + $0x1a8] sm:$0xff]
        %v3449 = vld [vmem:[#allocation3 + $0x1b0] sm:$0xff]
        %v3450 = vld [vmem:[#allocation3 + $0x1b8] sm:$0xff]
        %v3451 = vld [vmem:[#allocation3 + $0x1c0] sm:$0xff]
        %v3452 = vld [vmem:[#allocation3 + $0x1c8] sm:$0xff]
        %v3453 = vld [vmem:[#allocation3 + $0x1d0] sm:$0xff]
        %v3454 = vld [vmem:[#allocation3 + $0x1d8] sm:$0xff]
        %v3455 = vld [vmem:[#allocation3 + $0x1e0] sm:$0xff]
        %v3456 = vld [vmem:[#allocation3 + $0x1e8] sm:$0xff]
        %v3457 = vld [vmem:[#allocation3 + $0x1f0] sm:$0xff]
        %v3458 = vld [vmem:[#allocation3 + $0x1f8] sm:$0xff]
        %v3459 = vld [vmem:[#allocation3 + $0x200] sm:$0xff]
        %v3460 = vld [vmem:[#allocation3 + $0x208] sm:$0xff]
        %v3461 = vld [vmem:[#allocation3 + $0x210] sm:$0xff]
        %v3462 = vld [vmem:[#allocation3 + $0x218] sm:$0xff]
        %v3463 = vld [vmem:[#allocation3 + $0x220] sm:$0xff]
        %v3464 = vld [vmem:[#allocation3 + $0x228] sm:$0xff]
        %v3465 = vld [vmem:[#allocation3 + $0x230] sm:$0xff]
        %v3466 = vld [vmem:[#allocation3 + $0x238] sm:$0xff]
        %v3467 = vld [vmem:[#allocation3 + $0x240] sm:$0xff]
        %v3468 = vld [vmem:[#allocation3 + $0x248] sm:$0xff]
        %v3469 = vld [vmem:[#allocation3 + $0x250] sm:$0xff]
        %v3470 = vld [vmem:[#allocation3 + $0x258] sm:$0xff]
        %v3471 = vld [vmem:[#allocation3 + $0x260] sm:$0xff]
        %v3472 = vld [vmem:[#allocation3 + $0x268] sm:$0xff]
        %v3473 = vld [vmem:[#allocation3 + $0x270] sm:$0xff]
        %v3474 = vld [vmem:[#allocation3 + $0x278] sm:$0xff]
        %v3475 = vld [vmem:[#allocation3 + $0x280] sm:$0xff]
        %v3476 = vld [vmem:[#allocation3 + $0x288] sm:$0xff]
        %v3477 = vld [vmem:[#allocation3 + $0x290] sm:$0xff]
        %v3478 = vld [vmem:[#allocation3 + $0x298] sm:$0xff]
        %v3479 = vld [vmem:[#allocation3 + $0x2a0] sm:$0xff]
        %v3480 = vld [vmem:[#allocation3 + $0x2a8] sm:$0xff]
        %v3481 = vld [vmem:[#allocation3 + $0x2b0] sm:$0xff]
        %v3482 = vld [vmem:[#allocation3 + $0x2b8] sm:$0xff]
        %v3483 = vld [vmem:[#allocation3 + $0x2c0] sm:$0xff]
        %v3484 = vld [vmem:[#allocation3 + $0x2c8] sm:$0xff]
        %v3485 = vld [vmem:[#allocation3 + $0x2d0] sm:$0xff]
        %v3486 = vld [vmem:[#allocation3 + $0x2d8] sm:$0xff]
        %v3487 = vld [vmem:[#allocation3 + $0x2e0] sm:$0xff]
        %v3488 = vld [vmem:[#allocation3 + $0x2e8] sm:$0xff]
        %v3489 = vld [vmem:[#allocation3 + $0x2f0] sm:$0xff]
        %v3490 = vld [vmem:[#allocation3 + $0x2f8] sm:$0xff]
        %v3491 = vld [vmem:[#allocation3 + $0x300] sm:$0xff]
        %v3492 = vld [vmem:[#allocation3 + $0x308] sm:$0xff]
        %v3493 = vld [vmem:[#allocation3 + $0x310] sm:$0xff]
        %v3494 = vld [vmem:[#allocation3 + $0x318] sm:$0xff]
        %v3495 = vld [vmem:[%s7] sm:$0xff]
        %v3496 = vld [vmem:[%s7 + $0x8] sm:$0xff]
        %3498 = vset.pattern.permute.xlu0 0
        %3499 = vperm.xlu0 %3498, %v3495
        %v3500 = vpop.permute.xlu0 %3499
        %3503 = vset.pattern.permute.xlu0 0
        %3504 = vperm.xlu0 %3503, %v3496
        %v3505 = vpop.permute.xlu0 %3504
        %v3508 = vsel %vm1327, %v3392, 0
        %v3511 = vsel %vm1327, %v3394, 0
        %3513 = vmatpush.msra.mxu0 %v3455
        %3514 = vmatpush.msra.mxu0 %v3451
        %3515 = vmatpush.msra.mxu0 %v3447
        %3516 = vmatpush.msra.mxu0 %v3443
        %3517 = vmatpush.msra.mxu0 %v3439
        %3518 = vmatpush.msra.mxu0 %v3435
        %3519 = vmatpush.msra.mxu0 %v3431
        %3520 = vmatpush.msra.mxu0 %v3427
        %3521 = vmatpush.msra.mxu0 %v3423
        %3522 = vmatpush.msra.mxu0 %v3419
        %3523 = vmatpush.msra.mxu0 %v3415
        %3524 = vmatpush.msra.mxu0 %v3411
        %3525 = vmatpush.msra.mxu0 %v3407
        %3526 = vmatpush.msra.mxu0 %v3403
        %3527 = vmatpush.msra.mxu0 %v3399
        %3528 = vmatpush.msra.mxu0 %v3395
        %3529 = vmatmul.f32.gmra.mxu0 %v3391
        %v3530 = vpop.f32.mrf.mxu0
        %v3531 = vadd.f32 %v3500, %v3530
        %3532 = vmatmul.f32.gmra.mxu0 %v3393
        %v3533 = vpop.f32.mrf.mxu0
        %v3534 = vadd.f32 %v3505, %v3533
        %3535 = vdwg.mxu0
        %3536 = vmatpush.msra.mxu0 0.0
        %3537 = vmatpush.msra.mxu0 0.0
        %3538 = vmatpush.msra.mxu0 0.0
        %3539 = vmatpush.msra.mxu0 0.0
        %3540 = vmatpush.msra.mxu0 0.0
        %3541 = vmatpush.msra.mxu0 0.0
        %3542 = vmatpush.msra.mxu0 0.0
        %3543 = vmatpush.msra.mxu0 %v3491
        %3544 = vmatpush.msra.mxu0 %v3487
        %3545 = vmatpush.msra.mxu0 %v3483
        %3546 = vmatpush.msra.mxu0 %v3479
        %3547 = vmatpush.msra.mxu0 %v3475
        %3548 = vmatpush.msra.mxu0 %v3471
        %3549 = vmatpush.msra.mxu0 %v3467
        %3550 = vmatpush.msra.mxu0 %v3463
        %3551 = vmatpush.msra.mxu0 %v3459
        %3552 = vmatmul.f32.gmra.mxu0 %v3508
        %v3553 = vpop.f32.mrf.mxu0
        %v3554 = vadd.f32 %v3531, %v3553
        %3555 = vmatmul.f32.gmra.mxu0 %v3511
        %v3556 = vpop.f32.mrf.mxu0
        %v3557 = vadd.f32 %v3534, %v3556
        %3558 = vdwg.mxu0
        %3559 = vmatpush.msra.mxu0 %v3456
        %3560 = vmatpush.msra.mxu0 %v3452
        %3561 = vmatpush.msra.mxu0 %v3448
        %3562 = vmatpush.msra.mxu0 %v3444
        %3563 = vmatpush.msra.mxu0 %v3440
        %3564 = vmatpush.msra.mxu0 %v3436
        %3565 = vmatpush.msra.mxu0 %v3432
        %3566 = vmatpush.msra.mxu0 %v3428
        %3567 = vmatpush.msra.mxu0 %v3424
        %3568 = vmatpush.msra.mxu0 %v3420
        %3569 = vmatpush.msra.mxu0 %v3416
        %3570 = vmatpush.msra.mxu0 %v3412
        %3571 = vmatpush.msra.mxu0 %v3408
        %3572 = vmatpush.msra.mxu0 %v3404
        %3573 = vmatpush.msra.mxu0 %v3400
        %3574 = vmatpush.msra.mxu0 %v3396
        %3575 = vmatmul.f32.gmra.mxu0 %v3391
        %v3576 = vpop.f32.mrf.mxu0
        %v3577 = vadd.f32 %v3500, %v3576
        %3578 = vmatmul.f32.gmra.mxu0 %v3393
        %v3579 = vpop.f32.mrf.mxu0
        %v3580 = vadd.f32 %v3505, %v3579
        %3581 = vdwg.mxu0
        %3582 = vmatpush.msra.mxu0 0.0
        %3583 = vmatpush.msra.mxu0 0.0
        %3584 = vmatpush.msra.mxu0 0.0
        %3585 = vmatpush.msra.mxu0 0.0
        %3586 = vmatpush.msra.mxu0 0.0
        %3587 = vmatpush.msra.mxu0 0.0
        %3588 = vmatpush.msra.mxu0 0.0
        %3589 = vmatpush.msra.mxu0 %v3492
        %3590 = vmatpush.msra.mxu0 %v3488
        %3591 = vmatpush.msra.mxu0 %v3484
        %3592 = vmatpush.msra.mxu0 %v3480
        %3593 = vmatpush.msra.mxu0 %v3476
        %3594 = vmatpush.msra.mxu0 %v3472
        %3595 = vmatpush.msra.mxu0 %v3468
        %3596 = vmatpush.msra.mxu0 %v3464
        %3597 = vmatpush.msra.mxu0 %v3460
        %3598 = vmatmul.f32.gmra.mxu0 %v3508
        %v3599 = vpop.f32.mrf.mxu0
        %v3600 = vadd.f32 %v3577, %v3599
        %3601 = vmatmul.f32.gmra.mxu0 %v3511
        %v3602 = vpop.f32.mrf.mxu0
        %v3603 = vadd.f32 %v3580, %v3602
        %3604 = vdwg.mxu0
        %3605 = vmatpush.msra.mxu0 %v3457
        %3606 = vmatpush.msra.mxu0 %v3453
        %3607 = vmatpush.msra.mxu0 %v3449
        %3608 = vmatpush.msra.mxu0 %v3445
        %3609 = vmatpush.msra.mxu0 %v3441
        %3610 = vmatpush.msra.mxu0 %v3437
        %3611 = vmatpush.msra.mxu0 %v3433
        %3612 = vmatpush.msra.mxu0 %v3429
        %3613 = vmatpush.msra.mxu0 %v3425
        %3614 = vmatpush.msra.mxu0 %v3421
        %3615 = vmatpush.msra.mxu0 %v3417
        %3616 = vmatpush.msra.mxu0 %v3413
        %3617 = vmatpush.msra.mxu0 %v3409
        %3618 = vmatpush.msra.mxu0 %v3405
        %3619 = vmatpush.msra.mxu0 %v3401
        %3620 = vmatpush.msra.mxu0 %v3397
        %3621 = vmatmul.f32.gmra.mxu0 %v3391
        %v3622 = vpop.f32.mrf.mxu0
        %v3623 = vadd.f32 %v3500, %v3622
        %3624 = vmatmul.f32.gmra.mxu0 %v3393
        %v3625 = vpop.f32.mrf.mxu0
        %v3626 = vadd.f32 %v3505, %v3625
        %3627 = vdwg.mxu0
        %3628 = vmatpush.msra.mxu0 0.0
        %3629 = vmatpush.msra.mxu0 0.0
        %3630 = vmatpush.msra.mxu0 0.0
        %3631 = vmatpush.msra.mxu0 0.0
        %3632 = vmatpush.msra.mxu0 0.0
        %3633 = vmatpush.msra.mxu0 0.0
        %3634 = vmatpush.msra.mxu0 0.0
        %3635 = vmatpush.msra.mxu0 %v3493
        %3636 = vmatpush.msra.mxu0 %v3489
        %3637 = vmatpush.msra.mxu0 %v3485
        %3638 = vmatpush.msra.mxu0 %v3481
        %3639 = vmatpush.msra.mxu0 %v3477
        %3640 = vmatpush.msra.mxu0 %v3473
        %3641 = vmatpush.msra.mxu0 %v3469
        %3642 = vmatpush.msra.mxu0 %v3465
        %3643 = vmatpush.msra.mxu0 %v3461
        %3644 = vmatmul.f32.gmra.mxu0 %v3508
        %v3645 = vpop.f32.mrf.mxu0
        %v3646 = vadd.f32 %v3623, %v3645
        %3647 = vmatmul.f32.gmra.mxu0 %v3511
        %v3648 = vpop.f32.mrf.mxu0
        %v3649 = vadd.f32 %v3626, %v3648
        %3650 = vdwg.mxu0
        %3651 = vmatpush.msra.mxu0 %v3458
        %3652 = vmatpush.msra.mxu0 %v3454
        %3653 = vmatpush.msra.mxu0 %v3450
        %3654 = vmatpush.msra.mxu0 %v3446
        %3655 = vmatpush.msra.mxu0 %v3442
        %3656 = vmatpush.msra.mxu0 %v3438
        %3657 = vmatpush.msra.mxu0 %v3434
        %3658 = vmatpush.msra.mxu0 %v3430
        %3659 = vmatpush.msra.mxu0 %v3426
        %3660 = vmatpush.msra.mxu0 %v3422
        %3661 = vmatpush.msra.mxu0 %v3418
        %3662 = vmatpush.msra.mxu0 %v3414
        %3663 = vmatpush.msra.mxu0 %v3410
        %3664 = vmatpush.msra.mxu0 %v3406
        %3665 = vmatpush.msra.mxu0 %v3402
        %3666 = vmatpush.msra.mxu0 %v3398
        %3667 = vmatmul.f32.gmra.mxu0 %v3391
        %v3668 = vpop.f32.mrf.mxu0
        %v3669 = vadd.f32 %v3500, %v3668
        %3670 = vmatmul.f32.gmra.mxu0 %v3393
        %v3671 = vpop.f32.mrf.mxu0
        %v3672 = vadd.f32 %v3505, %v3671
        %3673 = vdwg.mxu0
        %3674 = vmatpush.msra.mxu0 0.0
        %3675 = vmatpush.msra.mxu0 0.0
        %3676 = vmatpush.msra.mxu0 0.0
        %3677 = vmatpush.msra.mxu0 0.0
        %3678 = vmatpush.msra.mxu0 0.0
        %3679 = vmatpush.msra.mxu0 0.0
        %3680 = vmatpush.msra.mxu0 0.0
        %3681 = vmatpush.msra.mxu0 %v3494
        %3682 = vmatpush.msra.mxu0 %v3490
        %3683 = vmatpush.msra.mxu0 %v3486
        %3684 = vmatpush.msra.mxu0 %v3482
        %3685 = vmatpush.msra.mxu0 %v3478
        %3686 = vmatpush.msra.mxu0 %v3474
        %3687 = vmatpush.msra.mxu0 %v3470
        %3688 = vmatpush.msra.mxu0 %v3466
        %3689 = vmatpush.msra.mxu0 %v3462
        %3690 = vmatmul.f32.gmra.mxu0 %v3508
        %v3691 = vpop.f32.mrf.mxu0
        %v3692 = vadd.f32 %v3669, %v3691
        %3693 = vmatmul.f32.gmra.mxu0 %v3511
        %v3694 = vpop.f32.mrf.mxu0
        %v3695 = vadd.f32 %v3672, %v3694
        %3696 = vdwg.mxu0
        %v3697 = vmax.f32 %v3554, 0.0
        %v3698 = vmax.f32 %v3600, 0.0
        %v3699 = vmax.f32 %v3646, 0.0
        %v3700 = vmax.f32 %v3692, 0.0
        %v3701 = vmax.f32 %v3557, 0.0
        %v3702 = vmax.f32 %v3603, 0.0
        %v3703 = vmax.f32 %v3649, 0.0
        %v3704 = vmax.f32 %v3695, 0.0
        %v3705 = vmul.f32 %v3697, %v1496
        %v3706 = vmul.f32 %v3698, %v1497
        %v3707 = vmul.f32 %v3699, %v1498
        %v3708 = vmul.f32 %v3700, %v1499
        %v3709 = vmul.f32 %v3701, %v1496
        %v3710 = vmul.f32 %v3702, %v1497
        %v3711 = vmul.f32 %v3703, %v1498
        %v3712 = vmul.f32 %v3704, %v1499
        %3721 = vrot.lane.b32.xlu0 %v3705, 42
        %v3722 = vpop.permute.xlu0 %3721
        %3723 = vrot.lane.b32.xlu0 %v3706, 42
        %v3724 = vpop.permute.xlu0 %3723
        %3725 = vrot.lane.b32.xlu0 %v3707, 42
        %v3726 = vpop.permute.xlu0 %3725
        %3727 = vrot.lane.b32.xlu0 %v3708, 42
        %v3728 = vpop.permute.xlu0 %3727
        %3729 = vrot.lane.b32.xlu0 %v3709, 42
        %v3730 = vpop.permute.xlu0 %3729
        %3731 = vrot.lane.b32.xlu0 %v3710, 42
        %v3732 = vpop.permute.xlu0 %3731
        %3733 = vrot.lane.b32.xlu0 %v3711, 42
        %v3734 = vpop.permute.xlu0 %3733
        %3735 = vrot.lane.b32.xlu0 %v3712, 42
        %v3736 = vpop.permute.xlu0 %3735
        %v3737 = vsel %vm1520, %v3722, %v3724
        %v3738 = vsel %vm1520, %v3724, %v3726
        %v3739 = vsel %vm1520, %v3726, %v3728
        %v3740 = vsel %vm1520, %v3730, %v3732
        %v3741 = vsel %vm1520, %v3732, %v3734
        %v3742 = vsel %vm1520, %v3734, %v3736
        %3753 = vst.msk [vmem:[#allocation2] sm:$0xff] %vm1529, %v3722
        %3754 = vst [vmem:[#allocation2 + $0x8] sm:$0xff] %v3737
        %3755 = vst [vmem:[#allocation2 + $0x10] sm:$0xff] %v3738
        %3756 = vst [vmem:[#allocation2 + $0x18] sm:$0xff] %v3739
        %3757 = vst.msk [vmem:[#allocation2 + $0x20] sm:$0xff] %vm1520, %v3728
        %3758 = vst.msk [vmem:[#allocation2 + $0x28] sm:$0xff] %vm1529, %v3730
        %3759 = vst [vmem:[#allocation2 + $0x30] sm:$0xff] %v3740
        %3760 = vst [vmem:[#allocation2 + $0x38] sm:$0xff] %v3741
        %3761 = vst [vmem:[#allocation2 + $0x40] sm:$0xff] %v3742
        %3762 = vst.msk [vmem:[#allocation2 + $0x48] sm:$0xff] %vm1520, %v3736
        %v3763 = vld [vmem:[#allocation2] sm:$0xff]
        %v3764 = vld [vmem:[#allocation2 + $0x8] sm:$0xff]
        %v3765 = vld [vmem:[#allocation2 + $0x10] sm:$0xff]
        %v3766 = vld [vmem:[#allocation2 + $0x18] sm:$0xff]
        %v3767 = vld [vmem:[#allocation2 + $0x28] sm:$0xff]
        %v3768 = vld [vmem:[#allocation2 + $0x30] sm:$0xff]
        %v3769 = vld [vmem:[#allocation2 + $0x38] sm:$0xff]
        %v3770 = vld [vmem:[#allocation2 + $0x40] sm:$0xff]
        %3771 = vst [vmem:[#allocation3] sm:$0xff] %v3763
        %3772 = vst [vmem:[#allocation3 + $0x8] sm:$0xff] %v3764
        %3773 = vst [vmem:[#allocation3 + $0x10] sm:$0xff] %v3765
        %3774 = vst [vmem:[#allocation3 + $0x18] sm:$0xff] %v3766
        %3775 = vst [vmem:[#allocation3 + $0x20] sm:$0xff] %v3767
        %3776 = vst [vmem:[#allocation3 + $0x28] sm:$0xff] %v3768
        %3777 = vst [vmem:[#allocation3 + $0x30] sm:$0xff] %v3769
        %3778 = vst [vmem:[#allocation3 + $0x38] sm:$0xff] %v3770
        %v3779 = vld [vmem:[#allocation2] sm:$0xff]
        %v3780 = vld [vmem:[#allocation2 + $0x8] sm:$0xff]
        %v3781 = vld [vmem:[#allocation2 + $0x10] sm:$0xff]
        %v3782 = vld [vmem:[#allocation2 + $0x18] sm:$0xff]
        %v3783 = vld [vmem:[#allocation2 + $0x20] sm:$0xff]
        %v3784 = vld [vmem:[#allocation2 + $0x28] sm:$0xff]
        %v3785 = vld [vmem:[#allocation2 + $0x30] sm:$0xff]
        %v3786 = vld [vmem:[#allocation2 + $0x38] sm:$0xff]
        %v3787 = vld [vmem:[#allocation2 + $0x40] sm:$0xff]
        %v3788 = vld [vmem:[#allocation2 + $0x48] sm:$0xff]
        %3799 = vrot.lane.b32.xlu0 %v3779, 127
        %v3800 = vpop.permute.xlu0 %3799
        %3801 = vrot.lane.b32.xlu0 %v3780, 127
        %v3802 = vpop.permute.xlu0 %3801
        %3803 = vrot.lane.b32.xlu0 %v3781, 127
        %v3804 = vpop.permute.xlu0 %3803
        %3805 = vrot.lane.b32.xlu0 %v3782, 127
        %v3806 = vpop.permute.xlu0 %3805
        %3807 = vrot.lane.b32.xlu0 %v3783, 127
        %v3808 = vpop.permute.xlu0 %3807
        %3809 = vrot.lane.b32.xlu0 %v3784, 127
        %v3810 = vpop.permute.xlu0 %3809
        %3811 = vrot.lane.b32.xlu0 %v3785, 127
        %v3812 = vpop.permute.xlu0 %3811
        %3813 = vrot.lane.b32.xlu0 %v3786, 127
        %v3814 = vpop.permute.xlu0 %3813
        %3815 = vrot.lane.b32.xlu0 %v3787, 127
        %v3816 = vpop.permute.xlu0 %3815
        %3817 = vrot.lane.b32.xlu0 %v3788, 127
        %v3818 = vpop.permute.xlu0 %3817
        %v3819 = vsel %vm447, %v3800, %v3802
        %v3820 = vsel %vm447, %v3802, %v3804
        %v3821 = vsel %vm447, %v3804, %v3806
        %v3822 = vsel %vm447, %v3806, %v3808
        %v3823 = vsel %vm447, %v3810, %v3812
        %v3824 = vsel %vm447, %v3812, %v3814
        %v3825 = vsel %vm447, %v3814, %v3816
        %v3826 = vsel %vm447, %v3816, %v3818
        %3835 = vst [vmem:[#allocation3 + $0x40] sm:$0xff] %v3819
        %3836 = vst [vmem:[#allocation3 + $0x48] sm:$0xff] %v3820
        %3837 = vst [vmem:[#allocation3 + $0x50] sm:$0xff] %v3821
        %3838 = vst [vmem:[#allocation3 + $0x58] sm:$0xff] %v3822
        %3839 = vst [vmem:[#allocation3 + $0x60] sm:$0xff] %v3823
        %3840 = vst [vmem:[#allocation3 + $0x68] sm:$0xff] %v3824
        %3841 = vst [vmem:[#allocation3 + $0x70] sm:$0xff] %v3825
        %3842 = vst [vmem:[#allocation3 + $0x78] sm:$0xff] %v3826
        %v3843 = vld [vmem:[#allocation2] sm:$0xff]
        %v3844 = vld [vmem:[#allocation2 + $0x8] sm:$0xff]
        %v3845 = vld [vmem:[#allocation2 + $0x10] sm:$0xff]
        %v3846 = vld [vmem:[#allocation2 + $0x18] sm:$0xff]
        %v3847 = vld [vmem:[#allocation2 + $0x20] sm:$0xff]
        %v3848 = vld [vmem:[#allocation2 + $0x28] sm:$0xff]
        %v3849 = vld [vmem:[#allocation2 + $0x30] sm:$0xff]
        %v3850 = vld [vmem:[#allocation2 + $0x38] sm:$0xff]
        %v3851 = vld [vmem:[#allocation2 + $0x40] sm:$0xff]
        %v3852 = vld [vmem:[#allocation2 + $0x48] sm:$0xff]
        %3863 = vrot.lane.b32.xlu0 %v3843, 126
        %v3864 = vpop.permute.xlu0 %3863
        %3865 = vrot.lane.b32.xlu0 %v3844, 126
        %v3866 = vpop.permute.xlu0 %3865
        %3867 = vrot.lane.b32.xlu0 %v3845, 126
        %v3868 = vpop.permute.xlu0 %3867
        %3869 = vrot.lane.b32.xlu0 %v3846, 126
        %v3870 = vpop.permute.xlu0 %3869
        %3871 = vrot.lane.b32.xlu0 %v3847, 126
        %v3872 = vpop.permute.xlu0 %3871
        %3873 = vrot.lane.b32.xlu0 %v3848, 126
        %v3874 = vpop.permute.xlu0 %3873
        %3875 = vrot.lane.b32.xlu0 %v3849, 126
        %v3876 = vpop.permute.xlu0 %3875
        %3877 = vrot.lane.b32.xlu0 %v3850, 126
        %v3878 = vpop.permute.xlu0 %3877
        %3879 = vrot.lane.b32.xlu0 %v3851, 126
        %v3880 = vpop.permute.xlu0 %3879
        %3881 = vrot.lane.b32.xlu0 %v3852, 126
        %v3882 = vpop.permute.xlu0 %3881
        %v3883 = vsel %vm480, %v3864, %v3866
        %v3884 = vsel %vm480, %v3866, %v3868
        %v3885 = vsel %vm480, %v3868, %v3870
        %v3886 = vsel %vm480, %v3870, %v3872
        %v3887 = vsel %vm480, %v3874, %v3876
        %v3888 = vsel %vm480, %v3876, %v3878
        %v3889 = vsel %vm480, %v3878, %v3880
        %v3890 = vsel %vm480, %v3880, %v3882
        %3899 = vst [vmem:[#allocation3 + $0x80] sm:$0xff] %v3883
        %3900 = vst [vmem:[#allocation3 + $0x88] sm:$0xff] %v3884
        %3901 = vst [vmem:[#allocation3 + $0x90] sm:$0xff] %v3885
        %3902 = vst [vmem:[#allocation3 + $0x98] sm:$0xff] %v3886
        %3903 = vst [vmem:[#allocation3 + $0xa0] sm:$0xff] %v3887
        %3904 = vst [vmem:[#allocation3 + $0xa8] sm:$0xff] %v3888
        %3905 = vst [vmem:[#allocation3 + $0xb0] sm:$0xff] %v3889
        %3906 = vst [vmem:[#allocation3 + $0xb8] sm:$0xff] %v3890
        %v3907 = vld [vmem:[#allocation2] sm:$0xff]
        %v3908 = vld [vmem:[#allocation2 + $0x8] sm:$0xff]
        %v3909 = vld [vmem:[#allocation2 + $0x10] sm:$0xff]
        %v3910 = vld [vmem:[#allocation2 + $0x18] sm:$0xff]
        %v3911 = vld [vmem:[#allocation2 + $0x20] sm:$0xff]
        %v3912 = vld [vmem:[#allocation2 + $0x28] sm:$0xff]
        %v3913 = vld [vmem:[#allocation2 + $0x30] sm:$0xff]
        %v3914 = vld [vmem:[#allocation2 + $0x38] sm:$0xff]
        %v3915 = vld [vmem:[#allocation2 + $0x40] sm:$0xff]
        %v3916 = vld [vmem:[#allocation2 + $0x48] sm:$0xff]
        %3927 = vrot.lane.b32.xlu0 %v3907, 125
        %v3928 = vpop.permute.xlu0 %3927
        %3929 = vrot.lane.b32.xlu0 %v3908, 125
        %v3930 = vpop.permute.xlu0 %3929
        %3931 = vrot.lane.b32.xlu0 %v3909, 125
        %v3932 = vpop.permute.xlu0 %3931
        %3933 = vrot.lane.b32.xlu0 %v3910, 125
        %v3934 = vpop.permute.xlu0 %3933
        %3935 = vrot.lane.b32.xlu0 %v3911, 125
        %v3936 = vpop.permute.xlu0 %3935
        %3937 = vrot.lane.b32.xlu0 %v3912, 125
        %v3938 = vpop.permute.xlu0 %3937
        %3939 = vrot.lane.b32.xlu0 %v3913, 125
        %v3940 = vpop.permute.xlu0 %3939
        %3941 = vrot.lane.b32.xlu0 %v3914, 125
        %v3942 = vpop.permute.xlu0 %3941
        %3943 = vrot.lane.b32.xlu0 %v3915, 125
        %v3944 = vpop.permute.xlu0 %3943
        %3945 = vrot.lane.b32.xlu0 %v3916, 125
        %v3946 = vpop.permute.xlu0 %3945
        %v3947 = vsel %vm513, %v3928, %v3930
        %v3948 = vsel %vm513, %v3930, %v3932
        %v3949 = vsel %vm513, %v3932, %v3934
        %v3950 = vsel %vm513, %v3934, %v3936
        %v3951 = vsel %vm513, %v3938, %v3940
        %v3952 = vsel %vm513, %v3940, %v3942
        %v3953 = vsel %vm513, %v3942, %v3944
        %v3954 = vsel %vm513, %v3944, %v3946
        %3963 = vst [vmem:[#allocation3 + $0xc0] sm:$0xff] %v3947
        %3964 = vst [vmem:[#allocation3 + $0xc8] sm:$0xff] %v3948
        %3965 = vst [vmem:[#allocation3 + $0xd0] sm:$0xff] %v3949
        %3966 = vst [vmem:[#allocation3 + $0xd8] sm:$0xff] %v3950
        %3967 = vst [vmem:[#allocation3 + $0xe0] sm:$0xff] %v3951
        %3968 = vst [vmem:[#allocation3 + $0xe8] sm:$0xff] %v3952
        %3969 = vst [vmem:[#allocation3 + $0xf0] sm:$0xff] %v3953
        %3970 = vst [vmem:[#allocation3 + $0xf8] sm:$0xff] %v3954
        %v3971 = vld [vmem:[#allocation2] sm:$0xff]
        %v3972 = vld [vmem:[#allocation2 + $0x8] sm:$0xff]
        %v3973 = vld [vmem:[#allocation2 + $0x10] sm:$0xff]
        %v3974 = vld [vmem:[#allocation2 + $0x18] sm:$0xff]
        %v3975 = vld [vmem:[#allocation2 + $0x20] sm:$0xff]
        %v3976 = vld [vmem:[#allocation2 + $0x28] sm:$0xff]
        %v3977 = vld [vmem:[#allocation2 + $0x30] sm:$0xff]
        %v3978 = vld [vmem:[#allocation2 + $0x38] sm:$0xff]
        %v3979 = vld [vmem:[#allocation2 + $0x40] sm:$0xff]
        %v3980 = vld [vmem:[#allocation2 + $0x48] sm:$0xff]
        %3991 = vrot.lane.b32.xlu0 %v3971, 124
        %v3992 = vpop.permute.xlu0 %3991
        %3993 = vrot.lane.b32.xlu0 %v3972, 124
        %v3994 = vpop.permute.xlu0 %3993
        %3995 = vrot.lane.b32.xlu0 %v3973, 124
        %v3996 = vpop.permute.xlu0 %3995
        %3997 = vrot.lane.b32.xlu0 %v3974, 124
        %v3998 = vpop.permute.xlu0 %3997
        %3999 = vrot.lane.b32.xlu0 %v3975, 124
        %v4000 = vpop.permute.xlu0 %3999
        %4001 = vrot.lane.b32.xlu0 %v3976, 124
        %v4002 = vpop.permute.xlu0 %4001
        %4003 = vrot.lane.b32.xlu0 %v3977, 124
        %v4004 = vpop.permute.xlu0 %4003
        %4005 = vrot.lane.b32.xlu0 %v3978, 124
        %v4006 = vpop.permute.xlu0 %4005
        %4007 = vrot.lane.b32.xlu0 %v3979, 124
        %v4008 = vpop.permute.xlu0 %4007
        %4009 = vrot.lane.b32.xlu0 %v3980, 124
        %v4010 = vpop.permute.xlu0 %4009
        %v4011 = vsel %vm546, %v3992, %v3994
        %v4012 = vsel %vm546, %v3994, %v3996
        %v4013 = vsel %vm546, %v3996, %v3998
        %v4014 = vsel %vm546, %v3998, %v4000
        %v4015 = vsel %vm546, %v4002, %v4004
        %v4016 = vsel %vm546, %v4004, %v4006
        %v4017 = vsel %vm546, %v4006, %v4008
        %v4018 = vsel %vm546, %v4008, %v4010
        %4027 = vst [vmem:[#allocation3 + $0x100] sm:$0xff] %v4011
        %4028 = vst [vmem:[#allocation3 + $0x108] sm:$0xff] %v4012
        %4029 = vst [vmem:[#allocation3 + $0x110] sm:$0xff] %v4013
        %4030 = vst [vmem:[#allocation3 + $0x118] sm:$0xff] %v4014
        %4031 = vst [vmem:[#allocation3 + $0x120] sm:$0xff] %v4015
        %4032 = vst [vmem:[#allocation3 + $0x128] sm:$0xff] %v4016
        %4033 = vst [vmem:[#allocation3 + $0x130] sm:$0xff] %v4017
        %4034 = vst [vmem:[#allocation3 + $0x138] sm:$0xff] %v4018
        %v4035 = vld [vmem:[#allocation2] sm:$0xff]
        %v4036 = vld [vmem:[#allocation2 + $0x8] sm:$0xff]
        %v4037 = vld [vmem:[#allocation2 + $0x10] sm:$0xff]
        %v4038 = vld [vmem:[#allocation2 + $0x18] sm:$0xff]
        %v4039 = vld [vmem:[#allocation2 + $0x20] sm:$0xff]
        %v4040 = vld [vmem:[#allocation2 + $0x28] sm:$0xff]
        %v4041 = vld [vmem:[#allocation2 + $0x30] sm:$0xff]
        %v4042 = vld [vmem:[#allocation2 + $0x38] sm:$0xff]
        %v4043 = vld [vmem:[#allocation2 + $0x40] sm:$0xff]
        %v4044 = vld [vmem:[#allocation2 + $0x48] sm:$0xff]
        %4055 = vrot.lane.b32.xlu0 %v4035, 108
        %v4056 = vpop.permute.xlu0 %4055
        %4057 = vrot.lane.b32.xlu0 %v4036, 108
        %v4058 = vpop.permute.xlu0 %4057
        %4059 = vrot.lane.b32.xlu0 %v4037, 108
        %v4060 = vpop.permute.xlu0 %4059
        %4061 = vrot.lane.b32.xlu0 %v4038, 108
        %v4062 = vpop.permute.xlu0 %4061
        %4063 = vrot.lane.b32.xlu0 %v4039, 108
        %v4064 = vpop.permute.xlu0 %4063
        %4065 = vrot.lane.b32.xlu0 %v4040, 108
        %v4066 = vpop.permute.xlu0 %4065
        %4067 = vrot.lane.b32.xlu0 %v4041, 108
        %v4068 = vpop.permute.xlu0 %4067
        %4069 = vrot.lane.b32.xlu0 %v4042, 108
        %v4070 = vpop.permute.xlu0 %4069
        %4071 = vrot.lane.b32.xlu0 %v4043, 108
        %v4072 = vpop.permute.xlu0 %4071
        %4073 = vrot.lane.b32.xlu0 %v4044, 108
        %v4074 = vpop.permute.xlu0 %4073
        %v4075 = vsel %vm579, %v4056, %v4058
        %v4076 = vsel %vm579, %v4058, %v4060
        %v4077 = vsel %vm579, %v4060, %v4062
        %v4078 = vsel %vm579, %v4062, %v4064
        %v4079 = vsel %vm579, %v4066, %v4068
        %v4080 = vsel %vm579, %v4068, %v4070
        %v4081 = vsel %vm579, %v4070, %v4072
        %v4082 = vsel %vm579, %v4072, %v4074
        %4091 = vst [vmem:[#allocation3 + $0x140] sm:$0xff] %v4075
        %4092 = vst [vmem:[#allocation3 + $0x148] sm:$0xff] %v4076
        %4093 = vst [vmem:[#allocation3 + $0x150] sm:$0xff] %v4077
        %4094 = vst [vmem:[#allocation3 + $0x158] sm:$0xff] %v4078
        %4095 = vst [vmem:[#allocation3 + $0x160] sm:$0xff] %v4079
        %4096 = vst [vmem:[#allocation3 + $0x168] sm:$0xff] %v4080
        %4097 = vst [vmem:[#allocation3 + $0x170] sm:$0xff] %v4081
        %4098 = vst [vmem:[#allocation3 + $0x178] sm:$0xff] %v4082
        %v4099 = vld [vmem:[#allocation2] sm:$0xff]
        %v4100 = vld [vmem:[#allocation2 + $0x8] sm:$0xff]
        %v4101 = vld [vmem:[#allocation2 + $0x10] sm:$0xff]
        %v4102 = vld [vmem:[#allocation2 + $0x18] sm:$0xff]
        %v4103 = vld [vmem:[#allocation2 + $0x20] sm:$0xff]
        %v4104 = vld [vmem:[#allocation2 + $0x28] sm:$0xff]
        %v4105 = vld [vmem:[#allocation2 + $0x30] sm:$0xff]
        %v4106 = vld [vmem:[#allocation2 + $0x38] sm:$0xff]
        %v4107 = vld [vmem:[#allocation2 + $0x40] sm:$0xff]
        %v4108 = vld [vmem:[#allocation2 + $0x48] sm:$0xff]
        %4119 = vrot.lane.b32.xlu0 %v4099, 107
        %v4120 = vpop.permute.xlu0 %4119
        %4121 = vrot.lane.b32.xlu0 %v4100, 107
        %v4122 = vpop.permute.xlu0 %4121
        %4123 = vrot.lane.b32.xlu0 %v4101, 107
        %v4124 = vpop.permute.xlu0 %4123
        %4125 = vrot.lane.b32.xlu0 %v4102, 107
        %v4126 = vpop.permute.xlu0 %4125
        %4127 = vrot.lane.b32.xlu0 %v4103, 107
        %v4128 = vpop.permute.xlu0 %4127
        %4129 = vrot.lane.b32.xlu0 %v4104, 107
        %v4130 = vpop.permute.xlu0 %4129
        %4131 = vrot.lane.b32.xlu0 %v4105, 107
        %v4132 = vpop.permute.xlu0 %4131
        %4133 = vrot.lane.b32.xlu0 %v4106, 107
        %v4134 = vpop.permute.xlu0 %4133
        %4135 = vrot.lane.b32.xlu0 %v4107, 107
        %v4136 = vpop.permute.xlu0 %4135
        %4137 = vrot.lane.b32.xlu0 %v4108, 107
        %v4138 = vpop.permute.xlu0 %4137
        %v4139 = vsel %vm612, %v4120, %v4122
        %v4140 = vsel %vm612, %v4122, %v4124
        %v4141 = vsel %vm612, %v4124, %v4126
        %v4142 = vsel %vm612, %v4126, %v4128
        %v4143 = vsel %vm612, %v4130, %v4132
        %v4144 = vsel %vm612, %v4132, %v4134
        %v4145 = vsel %vm612, %v4134, %v4136
        %v4146 = vsel %vm612, %v4136, %v4138
        %4155 = vst [vmem:[#allocation3 + $0x180] sm:$0xff] %v4139
        %4156 = vst [vmem:[#allocation3 + $0x188] sm:$0xff] %v4140
        %4157 = vst [vmem:[#allocation3 + $0x190] sm:$0xff] %v4141
        %4158 = vst [vmem:[#allocation3 + $0x198] sm:$0xff] %v4142
        %4159 = vst [vmem:[#allocation3 + $0x1a0] sm:$0xff] %v4143
        %4160 = vst [vmem:[#allocation3 + $0x1a8] sm:$0xff] %v4144
        %4161 = vst [vmem:[#allocation3 + $0x1b0] sm:$0xff] %v4145
        %4162 = vst [vmem:[#allocation3 + $0x1b8] sm:$0xff] %v4146
        %v4163 = vld [vmem:[#allocation2] sm:$0xff]
        %v4164 = vld [vmem:[#allocation2 + $0x8] sm:$0xff]
        %v4165 = vld [vmem:[#allocation2 + $0x10] sm:$0xff]
        %v4166 = vld [vmem:[#allocation2 + $0x18] sm:$0xff]
        %v4167 = vld [vmem:[#allocation2 + $0x20] sm:$0xff]
        %v4168 = vld [vmem:[#allocation2 + $0x28] sm:$0xff]
        %v4169 = vld [vmem:[#allocation2 + $0x30] sm:$0xff]
        %v4170 = vld [vmem:[#allocation2 + $0x38] sm:$0xff]
        %v4171 = vld [vmem:[#allocation2 + $0x40] sm:$0xff]
        %v4172 = vld [vmem:[#allocation2 + $0x48] sm:$0xff]
        %4183 = vrot.lane.b32.xlu0 %v4163, 106
        %v4184 = vpop.permute.xlu0 %4183
        %4185 = vrot.lane.b32.xlu0 %v4164, 106
        %v4186 = vpop.permute.xlu0 %4185
        %4187 = vrot.lane.b32.xlu0 %v4165, 106
        %v4188 = vpop.permute.xlu0 %4187
        %4189 = vrot.lane.b32.xlu0 %v4166, 106
        %v4190 = vpop.permute.xlu0 %4189
        %4191 = vrot.lane.b32.xlu0 %v4167, 106
        %v4192 = vpop.permute.xlu0 %4191
        %4193 = vrot.lane.b32.xlu0 %v4168, 106
        %v4194 = vpop.permute.xlu0 %4193
        %4195 = vrot.lane.b32.xlu0 %v4169, 106
        %v4196 = vpop.permute.xlu0 %4195
        %4197 = vrot.lane.b32.xlu0 %v4170, 106
        %v4198 = vpop.permute.xlu0 %4197
        %4199 = vrot.lane.b32.xlu0 %v4171, 106
        %v4200 = vpop.permute.xlu0 %4199
        %4201 = vrot.lane.b32.xlu0 %v4172, 106
        %v4202 = vpop.permute.xlu0 %4201
        %v4203 = vsel %vm645, %v4184, %v4186
        %v4204 = vsel %vm645, %v4186, %v4188
        %v4205 = vsel %vm645, %v4188, %v4190
        %v4206 = vsel %vm645, %v4190, %v4192
        %v4207 = vsel %vm645, %v4194, %v4196
        %v4208 = vsel %vm645, %v4196, %v4198
        %v4209 = vsel %vm645, %v4198, %v4200
        %v4210 = vsel %vm645, %v4200, %v4202
        %4219 = vst [vmem:[#allocation3 + $0x1c0] sm:$0xff] %v4203
        %4220 = vst [vmem:[#allocation3 + $0x1c8] sm:$0xff] %v4204
        %4221 = vst [vmem:[#allocation3 + $0x1d0] sm:$0xff] %v4205
        %4222 = vst [vmem:[#allocation3 + $0x1d8] sm:$0xff] %v4206
        %4223 = vst [vmem:[#allocation3 + $0x1e0] sm:$0xff] %v4207
        %4224 = vst [vmem:[#allocation3 + $0x1e8] sm:$0xff] %v4208
        %4225 = vst [vmem:[#allocation3 + $0x1f0] sm:$0xff] %v4209
        %4226 = vst [vmem:[#allocation3 + $0x1f8] sm:$0xff] %v4210
        %v4227 = vld [vmem:[#allocation2] sm:$0xff]
        %v4228 = vld [vmem:[#allocation2 + $0x8] sm:$0xff]
        %v4229 = vld [vmem:[#allocation2 + $0x10] sm:$0xff]
        %v4230 = vld [vmem:[#allocation2 + $0x18] sm:$0xff]
        %v4231 = vld [vmem:[#allocation2 + $0x20] sm:$0xff]
        %v4232 = vld [vmem:[#allocation2 + $0x28] sm:$0xff]
        %v4233 = vld [vmem:[#allocation2 + $0x30] sm:$0xff]
        %v4234 = vld [vmem:[#allocation2 + $0x38] sm:$0xff]
        %v4235 = vld [vmem:[#allocation2 + $0x40] sm:$0xff]
        %v4236 = vld [vmem:[#allocation2 + $0x48] sm:$0xff]
        %4247 = vrot.lane.b32.xlu0 %v4227, 105
        %v4248 = vpop.permute.xlu0 %4247
        %4249 = vrot.lane.b32.xlu0 %v4228, 105
        %v4250 = vpop.permute.xlu0 %4249
        %4251 = vrot.lane.b32.xlu0 %v4229, 105
        %v4252 = vpop.permute.xlu0 %4251
        %4253 = vrot.lane.b32.xlu0 %v4230, 105
        %v4254 = vpop.permute.xlu0 %4253
        %4255 = vrot.lane.b32.xlu0 %v4231, 105
        %v4256 = vpop.permute.xlu0 %4255
        %4257 = vrot.lane.b32.xlu0 %v4232, 105
        %v4258 = vpop.permute.xlu0 %4257
        %4259 = vrot.lane.b32.xlu0 %v4233, 105
        %v4260 = vpop.permute.xlu0 %4259
        %4261 = vrot.lane.b32.xlu0 %v4234, 105
        %v4262 = vpop.permute.xlu0 %4261
        %4263 = vrot.lane.b32.xlu0 %v4235, 105
        %v4264 = vpop.permute.xlu0 %4263
        %4265 = vrot.lane.b32.xlu0 %v4236, 105
        %v4266 = vpop.permute.xlu0 %4265
        %v4267 = vsel %vm678, %v4248, %v4250
        %v4268 = vsel %vm678, %v4250, %v4252
        %v4269 = vsel %vm678, %v4252, %v4254
        %v4270 = vsel %vm678, %v4254, %v4256
        %v4271 = vsel %vm678, %v4258, %v4260
        %v4272 = vsel %vm678, %v4260, %v4262
        %v4273 = vsel %vm678, %v4262, %v4264
        %v4274 = vsel %vm678, %v4264, %v4266
        %4283 = vst [vmem:[#allocation3 + $0x200] sm:$0xff] %v4267
        %4284 = vst [vmem:[#allocation3 + $0x208] sm:$0xff] %v4268
        %4285 = vst [vmem:[#allocation3 + $0x210] sm:$0xff] %v4269
        %4286 = vst [vmem:[#allocation3 + $0x218] sm:$0xff] %v4270
        %4287 = vst [vmem:[#allocation3 + $0x220] sm:$0xff] %v4271
        %4288 = vst [vmem:[#allocation3 + $0x228] sm:$0xff] %v4272
        %4289 = vst [vmem:[#allocation3 + $0x230] sm:$0xff] %v4273
        %4290 = vst [vmem:[#allocation3 + $0x238] sm:$0xff] %v4274
        %v4291 = vld [vmem:[#allocation2] sm:$0xff]
        %v4292 = vld [vmem:[#allocation2 + $0x8] sm:$0xff]
        %v4293 = vld [vmem:[#allocation2 + $0x10] sm:$0xff]
        %v4294 = vld [vmem:[#allocation2 + $0x18] sm:$0xff]
        %v4295 = vld [vmem:[#allocation2 + $0x20] sm:$0xff]
        %v4296 = vld [vmem:[#allocation2 + $0x28] sm:$0xff]
        %v4297 = vld [vmem:[#allocation2 + $0x30] sm:$0xff]
        %v4298 = vld [vmem:[#allocation2 + $0x38] sm:$0xff]
        %v4299 = vld [vmem:[#allocation2 + $0x40] sm:$0xff]
        %v4300 = vld [vmem:[#allocation2 + $0x48] sm:$0xff]
        %4311 = vrot.lane.b32.xlu0 %v4291, 104
        %v4312 = vpop.permute.xlu0 %4311
        %4313 = vrot.lane.b32.xlu0 %v4292, 104
        %v4314 = vpop.permute.xlu0 %4313
        %4315 = vrot.lane.b32.xlu0 %v4293, 104
        %v4316 = vpop.permute.xlu0 %4315
        %4317 = vrot.lane.b32.xlu0 %v4294, 104
        %v4318 = vpop.permute.xlu0 %4317
        %4319 = vrot.lane.b32.xlu0 %v4295, 104
        %v4320 = vpop.permute.xlu0 %4319
        %4321 = vrot.lane.b32.xlu0 %v4296, 104
        %v4322 = vpop.permute.xlu0 %4321
        %4323 = vrot.lane.b32.xlu0 %v4297, 104
        %v4324 = vpop.permute.xlu0 %4323
        %4325 = vrot.lane.b32.xlu0 %v4298, 104
        %v4326 = vpop.permute.xlu0 %4325
        %4327 = vrot.lane.b32.xlu0 %v4299, 104
        %v4328 = vpop.permute.xlu0 %4327
        %4329 = vrot.lane.b32.xlu0 %v4300, 104
        %v4330 = vpop.permute.xlu0 %4329
        %v4331 = vsel %vm711, %v4312, %v4314
        %v4332 = vsel %vm711, %v4314, %v4316
        %v4333 = vsel %vm711, %v4316, %v4318
        %v4334 = vsel %vm711, %v4318, %v4320
        %v4335 = vsel %vm711, %v4322, %v4324
        %v4336 = vsel %vm711, %v4324, %v4326
        %v4337 = vsel %vm711, %v4326, %v4328
        %v4338 = vsel %vm711, %v4328, %v4330
        %4347 = vst [vmem:[#allocation3 + $0x240] sm:$0xff] %v4331
        %4348 = vst [vmem:[#allocation3 + $0x248] sm:$0xff] %v4332
        %4349 = vst [vmem:[#allocation3 + $0x250] sm:$0xff] %v4333
        %4350 = vst [vmem:[#allocation3 + $0x258] sm:$0xff] %v4334
        %4351 = vst [vmem:[#allocation3 + $0x260] sm:$0xff] %v4335
        %4352 = vst [vmem:[#allocation3 + $0x268] sm:$0xff] %v4336
        %4353 = vst [vmem:[#allocation3 + $0x270] sm:$0xff] %v4337
        %4354 = vst [vmem:[#allocation3 + $0x278] sm:$0xff] %v4338
        %v4355 = vld [vmem:[#allocation2] sm:$0xff]
        %v4356 = vld [vmem:[#allocation2 + $0x8] sm:$0xff]
        %v4357 = vld [vmem:[#allocation2 + $0x10] sm:$0xff]
        %v4358 = vld [vmem:[#allocation2 + $0x18] sm:$0xff]
        %v4359 = vld [vmem:[#allocation2 + $0x20] sm:$0xff]
        %v4360 = vld [vmem:[#allocation2 + $0x28] sm:$0xff]
        %v4361 = vld [vmem:[#allocation2 + $0x30] sm:$0xff]
        %v4362 = vld [vmem:[#allocation2 + $0x38] sm:$0xff]
        %v4363 = vld [vmem:[#allocation2 + $0x40] sm:$0xff]
        %v4364 = vld [vmem:[#allocation2 + $0x48] sm:$0xff]
        %4375 = vrot.lane.b32.xlu0 %v4355, 88
        %v4376 = vpop.permute.xlu0 %4375
        %4377 = vrot.lane.b32.xlu0 %v4356, 88
        %v4378 = vpop.permute.xlu0 %4377
        %4379 = vrot.lane.b32.xlu0 %v4357, 88
        %v4380 = vpop.permute.xlu0 %4379
        %4381 = vrot.lane.b32.xlu0 %v4358, 88
        %v4382 = vpop.permute.xlu0 %4381
        %4383 = vrot.lane.b32.xlu0 %v4359, 88
        %v4384 = vpop.permute.xlu0 %4383
        %4385 = vrot.lane.b32.xlu0 %v4360, 88
        %v4386 = vpop.permute.xlu0 %4385
        %4387 = vrot.lane.b32.xlu0 %v4361, 88
        %v4388 = vpop.permute.xlu0 %4387
        %4389 = vrot.lane.b32.xlu0 %v4362, 88
        %v4390 = vpop.permute.xlu0 %4389
        %4391 = vrot.lane.b32.xlu0 %v4363, 88
        %v4392 = vpop.permute.xlu0 %4391
        %4393 = vrot.lane.b32.xlu0 %v4364, 88
        %v4394 = vpop.permute.xlu0 %4393
        %v4395 = vsel %vm744, %v4376, %v4378
        %v4396 = vsel %vm744, %v4378, %v4380
        %v4397 = vsel %vm744, %v4380, %v4382
        %v4398 = vsel %vm744, %v4382, %v4384
        %v4399 = vsel %vm744, %v4386, %v4388
        %v4400 = vsel %vm744, %v4388, %v4390
        %v4401 = vsel %vm744, %v4390, %v4392
        %v4402 = vsel %vm744, %v4392, %v4394
        %4411 = vst [vmem:[#allocation3 + $0x280] sm:$0xff] %v4395
        %4412 = vst [vmem:[#allocation3 + $0x288] sm:$0xff] %v4396
        %4413 = vst [vmem:[#allocation3 + $0x290] sm:$0xff] %v4397
        %4414 = vst [vmem:[#allocation3 + $0x298] sm:$0xff] %v4398
        %4415 = vst [vmem:[#allocation3 + $0x2a0] sm:$0xff] %v4399
        %4416 = vst [vmem:[#allocation3 + $0x2a8] sm:$0xff] %v4400
        %4417 = vst [vmem:[#allocation3 + $0x2b0] sm:$0xff] %v4401
        %4418 = vst [vmem:[#allocation3 + $0x2b8] sm:$0xff] %v4402
        %v4419 = vld [vmem:[#allocation2] sm:$0xff]
        %v4420 = vld [vmem:[#allocation2 + $0x8] sm:$0xff]
        %v4421 = vld [vmem:[#allocation2 + $0x10] sm:$0xff]
        %v4422 = vld [vmem:[#allocation2 + $0x18] sm:$0xff]
        %v4423 = vld [vmem:[#allocation2 + $0x20] sm:$0xff]
        %v4424 = vld [vmem:[#allocation2 + $0x28] sm:$0xff]
        %v4425 = vld [vmem:[#allocation2 + $0x30] sm:$0xff]
        %v4426 = vld [vmem:[#allocation2 + $0x38] sm:$0xff]
        %v4427 = vld [vmem:[#allocation2 + $0x40] sm:$0xff]
        %v4428 = vld [vmem:[#allocation2 + $0x48] sm:$0xff]
        %4439 = vrot.lane.b32.xlu0 %v4419, 87
        %v4440 = vpop.permute.xlu0 %4439
        %4441 = vrot.lane.b32.xlu0 %v4420, 87
        %v4442 = vpop.permute.xlu0 %4441
        %4443 = vrot.lane.b32.xlu0 %v4421, 87
        %v4444 = vpop.permute.xlu0 %4443
        %4445 = vrot.lane.b32.xlu0 %v4422, 87
        %v4446 = vpop.permute.xlu0 %4445
        %4447 = vrot.lane.b32.xlu0 %v4423, 87
        %v4448 = vpop.permute.xlu0 %4447
        %4449 = vrot.lane.b32.xlu0 %v4424, 87
        %v4450 = vpop.permute.xlu0 %4449
        %4451 = vrot.lane.b32.xlu0 %v4425, 87
        %v4452 = vpop.permute.xlu0 %4451
        %4453 = vrot.lane.b32.xlu0 %v4426, 87
        %v4454 = vpop.permute.xlu0 %4453
        %4455 = vrot.lane.b32.xlu0 %v4427, 87
        %v4456 = vpop.permute.xlu0 %4455
        %4457 = vrot.lane.b32.xlu0 %v4428, 87
        %v4458 = vpop.permute.xlu0 %4457
        %v4459 = vsel %vm777, %v4440, %v4442
        %v4460 = vsel %vm777, %v4442, %v4444
        %v4461 = vsel %vm777, %v4444, %v4446
        %v4462 = vsel %vm777, %v4446, %v4448
        %v4463 = vsel %vm777, %v4450, %v4452
        %v4464 = vsel %vm777, %v4452, %v4454
        %v4465 = vsel %vm777, %v4454, %v4456
        %v4466 = vsel %vm777, %v4456, %v4458
        %4475 = vst [vmem:[#allocation3 + $0x2c0] sm:$0xff] %v4459
        %4476 = vst [vmem:[#allocation3 + $0x2c8] sm:$0xff] %v4460
        %4477 = vst [vmem:[#allocation3 + $0x2d0] sm:$0xff] %v4461
        %4478 = vst [vmem:[#allocation3 + $0x2d8] sm:$0xff] %v4462
        %4479 = vst [vmem:[#allocation3 + $0x2e0] sm:$0xff] %v4463
        %4480 = vst [vmem:[#allocation3 + $0x2e8] sm:$0xff] %v4464
        %4481 = vst [vmem:[#allocation3 + $0x2f0] sm:$0xff] %v4465
        %4482 = vst [vmem:[#allocation3 + $0x2f8] sm:$0xff] %v4466
        %v4483 = vld [vmem:[#allocation2] sm:$0xff]
        %v4484 = vld [vmem:[#allocation2 + $0x8] sm:$0xff]
        %v4485 = vld [vmem:[#allocation2 + $0x10] sm:$0xff]
        %v4486 = vld [vmem:[#allocation2 + $0x18] sm:$0xff]
        %v4487 = vld [vmem:[#allocation2 + $0x20] sm:$0xff]
        %v4488 = vld [vmem:[#allocation2 + $0x28] sm:$0xff]
        %v4489 = vld [vmem:[#allocation2 + $0x30] sm:$0xff]
        %v4490 = vld [vmem:[#allocation2 + $0x38] sm:$0xff]
        %v4491 = vld [vmem:[#allocation2 + $0x40] sm:$0xff]
        %v4492 = vld [vmem:[#allocation2 + $0x48] sm:$0xff]
        %4503 = vrot.lane.b32.xlu0 %v4483, 86
        %v4504 = vpop.permute.xlu0 %4503
        %4505 = vrot.lane.b32.xlu0 %v4484, 86
        %v4506 = vpop.permute.xlu0 %4505
        %4507 = vrot.lane.b32.xlu0 %v4485, 86
        %v4508 = vpop.permute.xlu0 %4507
        %4509 = vrot.lane.b32.xlu0 %v4486, 86
        %v4510 = vpop.permute.xlu0 %4509
        %4511 = vrot.lane.b32.xlu0 %v4487, 86
        %v4512 = vpop.permute.xlu0 %4511
        %4513 = vrot.lane.b32.xlu0 %v4488, 86
        %v4514 = vpop.permute.xlu0 %4513
        %4515 = vrot.lane.b32.xlu0 %v4489, 86
        %v4516 = vpop.permute.xlu0 %4515
        %4517 = vrot.lane.b32.xlu0 %v4490, 86
        %v4518 = vpop.permute.xlu0 %4517
        %4519 = vrot.lane.b32.xlu0 %v4491, 86
        %v4520 = vpop.permute.xlu0 %4519
        %4521 = vrot.lane.b32.xlu0 %v4492, 86
        %v4522 = vpop.permute.xlu0 %4521
        %v4523 = vsel %vm810, %v4504, %v4506
        %v4524 = vsel %vm810, %v4506, %v4508
        %v4525 = vsel %vm810, %v4508, %v4510
        %v4526 = vsel %vm810, %v4510, %v4512
        %v4527 = vsel %vm810, %v4514, %v4516
        %v4528 = vsel %vm810, %v4516, %v4518
        %v4529 = vsel %vm810, %v4518, %v4520
        %v4530 = vsel %vm810, %v4520, %v4522
        %4539 = vst [vmem:[#allocation3 + $0x300] sm:$0xff] %v4523
        %4540 = vst [vmem:[#allocation3 + $0x308] sm:$0xff] %v4524
        %4541 = vst [vmem:[#allocation3 + $0x310] sm:$0xff] %v4525
        %4542 = vst [vmem:[#allocation3 + $0x318] sm:$0xff] %v4526
        %4543 = vst [vmem:[#allocation3 + $0x320] sm:$0xff] %v4527
        %4544 = vst [vmem:[#allocation3 + $0x328] sm:$0xff] %v4528
        %4545 = vst [vmem:[#allocation3 + $0x330] sm:$0xff] %v4529
        %4546 = vst [vmem:[#allocation3 + $0x338] sm:$0xff] %v4530
        %v4547 = vld [vmem:[#allocation2] sm:$0xff]
        %v4548 = vld [vmem:[#allocation2 + $0x8] sm:$0xff]
        %v4549 = vld [vmem:[#allocation2 + $0x10] sm:$0xff]
        %v4550 = vld [vmem:[#allocation2 + $0x18] sm:$0xff]
        %v4551 = vld [vmem:[#allocation2 + $0x20] sm:$0xff]
        %v4552 = vld [vmem:[#allocation2 + $0x28] sm:$0xff]
        %v4553 = vld [vmem:[#allocation2 + $0x30] sm:$0xff]
        %v4554 = vld [vmem:[#allocation2 + $0x38] sm:$0xff]
        %v4555 = vld [vmem:[#allocation2 + $0x40] sm:$0xff]
        %v4556 = vld [vmem:[#allocation2 + $0x48] sm:$0xff]
        %4567 = vrot.lane.b32.xlu0 %v4547, 85
        %v4568 = vpop.permute.xlu0 %4567
        %4569 = vrot.lane.b32.xlu0 %v4548, 85
        %v4570 = vpop.permute.xlu0 %4569
        %4571 = vrot.lane.b32.xlu0 %v4549, 85
        %v4572 = vpop.permute.xlu0 %4571
        %4573 = vrot.lane.b32.xlu0 %v4550, 85
        %v4574 = vpop.permute.xlu0 %4573
        %4575 = vrot.lane.b32.xlu0 %v4551, 85
        %v4576 = vpop.permute.xlu0 %4575
        %4577 = vrot.lane.b32.xlu0 %v4552, 85
        %v4578 = vpop.permute.xlu0 %4577
        %4579 = vrot.lane.b32.xlu0 %v4553, 85
        %v4580 = vpop.permute.xlu0 %4579
        %4581 = vrot.lane.b32.xlu0 %v4554, 85
        %v4582 = vpop.permute.xlu0 %4581
        %4583 = vrot.lane.b32.xlu0 %v4555, 85
        %v4584 = vpop.permute.xlu0 %4583
        %4585 = vrot.lane.b32.xlu0 %v4556, 85
        %v4586 = vpop.permute.xlu0 %4585
        %v4587 = vsel %vm843, %v4568, %v4570
        %v4588 = vsel %vm843, %v4570, %v4572
        %v4589 = vsel %vm843, %v4572, %v4574
        %v4590 = vsel %vm843, %v4574, %v4576
        %v4591 = vsel %vm843, %v4578, %v4580
        %v4592 = vsel %vm843, %v4580, %v4582
        %v4593 = vsel %vm843, %v4582, %v4584
        %v4594 = vsel %vm843, %v4584, %v4586
        %4603 = vst [vmem:[#allocation3 + $0x340] sm:$0xff] %v4587
        %4604 = vst [vmem:[#allocation3 + $0x348] sm:$0xff] %v4588
        %4605 = vst [vmem:[#allocation3 + $0x350] sm:$0xff] %v4589
        %4606 = vst [vmem:[#allocation3 + $0x358] sm:$0xff] %v4590
        %4607 = vst [vmem:[#allocation3 + $0x360] sm:$0xff] %v4591
        %4608 = vst [vmem:[#allocation3 + $0x368] sm:$0xff] %v4592
        %4609 = vst [vmem:[#allocation3 + $0x370] sm:$0xff] %v4593
        %4610 = vst [vmem:[#allocation3 + $0x378] sm:$0xff] %v4594
        %v4611 = vld [vmem:[#allocation2] sm:$0xff]
        %v4612 = vld [vmem:[#allocation2 + $0x8] sm:$0xff]
        %v4613 = vld [vmem:[#allocation2 + $0x10] sm:$0xff]
        %v4614 = vld [vmem:[#allocation2 + $0x18] sm:$0xff]
        %v4615 = vld [vmem:[#allocation2 + $0x20] sm:$0xff]
        %v4616 = vld [vmem:[#allocation2 + $0x28] sm:$0xff]
        %v4617 = vld [vmem:[#allocation2 + $0x30] sm:$0xff]
        %v4618 = vld [vmem:[#allocation2 + $0x38] sm:$0xff]
        %v4619 = vld [vmem:[#allocation2 + $0x40] sm:$0xff]
        %v4620 = vld [vmem:[#allocation2 + $0x48] sm:$0xff]
        %4631 = vrot.lane.b32.xlu0 %v4611, 84
        %v4632 = vpop.permute.xlu0 %4631
        %4633 = vrot.lane.b32.xlu0 %v4612, 84
        %v4634 = vpop.permute.xlu0 %4633
        %4635 = vrot.lane.b32.xlu0 %v4613, 84
        %v4636 = vpop.permute.xlu0 %4635
        %4637 = vrot.lane.b32.xlu0 %v4614, 84
        %v4638 = vpop.permute.xlu0 %4637
        %4639 = vrot.lane.b32.xlu0 %v4615, 84
        %v4640 = vpop.permute.xlu0 %4639
        %4641 = vrot.lane.b32.xlu0 %v4616, 84
        %v4642 = vpop.permute.xlu0 %4641
        %4643 = vrot.lane.b32.xlu0 %v4617, 84
        %v4644 = vpop.permute.xlu0 %4643
        %4645 = vrot.lane.b32.xlu0 %v4618, 84
        %v4646 = vpop.permute.xlu0 %4645
        %4647 = vrot.lane.b32.xlu0 %v4619, 84
        %v4648 = vpop.permute.xlu0 %4647
        %4649 = vrot.lane.b32.xlu0 %v4620, 84
        %v4650 = vpop.permute.xlu0 %4649
        %v4651 = vsel %vm876, %v4632, %v4634
        %v4652 = vsel %vm876, %v4634, %v4636
        %v4653 = vsel %vm876, %v4636, %v4638
        %v4654 = vsel %vm876, %v4638, %v4640
        %v4655 = vsel %vm876, %v4642, %v4644
        %v4656 = vsel %vm876, %v4644, %v4646
        %v4657 = vsel %vm876, %v4646, %v4648
        %v4658 = vsel %vm876, %v4648, %v4650
        %4667 = vst [vmem:[#allocation3 + $0x380] sm:$0xff] %v4651
        %4668 = vst [vmem:[#allocation3 + $0x388] sm:$0xff] %v4652
        %4669 = vst [vmem:[#allocation3 + $0x390] sm:$0xff] %v4653
        %4670 = vst [vmem:[#allocation3 + $0x398] sm:$0xff] %v4654
        %4671 = vst [vmem:[#allocation3 + $0x3a0] sm:$0xff] %v4655
        %4672 = vst [vmem:[#allocation3 + $0x3a8] sm:$0xff] %v4656
        %4673 = vst [vmem:[#allocation3 + $0x3b0] sm:$0xff] %v4657
        %4674 = vst [vmem:[#allocation3 + $0x3b8] sm:$0xff] %v4658
        %v4675 = vld [vmem:[#allocation2] sm:$0xff]
        %v4676 = vld [vmem:[#allocation2 + $0x8] sm:$0xff]
        %v4677 = vld [vmem:[#allocation2 + $0x10] sm:$0xff]
        %v4678 = vld [vmem:[#allocation2 + $0x18] sm:$0xff]
        %v4679 = vld [vmem:[#allocation2 + $0x20] sm:$0xff]
        %v4680 = vld [vmem:[#allocation2 + $0x28] sm:$0xff]
        %v4681 = vld [vmem:[#allocation2 + $0x30] sm:$0xff]
        %v4682 = vld [vmem:[#allocation2 + $0x38] sm:$0xff]
        %v4683 = vld [vmem:[#allocation2 + $0x40] sm:$0xff]
        %v4684 = vld [vmem:[#allocation2 + $0x48] sm:$0xff]
        %4695 = vrot.lane.b32.xlu0 %v4675, 68
        %v4696 = vpop.permute.xlu0 %4695
        %4697 = vrot.lane.b32.xlu0 %v4676, 68
        %v4698 = vpop.permute.xlu0 %4697
        %4699 = vrot.lane.b32.xlu0 %v4677, 68
        %v4700 = vpop.permute.xlu0 %4699
        %4701 = vrot.lane.b32.xlu0 %v4678, 68
        %v4702 = vpop.permute.xlu0 %4701
        %4703 = vrot.lane.b32.xlu0 %v4679, 68
        %v4704 = vpop.permute.xlu0 %4703
        %4705 = vrot.lane.b32.xlu0 %v4680, 68
        %v4706 = vpop.permute.xlu0 %4705
        %4707 = vrot.lane.b32.xlu0 %v4681, 68
        %v4708 = vpop.permute.xlu0 %4707
        %4709 = vrot.lane.b32.xlu0 %v4682, 68
        %v4710 = vpop.permute.xlu0 %4709
        %4711 = vrot.lane.b32.xlu0 %v4683, 68
        %v4712 = vpop.permute.xlu0 %4711
        %4713 = vrot.lane.b32.xlu0 %v4684, 68
        %v4714 = vpop.permute.xlu0 %4713
        %v4715 = vsel %vm909, %v4696, %v4698
        %v4716 = vsel %vm909, %v4698, %v4700
        %v4717 = vsel %vm909, %v4700, %v4702
        %v4718 = vsel %vm909, %v4702, %v4704
        %v4719 = vsel %vm909, %v4706, %v4708
        %v4720 = vsel %vm909, %v4708, %v4710
        %v4721 = vsel %vm909, %v4710, %v4712
        %v4722 = vsel %vm909, %v4712, %v4714
        %4731 = vst [vmem:[#allocation3 + $0x3c0] sm:$0xff] %v4715
        %4732 = vst [vmem:[#allocation3 + $0x3c8] sm:$0xff] %v4716
        %4733 = vst [vmem:[#allocation3 + $0x3d0] sm:$0xff] %v4717
        %4734 = vst [vmem:[#allocation3 + $0x3d8] sm:$0xff] %v4718
        %4735 = vst [vmem:[#allocation3 + $0x3e0] sm:$0xff] %v4719
        %4736 = vst [vmem:[#allocation3 + $0x3e8] sm:$0xff] %v4720
        %4737 = vst [vmem:[#allocation3 + $0x3f0] sm:$0xff] %v4721
        %4738 = vst [vmem:[#allocation3 + $0x3f8] sm:$0xff] %v4722
        %v4739 = vld [vmem:[#allocation2] sm:$0xff]
        %v4740 = vld [vmem:[#allocation2 + $0x8] sm:$0xff]
        %v4741 = vld [vmem:[#allocation2 + $0x10] sm:$0xff]
        %v4742 = vld [vmem:[#allocation2 + $0x18] sm:$0xff]
        %v4743 = vld [vmem:[#allocation2 + $0x20] sm:$0xff]
        %v4744 = vld [vmem:[#allocation2 + $0x28] sm:$0xff]
        %v4745 = vld [vmem:[#allocation2 + $0x30] sm:$0xff]
        %v4746 = vld [vmem:[#allocation2 + $0x38] sm:$0xff]
        %v4747 = vld [vmem:[#allocation2 + $0x40] sm:$0xff]
        %v4748 = vld [vmem:[#allocation2 + $0x48] sm:$0xff]
        %4759 = vrot.lane.b32.xlu0 %v4739, 67
        %v4760 = vpop.permute.xlu0 %4759
        %4761 = vrot.lane.b32.xlu0 %v4740, 67
        %v4762 = vpop.permute.xlu0 %4761
        %4763 = vrot.lane.b32.xlu0 %v4741, 67
        %v4764 = vpop.permute.xlu0 %4763
        %4765 = vrot.lane.b32.xlu0 %v4742, 67
        %v4766 = vpop.permute.xlu0 %4765
        %4767 = vrot.lane.b32.xlu0 %v4743, 67
        %v4768 = vpop.permute.xlu0 %4767
        %4769 = vrot.lane.b32.xlu0 %v4744, 67
        %v4770 = vpop.permute.xlu0 %4769
        %4771 = vrot.lane.b32.xlu0 %v4745, 67
        %v4772 = vpop.permute.xlu0 %4771
        %4773 = vrot.lane.b32.xlu0 %v4746, 67
        %v4774 = vpop.permute.xlu0 %4773
        %4775 = vrot.lane.b32.xlu0 %v4747, 67
        %v4776 = vpop.permute.xlu0 %4775
        %4777 = vrot.lane.b32.xlu0 %v4748, 67
        %v4778 = vpop.permute.xlu0 %4777
        %v4779 = vsel %vm942, %v4760, %v4762
        %v4780 = vsel %vm942, %v4762, %v4764
        %v4781 = vsel %vm942, %v4764, %v4766
        %v4782 = vsel %vm942, %v4766, %v4768
        %v4783 = vsel %vm942, %v4770, %v4772
        %v4784 = vsel %vm942, %v4772, %v4774
        %v4785 = vsel %vm942, %v4774, %v4776
        %v4786 = vsel %vm942, %v4776, %v4778
        %4795 = vst [vmem:[#allocation3 + $0x400] sm:$0xff] %v4779
        %4796 = vst [vmem:[#allocation3 + $0x408] sm:$0xff] %v4780
        %4797 = vst [vmem:[#allocation3 + $0x410] sm:$0xff] %v4781
        %4798 = vst [vmem:[#allocation3 + $0x418] sm:$0xff] %v4782
        %4799 = vst [vmem:[#allocation3 + $0x420] sm:$0xff] %v4783
        %4800 = vst [vmem:[#allocation3 + $0x428] sm:$0xff] %v4784
        %4801 = vst [vmem:[#allocation3 + $0x430] sm:$0xff] %v4785
        %4802 = vst [vmem:[#allocation3 + $0x438] sm:$0xff] %v4786
        %v4803 = vld [vmem:[#allocation2] sm:$0xff]
        %v4804 = vld [vmem:[#allocation2 + $0x8] sm:$0xff]
        %v4805 = vld [vmem:[#allocation2 + $0x10] sm:$0xff]
        %v4806 = vld [vmem:[#allocation2 + $0x18] sm:$0xff]
        %v4807 = vld [vmem:[#allocation2 + $0x20] sm:$0xff]
        %v4808 = vld [vmem:[#allocation2 + $0x28] sm:$0xff]
        %v4809 = vld [vmem:[#allocation2 + $0x30] sm:$0xff]
        %v4810 = vld [vmem:[#allocation2 + $0x38] sm:$0xff]
        %v4811 = vld [vmem:[#allocation2 + $0x40] sm:$0xff]
        %v4812 = vld [vmem:[#allocation2 + $0x48] sm:$0xff]
        %4823 = vrot.lane.b32.xlu0 %v4803, 66
        %v4824 = vpop.permute.xlu0 %4823
        %4825 = vrot.lane.b32.xlu0 %v4804, 66
        %v4826 = vpop.permute.xlu0 %4825
        %4827 = vrot.lane.b32.xlu0 %v4805, 66
        %v4828 = vpop.permute.xlu0 %4827
        %4829 = vrot.lane.b32.xlu0 %v4806, 66
        %v4830 = vpop.permute.xlu0 %4829
        %4831 = vrot.lane.b32.xlu0 %v4807, 66
        %v4832 = vpop.permute.xlu0 %4831
        %4833 = vrot.lane.b32.xlu0 %v4808, 66
        %v4834 = vpop.permute.xlu0 %4833
        %4835 = vrot.lane.b32.xlu0 %v4809, 66
        %v4836 = vpop.permute.xlu0 %4835
        %4837 = vrot.lane.b32.xlu0 %v4810, 66
        %v4838 = vpop.permute.xlu0 %4837
        %4839 = vrot.lane.b32.xlu0 %v4811, 66
        %v4840 = vpop.permute.xlu0 %4839
        %4841 = vrot.lane.b32.xlu0 %v4812, 66
        %v4842 = vpop.permute.xlu0 %4841
        %v4843 = vsel %vm975, %v4824, %v4826
        %v4844 = vsel %vm975, %v4826, %v4828
        %v4845 = vsel %vm975, %v4828, %v4830
        %v4846 = vsel %vm975, %v4830, %v4832
        %v4847 = vsel %vm975, %v4834, %v4836
        %v4848 = vsel %vm975, %v4836, %v4838
        %v4849 = vsel %vm975, %v4838, %v4840
        %v4850 = vsel %vm975, %v4840, %v4842
        %4859 = vst [vmem:[#allocation3 + $0x440] sm:$0xff] %v4843
        %4860 = vst [vmem:[#allocation3 + $0x448] sm:$0xff] %v4844
        %4861 = vst [vmem:[#allocation3 + $0x450] sm:$0xff] %v4845
        %4862 = vst [vmem:[#allocation3 + $0x458] sm:$0xff] %v4846
        %4863 = vst [vmem:[#allocation3 + $0x460] sm:$0xff] %v4847
        %4864 = vst [vmem:[#allocation3 + $0x468] sm:$0xff] %v4848
        %4865 = vst [vmem:[#allocation3 + $0x470] sm:$0xff] %v4849
        %4866 = vst [vmem:[#allocation3 + $0x478] sm:$0xff] %v4850
        %v4867 = vld [vmem:[#allocation2] sm:$0xff]
        %v4868 = vld [vmem:[#allocation2 + $0x8] sm:$0xff]
        %v4869 = vld [vmem:[#allocation2 + $0x10] sm:$0xff]
        %v4870 = vld [vmem:[#allocation2 + $0x18] sm:$0xff]
        %v4871 = vld [vmem:[#allocation2 + $0x20] sm:$0xff]
        %v4872 = vld [vmem:[#allocation2 + $0x28] sm:$0xff]
        %v4873 = vld [vmem:[#allocation2 + $0x30] sm:$0xff]
        %v4874 = vld [vmem:[#allocation2 + $0x38] sm:$0xff]
        %v4875 = vld [vmem:[#allocation2 + $0x40] sm:$0xff]
        %v4876 = vld [vmem:[#allocation2 + $0x48] sm:$0xff]
        %4887 = vrot.lane.b32.xlu0 %v4867, 65
        %v4888 = vpop.permute.xlu0 %4887
        %4889 = vrot.lane.b32.xlu0 %v4868, 65
        %v4890 = vpop.permute.xlu0 %4889
        %4891 = vrot.lane.b32.xlu0 %v4869, 65
        %v4892 = vpop.permute.xlu0 %4891
        %4893 = vrot.lane.b32.xlu0 %v4870, 65
        %v4894 = vpop.permute.xlu0 %4893
        %4895 = vrot.lane.b32.xlu0 %v4871, 65
        %v4896 = vpop.permute.xlu0 %4895
        %4897 = vrot.lane.b32.xlu0 %v4872, 65
        %v4898 = vpop.permute.xlu0 %4897
        %4899 = vrot.lane.b32.xlu0 %v4873, 65
        %v4900 = vpop.permute.xlu0 %4899
        %4901 = vrot.lane.b32.xlu0 %v4874, 65
        %v4902 = vpop.permute.xlu0 %4901
        %4903 = vrot.lane.b32.xlu0 %v4875, 65
        %v4904 = vpop.permute.xlu0 %4903
        %4905 = vrot.lane.b32.xlu0 %v4876, 65
        %v4906 = vpop.permute.xlu0 %4905
        %v4907 = vsel %vm1008, %v4888, %v4890
        %v4908 = vsel %vm1008, %v4890, %v4892
        %v4909 = vsel %vm1008, %v4892, %v4894
        %v4910 = vsel %vm1008, %v4894, %v4896
        %v4911 = vsel %vm1008, %v4898, %v4900
        %v4912 = vsel %vm1008, %v4900, %v4902
        %v4913 = vsel %vm1008, %v4902, %v4904
        %v4914 = vsel %vm1008, %v4904, %v4906
        %4923 = vst [vmem:[#allocation3 + $0x480] sm:$0xff] %v4907
        %4924 = vst [vmem:[#allocation3 + $0x488] sm:$0xff] %v4908
        %4925 = vst [vmem:[#allocation3 + $0x490] sm:$0xff] %v4909
        %4926 = vst [vmem:[#allocation3 + $0x498] sm:$0xff] %v4910
        %4927 = vst [vmem:[#allocation3 + $0x4a0] sm:$0xff] %v4911
        %4928 = vst [vmem:[#allocation3 + $0x4a8] sm:$0xff] %v4912
        %4929 = vst [vmem:[#allocation3 + $0x4b0] sm:$0xff] %v4913
        %4930 = vst [vmem:[#allocation3 + $0x4b8] sm:$0xff] %v4914
        %v4931 = vld [vmem:[#allocation2] sm:$0xff]
        %v4932 = vld [vmem:[#allocation2 + $0x8] sm:$0xff]
        %v4933 = vld [vmem:[#allocation2 + $0x10] sm:$0xff]
        %v4934 = vld [vmem:[#allocation2 + $0x18] sm:$0xff]
        %v4935 = vld [vmem:[#allocation2 + $0x20] sm:$0xff]
        %v4936 = vld [vmem:[#allocation2 + $0x28] sm:$0xff]
        %v4937 = vld [vmem:[#allocation2 + $0x30] sm:$0xff]
        %v4938 = vld [vmem:[#allocation2 + $0x38] sm:$0xff]
        %v4939 = vld [vmem:[#allocation2 + $0x40] sm:$0xff]
        %v4940 = vld [vmem:[#allocation2 + $0x48] sm:$0xff]
        %4951 = vrot.lane.b32.xlu0 %v4931, 64
        %v4952 = vpop.permute.xlu0 %4951
        %4953 = vrot.lane.b32.xlu0 %v4932, 64
        %v4954 = vpop.permute.xlu0 %4953
        %4955 = vrot.lane.b32.xlu0 %v4933, 64
        %v4956 = vpop.permute.xlu0 %4955
        %4957 = vrot.lane.b32.xlu0 %v4934, 64
        %v4958 = vpop.permute.xlu0 %4957
        %4959 = vrot.lane.b32.xlu0 %v4935, 64
        %v4960 = vpop.permute.xlu0 %4959
        %4961 = vrot.lane.b32.xlu0 %v4936, 64
        %v4962 = vpop.permute.xlu0 %4961
        %4963 = vrot.lane.b32.xlu0 %v4937, 64
        %v4964 = vpop.permute.xlu0 %4963
        %4965 = vrot.lane.b32.xlu0 %v4938, 64
        %v4966 = vpop.permute.xlu0 %4965
        %4967 = vrot.lane.b32.xlu0 %v4939, 64
        %v4968 = vpop.permute.xlu0 %4967
        %4969 = vrot.lane.b32.xlu0 %v4940, 64
        %v4970 = vpop.permute.xlu0 %4969
        %v4971 = vsel %vm1041, %v4952, %v4954
        %v4972 = vsel %vm1041, %v4954, %v4956
        %v4973 = vsel %vm1041, %v4956, %v4958
        %v4974 = vsel %vm1041, %v4958, %v4960
        %v4975 = vsel %vm1041, %v4962, %v4964
        %v4976 = vsel %vm1041, %v4964, %v4966
        %v4977 = vsel %vm1041, %v4966, %v4968
        %v4978 = vsel %vm1041, %v4968, %v4970
        %4987 = vst [vmem:[#allocation3 + $0x4c0] sm:$0xff] %v4971
        %4988 = vst [vmem:[#allocation3 + $0x4c8] sm:$0xff] %v4972
        %4989 = vst [vmem:[#allocation3 + $0x4d0] sm:$0xff] %v4973
        %4990 = vst [vmem:[#allocation3 + $0x4d8] sm:$0xff] %v4974
        %4991 = vst [vmem:[#allocation3 + $0x4e0] sm:$0xff] %v4975
        %4992 = vst [vmem:[#allocation3 + $0x4e8] sm:$0xff] %v4976
        %4993 = vst [vmem:[#allocation3 + $0x4f0] sm:$0xff] %v4977
        %4994 = vst [vmem:[#allocation3 + $0x4f8] sm:$0xff] %v4978
        %v4995 = vld [vmem:[#allocation2] sm:$0xff]
        %v4996 = vld [vmem:[#allocation2 + $0x8] sm:$0xff]
        %v4997 = vld [vmem:[#allocation2 + $0x10] sm:$0xff]
        %v4998 = vld [vmem:[#allocation2 + $0x18] sm:$0xff]
        %v4999 = vld [vmem:[#allocation2 + $0x20] sm:$0xff]
        %v5000 = vld [vmem:[#allocation2 + $0x28] sm:$0xff]
        %v5001 = vld [vmem:[#allocation2 + $0x30] sm:$0xff]
        %v5002 = vld [vmem:[#allocation2 + $0x38] sm:$0xff]
        %v5003 = vld [vmem:[#allocation2 + $0x40] sm:$0xff]
        %v5004 = vld [vmem:[#allocation2 + $0x48] sm:$0xff]
        %5015 = vrot.lane.b32.xlu0 %v4995, 48
        %v5016 = vpop.permute.xlu0 %5015
        %5017 = vrot.lane.b32.xlu0 %v4996, 48
        %v5018 = vpop.permute.xlu0 %5017
        %5019 = vrot.lane.b32.xlu0 %v4997, 48
        %v5020 = vpop.permute.xlu0 %5019
        %5021 = vrot.lane.b32.xlu0 %v4998, 48
        %v5022 = vpop.permute.xlu0 %5021
        %5023 = vrot.lane.b32.xlu0 %v4999, 48
        %v5024 = vpop.permute.xlu0 %5023
        %5025 = vrot.lane.b32.xlu0 %v5000, 48
        %v5026 = vpop.permute.xlu0 %5025
        %5027 = vrot.lane.b32.xlu0 %v5001, 48
        %v5028 = vpop.permute.xlu0 %5027
        %5029 = vrot.lane.b32.xlu0 %v5002, 48
        %v5030 = vpop.permute.xlu0 %5029
        %5031 = vrot.lane.b32.xlu0 %v5003, 48
        %v5032 = vpop.permute.xlu0 %5031
        %5033 = vrot.lane.b32.xlu0 %v5004, 48
        %v5034 = vpop.permute.xlu0 %5033
        %v5035 = vsel %vm1074, %v5016, %v5018
        %v5036 = vsel %vm1074, %v5018, %v5020
        %v5037 = vsel %vm1074, %v5020, %v5022
        %v5038 = vsel %vm1074, %v5022, %v5024
        %v5039 = vsel %vm1074, %v5026, %v5028
        %v5040 = vsel %vm1074, %v5028, %v5030
        %v5041 = vsel %vm1074, %v5030, %v5032
        %v5042 = vsel %vm1074, %v5032, %v5034
        %5051 = vst [vmem:[#allocation3 + $0x500] sm:$0xff] %v5035
        %5052 = vst [vmem:[#allocation3 + $0x508] sm:$0xff] %v5036
        %5053 = vst [vmem:[#allocation3 + $0x510] sm:$0xff] %v5037
        %5054 = vst [vmem:[#allocation3 + $0x518] sm:$0xff] %v5038
        %5055 = vst [vmem:[#allocation3 + $0x520] sm:$0xff] %v5039
        %5056 = vst [vmem:[#allocation3 + $0x528] sm:$0xff] %v5040
        %5057 = vst [vmem:[#allocation3 + $0x530] sm:$0xff] %v5041
        %5058 = vst [vmem:[#allocation3 + $0x538] sm:$0xff] %v5042
        %v5059 = vld [vmem:[#allocation2] sm:$0xff]
        %v5060 = vld [vmem:[#allocation2 + $0x8] sm:$0xff]
        %v5061 = vld [vmem:[#allocation2 + $0x10] sm:$0xff]
        %v5062 = vld [vmem:[#allocation2 + $0x18] sm:$0xff]
        %v5063 = vld [vmem:[#allocation2 + $0x20] sm:$0xff]
        %v5064 = vld [vmem:[#allocation2 + $0x28] sm:$0xff]
        %v5065 = vld [vmem:[#allocation2 + $0x30] sm:$0xff]
        %v5066 = vld [vmem:[#allocation2 + $0x38] sm:$0xff]
        %v5067 = vld [vmem:[#allocation2 + $0x40] sm:$0xff]
        %v5068 = vld [vmem:[#allocation2 + $0x48] sm:$0xff]
        %5079 = vrot.lane.b32.xlu0 %v5059, 47
        %v5080 = vpop.permute.xlu0 %5079
        %5081 = vrot.lane.b32.xlu0 %v5060, 47
        %v5082 = vpop.permute.xlu0 %5081
        %5083 = vrot.lane.b32.xlu0 %v5061, 47
        %v5084 = vpop.permute.xlu0 %5083
        %5085 = vrot.lane.b32.xlu0 %v5062, 47
        %v5086 = vpop.permute.xlu0 %5085
        %5087 = vrot.lane.b32.xlu0 %v5063, 47
        %v5088 = vpop.permute.xlu0 %5087
        %5089 = vrot.lane.b32.xlu0 %v5064, 47
        %v5090 = vpop.permute.xlu0 %5089
        %5091 = vrot.lane.b32.xlu0 %v5065, 47
        %v5092 = vpop.permute.xlu0 %5091
        %5093 = vrot.lane.b32.xlu0 %v5066, 47
        %v5094 = vpop.permute.xlu0 %5093
        %5095 = vrot.lane.b32.xlu0 %v5067, 47
        %v5096 = vpop.permute.xlu0 %5095
        %5097 = vrot.lane.b32.xlu0 %v5068, 47
        %v5098 = vpop.permute.xlu0 %5097
        %v5099 = vsel %vm1107, %v5080, %v5082
        %v5100 = vsel %vm1107, %v5082, %v5084
        %v5101 = vsel %vm1107, %v5084, %v5086
        %v5102 = vsel %vm1107, %v5086, %v5088
        %v5103 = vsel %vm1107, %v5090, %v5092
        %v5104 = vsel %vm1107, %v5092, %v5094
        %v5105 = vsel %vm1107, %v5094, %v5096
        %v5106 = vsel %vm1107, %v5096, %v5098
        %5115 = vst [vmem:[#allocation3 + $0x540] sm:$0xff] %v5099
        %5116 = vst [vmem:[#allocation3 + $0x548] sm:$0xff] %v5100
        %5117 = vst [vmem:[#allocation3 + $0x550] sm:$0xff] %v5101
        %5118 = vst [vmem:[#allocation3 + $0x558] sm:$0xff] %v5102
        %5119 = vst [vmem:[#allocation3 + $0x560] sm:$0xff] %v5103
        %5120 = vst [vmem:[#allocation3 + $0x568] sm:$0xff] %v5104
        %5121 = vst [vmem:[#allocation3 + $0x570] sm:$0xff] %v5105
        %5122 = vst [vmem:[#allocation3 + $0x578] sm:$0xff] %v5106
        %v5123 = vld [vmem:[#allocation2] sm:$0xff]
        %v5124 = vld [vmem:[#allocation2 + $0x8] sm:$0xff]
        %v5125 = vld [vmem:[#allocation2 + $0x10] sm:$0xff]
        %v5126 = vld [vmem:[#allocation2 + $0x18] sm:$0xff]
        %v5127 = vld [vmem:[#allocation2 + $0x20] sm:$0xff]
        %v5128 = vld [vmem:[#allocation2 + $0x28] sm:$0xff]
        %v5129 = vld [vmem:[#allocation2 + $0x30] sm:$0xff]
        %v5130 = vld [vmem:[#allocation2 + $0x38] sm:$0xff]
        %v5131 = vld [vmem:[#allocation2 + $0x40] sm:$0xff]
        %v5132 = vld [vmem:[#allocation2 + $0x48] sm:$0xff]
        %5143 = vrot.lane.b32.xlu0 %v5123, 46
        %v5144 = vpop.permute.xlu0 %5143
        %5145 = vrot.lane.b32.xlu0 %v5124, 46
        %v5146 = vpop.permute.xlu0 %5145
        %5147 = vrot.lane.b32.xlu0 %v5125, 46
        %v5148 = vpop.permute.xlu0 %5147
        %5149 = vrot.lane.b32.xlu0 %v5126, 46
        %v5150 = vpop.permute.xlu0 %5149
        %5151 = vrot.lane.b32.xlu0 %v5127, 46
        %v5152 = vpop.permute.xlu0 %5151
        %5153 = vrot.lane.b32.xlu0 %v5128, 46
        %v5154 = vpop.permute.xlu0 %5153
        %5155 = vrot.lane.b32.xlu0 %v5129, 46
        %v5156 = vpop.permute.xlu0 %5155
        %5157 = vrot.lane.b32.xlu0 %v5130, 46
        %v5158 = vpop.permute.xlu0 %5157
        %5159 = vrot.lane.b32.xlu0 %v5131, 46
        %v5160 = vpop.permute.xlu0 %5159
        %5161 = vrot.lane.b32.xlu0 %v5132, 46
        %v5162 = vpop.permute.xlu0 %5161
        %v5163 = vsel %vm1140, %v5144, %v5146
        %v5164 = vsel %vm1140, %v5146, %v5148
        %v5165 = vsel %vm1140, %v5148, %v5150
        %v5166 = vsel %vm1140, %v5150, %v5152
        %v5167 = vsel %vm1140, %v5154, %v5156
        %v5168 = vsel %vm1140, %v5156, %v5158
        %v5169 = vsel %vm1140, %v5158, %v5160
        %v5170 = vsel %vm1140, %v5160, %v5162
        %5179 = vst [vmem:[#allocation3 + $0x580] sm:$0xff] %v5163
        %5180 = vst [vmem:[#allocation3 + $0x588] sm:$0xff] %v5164
        %5181 = vst [vmem:[#allocation3 + $0x590] sm:$0xff] %v5165
        %5182 = vst [vmem:[#allocation3 + $0x598] sm:$0xff] %v5166
        %5183 = vst [vmem:[#allocation3 + $0x5a0] sm:$0xff] %v5167
        %5184 = vst [vmem:[#allocation3 + $0x5a8] sm:$0xff] %v5168
        %5185 = vst [vmem:[#allocation3 + $0x5b0] sm:$0xff] %v5169
        %5186 = vst [vmem:[#allocation3 + $0x5b8] sm:$0xff] %v5170
        %v5187 = vld [vmem:[#allocation2] sm:$0xff]
        %v5188 = vld [vmem:[#allocation2 + $0x8] sm:$0xff]
        %v5189 = vld [vmem:[#allocation2 + $0x10] sm:$0xff]
        %v5190 = vld [vmem:[#allocation2 + $0x18] sm:$0xff]
        %v5191 = vld [vmem:[#allocation2 + $0x20] sm:$0xff]
        %v5192 = vld [vmem:[#allocation2 + $0x28] sm:$0xff]
        %v5193 = vld [vmem:[#allocation2 + $0x30] sm:$0xff]
        %v5194 = vld [vmem:[#allocation2 + $0x38] sm:$0xff]
        %v5195 = vld [vmem:[#allocation2 + $0x40] sm:$0xff]
        %v5196 = vld [vmem:[#allocation2 + $0x48] sm:$0xff]
        %5207 = vrot.lane.b32.xlu0 %v5187, 45
        %v5208 = vpop.permute.xlu0 %5207
        %5209 = vrot.lane.b32.xlu0 %v5188, 45
        %v5210 = vpop.permute.xlu0 %5209
        %5211 = vrot.lane.b32.xlu0 %v5189, 45
        %v5212 = vpop.permute.xlu0 %5211
        %5213 = vrot.lane.b32.xlu0 %v5190, 45
        %v5214 = vpop.permute.xlu0 %5213
        %5215 = vrot.lane.b32.xlu0 %v5191, 45
        %v5216 = vpop.permute.xlu0 %5215
        %5217 = vrot.lane.b32.xlu0 %v5192, 45
        %v5218 = vpop.permute.xlu0 %5217
        %5219 = vrot.lane.b32.xlu0 %v5193, 45
        %v5220 = vpop.permute.xlu0 %5219
        %5221 = vrot.lane.b32.xlu0 %v5194, 45
        %v5222 = vpop.permute.xlu0 %5221
        %5223 = vrot.lane.b32.xlu0 %v5195, 45
        %v5224 = vpop.permute.xlu0 %5223
        %5225 = vrot.lane.b32.xlu0 %v5196, 45
        %v5226 = vpop.permute.xlu0 %5225
        %v5227 = vsel %vm1173, %v5208, %v5210
        %v5228 = vsel %vm1173, %v5210, %v5212
        %v5229 = vsel %vm1173, %v5212, %v5214
        %v5230 = vsel %vm1173, %v5214, %v5216
        %v5231 = vsel %vm1173, %v5218, %v5220
        %v5232 = vsel %vm1173, %v5220, %v5222
        %v5233 = vsel %vm1173, %v5222, %v5224
        %v5234 = vsel %vm1173, %v5224, %v5226
        %5243 = vst [vmem:[#allocation3 + $0x5c0] sm:$0xff] %v5227
        %5244 = vst [vmem:[#allocation3 + $0x5c8] sm:$0xff] %v5228
        %5245 = vst [vmem:[#allocation3 + $0x5d0] sm:$0xff] %v5229
        %5246 = vst [vmem:[#allocation3 + $0x5d8] sm:$0xff] %v5230
        %5247 = vst [vmem:[#allocation3 + $0x5e0] sm:$0xff] %v5231
        %5248 = vst [vmem:[#allocation3 + $0x5e8] sm:$0xff] %v5232
        %5249 = vst [vmem:[#allocation3 + $0x5f0] sm:$0xff] %v5233
        %5250 = vst [vmem:[#allocation3 + $0x5f8] sm:$0xff] %v5234
        %v5251 = vld [vmem:[#allocation2] sm:$0xff]
        %v5252 = vld [vmem:[#allocation2 + $0x8] sm:$0xff]
        %v5253 = vld [vmem:[#allocation2 + $0x10] sm:$0xff]
        %v5254 = vld [vmem:[#allocation2 + $0x18] sm:$0xff]
        %v5255 = vld [vmem:[#allocation2 + $0x20] sm:$0xff]
        %v5256 = vld [vmem:[#allocation2 + $0x28] sm:$0xff]
        %v5257 = vld [vmem:[#allocation2 + $0x30] sm:$0xff]
        %v5258 = vld [vmem:[#allocation2 + $0x38] sm:$0xff]
        %v5259 = vld [vmem:[#allocation2 + $0x40] sm:$0xff]
        %v5260 = vld [vmem:[#allocation2 + $0x48] sm:$0xff]
        %5271 = vrot.lane.b32.xlu0 %v5251, 44
        %v5272 = vpop.permute.xlu0 %5271
        %5273 = vrot.lane.b32.xlu0 %v5252, 44
        %v5274 = vpop.permute.xlu0 %5273
        %5275 = vrot.lane.b32.xlu0 %v5253, 44
        %v5276 = vpop.permute.xlu0 %5275
        %5277 = vrot.lane.b32.xlu0 %v5254, 44
        %v5278 = vpop.permute.xlu0 %5277
        %5279 = vrot.lane.b32.xlu0 %v5255, 44
        %v5280 = vpop.permute.xlu0 %5279
        %5281 = vrot.lane.b32.xlu0 %v5256, 44
        %v5282 = vpop.permute.xlu0 %5281
        %5283 = vrot.lane.b32.xlu0 %v5257, 44
        %v5284 = vpop.permute.xlu0 %5283
        %5285 = vrot.lane.b32.xlu0 %v5258, 44
        %v5286 = vpop.permute.xlu0 %5285
        %5287 = vrot.lane.b32.xlu0 %v5259, 44
        %v5288 = vpop.permute.xlu0 %5287
        %5289 = vrot.lane.b32.xlu0 %v5260, 44
        %v5290 = vpop.permute.xlu0 %5289
        %v5291 = vsel %vm1206, %v5272, %v5274
        %v5292 = vsel %vm1206, %v5274, %v5276
        %v5293 = vsel %vm1206, %v5276, %v5278
        %v5294 = vsel %vm1206, %v5278, %v5280
        %v5295 = vsel %vm1206, %v5282, %v5284
        %v5296 = vsel %vm1206, %v5284, %v5286
        %v5297 = vsel %vm1206, %v5286, %v5288
        %v5298 = vsel %vm1206, %v5288, %v5290
        %5307 = vst [vmem:[#allocation3 + $0x600] sm:$0xff] %v5291
        %5308 = vst [vmem:[#allocation3 + $0x608] sm:$0xff] %v5292
        %5309 = vst [vmem:[#allocation3 + $0x610] sm:$0xff] %v5293
        %5310 = vst [vmem:[#allocation3 + $0x618] sm:$0xff] %v5294
        %5311 = vst [vmem:[#allocation3 + $0x620] sm:$0xff] %v5295
        %5312 = vst [vmem:[#allocation3 + $0x628] sm:$0xff] %v5296
        %5313 = vst [vmem:[#allocation3 + $0x630] sm:$0xff] %v5297
        %5314 = vst [vmem:[#allocation3 + $0x638] sm:$0xff] %v5298
        %v5315 = vld [vmem:[#allocation9] sm:$0xff]
        %v5316 = vld [vmem:[#allocation9 + $0x8] sm:$0xff]
        %v5317 = vld [vmem:[#allocation9 + $0x10] sm:$0xff]
        %v5318 = vld [vmem:[#allocation9 + $0x18] sm:$0xff]
        %v5319 = vld [vmem:[#allocation3] sm:$0xff]
        %v5320 = vld [vmem:[#allocation3 + $0x8] sm:$0xff]
        %v5321 = vld [vmem:[#allocation3 + $0x10] sm:$0xff]
        %v5322 = vld [vmem:[#allocation3 + $0x18] sm:$0xff]
        %v5323 = vld [vmem:[#allocation3 + $0x20] sm:$0xff]
        %v5324 = vld [vmem:[#allocation3 + $0x28] sm:$0xff]
        %v5325 = vld [vmem:[#allocation3 + $0x30] sm:$0xff]
        %v5326 = vld [vmem:[#allocation3 + $0x38] sm:$0xff]
        %v5327 = vld [vmem:[#allocation3 + $0x40] sm:$0xff]
        %v5328 = vld [vmem:[#allocation3 + $0x48] sm:$0xff]
        %v5329 = vld [vmem:[#allocation3 + $0x50] sm:$0xff]
        %v5330 = vld [vmem:[#allocation3 + $0x58] sm:$0xff]
        %v5331 = vld [vmem:[#allocation3 + $0x60] sm:$0xff]
        %v5332 = vld [vmem:[#allocation3 + $0x68] sm:$0xff]
        %v5333 = vld [vmem:[#allocation3 + $0x70] sm:$0xff]
        %v5334 = vld [vmem:[#allocation3 + $0x78] sm:$0xff]
        %v5335 = vld [vmem:[#allocation3 + $0x80] sm:$0xff]
        %v5336 = vld [vmem:[#allocation3 + $0x88] sm:$0xff]
        %v5337 = vld [vmem:[#allocation3 + $0x90] sm:$0xff]
        %v5338 = vld [vmem:[#allocation3 + $0x98] sm:$0xff]
        %v5339 = vld [vmem:[#allocation3 + $0xa0] sm:$0xff]
        %v5340 = vld [vmem:[#allocation3 + $0xa8] sm:$0xff]
        %v5341 = vld [vmem:[#allocation3 + $0xb0] sm:$0xff]
        %v5342 = vld [vmem:[#allocation3 + $0xb8] sm:$0xff]
        %v5343 = vld [vmem:[#allocation3 + $0xc0] sm:$0xff]
        %v5344 = vld [vmem:[#allocation3 + $0xc8] sm:$0xff]
        %v5345 = vld [vmem:[#allocation3 + $0xd0] sm:$0xff]
        %v5346 = vld [vmem:[#allocation3 + $0xd8] sm:$0xff]
        %v5347 = vld [vmem:[#allocation3 + $0xe0] sm:$0xff]
        %v5348 = vld [vmem:[#allocation3 + $0xe8] sm:$0xff]
        %v5349 = vld [vmem:[#allocation3 + $0xf0] sm:$0xff]
        %v5350 = vld [vmem:[#allocation3 + $0xf8] sm:$0xff]
        %v5351 = vld [vmem:[#allocation3 + $0x100] sm:$0xff]
        %v5352 = vld [vmem:[#allocation3 + $0x108] sm:$0xff]
        %v5353 = vld [vmem:[#allocation3 + $0x110] sm:$0xff]
        %v5354 = vld [vmem:[#allocation3 + $0x118] sm:$0xff]
        %v5355 = vld [vmem:[#allocation3 + $0x120] sm:$0xff]
        %v5356 = vld [vmem:[#allocation3 + $0x128] sm:$0xff]
        %v5357 = vld [vmem:[#allocation3 + $0x130] sm:$0xff]
        %v5358 = vld [vmem:[#allocation3 + $0x138] sm:$0xff]
        %v5359 = vld [vmem:[#allocation3 + $0x140] sm:$0xff]
        %v5360 = vld [vmem:[#allocation3 + $0x148] sm:$0xff]
        %v5361 = vld [vmem:[#allocation3 + $0x150] sm:$0xff]
        %v5362 = vld [vmem:[#allocation3 + $0x158] sm:$0xff]
        %v5363 = vld [vmem:[#allocation3 + $0x160] sm:$0xff]
        %v5364 = vld [vmem:[#allocation3 + $0x168] sm:$0xff]
        %v5365 = vld [vmem:[#allocation3 + $0x170] sm:$0xff]
        %v5366 = vld [vmem:[#allocation3 + $0x178] sm:$0xff]
        %v5367 = vld [vmem:[#allocation3 + $0x180] sm:$0xff]
        %v5368 = vld [vmem:[#allocation3 + $0x188] sm:$0xff]
        %v5369 = vld [vmem:[#allocation3 + $0x190] sm:$0xff]
        %v5370 = vld [vmem:[#allocation3 + $0x198] sm:$0xff]
        %v5371 = vld [vmem:[#allocation3 + $0x1a0] sm:$0xff]
        %v5372 = vld [vmem:[#allocation3 + $0x1a8] sm:$0xff]
        %v5373 = vld [vmem:[#allocation3 + $0x1b0] sm:$0xff]
        %v5374 = vld [vmem:[#allocation3 + $0x1b8] sm:$0xff]
        %v5375 = vld [vmem:[#allocation3 + $0x1c0] sm:$0xff]
        %v5376 = vld [vmem:[#allocation3 + $0x1c8] sm:$0xff]
        %v5377 = vld [vmem:[#allocation3 + $0x1d0] sm:$0xff]
        %v5378 = vld [vmem:[#allocation3 + $0x1d8] sm:$0xff]
        %v5379 = vld [vmem:[#allocation3 + $0x1e0] sm:$0xff]
        %v5380 = vld [vmem:[#allocation3 + $0x1e8] sm:$0xff]
        %v5381 = vld [vmem:[#allocation3 + $0x1f0] sm:$0xff]
        %v5382 = vld [vmem:[#allocation3 + $0x1f8] sm:$0xff]
        %v5383 = vld [vmem:[#allocation3 + $0x200] sm:$0xff]
        %v5384 = vld [vmem:[#allocation3 + $0x208] sm:$0xff]
        %v5385 = vld [vmem:[#allocation3 + $0x210] sm:$0xff]
        %v5386 = vld [vmem:[#allocation3 + $0x218] sm:$0xff]
        %v5387 = vld [vmem:[#allocation3 + $0x220] sm:$0xff]
        %v5388 = vld [vmem:[#allocation3 + $0x228] sm:$0xff]
        %v5389 = vld [vmem:[#allocation3 + $0x230] sm:$0xff]
        %v5390 = vld [vmem:[#allocation3 + $0x238] sm:$0xff]
        %v5391 = vld [vmem:[#allocation3 + $0x240] sm:$0xff]
        %v5392 = vld [vmem:[#allocation3 + $0x248] sm:$0xff]
        %v5393 = vld [vmem:[#allocation3 + $0x250] sm:$0xff]
        %v5394 = vld [vmem:[#allocation3 + $0x258] sm:$0xff]
        %v5395 = vld [vmem:[#allocation3 + $0x260] sm:$0xff]
        %v5396 = vld [vmem:[#allocation3 + $0x268] sm:$0xff]
        %v5397 = vld [vmem:[#allocation3 + $0x270] sm:$0xff]
        %v5398 = vld [vmem:[#allocation3 + $0x278] sm:$0xff]
        %v5399 = vld [vmem:[#allocation3 + $0x280] sm:$0xff]
        %v5400 = vld [vmem:[#allocation3 + $0x288] sm:$0xff]
        %v5401 = vld [vmem:[#allocation3 + $0x290] sm:$0xff]
        %v5402 = vld [vmem:[#allocation3 + $0x298] sm:$0xff]
        %v5403 = vld [vmem:[#allocation3 + $0x2a0] sm:$0xff]
        %v5404 = vld [vmem:[#allocation3 + $0x2a8] sm:$0xff]
        %v5405 = vld [vmem:[#allocation3 + $0x2b0] sm:$0xff]
        %v5406 = vld [vmem:[#allocation3 + $0x2b8] sm:$0xff]
        %v5407 = vld [vmem:[#allocation3 + $0x2c0] sm:$0xff]
        %v5408 = vld [vmem:[#allocation3 + $0x2c8] sm:$0xff]
        %v5409 = vld [vmem:[#allocation3 + $0x2d0] sm:$0xff]
        %v5410 = vld [vmem:[#allocation3 + $0x2d8] sm:$0xff]
        %v5411 = vld [vmem:[#allocation3 + $0x2e0] sm:$0xff]
        %v5412 = vld [vmem:[#allocation3 + $0x2e8] sm:$0xff]
        %v5413 = vld [vmem:[#allocation3 + $0x2f0] sm:$0xff]
        %v5414 = vld [vmem:[#allocation3 + $0x2f8] sm:$0xff]
        %v5415 = vld [vmem:[#allocation3 + $0x300] sm:$0xff]
        %v5416 = vld [vmem:[#allocation3 + $0x308] sm:$0xff]
        %v5417 = vld [vmem:[#allocation3 + $0x310] sm:$0xff]
        %v5418 = vld [vmem:[#allocation3 + $0x318] sm:$0xff]
        %v5419 = vld [vmem:[#allocation3 + $0x320] sm:$0xff]
        %v5420 = vld [vmem:[#allocation3 + $0x328] sm:$0xff]
        %v5421 = vld [vmem:[#allocation3 + $0x330] sm:$0xff]
        %v5422 = vld [vmem:[#allocation3 + $0x338] sm:$0xff]
        %v5423 = vld [vmem:[#allocation3 + $0x340] sm:$0xff]
        %v5424 = vld [vmem:[#allocation3 + $0x348] sm:$0xff]
        %v5425 = vld [vmem:[#allocation3 + $0x350] sm:$0xff]
        %v5426 = vld [vmem:[#allocation3 + $0x358] sm:$0xff]
        %v5427 = vld [vmem:[#allocation3 + $0x360] sm:$0xff]
        %v5428 = vld [vmem:[#allocation3 + $0x368] sm:$0xff]
        %v5429 = vld [vmem:[#allocation3 + $0x370] sm:$0xff]
        %v5430 = vld [vmem:[#allocation3 + $0x378] sm:$0xff]
        %v5431 = vld [vmem:[#allocation3 + $0x380] sm:$0xff]
        %v5432 = vld [vmem:[#allocation3 + $0x388] sm:$0xff]
        %v5433 = vld [vmem:[#allocation3 + $0x390] sm:$0xff]
        %v5434 = vld [vmem:[#allocation3 + $0x398] sm:$0xff]
        %v5435 = vld [vmem:[#allocation3 + $0x3a0] sm:$0xff]
        %v5436 = vld [vmem:[#allocation3 + $0x3a8] sm:$0xff]
        %v5437 = vld [vmem:[#allocation3 + $0x3b0] sm:$0xff]
        %v5438 = vld [vmem:[#allocation3 + $0x3b8] sm:$0xff]
        %v5439 = vld [vmem:[#allocation3 + $0x3c0] sm:$0xff]
        %v5440 = vld [vmem:[#allocation3 + $0x3c8] sm:$0xff]
        %v5441 = vld [vmem:[#allocation3 + $0x3d0] sm:$0xff]
        %v5442 = vld [vmem:[#allocation3 + $0x3d8] sm:$0xff]
        %v5443 = vld [vmem:[#allocation3 + $0x3e0] sm:$0xff]
        %v5444 = vld [vmem:[#allocation3 + $0x3e8] sm:$0xff]
        %v5445 = vld [vmem:[#allocation3 + $0x3f0] sm:$0xff]
        %v5446 = vld [vmem:[#allocation3 + $0x3f8] sm:$0xff]
        %v5447 = vld [vmem:[#allocation3 + $0x400] sm:$0xff]
        %v5448 = vld [vmem:[#allocation3 + $0x408] sm:$0xff]
        %v5449 = vld [vmem:[#allocation3 + $0x410] sm:$0xff]
        %v5450 = vld [vmem:[#allocation3 + $0x418] sm:$0xff]
        %v5451 = vld [vmem:[#allocation3 + $0x420] sm:$0xff]
        %v5452 = vld [vmem:[#allocation3 + $0x428] sm:$0xff]
        %v5453 = vld [vmem:[#allocation3 + $0x430] sm:$0xff]
        %v5454 = vld [vmem:[#allocation3 + $0x438] sm:$0xff]
        %v5455 = vld [vmem:[#allocation3 + $0x440] sm:$0xff]
        %v5456 = vld [vmem:[#allocation3 + $0x448] sm:$0xff]
        %v5457 = vld [vmem:[#allocation3 + $0x450] sm:$0xff]
        %v5458 = vld [vmem:[#allocation3 + $0x458] sm:$0xff]
        %v5459 = vld [vmem:[#allocation3 + $0x460] sm:$0xff]
        %v5460 = vld [vmem:[#allocation3 + $0x468] sm:$0xff]
        %v5461 = vld [vmem:[#allocation3 + $0x470] sm:$0xff]
        %v5462 = vld [vmem:[#allocation3 + $0x478] sm:$0xff]
        %v5463 = vld [vmem:[#allocation3 + $0x480] sm:$0xff]
        %v5464 = vld [vmem:[#allocation3 + $0x488] sm:$0xff]
        %v5465 = vld [vmem:[#allocation3 + $0x490] sm:$0xff]
        %v5466 = vld [vmem:[#allocation3 + $0x498] sm:$0xff]
        %v5467 = vld [vmem:[#allocation3 + $0x4a0] sm:$0xff]
        %v5468 = vld [vmem:[#allocation3 + $0x4a8] sm:$0xff]
        %v5469 = vld [vmem:[#allocation3 + $0x4b0] sm:$0xff]
        %v5470 = vld [vmem:[#allocation3 + $0x4b8] sm:$0xff]
        %v5471 = vld [vmem:[#allocation3 + $0x4c0] sm:$0xff]
        %v5472 = vld [vmem:[#allocation3 + $0x4c8] sm:$0xff]
        %v5473 = vld [vmem:[#allocation3 + $0x4d0] sm:$0xff]
        %v5474 = vld [vmem:[#allocation3 + $0x4d8] sm:$0xff]
        %v5475 = vld [vmem:[#allocation3 + $0x4e0] sm:$0xff]
        %v5476 = vld [vmem:[#allocation3 + $0x4e8] sm:$0xff]
        %v5477 = vld [vmem:[#allocation3 + $0x4f0] sm:$0xff]
        %v5478 = vld [vmem:[#allocation3 + $0x4f8] sm:$0xff]
        %v5479 = vld [vmem:[#allocation3 + $0x500] sm:$0xff]
        %v5480 = vld [vmem:[#allocation3 + $0x508] sm:$0xff]
        %v5481 = vld [vmem:[#allocation3 + $0x510] sm:$0xff]
        %v5482 = vld [vmem:[#allocation3 + $0x518] sm:$0xff]
        %v5483 = vld [vmem:[#allocation3 + $0x520] sm:$0xff]
        %v5484 = vld [vmem:[#allocation3 + $0x528] sm:$0xff]
        %v5485 = vld [vmem:[#allocation3 + $0x530] sm:$0xff]
        %v5486 = vld [vmem:[#allocation3 + $0x538] sm:$0xff]
        %v5487 = vld [vmem:[#allocation3 + $0x540] sm:$0xff]
        %v5488 = vld [vmem:[#allocation3 + $0x548] sm:$0xff]
        %v5489 = vld [vmem:[#allocation3 + $0x550] sm:$0xff]
        %v5490 = vld [vmem:[#allocation3 + $0x558] sm:$0xff]
        %v5491 = vld [vmem:[#allocation3 + $0x560] sm:$0xff]
        %v5492 = vld [vmem:[#allocation3 + $0x568] sm:$0xff]
        %v5493 = vld [vmem:[#allocation3 + $0x570] sm:$0xff]
        %v5494 = vld [vmem:[#allocation3 + $0x578] sm:$0xff]
        %v5495 = vld [vmem:[#allocation3 + $0x580] sm:$0xff]
        %v5496 = vld [vmem:[#allocation3 + $0x588] sm:$0xff]
        %v5497 = vld [vmem:[#allocation3 + $0x590] sm:$0xff]
        %v5498 = vld [vmem:[#allocation3 + $0x598] sm:$0xff]
        %v5499 = vld [vmem:[#allocation3 + $0x5a0] sm:$0xff]
        %v5500 = vld [vmem:[#allocation3 + $0x5a8] sm:$0xff]
        %v5501 = vld [vmem:[#allocation3 + $0x5b0] sm:$0xff]
        %v5502 = vld [vmem:[#allocation3 + $0x5b8] sm:$0xff]
        %v5503 = vld [vmem:[#allocation3 + $0x5c0] sm:$0xff]
        %v5504 = vld [vmem:[#allocation3 + $0x5c8] sm:$0xff]
        %v5505 = vld [vmem:[#allocation3 + $0x5d0] sm:$0xff]
        %v5506 = vld [vmem:[#allocation3 + $0x5d8] sm:$0xff]
        %v5507 = vld [vmem:[#allocation3 + $0x5e0] sm:$0xff]
        %v5508 = vld [vmem:[#allocation3 + $0x5e8] sm:$0xff]
        %v5509 = vld [vmem:[#allocation3 + $0x5f0] sm:$0xff]
        %v5510 = vld [vmem:[#allocation3 + $0x5f8] sm:$0xff]
        %v5511 = vld [vmem:[#allocation3 + $0x600] sm:$0xff]
        %v5512 = vld [vmem:[#allocation3 + $0x608] sm:$0xff]
        %v5513 = vld [vmem:[#allocation3 + $0x610] sm:$0xff]
        %v5514 = vld [vmem:[#allocation3 + $0x618] sm:$0xff]
        %v5515 = vld [vmem:[#allocation3 + $0x620] sm:$0xff]
        %v5516 = vld [vmem:[#allocation3 + $0x628] sm:$0xff]
        %v5517 = vld [vmem:[#allocation3 + $0x630] sm:$0xff]
        %v5518 = vld [vmem:[#allocation3 + $0x638] sm:$0xff]
        %v5519 = vld [vmem:[%s9] sm:$0xff]
        %5521 = vset.pattern.permute.xlu0 0
        %5522 = vperm.xlu0 %5521, %v5519
        %v5523 = vpop.permute.xlu0 %5522
        %vm5525 = vcmask 130048
        %v5527 = vsel %vm5525, %v5318, 0
        %5529 = vmatpush.msra.mxu0 %v5379
        %5530 = vmatpush.msra.mxu0 %v5375
        %5531 = vmatpush.msra.mxu0 %v5371
        %5532 = vmatpush.msra.mxu0 %v5367
        %5533 = vmatpush.msra.mxu0 %v5363
        %5534 = vmatpush.msra.mxu0 %v5359
        %5535 = vmatpush.msra.mxu0 %v5355
        %5536 = vmatpush.msra.mxu0 %v5351
        %5537 = vmatpush.msra.mxu0 %v5347
        %5538 = vmatpush.msra.mxu0 %v5343
        %5539 = vmatpush.msra.mxu0 %v5339
        %5540 = vmatpush.msra.mxu0 %v5335
        %5541 = vmatpush.msra.mxu0 %v5331
        %5542 = vmatpush.msra.mxu0 %v5327
        %5543 = vmatpush.msra.mxu0 %v5323
        %5544 = vmatpush.msra.mxu0 %v5319
        %5545 = vmatmul.f32.gmra.mxu0 %v5315
        %v5546 = vpop.f32.mrf.mxu0
        %v5547 = vadd.f32 %v5523, %v5546
        %5548 = vdwg.mxu0
        %5549 = vmatpush.msra.mxu0 %v5443
        %5550 = vmatpush.msra.mxu0 %v5439
        %5551 = vmatpush.msra.mxu0 %v5435
        %5552 = vmatpush.msra.mxu0 %v5431
        %5553 = vmatpush.msra.mxu0 %v5427
        %5554 = vmatpush.msra.mxu0 %v5423
        %5555 = vmatpush.msra.mxu0 %v5419
        %5556 = vmatpush.msra.mxu0 %v5415
        %5557 = vmatpush.msra.mxu0 %v5411
        %5558 = vmatpush.msra.mxu0 %v5407
        %5559 = vmatpush.msra.mxu0 %v5403
        %5560 = vmatpush.msra.mxu0 %v5399
        %5561 = vmatpush.msra.mxu0 %v5395
        %5562 = vmatpush.msra.mxu0 %v5391
        %5563 = vmatpush.msra.mxu0 %v5387
        %5564 = vmatpush.msra.mxu0 %v5383
        %5565 = vmatmul.f32.gmra.mxu0 %v5316
        %v5566 = vpop.f32.mrf.mxu0
        %v5567 = vadd.f32 %v5547, %v5566
        %5568 = vdwg.mxu0
        %5569 = vmatpush.msra.mxu0 %v5507
        %5570 = vmatpush.msra.mxu0 %v5503
        %5571 = vmatpush.msra.mxu0 %v5499
        %5572 = vmatpush.msra.mxu0 %v5495
        %5573 = vmatpush.msra.mxu0 %v5491
        %5574 = vmatpush.msra.mxu0 %v5487
        %5575 = vmatpush.msra.mxu0 %v5483
        %5576 = vmatpush.msra.mxu0 %v5479
        %5577 = vmatpush.msra.mxu0 %v5475
        %5578 = vmatpush.msra.mxu0 %v5471
        %5579 = vmatpush.msra.mxu0 %v5467
        %5580 = vmatpush.msra.mxu0 %v5463
        %5581 = vmatpush.msra.mxu0 %v5459
        %5582 = vmatpush.msra.mxu0 %v5455
        %5583 = vmatpush.msra.mxu0 %v5451
        %5584 = vmatpush.msra.mxu0 %v5447
        %5585 = vmatmul.f32.gmra.mxu0 %v5317
        %v5586 = vpop.f32.mrf.mxu0
        %v5587 = vadd.f32 %v5567, %v5586
        %5588 = vdwg.mxu0
        %5589 = vmatpush.msra.mxu0 0.0
        %5590 = vmatpush.msra.mxu0 0.0
        %5591 = vmatpush.msra.mxu0 0.0
        %5592 = vmatpush.msra.mxu0 0.0
        %5593 = vmatpush.msra.mxu0 0.0
        %5594 = vmatpush.msra.mxu0 0.0
        %5595 = vmatpush.msra.mxu0 0.0
        %5596 = vmatpush.msra.mxu0 0.0
        %5597 = vmatpush.msra.mxu0 0.0
        %5598 = vmatpush.msra.mxu0 0.0
        %5599 = vmatpush.msra.mxu0 0.0
        %5600 = vmatpush.msra.mxu0 0.0
        %5601 = vmatpush.msra.mxu0 0.0
        %5602 = vmatpush.msra.mxu0 0.0
        %5603 = vmatpush.msra.mxu0 %v5515
        %5604 = vmatpush.msra.mxu0 %v5511
        %5605 = vmatmul.f32.gmra.mxu0 %v5527
        %v5606 = vpop.f32.mrf.mxu0
        %v5607 = vadd.f32 %v5587, %v5606
        %5608 = vdwg.mxu0
        %5609 = vmatpush.msra.mxu0 %v5380
        %5610 = vmatpush.msra.mxu0 %v5376
        %5611 = vmatpush.msra.mxu0 %v5372
        %5612 = vmatpush.msra.mxu0 %v5368
        %5613 = vmatpush.msra.mxu0 %v5364
        %5614 = vmatpush.msra.mxu0 %v5360
        %5615 = vmatpush.msra.mxu0 %v5356
        %5616 = vmatpush.msra.mxu0 %v5352
        %5617 = vmatpush.msra.mxu0 %v5348
        %5618 = vmatpush.msra.mxu0 %v5344
        %5619 = vmatpush.msra.mxu0 %v5340
        %5620 = vmatpush.msra.mxu0 %v5336
        %5621 = vmatpush.msra.mxu0 %v5332
        %5622 = vmatpush.msra.mxu0 %v5328
        %5623 = vmatpush.msra.mxu0 %v5324
        %5624 = vmatpush.msra.mxu0 %v5320
        %5625 = vmatmul.f32.gmra.mxu0 %v5315
        %v5626 = vpop.f32.mrf.mxu0
        %v5627 = vadd.f32 %v5523, %v5626
        %5628 = vdwg.mxu0
        %5629 = vmatpush.msra.mxu0 %v5444
        %5630 = vmatpush.msra.mxu0 %v5440
        %5631 = vmatpush.msra.mxu0 %v5436
        %5632 = vmatpush.msra.mxu0 %v5432
        %5633 = vmatpush.msra.mxu0 %v5428
        %5634 = vmatpush.msra.mxu0 %v5424
        %5635 = vmatpush.msra.mxu0 %v5420
        %5636 = vmatpush.msra.mxu0 %v5416
        %5637 = vmatpush.msra.mxu0 %v5412
        %5638 = vmatpush.msra.mxu0 %v5408
        %5639 = vmatpush.msra.mxu0 %v5404
        %5640 = vmatpush.msra.mxu0 %v5400
        %5641 = vmatpush.msra.mxu0 %v5396
        %5642 = vmatpush.msra.mxu0 %v5392
        %5643 = vmatpush.msra.mxu0 %v5388
        %5644 = vmatpush.msra.mxu0 %v5384
        %5645 = vmatmul.f32.gmra.mxu0 %v5316
        %v5646 = vpop.f32.mrf.mxu0
        %v5647 = vadd.f32 %v5627, %v5646
        %5648 = vdwg.mxu0
        %5649 = vmatpush.msra.mxu0 %v5508
        %5650 = vmatpush.msra.mxu0 %v5504
        %5651 = vmatpush.msra.mxu0 %v5500
        %5652 = vmatpush.msra.mxu0 %v5496
        %5653 = vmatpush.msra.mxu0 %v5492
        %5654 = vmatpush.msra.mxu0 %v5488
        %5655 = vmatpush.msra.mxu0 %v5484
        %5656 = vmatpush.msra.mxu0 %v5480
        %5657 = vmatpush.msra.mxu0 %v5476
        %5658 = vmatpush.msra.mxu0 %v5472
        %5659 = vmatpush.msra.mxu0 %v5468
        %5660 = vmatpush.msra.mxu0 %v5464
        %5661 = vmatpush.msra.mxu0 %v5460
        %5662 = vmatpush.msra.mxu0 %v5456
        %5663 = vmatpush.msra.mxu0 %v5452
        %5664 = vmatpush.msra.mxu0 %v5448
        %5665 = vmatmul.f32.gmra.mxu0 %v5317
        %v5666 = vpop.f32.mrf.mxu0
        %v5667 = vadd.f32 %v5647, %v5666
        %5668 = vdwg.mxu0
        %5669 = vmatpush.msra.mxu0 0.0
        %5670 = vmatpush.msra.mxu0 0.0
        %5671 = vmatpush.msra.mxu0 0.0
        %5672 = vmatpush.msra.mxu0 0.0
        %5673 = vmatpush.msra.mxu0 0.0
        %5674 = vmatpush.msra.mxu0 0.0
        %5675 = vmatpush.msra.mxu0 0.0
        %5676 = vmatpush.msra.mxu0 0.0
        %5677 = vmatpush.msra.mxu0 0.0
        %5678 = vmatpush.msra.mxu0 0.0
        %5679 = vmatpush.msra.mxu0 0.0
        %5680 = vmatpush.msra.mxu0 0.0
        %5681 = vmatpush.msra.mxu0 0.0
        %5682 = vmatpush.msra.mxu0 0.0
        %5683 = vmatpush.msra.mxu0 %v5516
        %5684 = vmatpush.msra.mxu0 %v5512
        %5685 = vmatmul.f32.gmra.mxu0 %v5527
        %v5686 = vpop.f32.mrf.mxu0
        %v5687 = vadd.f32 %v5667, %v5686
        %5688 = vdwg.mxu0
        %5689 = vmatpush.msra.mxu0 %v5381
        %5690 = vmatpush.msra.mxu0 %v5377
        %5691 = vmatpush.msra.mxu0 %v5373
        %5692 = vmatpush.msra.mxu0 %v5369
        %5693 = vmatpush.msra.mxu0 %v5365
        %5694 = vmatpush.msra.mxu0 %v5361
        %5695 = vmatpush.msra.mxu0 %v5357
        %5696 = vmatpush.msra.mxu0 %v5353
        %5697 = vmatpush.msra.mxu0 %v5349
        %5698 = vmatpush.msra.mxu0 %v5345
        %5699 = vmatpush.msra.mxu0 %v5341
        %5700 = vmatpush.msra.mxu0 %v5337
        %5701 = vmatpush.msra.mxu0 %v5333
        %5702 = vmatpush.msra.mxu0 %v5329
        %5703 = vmatpush.msra.mxu0 %v5325
        %5704 = vmatpush.msra.mxu0 %v5321
        %5705 = vmatmul.f32.gmra.mxu0 %v5315
        %v5706 = vpop.f32.mrf.mxu0
        %v5707 = vadd.f32 %v5523, %v5706
        %5708 = vdwg.mxu0
        %5709 = vmatpush.msra.mxu0 %v5445
        %5710 = vmatpush.msra.mxu0 %v5441
        %5711 = vmatpush.msra.mxu0 %v5437
        %5712 = vmatpush.msra.mxu0 %v5433
        %5713 = vmatpush.msra.mxu0 %v5429
        %5714 = vmatpush.msra.mxu0 %v5425
        %5715 = vmatpush.msra.mxu0 %v5421
        %5716 = vmatpush.msra.mxu0 %v5417
        %5717 = vmatpush.msra.mxu0 %v5413
        %5718 = vmatpush.msra.mxu0 %v5409
        %5719 = vmatpush.msra.mxu0 %v5405
        %5720 = vmatpush.msra.mxu0 %v5401
        %5721 = vmatpush.msra.mxu0 %v5397
        %5722 = vmatpush.msra.mxu0 %v5393
        %5723 = vmatpush.msra.mxu0 %v5389
        %5724 = vmatpush.msra.mxu0 %v5385
        %5725 = vmatmul.f32.gmra.mxu0 %v5316
        %v5726 = vpop.f32.mrf.mxu0
        %v5727 = vadd.f32 %v5707, %v5726
        %5728 = vdwg.mxu0
        %5729 = vmatpush.msra.mxu0 %v5509
        %5730 = vmatpush.msra.mxu0 %v5505
        %5731 = vmatpush.msra.mxu0 %v5501
        %5732 = vmatpush.msra.mxu0 %v5497
        %5733 = vmatpush.msra.mxu0 %v5493
        %5734 = vmatpush.msra.mxu0 %v5489
        %5735 = vmatpush.msra.mxu0 %v5485
        %5736 = vmatpush.msra.mxu0 %v5481
        %5737 = vmatpush.msra.mxu0 %v5477
        %5738 = vmatpush.msra.mxu0 %v5473
        %5739 = vmatpush.msra.mxu0 %v5469
        %5740 = vmatpush.msra.mxu0 %v5465
        %5741 = vmatpush.msra.mxu0 %v5461
        %5742 = vmatpush.msra.mxu0 %v5457
        %5743 = vmatpush.msra.mxu0 %v5453
        %5744 = vmatpush.msra.mxu0 %v5449
        %5745 = vmatmul.f32.gmra.mxu0 %v5317
        %v5746 = vpop.f32.mrf.mxu0
        %v5747 = vadd.f32 %v5727, %v5746
        %5748 = vdwg.mxu0
        %5749 = vmatpush.msra.mxu0 0.0
        %5750 = vmatpush.msra.mxu0 0.0
        %5751 = vmatpush.msra.mxu0 0.0
        %5752 = vmatpush.msra.mxu0 0.0
        %5753 = vmatpush.msra.mxu0 0.0
        %5754 = vmatpush.msra.mxu0 0.0
        %5755 = vmatpush.msra.mxu0 0.0
        %5756 = vmatpush.msra.mxu0 0.0
        %5757 = vmatpush.msra.mxu0 0.0
        %5758 = vmatpush.msra.mxu0 0.0
        %5759 = vmatpush.msra.mxu0 0.0
        %5760 = vmatpush.msra.mxu0 0.0
        %5761 = vmatpush.msra.mxu0 0.0
        %5762 = vmatpush.msra.mxu0 0.0
        %5763 = vmatpush.msra.mxu0 %v5517
        %5764 = vmatpush.msra.mxu0 %v5513
        %5765 = vmatmul.f32.gmra.mxu0 %v5527
        %v5766 = vpop.f32.mrf.mxu0
        %v5767 = vadd.f32 %v5747, %v5766
        %5768 = vdwg.mxu0
        %5769 = vmatpush.msra.mxu0 %v5382
        %5770 = vmatpush.msra.mxu0 %v5378
        %5771 = vmatpush.msra.mxu0 %v5374
        %5772 = vmatpush.msra.mxu0 %v5370
        %5773 = vmatpush.msra.mxu0 %v5366
        %5774 = vmatpush.msra.mxu0 %v5362
        %5775 = vmatpush.msra.mxu0 %v5358
        %5776 = vmatpush.msra.mxu0 %v5354
        %5777 = vmatpush.msra.mxu0 %v5350
        %5778 = vmatpush.msra.mxu0 %v5346
        %5779 = vmatpush.msra.mxu0 %v5342
        %5780 = vmatpush.msra.mxu0 %v5338
        %5781 = vmatpush.msra.mxu0 %v5334
        %5782 = vmatpush.msra.mxu0 %v5330
        %5783 = vmatpush.msra.mxu0 %v5326
        %5784 = vmatpush.msra.mxu0 %v5322
        %5785 = vmatmul.f32.gmra.mxu0 %v5315
        %v5786 = vpop.f32.mrf.mxu0
        %v5787 = vadd.f32 %v5523, %v5786
        %5788 = vdwg.mxu0
        %5789 = vmatpush.msra.mxu0 %v5446
        %5790 = vmatpush.msra.mxu0 %v5442
        %5791 = vmatpush.msra.mxu0 %v5438
        %5792 = vmatpush.msra.mxu0 %v5434
        %5793 = vmatpush.msra.mxu0 %v5430
        %5794 = vmatpush.msra.mxu0 %v5426
        %5795 = vmatpush.msra.mxu0 %v5422
        %5796 = vmatpush.msra.mxu0 %v5418
        %5797 = vmatpush.msra.mxu0 %v5414
        %5798 = vmatpush.msra.mxu0 %v5410
        %5799 = vmatpush.msra.mxu0 %v5406
        %5800 = vmatpush.msra.mxu0 %v5402
        %5801 = vmatpush.msra.mxu0 %v5398
        %5802 = vmatpush.msra.mxu0 %v5394
        %5803 = vmatpush.msra.mxu0 %v5390
        %5804 = vmatpush.msra.mxu0 %v5386
        %5805 = vmatmul.f32.gmra.mxu0 %v5316
        %v5806 = vpop.f32.mrf.mxu0
        %v5807 = vadd.f32 %v5787, %v5806
        %5808 = vdwg.mxu0
        %5809 = vmatpush.msra.mxu0 %v5510
        %5810 = vmatpush.msra.mxu0 %v5506
        %5811 = vmatpush.msra.mxu0 %v5502
        %5812 = vmatpush.msra.mxu0 %v5498
        %5813 = vmatpush.msra.mxu0 %v5494
        %5814 = vmatpush.msra.mxu0 %v5490
        %5815 = vmatpush.msra.mxu0 %v5486
        %5816 = vmatpush.msra.mxu0 %v5482
        %5817 = vmatpush.msra.mxu0 %v5478
        %5818 = vmatpush.msra.mxu0 %v5474
        %5819 = vmatpush.msra.mxu0 %v5470
        %5820 = vmatpush.msra.mxu0 %v5466
        %5821 = vmatpush.msra.mxu0 %v5462
        %5822 = vmatpush.msra.mxu0 %v5458
        %5823 = vmatpush.msra.mxu0 %v5454
        %5824 = vmatpush.msra.mxu0 %v5450
        %5825 = vmatmul.f32.gmra.mxu0 %v5317
        %v5826 = vpop.f32.mrf.mxu0
        %v5827 = vadd.f32 %v5807, %v5826
        %5828 = vdwg.mxu0
        %5829 = vmatpush.msra.mxu0 0.0
        %5830 = vmatpush.msra.mxu0 0.0
        %5831 = vmatpush.msra.mxu0 0.0
        %5832 = vmatpush.msra.mxu0 0.0
        %5833 = vmatpush.msra.mxu0 0.0
        %5834 = vmatpush.msra.mxu0 0.0
        %5835 = vmatpush.msra.mxu0 0.0
        %5836 = vmatpush.msra.mxu0 0.0
        %5837 = vmatpush.msra.mxu0 0.0
        %5838 = vmatpush.msra.mxu0 0.0
        %5839 = vmatpush.msra.mxu0 0.0
        %5840 = vmatpush.msra.mxu0 0.0
        %5841 = vmatpush.msra.mxu0 0.0
        %5842 = vmatpush.msra.mxu0 0.0
        %5843 = vmatpush.msra.mxu0 %v5518
        %5844 = vmatpush.msra.mxu0 %v5514
        %5845 = vmatmul.f32.gmra.mxu0 %v5527
        %v5846 = vpop.f32.mrf.mxu0
        %v5847 = vadd.f32 %v5827, %v5846
        %5848 = vdwg.mxu0
        %v5849 = vmax.f32 %v5607, 0.0
        %v5850 = vmax.f32 %v5687, 0.0
        %v5851 = vmax.f32 %v5767, 0.0
        %v5852 = vmax.f32 %v5847, 0.0
        %5853 = vst [vmem:[%s396] sm:$0xff] %v5849
        %5854 = vst [vmem:[%s396 + $0x8] sm:$0xff] %v5850
        %5855 = vst [vmem:[%s396 + $0x10] sm:$0xff] %v5851
        %5856 = vst [vmem:[%s396 + $0x18] sm:$0xff] %v5852
        %s5857 = sand.u32 %s249, 1
        %s5858 = scalar_lea.sflag [#allocation6], %s5857
        %s5859 = sand.u32 %s249, 1
        %s5860 = smul.addr %s5859, 32
        %s5861 = scalar_lea.vmem [#allocation10], %s5860
        // Predicated region
        $region73: #{tpu_custom_call.1} parent=59 // pred_check
          %p5862 = pneg %p259
        $region74: #{tpu_custom_call.1} parent=59 // pred_check_branch
          %5864 = sbr.rel (%p5862) target = $region76
        $region75: #{tpu_custom_call.1} parent=59 // pred_region
          %5866 = vsyncadd %s5858, 0
          %s5867 = smul.addr %s26, 4
          %s5868 = smul.addr %s5867, 8
          %s5869 = scalar_lea.hbm %s10, %s5868
          %s5871 = sshll.u32 %s5861, 4
          %s5872 = int_to_ptr.vmem [resolvable:$true] %s5871
          %s5873 = sshll.u32 %s5869, 4
          %s5874 = int_to_ptr.hbm [resolvable:$true] %s5873
          %5876 = dma.vmem_to_hbm [thread:$0]  %s5872, 512, %s5874, %s5858
        $region76: #{tpu_custom_call.1} parent=59 // pred_fallthru
          _
      $region60: #{tpu_custom_call.1} parent=5 // pred_fallthru
        _
      %p5877 = scmp.le.s32.totalorder 2, %s21
      // Predicated region
      $region77: #{tpu_custom_call.1} parent=5 // pred_check
        %p5878 = pneg %p5877
      $region78: #{tpu_custom_call.1} parent=5 // pred_check_branch
        %5880 = sbr.rel (%p5878) target = $region80
      $region79: #{tpu_custom_call.1} parent=5 // pred_region
        %s5881 = ssub.s32 %s21, 2
        // Predicated region
        $region81: #{tpu_custom_call.1} parent=79 // pred_check
          %p5882 = pneg %p265
        $region82: #{tpu_custom_call.1} parent=79 // pred_check_branch
          %5884 = sbr.rel (%p5882) target = $region84
        $region83: #{tpu_custom_call.1} parent=79 // pred_region
          %s5885 = sand.u32 %s250, 1
          %s5886 = scalar_lea.sflag [#allocation6], %s5885
          %s5887 = sand.u32 %s250, 1
          %s5888 = smul.addr %s5887, 32
          %s5889 = scalar_lea.vmem [#allocation10], %s5888
          %5891 = dma.done %s5886, 512
        $region84: #{tpu_custom_call.1} parent=79 // pred_fallthru
          _
      $region80: #{tpu_custom_call.1} parent=5 // pred_fallthru
        _
    $region6: #{tpu_custom_call.1} parent=1 // loop_footer
      %s25 = sadd.s32 1, %s21
    $region7: #{tpu_custom_call.1} parent=1 // loop_footer_branch
      %20 = sbr.rel target = $region3
    $region8: #{tpu_custom_call.1} parent=1 // loop_exit
      _
    %5892 = vsyncpa [#allocation5], 1
    %s5893 = scalar_lea.sflag [#allocation5], 1
    %5894 = vsyncpa %s5893, 1
    %5895 = vsyncpa [#allocation8], 1
    %5896 = vsyncpa [#allocation6], 1
    %s5897 = scalar_lea.sflag [#allocation6], 1
    %5898 = vsyncpa %s5897, 1

</llo_original>
